<compile_context>
chip_gen: v7x
topology: tpu7x:2x2x1
jax: 0.10.0
libtpu: 0.0.40
codegen_flags: <defaults>
</compile_context>

<pallas_src>
import functools

import jax
import jax.numpy as jnp
from jax import lax
from jax.experimental import pallas as pl
from jax.experimental.pallas import tpu as pltpu


NB_CAP = 16                      # batch elements per conv grid step (16-32 on v7x,
                                 # could be raised to 32-64 on v5e/v6e)
MLP_TN_CAP = 256                 # batch tile for the fused Linear->Linear kernel
VMEM_LIMIT = 48 * 1024 * 1024    # above 16/32 MiB scoped defaults, < 64 MiB (v7x)


def _pick_batch_block(n, cap=NB_CAP):
    """Batch block + padded batch size (never a degenerate Nb=1 for n>1)."""
    nb = min(cap, n)
    npad = pl.cdiv(n, nb) * nb
    return nb, npad


# ----------------------------------------------------------------------------
# Fused Conv2d(5x5, stride 1, pad 2) + MaxPool2d(2)
#
# Host builds a full 5x5 im2col split over the 2x2-pool parity:
#   x_{sh,sw}[n, i*W2+q, (ky*5+kx)*Cin_p + c] = xpad[n, 2i+sh+ky, 2q+sw+kx, c]
# so the kernel does 4 deep dots (K = 25*Cin_p) and the whole pool is an
# elementwise max of the 4 results.  Every in-kernel reshape is a pure
# major-dim reinterpretation (P is a multiple of 16, lanes unchanged).
# ----------------------------------------------------------------------------
def _conv_pool_kernel(x00_ref, x01_ref, x10_ref, x11_ref, w_ref, b_ref, o_ref,
                      *, Nb, P, K, Cout):
    M = Nb * P
    w = w_ref[...]
    y = jnp.dot(x00_ref[...].reshape(M, K), w, preferred_element_type=jnp.float32)
    for xr in (x01_ref, x10_ref, x11_ref):
        d = jnp.dot(xr[...].reshape(M, K), w, preferred_element_type=jnp.float32)
        y = jnp.maximum(y, d)                      # 2x2 max-pool (parity split)
    y = y + b_ref[...]                             # bias after max == before
    o_ref[...] = y.reshape(Nb, P, Cout).astype(o_ref.dtype)


def conv5x5_pool(x_nhwc, wt, b, nb):
    """Fused 'same' 5x5 conv + 2x2 maxpool.  NHWC in, bf16 NHWC (pooled) out.

    wt: prepared (25*Cin_p, Cout) bf16 weight;  b: (1, Cout) f32 bias.
    """
    N, H, W, Cin = x_nhwc.shape
    K, Cout = wt.shape
    Cin_p = K // 25
    pad_c = Cin_p - Cin
    H2, W2 = H // 2, W // 2
    P = H2 * W2

    xp = jnp.pad(x_nhwc, ((0, 0), (2, 2), (2, 2), (0, pad_c))).astype(jnp.bfloat16)

    def gather(sh, sw):
        slabs = [xp[:, sh + ky:sh + ky + H:2, sw + kx:sw + kx + W:2, :]
                 for ky in range(5) for kx in range(5)]
        return jnp.concatenate(slabs, axis=-1).reshape(N, P, K)

    xs = [gather(0, 0), gather(0, 1), gather(1, 0), gather(1, 1)]

    kernel = functools.partial(_conv_pool_kernel, Nb=nb, P=P, K=K, Cout=Cout)
    out = pl.pallas_call(
        kernel,
        out_shape=jax.ShapeDtypeStruct((N, P, Cout), jnp.bfloat16),
        grid=(N // nb,),
        in_specs=[pl.BlockSpec((nb, P, K), lambda n: (n, 0, 0)) for _ in range(4)]
                 + [pl.BlockSpec((K, Cout), lambda n: (0, 0)),
                    pl.BlockSpec((1, Cout), lambda n: (0, 0))],
        out_specs=pl.BlockSpec((nb, P, Cout), lambda n: (n, 0, 0)),
        compiler_params=pltpu.CompilerParams(
            dimension_semantics=("parallel",),
            vmem_limit_bytes=VMEM_LIMIT),
    )(*xs, wt, b)
    return out.reshape(N, H2, W2, Cout)


# ----------------------------------------------------------------------------
# Linear(1024 -> 64) -> Linear(64 -> 10), fused, tiled over batch
# ----------------------------------------------------------------------------
def _mlp_kernel(x_ref, w1_ref, b1_ref, w2_ref, b2_ref, o_ref):
    h = jnp.dot(x_ref[...], w1_ref[...],
                preferred_element_type=jnp.float32) + b1_ref[...]
    o_ref[...] = jnp.dot(h, w2_ref[...],
                         preferred_element_type=jnp.float32) + b2_ref[...]


def mlp(x, w1, b1, w2, b2):
    """x: (N, D) activations; w1: (D, F1) bf16; w2: (F1, F2) f32."""
    N, D = x.shape
    F1 = w1.shape[1]
    F2 = w2.shape[1]
    tn = min(MLP_TN_CAP, pl.next_power_of_2(N))
    npad = pl.cdiv(N, tn) * tn
    xp = x.astype(jnp.bfloat16)
    if npad != N:
        xp = jnp.pad(xp, ((0, npad - N), (0, 0)))
    out = pl.pallas_call(
        _mlp_kernel,
        out_shape=jax.ShapeDtypeStruct((npad, F2), jnp.float32),
        grid=(npad // tn,),
        in_specs=[pl.BlockSpec((tn, D), lambda i: (i, 0)),
                  pl.BlockSpec((D, F1), lambda i: (0, 0)),
                  pl.BlockSpec((1, F1), lambda i: (0, 0)),
                  pl.BlockSpec((F1, F2), lambda i: (0, 0)),
                  pl.BlockSpec((1, F2), lambda i: (0, 0))],
        out_specs=pl.BlockSpec((tn, F2), lambda i: (i, 0)),
        compiler_params=pltpu.CompilerParams(
            dimension_semantics=("parallel",),
            vmem_limit_bytes=VMEM_LIMIT),
    )(xp, w1, b1, w2, b2)
    return out[:N]


# ----------------------------------------------------------------------------
# One-time parameter preparation (hoisted out of the jitted forward)
# ----------------------------------------------------------------------------
def prepare_params(p):
    def conv_w(w):
        cin = w.shape[1]
        pad_c = (-cin) % 8
        wt = jnp.transpose(w, (2, 3, 1, 0))                 # (5, 5, Cin, Cout)
        wt = jnp.pad(wt, ((0, 0), (0, 0), (0, pad_c), (0, 0)))
        return wt.reshape(25 * (cin + pad_c), w.shape[0]).astype(jnp.bfloat16)

    # Fold PyTorch's NCHW Flatten order into fc1's weight (NHWC feature order).
    cout3 = p["w3"].shape[0]
    hw = p["fc1_w"].shape[1] // cout3
    side = int(round(hw ** 0.5))
    fc1_w = (p["fc1_w"].reshape(-1, cout3, side, side)      # (64, C, H, W)
             .transpose(0, 2, 3, 1)                         # (64, H, W, C)
             .reshape(p["fc1_w"].shape[0], -1).T)           # (1024, 64) NHWC order

    return {
        "cw1": conv_w(p["w1"]), "cb1": p["b1"].reshape(1, -1).astype(jnp.float32),
        "cw2": conv_w(p["w2"]), "cb2": p["b2"].reshape(1, -1).astype(jnp.float32),
        "cw3": conv_w(p["w3"]), "cb3": p["b3"].reshape(1, -1).astype(jnp.float32),
        "fc1_w": fc1_w.astype(jnp.bfloat16),
        "fc1_b": p["fc1_b"].reshape(1, -1).astype(jnp.float32),
        "fc2_w": p["fc2_w"].T.astype(jnp.float32),
        "fc2_b": p["fc2_b"].reshape(1, -1).astype(jnp.float32),
    }


# ----------------------------------------------------------------------------
# Full forward pass (matches the PyTorch Sequential)
# ----------------------------------------------------------------------------
@jax.jit
def yuzhao_forward(x_nchw, prep):
    N = x_nchw.shape[0]
    nb, npad = _pick_batch_block(N)
    x = jnp.transpose(x_nchw, (0, 2, 3, 1)).astype(jnp.float32)   # NCHW -> NHWC
    if npad != N:
        x = jnp.pad(x, ((0, npad - N), (0, 0), (0, 0), (0, 0)))
    x = conv5x5_pool(x, prep["cw1"], prep["cb1"], nb)   # (Np, 16, 16, 32) bf16
    x = conv5x5_pool(x, prep["cw2"], prep["cb2"], nb)   # (Np,  8,  8, 32) bf16
    x = conv5x5_pool(x, prep["cw3"], prep["cb3"], nb)   # (Np,  4,  4, 64) bf16
    feat = x.reshape(npad, -1)                          # NHWC flatten order, free
    out = mlp(feat, prep["fc1_w"], prep["fc1_b"],
              prep["fc2_w"], prep["fc2_b"])             # (Np, 10)
    return out[:N]


def init_params(key):
    ks = jax.random.split(key, 10)

    def nrm(k, shape, scale=0.05):
        return scale * jax.random.normal(k, shape, jnp.float32)

    return {
        "w1": nrm(ks[0], (32, 3, 5, 5)),  "b1": nrm(ks[1], (32,)),
        "w2": nrm(ks[2], (32, 32, 5, 5)), "b2": nrm(ks[3], (32,)),
        "w3": nrm(ks[4], (64, 32, 5, 5)), "b3": nrm(ks[5], (64,)),
        "fc1_w": nrm(ks[6], (64, 1024)),  "fc1_b": nrm(ks[7], (64,)),
        "fc2_w": nrm(ks[8], (10, 64)),    "fc2_b": nrm(ks[9], (10,)),
    }


def ref_forward(x_nchw, p):
    """Pure-JAX (XLA) reference for correctness checking."""
    def conv(x, w, b):
        y = lax.conv_general_dilated(
            x, w, (1, 1), ((2, 2), (2, 2)),
            dimension_numbers=("NCHW", "OIHW", "NCHW"),
            precision=lax.Precision.HIGHEST)
        return y + b.reshape(1, -1, 1, 1)

    def pool(x):
        return lax.reduce_window(x, -jnp.inf, lax.max,
                                 (1, 1, 2, 2), (1, 1, 2, 2), "VALID")

    x = pool(conv(x_nchw, p["w1"], p["b1"]))
    x = pool(conv(x, p["w2"], p["b2"]))
    x = pool(conv(x, p["w3"], p["b3"]))
    x = x.reshape(x.shape[0], -1)
    x = x @ p["fc1_w"].T + p["fc1_b"]
    return x @ p["fc2_w"].T + p["fc2_b"]


if __name__ == "__main__":
    key = jax.random.PRNGKey(0)
    kx, kp = jax.random.split(key)
    x = jax.random.normal(kx, (2, 3, 32, 32), jnp.float32)   # NCHW input
    params = init_params(kp)
    prep = prepare_params(params)

    out = jax.block_until_ready(yuzhao_forward(x, prep))
    assert out.shape == (2, 10), out.shape

    ref = ref_forward(x, params)
    max_diff = float(jnp.max(jnp.abs(out - ref)))
    # All convs + fc1 run in bf16 with fp32 accumulation and bf16 intermediate
    # activations -> tolerance absorbs the intentional quantization.
    assert jnp.allclose(out, ref, rtol=5e-2, atol=5e-2), f"max abs diff {max_diff}"

    print("KERNEL_OK")
</pallas_src>

<mosaic_0001>
module attributes {stable_mosaic.version = 11 : i64} {
  func.func @_conv_pool_kernel(%arg0: i32, %arg1: memref<2x256x200xbf16, #tpu.memory_space<vmem>>, %arg2: memref<2x256x200xbf16, #tpu.memory_space<vmem>>, %arg3: memref<2x256x200xbf16, #tpu.memory_space<vmem>>, %arg4: memref<2x256x200xbf16, #tpu.memory_space<vmem>>, %arg5: memref<200x32xbf16, #tpu.memory_space<vmem>>, %arg6: memref<1x32xf32, #tpu.memory_space<vmem>>, %arg7: memref<2x256x32xbf16, #tpu.memory_space<vmem>>) attributes {dimension_semantics = [#tpu.dimension_semantics<parallel>], iteration_bounds = array<i64: 1>, scalar_prefetch = 0 : i64, scratch_operands = 0 : i64, tpu.core_type = #tpu.core_type<tc>, window_params = [{transform_indices = @transform_0, window_bounds = array<i64: 2, 256, 200>}, {transform_indices = @transform_1, window_bounds = array<i64: 2, 256, 200>}, {transform_indices = @transform_2, window_bounds = array<i64: 2, 256, 200>}, {transform_indices = @transform_3, window_bounds = array<i64: 2, 256, 200>}, {pipeline_mode = #tpu.pipeline_mode<synchronous>, transform_indices = @transform_4, window_bounds = array<i64: 200, 32>}, {pipeline_mode = #tpu.pipeline_mode<synchronous>, transform_indices = @transform_5, window_bounds = array<i64: 1, 32>}, {transform_indices = @transform_6, window_bounds = array<i64: 2, 256, 32>}]} {
    %c0 = arith.constant 0 : index
    %c0_0 = arith.constant 0 : index
    %0 = vector.load %arg5[%c0, %c0_0] : memref<200x32xbf16, #tpu.memory_space<vmem>>, vector<200x32xbf16>
    %c0_1 = arith.constant 0 : index
    %c0_2 = arith.constant 0 : index
    %c0_3 = arith.constant 0 : index
    %1 = vector.load %arg1[%c0_1, %c0_2, %c0_3] : memref<2x256x200xbf16, #tpu.memory_space<vmem>>, vector<2x256x200xbf16>
    %2 = vector.shape_cast %1 : vector<2x256x200xbf16> to vector<512x200xbf16>
    %cst = arith.constant dense<0.000000e+00> : vector<512x32xf32>
    %3 = tpu.matmul %2, %0, %cst {dimension_numbers = #tpu.dot_dimension_numbers<[1], [0], [0], [1], [0, 0, 1, 1], [], []>} : vector<512x200xbf16>, vector<200x32xbf16>, vector<512x32xf32> -> vector<512x32xf32>
    %c0_4 = arith.constant 0 : index
    %c0_5 = arith.constant 0 : index
    %c0_6 = arith.constant 0 : index
    %4 = vector.load %arg2[%c0_4, %c0_5, %c0_6] : memref<2x256x200xbf16, #tpu.memory_space<vmem>>, vector<2x256x200xbf16>
    %5 = vector.shape_cast %4 : vector<2x256x200xbf16> to vector<512x200xbf16>
    %cst_7 = arith.constant dense<0.000000e+00> : vector<512x32xf32>
    %6 = tpu.matmul %5, %0, %cst_7 {dimension_numbers = #tpu.dot_dimension_numbers<[1], [0], [0], [1], [0, 0, 1, 1], [], []>} : vector<512x200xbf16>, vector<200x32xbf16>, vector<512x32xf32> -> vector<512x32xf32>
    %7 = arith.maximumf %3, %6 : vector<512x32xf32>
    %c0_8 = arith.constant 0 : index
    %c0_9 = arith.constant 0 : index
    %c0_10 = arith.constant 0 : index
    %8 = vector.load %arg3[%c0_8, %c0_9, %c0_10] : memref<2x256x200xbf16, #tpu.memory_space<vmem>>, vector<2x256x200xbf16>
    %9 = vector.shape_cast %8 : vector<2x256x200xbf16> to vector<512x200xbf16>
    %cst_11 = arith.constant dense<0.000000e+00> : vector<512x32xf32>
    %10 = tpu.matmul %9, %0, %cst_11 {dimension_numbers = #tpu.dot_dimension_numbers<[1], [0], [0], [1], [0, 0, 1, 1], [], []>} : vector<512x200xbf16>, vector<200x32xbf16>, vector<512x32xf32> -> vector<512x32xf32>
    %11 = arith.maximumf %7, %10 : vector<512x32xf32>
    %c0_12 = arith.constant 0 : index
    %c0_13 = arith.constant 0 : index
    %c0_14 = arith.constant 0 : index
    %12 = vector.load %arg4[%c0_12, %c0_13, %c0_14] : memref<2x256x200xbf16, #tpu.memory_space<vmem>>, vector<2x256x200xbf16>
    %13 = vector.shape_cast %12 : vector<2x256x200xbf16> to vector<512x200xbf16>
    %cst_15 = arith.constant dense<0.000000e+00> : vector<512x32xf32>
    %14 = tpu.matmul %13, %0, %cst_15 {dimension_numbers = #tpu.dot_dimension_numbers<[1], [0], [0], [1], [0, 0, 1, 1], [], []>} : vector<512x200xbf16>, vector<200x32xbf16>, vector<512x32xf32> -> vector<512x32xf32>
    %15 = arith.maximumf %11, %14 : vector<512x32xf32>
    %c0_16 = arith.constant 0 : index
    %c0_17 = arith.constant 0 : index
    %16 = vector.load %arg6[%c0_16, %c0_17] : memref<1x32xf32, #tpu.memory_space<vmem>>, vector<1x32xf32>
    %17 = vector.broadcast %16 : vector<1x32xf32> to vector<512x32xf32>
    %18 = arith.addf %15, %17 : vector<512x32xf32>
    %19 = vector.shape_cast %18 : vector<512x32xf32> to vector<2x256x32xf32>
    %20 = arith.truncf %19 : vector<2x256x32xf32> to vector<2x256x32xbf16>
    %c0_18 = arith.constant 0 : index
    %c0_19 = arith.constant 0 : index
    %c0_20 = arith.constant 0 : index
    %21 = vector.load %arg7[%c0_18, %c0_19, %c0_20] : memref<2x256x32xbf16, #tpu.memory_space<vmem>>, vector<2x256x32xbf16>
    tpu.vector_store %arg7[%c0_18, %c0_19, %c0_20], %20 {strides = array<i32>} : memref<2x256x32xbf16, #tpu.memory_space<vmem>>, vector<2x256x32xbf16>,
    return
  }
  func.func @transform_0(%arg0: i32) -> (i32, i32, i32) {
    %c0_i32 = arith.constant 0 : i32
    %c0_i32_0 = arith.constant 0 : i32
    %c0_i32_1 = arith.constant 0 : i32
    return %arg0, %c0_i32, %c0_i32_0 : i32, i32, i32
  }
  func.func @transform_1(%arg0: i32) -> (i32, i32, i32) {
    %c0_i32 = arith.constant 0 : i32
    %c0_i32_0 = arith.constant 0 : i32
    %c0_i32_1 = arith.constant 0 : i32
    return %arg0, %c0_i32, %c0_i32_0 : i32, i32, i32
  }
  func.func @transform_2(%arg0: i32) -> (i32, i32, i32) {
    %c0_i32 = arith.constant 0 : i32
    %c0_i32_0 = arith.constant 0 : i32
    %c0_i32_1 = arith.constant 0 : i32
    return %arg0, %c0_i32, %c0_i32_0 : i32, i32, i32
  }
  func.func @transform_3(%arg0: i32) -> (i32, i32, i32) {
    %c0_i32 = arith.constant 0 : i32
    %c0_i32_0 = arith.constant 0 : i32
    %c0_i32_1 = arith.constant 0 : i32
    return %arg0, %c0_i32, %c0_i32_0 : i32, i32, i32
  }
  func.func @transform_4(%arg0: i32) -> (i32, i32) {
    %c0_i32 = arith.constant 0 : i32
    %c0_i32_0 = arith.constant 0 : i32
    %c0_i32_1 = arith.constant 0 : i32
    return %c0_i32, %c0_i32_0 : i32, i32
  }
  func.func @transform_5(%arg0: i32) -> (i32, i32) {
    %c0_i32 = arith.constant 0 : i32
    %c0_i32_0 = arith.constant 0 : i32
    %c0_i32_1 = arith.constant 0 : i32
    return %c0_i32, %c0_i32_0 : i32, i32
  }
  func.func @transform_6(%arg0: i32) -> (i32, i32, i32) {
    %c0_i32 = arith.constant 0 : i32
    %c0_i32_0 = arith.constant 0 : i32
    %c0_i32_1 = arith.constant 0 : i32
    return %arg0, %c0_i32, %c0_i32_0 : i32, i32, i32
  }
}

module attributes {stable_mosaic.version = 11 : i64} {
  func.func @_conv_pool_kernel(%arg0: i32, %arg1: memref<2x64x800xbf16, #tpu.memory_space<vmem>>, %arg2: memref<2x64x800xbf16, #tpu.memory_space<vmem>>, %arg3: memref<2x64x800xbf16, #tpu.memory_space<vmem>>, %arg4: memref<2x64x800xbf16, #tpu.memory_space<vmem>>, %arg5: memref<800x32xbf16, #tpu.memory_space<vmem>>, %arg6: memref<1x32xf32, #tpu.memory_space<vmem>>, %arg7: memref<2x64x32xbf16, #tpu.memory_space<vmem>>) attributes {dimension_semantics = [#tpu.dimension_semantics<parallel>], iteration_bounds = array<i64: 1>, scalar_prefetch = 0 : i64, scratch_operands = 0 : i64, tpu.core_type = #tpu.core_type<tc>, window_params = [{transform_indices = @transform_0, window_bounds = array<i64: 2, 64, 800>}, {transform_indices = @transform_1, window_bounds = array<i64: 2, 64, 800>}, {transform_indices = @transform_2, window_bounds = array<i64: 2, 64, 800>}, {transform_indices = @transform_3, window_bounds = array<i64: 2, 64, 800>}, {pipeline_mode = #tpu.pipeline_mode<synchronous>, transform_indices = @transform_4, window_bounds = array<i64: 800, 32>}, {pipeline_mode = #tpu.pipeline_mode<synchronous>, transform_indices = @transform_5, window_bounds = array<i64: 1, 32>}, {transform_indices = @transform_6, window_bounds = array<i64: 2, 64, 32>}]} {
    %c0 = arith.constant 0 : index
    %c0_0 = arith.constant 0 : index
    %0 = vector.load %arg5[%c0, %c0_0] : memref<800x32xbf16, #tpu.memory_space<vmem>>, vector<800x32xbf16>
    %c0_1 = arith.constant 0 : index
    %c0_2 = arith.constant 0 : index
    %c0_3 = arith.constant 0 : index
    %1 = vector.load %arg1[%c0_1, %c0_2, %c0_3] : memref<2x64x800xbf16, #tpu.memory_space<vmem>>, vector<2x64x800xbf16>
    %2 = vector.shape_cast %1 : vector<2x64x800xbf16> to vector<128x800xbf16>
    %cst = arith.constant dense<0.000000e+00> : vector<128x32xf32>
    %3 = tpu.matmul %2, %0, %cst {dimension_numbers = #tpu.dot_dimension_numbers<[1], [0], [0], [1], [0, 0, 1, 1], [], []>} : vector<128x800xbf16>, vector<800x32xbf16>, vector<128x32xf32> -> vector<128x32xf32>
    %c0_4 = arith.constant 0 : index
    %c0_5 = arith.constant 0 : index
    %c0_6 = arith.constant 0 : index
    %4 = vector.load %arg2[%c0_4, %c0_5, %c0_6] : memref<2x64x800xbf16, #tpu.memory_space<vmem>>, vector<2x64x800xbf16>
    %5 = vector.shape_cast %4 : vector<2x64x800xbf16> to vector<128x800xbf16>
    %cst_7 = arith.constant dense<0.000000e+00> : vector<128x32xf32>
    %6 = tpu.matmul %5, %0, %cst_7 {dimension_numbers = #tpu.dot_dimension_numbers<[1], [0], [0], [1], [0, 0, 1, 1], [], []>} : vector<128x800xbf16>, vector<800x32xbf16>, vector<128x32xf32> -> vector<128x32xf32>
    %7 = arith.maximumf %3, %6 : vector<128x32xf32>
    %c0_8 = arith.constant 0 : index
    %c0_9 = arith.constant 0 : index
    %c0_10 = arith.constant 0 : index
    %8 = vector.load %arg3[%c0_8, %c0_9, %c0_10] : memref<2x64x800xbf16, #tpu.memory_space<vmem>>, vector<2x64x800xbf16>
    %9 = vector.shape_cast %8 : vector<2x64x800xbf16> to vector<128x800xbf16>
    %cst_11 = arith.constant dense<0.000000e+00> : vector<128x32xf32>
    %10 = tpu.matmul %9, %0, %cst_11 {dimension_numbers = #tpu.dot_dimension_numbers<[1], [0], [0], [1], [0, 0, 1, 1], [], []>} : vector<128x800xbf16>, vector<800x32xbf16>, vector<128x32xf32> -> vector<128x32xf32>
    %11 = arith.maximumf %7, %10 : vector<128x32xf32>
    %c0_12 = arith.constant 0 : index
    %c0_13 = arith.constant 0 : index
    %c0_14 = arith.constant 0 : index
    %12 = vector.load %arg4[%c0_12, %c0_13, %c0_14] : memref<2x64x800xbf16, #tpu.memory_space<vmem>>, vector<2x64x800xbf16>
    %13 = vector.shape_cast %12 : vector<2x64x800xbf16> to vector<128x800xbf16>
    %cst_15 = arith.constant dense<0.000000e+00> : vector<128x32xf32>
    %14 = tpu.matmul %13, %0, %cst_15 {dimension_numbers = #tpu.dot_dimension_numbers<[1], [0], [0], [1], [0, 0, 1, 1], [], []>} : vector<128x800xbf16>, vector<800x32xbf16>, vector<128x32xf32> -> vector<128x32xf32>
    %15 = arith.maximumf %11, %14 : vector<128x32xf32>
    %c0_16 = arith.constant 0 : index
    %c0_17 = arith.constant 0 : index
    %16 = vector.load %arg6[%c0_16, %c0_17] : memref<1x32xf32, #tpu.memory_space<vmem>>, vector<1x32xf32>
    %17 = vector.broadcast %16 : vector<1x32xf32> to vector<128x32xf32>
    %18 = arith.addf %15, %17 : vector<128x32xf32>
    %19 = vector.shape_cast %18 : vector<128x32xf32> to vector<2x64x32xf32>
    %20 = arith.truncf %19 : vector<2x64x32xf32> to vector<2x64x32xbf16>
    %c0_18 = arith.constant 0 : index
    %c0_19 = arith.constant 0 : index
    %c0_20 = arith.constant 0 : index
    %21 = vector.load %arg7[%c0_18, %c0_19, %c0_20] : memref<2x64x32xbf16, #tpu.memory_space<vmem>>, vector<2x64x32xbf16>
    tpu.vector_store %arg7[%c0_18, %c0_19, %c0_20], %20 {strides = array<i32>} : memref<2x64x32xbf16, #tpu.memory_space<vmem>>, vector<2x64x32xbf16>,
    return
  }
  func.func @transform_0(%arg0: i32) -> (i32, i32, i32) {
    %c0_i32 = arith.constant 0 : i32
    %c0_i32_0 = arith.constant 0 : i32
    %c0_i32_1 = arith.constant 0 : i32
    return %arg0, %c0_i32, %c0_i32_0 : i32, i32, i32
  }
  func.func @transform_1(%arg0: i32) -> (i32, i32, i32) {
    %c0_i32 = arith.constant 0 : i32
    %c0_i32_0 = arith.constant 0 : i32
    %c0_i32_1 = arith.constant 0 : i32
    return %arg0, %c0_i32, %c0_i32_0 : i32, i32, i32
  }
  func.func @transform_2(%arg0: i32) -> (i32, i32, i32) {
    %c0_i32 = arith.constant 0 : i32
    %c0_i32_0 = arith.constant 0 : i32
    %c0_i32_1 = arith.constant 0 : i32
    return %arg0, %c0_i32, %c0_i32_0 : i32, i32, i32
  }
  func.func @transform_3(%arg0: i32) -> (i32, i32, i32) {
    %c0_i32 = arith.constant 0 : i32
    %c0_i32_0 = arith.constant 0 : i32
    %c0_i32_1 = arith.constant 0 : i32
    return %arg0, %c0_i32, %c0_i32_0 : i32, i32, i32
  }
  func.func @transform_4(%arg0: i32) -> (i32, i32) {
    %c0_i32 = arith.constant 0 : i32
    %c0_i32_0 = arith.constant 0 : i32
    %c0_i32_1 = arith.constant 0 : i32
    return %c0_i32, %c0_i32_0 : i32, i32
  }
  func.func @transform_5(%arg0: i32) -> (i32, i32) {
    %c0_i32 = arith.constant 0 : i32
    %c0_i32_0 = arith.constant 0 : i32
    %c0_i32_1 = arith.constant 0 : i32
    return %c0_i32, %c0_i32_0 : i32, i32
  }
  func.func @transform_6(%arg0: i32) -> (i32, i32, i32) {
    %c0_i32 = arith.constant 0 : i32
    %c0_i32_0 = arith.constant 0 : i32
    %c0_i32_1 = arith.constant 0 : i32
    return %arg0, %c0_i32, %c0_i32_0 : i32, i32, i32
  }
}

module attributes {stable_mosaic.version = 11 : i64} {
  func.func @_conv_pool_kernel(%arg0: i32, %arg1: memref<2x16x800xbf16, #tpu.memory_space<vmem>>, %arg2: memref<2x16x800xbf16, #tpu.memory_space<vmem>>, %arg3: memref<2x16x800xbf16, #tpu.memory_space<vmem>>, %arg4: memref<2x16x800xbf16, #tpu.memory_space<vmem>>, %arg5: memref<800x64xbf16, #tpu.memory_space<vmem>>, %arg6: memref<1x64xf32, #tpu.memory_space<vmem>>, %arg7: memref<2x16x64xbf16, #tpu.memory_space<vmem>>) attributes {dimension_semantics = [#tpu.dimension_semantics<parallel>], iteration_bounds = array<i64: 1>, scalar_prefetch = 0 : i64, scratch_operands = 0 : i64, tpu.core_type = #tpu.core_type<tc>, window_params = [{transform_indices = @transform_0, window_bounds = array<i64: 2, 16, 800>}, {transform_indices = @transform_1, window_bounds = array<i64: 2, 16, 800>}, {transform_indices = @transform_2, window_bounds = array<i64: 2, 16, 800>}, {transform_indices = @transform_3, window_bounds = array<i64: 2, 16, 800>}, {pipeline_mode = #tpu.pipeline_mode<synchronous>, transform_indices = @transform_4, window_bounds = array<i64: 800, 64>}, {pipeline_mode = #tpu.pipeline_mode<synchronous>, transform_indices = @transform_5, window_bounds = array<i64: 1, 64>}, {transform_indices = @transform_6, window_bounds = array<i64: 2, 16, 64>}]} {
    %c0 = arith.constant 0 : index
    %c0_0 = arith.constant 0 : index
    %0 = vector.load %arg5[%c0, %c0_0] : memref<800x64xbf16, #tpu.memory_space<vmem>>, vector<800x64xbf16>
    %c0_1 = arith.constant 0 : index
    %c0_2 = arith.constant 0 : index
    %c0_3 = arith.constant 0 : index
    %1 = vector.load %arg1[%c0_1, %c0_2, %c0_3] : memref<2x16x800xbf16, #tpu.memory_space<vmem>>, vector<2x16x800xbf16>
    %2 = vector.shape_cast %1 : vector<2x16x800xbf16> to vector<32x800xbf16>
    %cst = arith.constant dense<0.000000e+00> : vector<32x64xf32>
    %3 = tpu.matmul %2, %0, %cst {dimension_numbers = #tpu.dot_dimension_numbers<[1], [0], [0], [1], [0, 0, 1, 1], [], []>} : vector<32x800xbf16>, vector<800x64xbf16>, vector<32x64xf32> -> vector<32x64xf32>
    %c0_4 = arith.constant 0 : index
    %c0_5 = arith.constant 0 : index
    %c0_6 = arith.constant 0 : index
    %4 = vector.load %arg2[%c0_4, %c0_5, %c0_6] : memref<2x16x800xbf16, #tpu.memory_space<vmem>>, vector<2x16x800xbf16>
    %5 = vector.shape_cast %4 : vector<2x16x800xbf16> to vector<32x800xbf16>
    %cst_7 = arith.constant dense<0.000000e+00> : vector<32x64xf32>
    %6 = tpu.matmul %5, %0, %cst_7 {dimension_numbers = #tpu.dot_dimension_numbers<[1], [0], [0], [1], [0, 0, 1, 1], [], []>} : vector<32x800xbf16>, vector<800x64xbf16>, vector<32x64xf32> -> vector<32x64xf32>
    %7 = arith.maximumf %3, %6 : vector<32x64xf32>
    %c0_8 = arith.constant 0 : index
    %c0_9 = arith.constant 0 : index
    %c0_10 = arith.constant 0 : index
    %8 = vector.load %arg3[%c0_8, %c0_9, %c0_10] : memref<2x16x800xbf16, #tpu.memory_space<vmem>>, vector<2x16x800xbf16>
    %9 = vector.shape_cast %8 : vector<2x16x800xbf16> to vector<32x800xbf16>
    %cst_11 = arith.constant dense<0.000000e+00> : vector<32x64xf32>
    %10 = tpu.matmul %9, %0, %cst_11 {dimension_numbers = #tpu.dot_dimension_numbers<[1], [0], [0], [1], [0, 0, 1, 1], [], []>} : vector<32x800xbf16>, vector<800x64xbf16>, vector<32x64xf32> -> vector<32x64xf32>
    %11 = arith.maximumf %7, %10 : vector<32x64xf32>
    %c0_12 = arith.constant 0 : index
    %c0_13 = arith.constant 0 : index
    %c0_14 = arith.constant 0 : index
    %12 = vector.load %arg4[%c0_12, %c0_13, %c0_14] : memref<2x16x800xbf16, #tpu.memory_space<vmem>>, vector<2x16x800xbf16>
    %13 = vector.shape_cast %12 : vector<2x16x800xbf16> to vector<32x800xbf16>
    %cst_15 = arith.constant dense<0.000000e+00> : vector<32x64xf32>
    %14 = tpu.matmul %13, %0, %cst_15 {dimension_numbers = #tpu.dot_dimension_numbers<[1], [0], [0], [1], [0, 0, 1, 1], [], []>} : vector<32x800xbf16>, vector<800x64xbf16>, vector<32x64xf32> -> vector<32x64xf32>
    %15 = arith.maximumf %11, %14 : vector<32x64xf32>
    %c0_16 = arith.constant 0 : index
    %c0_17 = arith.constant 0 : index
    %16 = vector.load %arg6[%c0_16, %c0_17] : memref<1x64xf32, #tpu.memory_space<vmem>>, vector<1x64xf32>
    %17 = vector.broadcast %16 : vector<1x64xf32> to vector<32x64xf32>
    %18 = arith.addf %15, %17 : vector<32x64xf32>
    %19 = vector.shape_cast %18 : vector<32x64xf32> to vector<2x16x64xf32>
    %20 = arith.truncf %19 : vector<2x16x64xf32> to vector<2x16x64xbf16>
    %c0_18 = arith.constant 0 : index
    %c0_19 = arith.constant 0 : index
    %c0_20 = arith.constant 0 : index
    %21 = vector.load %arg7[%c0_18, %c0_19, %c0_20] : memref<2x16x64xbf16, #tpu.memory_space<vmem>>, vector<2x16x64xbf16>
    tpu.vector_store %arg7[%c0_18, %c0_19, %c0_20], %20 {strides = array<i32>} : memref<2x16x64xbf16, #tpu.memory_space<vmem>>, vector<2x16x64xbf16>,
    return
  }
  func.func @transform_0(%arg0: i32) -> (i32, i32, i32) {
    %c0_i32 = arith.constant 0 : i32
    %c0_i32_0 = arith.constant 0 : i32
    %c0_i32_1 = arith.constant 0 : i32
    return %arg0, %c0_i32, %c0_i32_0 : i32, i32, i32
  }
  func.func @transform_1(%arg0: i32) -> (i32, i32, i32) {
    %c0_i32 = arith.constant 0 : i32
    %c0_i32_0 = arith.constant 0 : i32
    %c0_i32_1 = arith.constant 0 : i32
    return %arg0, %c0_i32, %c0_i32_0 : i32, i32, i32
  }
  func.func @transform_2(%arg0: i32) -> (i32, i32, i32) {
    %c0_i32 = arith.constant 0 : i32
    %c0_i32_0 = arith.constant 0 : i32
    %c0_i32_1 = arith.constant 0 : i32
    return %arg0, %c0_i32, %c0_i32_0 : i32, i32, i32
  }
  func.func @transform_3(%arg0: i32) -> (i32, i32, i32) {
    %c0_i32 = arith.constant 0 : i32
    %c0_i32_0 = arith.constant 0 : i32
    %c0_i32_1 = arith.constant 0 : i32
    return %arg0, %c0_i32, %c0_i32_0 : i32, i32, i32
  }
  func.func @transform_4(%arg0: i32) -> (i32, i32) {
    %c0_i32 = arith.constant 0 : i32
    %c0_i32_0 = arith.constant 0 : i32
    %c0_i32_1 = arith.constant 0 : i32
    return %c0_i32, %c0_i32_0 : i32, i32
  }
  func.func @transform_5(%arg0: i32) -> (i32, i32) {
    %c0_i32 = arith.constant 0 : i32
    %c0_i32_0 = arith.constant 0 : i32
    %c0_i32_1 = arith.constant 0 : i32
    return %c0_i32, %c0_i32_0 : i32, i32
  }
  func.func @transform_6(%arg0: i32) -> (i32, i32, i32) {
    %c0_i32 = arith.constant 0 : i32
    %c0_i32_0 = arith.constant 0 : i32
    %c0_i32_1 = arith.constant 0 : i32
    return %arg0, %c0_i32, %c0_i32_0 : i32, i32, i32
  }
}

module attributes {stable_mosaic.version = 11 : i64} {
  func.func @_mlp_kernel(%arg0: i32, %arg1: memref<2x1024xbf16, #tpu.memory_space<vmem>>, %arg2: memref<1024x64xbf16, #tpu.memory_space<vmem>>, %arg3: memref<1x64xf32, #tpu.memory_space<vmem>>, %arg4: memref<64x10xf32, #tpu.memory_space<vmem>>, %arg5: memref<1x10xf32, #tpu.memory_space<vmem>>, %arg6: memref<2x10xf32, #tpu.memory_space<vmem>>) attributes {dimension_semantics = [#tpu.dimension_semantics<parallel>], iteration_bounds = array<i64: 1>, scalar_prefetch = 0 : i64, scratch_operands = 0 : i64, tpu.core_type = #tpu.core_type<tc>, window_params = [{transform_indices = @transform_0, window_bounds = array<i64: 2, 1024>}, {pipeline_mode = #tpu.pipeline_mode<synchronous>, transform_indices = @transform_1, window_bounds = array<i64: 1024, 64>}, {pipeline_mode = #tpu.pipeline_mode<synchronous>, transform_indices = @transform_2, window_bounds = array<i64: 1, 64>}, {pipeline_mode = #tpu.pipeline_mode<synchronous>, transform_indices = @transform_3, window_bounds = array<i64: 64, 10>}, {pipeline_mode = #tpu.pipeline_mode<synchronous>, transform_indices = @transform_4, window_bounds = array<i64: 1, 10>}, {transform_indices = @transform_5, window_bounds = array<i64: 2, 10>}]} {
    %c0 = arith.constant 0 : index
    %c0_0 = arith.constant 0 : index
    %0 = vector.load %arg1[%c0, %c0_0] : memref<2x1024xbf16, #tpu.memory_space<vmem>>, vector<2x1024xbf16>
    %c0_1 = arith.constant 0 : index
    %c0_2 = arith.constant 0 : index
    %1 = vector.load %arg2[%c0_1, %c0_2] : memref<1024x64xbf16, #tpu.memory_space<vmem>>, vector<1024x64xbf16>
    %cst = arith.constant dense<0.000000e+00> : vector<2x64xf32>
    %2 = tpu.matmul %0, %1, %cst {dimension_numbers = #tpu.dot_dimension_numbers<[1], [0], [0], [1], [0, 0, 1, 1], [], []>} : vector<2x1024xbf16>, vector<1024x64xbf16>, vector<2x64xf32> -> vector<2x64xf32>
    %c0_3 = arith.constant 0 : index
    %c0_4 = arith.constant 0 : index
    %3 = vector.load %arg3[%c0_3, %c0_4] : memref<1x64xf32, #tpu.memory_space<vmem>>, vector<1x64xf32>
    %4 = vector.broadcast %3 : vector<1x64xf32> to vector<2x64xf32>
    %5 = arith.addf %2, %4 : vector<2x64xf32>
    %c0_5 = arith.constant 0 : index
    %c0_6 = arith.constant 0 : index
    %6 = vector.load %arg4[%c0_5, %c0_6] : memref<64x10xf32, #tpu.memory_space<vmem>>, vector<64x10xf32>
    %cst_7 = arith.constant dense<0.000000e+00> : vector<2x10xf32>
    %7 = tpu.matmul %5, %6, %cst_7 {dimension_numbers = #tpu.dot_dimension_numbers<[1], [0], [0], [1], [0, 0, 1, 1], [], []>} : vector<2x64xf32>, vector<64x10xf32>, vector<2x10xf32> -> vector<2x10xf32>
    %c0_8 = arith.constant 0 : index
    %c0_9 = arith.constant 0 : index
    %8 = vector.load %arg5[%c0_8, %c0_9] : memref<1x10xf32, #tpu.memory_space<vmem>>, vector<1x10xf32>
    %9 = vector.broadcast %8 : vector<1x10xf32> to vector<2x10xf32>
    %10 = arith.addf %7, %9 : vector<2x10xf32>
    %c0_10 = arith.constant 0 : index
    %c0_11 = arith.constant 0 : index
    %11 = vector.load %arg6[%c0_10, %c0_11] : memref<2x10xf32, #tpu.memory_space<vmem>>, vector<2x10xf32>
    tpu.vector_store %arg6[%c0_10, %c0_11], %10 {strides = array<i32>} : memref<2x10xf32, #tpu.memory_space<vmem>>, vector<2x10xf32>,
    return
  }
  func.func @transform_0(%arg0: i32) -> (i32, i32) {
    %c0_i32 = arith.constant 0 : i32
    %c0_i32_0 = arith.constant 0 : i32
    return %arg0, %c0_i32 : i32, i32
  }
  func.func @transform_1(%arg0: i32) -> (i32, i32) {
    %c0_i32 = arith.constant 0 : i32
    %c0_i32_0 = arith.constant 0 : i32
    %c0_i32_1 = arith.constant 0 : i32
    return %c0_i32, %c0_i32_0 : i32, i32
  }
  func.func @transform_2(%arg0: i32) -> (i32, i32) {
    %c0_i32 = arith.constant 0 : i32
    %c0_i32_0 = arith.constant 0 : i32
    %c0_i32_1 = arith.constant 0 : i32
    return %c0_i32, %c0_i32_0 : i32, i32
  }
  func.func @transform_3(%arg0: i32) -> (i32, i32) {
    %c0_i32 = arith.constant 0 : i32
    %c0_i32_0 = arith.constant 0 : i32
    %c0_i32_1 = arith.constant 0 : i32
    return %c0_i32, %c0_i32_0 : i32, i32
  }
  func.func @transform_4(%arg0: i32) -> (i32, i32) {
    %c0_i32 = arith.constant 0 : i32
    %c0_i32_0 = arith.constant 0 : i32
    %c0_i32_1 = arith.constant 0 : i32
    return %c0_i32, %c0_i32_0 : i32, i32
  }
  func.func @transform_5(%arg0: i32) -> (i32, i32) {
    %c0_i32 = arith.constant 0 : i32
    %c0_i32_0 = arith.constant 0 : i32
    return %arg0, %c0_i32 : i32, i32
  }
}

</mosaic_0001>

<llo_original>
// kernel: yuzhao_forward.4
$region0: #{yuzhao_forward.4}
  #allocation0 [shape = 'u32[]', space=smem, size = 0x4, offset = 0x4, fixed_abs, tag = 'smem constant byte address 0x4 - core index']
  #allocation1 [shape = 'u32[144,128]{1,0:T(1,128)}', space=vmem, size = 0x12000, scoped, tag = 'internal scratch']
  %s0 = inlined_call_operand.vmem [shape: bf16[2,256,200], index: 0, kind: input, shape index: {}]
  %s1 = inlined_call_operand.vmem [shape: bf16[2,256,200], index: 1, kind: input, shape index: {}]
  %s2 = inlined_call_operand.vmem [shape: bf16[2,256,200], index: 2, kind: input, shape index: {}]
  %s3 = inlined_call_operand.vmem [shape: bf16[2,256,200], index: 3, kind: input, shape index: {}]
  %s4 = inlined_call_operand.vmem [shape: bf16[200,32], index: 4, kind: input, shape index: {}]
  %s5 = inlined_call_operand.vmem [shape: f32[1,32], index: 5, kind: input, shape index: {}]
  %s6 = inlined_call_operand.vmem [shape: bf16[2,256,32], index: 6, kind: output, shape index: {}]
  %s7 = sld [smem:[#allocation0]]
  $region34: #{yuzhao_forward.4} parent=0
    _
  %s9 = ssub.s32 1, %s7
  %s10 = scalar_select 0, %s9, %s7
  // Predicated region
  $region2: #{yuzhao_forward.4} parent=0 // pred_check
    _
  $region3: #{yuzhao_forward.4} parent=0 // pred_check_branch
    %12 = sbr.rel (0) target = $region5
  $region4: #{yuzhao_forward.4} parent=0 // pred_region
    _
  $region5: #{yuzhao_forward.4} parent=0 // pred_fallthru
    _
  // Predicated region
  $region6: #{yuzhao_forward.4} parent=0 // pred_check
    _
  $region7: #{yuzhao_forward.4} parent=0 // pred_check_branch
    %14 = sbr.rel (0) target = $region9
  $region8: #{yuzhao_forward.4} parent=0 // pred_region
    _
  $region9: #{yuzhao_forward.4} parent=0 // pred_fallthru
    _
  // Predicated region
  $region10: #{yuzhao_forward.4} parent=0 // pred_check
    _
  $region11: #{yuzhao_forward.4} parent=0 // pred_check_branch
    %16 = sbr.rel (0) target = $region13
  $region12: #{yuzhao_forward.4} parent=0 // pred_region
    _
  $region13: #{yuzhao_forward.4} parent=0 // pred_fallthru
    _
  // Predicated region
  $region14: #{yuzhao_forward.4} parent=0 // pred_check
    _
  $region15: #{yuzhao_forward.4} parent=0 // pred_check_branch
    %18 = sbr.rel (0) target = $region17
  $region16: #{yuzhao_forward.4} parent=0 // pred_region
    _
  $region17: #{yuzhao_forward.4} parent=0 // pred_fallthru
    _
  // Predicated region
  $region18: #{yuzhao_forward.4} parent=0 // pred_check
    _
  $region19: #{yuzhao_forward.4} parent=0 // pred_check_branch
    %20 = sbr.rel (0) target = $region21
  $region20: #{yuzhao_forward.4} parent=0 // pred_region
    _
  $region21: #{yuzhao_forward.4} parent=0 // pred_fallthru
    _
  // Predicated region
  $region22: #{yuzhao_forward.4} parent=0 // pred_check
    _
  $region23: #{yuzhao_forward.4} parent=0 // pred_check_branch
    %22 = sbr.rel (0) target = $region25
  $region24: #{yuzhao_forward.4} parent=0 // pred_region
    _
  $region25: #{yuzhao_forward.4} parent=0 // pred_fallthru
    _
  %v24 = vld [vmem:[%s4] sm:$0xf]
  %v25 = vld [vmem:[%s4 + $0x4] sm:$0xf]
  %v26 = vld [vmem:[%s4 + $0x8] sm:$0xf]
  %v27 = vld [vmem:[%s4 + $0xc] sm:$0xf]
  %v28 = vld [vmem:[%s4 + $0x10] sm:$0xf]
  %v29 = vld [vmem:[%s4 + $0x14] sm:$0xf]
  %v30 = vld [vmem:[%s4 + $0x18] sm:$0xf]
  %v31 = vld [vmem:[%s4 + $0x1c] sm:$0xf]
  %v32 = vld [vmem:[%s4 + $0x20] sm:$0xf]
  %v33 = vld [vmem:[%s4 + $0x24] sm:$0xf]
  %v34 = vld [vmem:[%s4 + $0x28] sm:$0xf]
  %v35 = vld [vmem:[%s4 + $0x2c] sm:$0xf]
  %v36 = vld [vmem:[%s4 + $0x30] sm:$0xf]
  %v37 = vld [vmem:[%s4 + $0x34] sm:$0xf]
  %v38 = vld [vmem:[%s4 + $0x38] sm:$0xf]
  %v39 = vld [vmem:[%s4 + $0x3c] sm:$0xf]
  %v40 = vld [vmem:[%s4 + $0x40] sm:$0xf]
  %v41 = vld [vmem:[%s4 + $0x44] sm:$0xf]
  %v42 = vld [vmem:[%s4 + $0x48] sm:$0xf]
  %v43 = vld [vmem:[%s4 + $0x4c] sm:$0xf]
  %v44 = vld [vmem:[%s4 + $0x50] sm:$0xf]
  %v45 = vld [vmem:[%s4 + $0x54] sm:$0xf]
  %v46 = vld [vmem:[%s4 + $0x58] sm:$0xf]
  %v47 = vld [vmem:[%s4 + $0x5c] sm:$0xf]
  %v48 = vld [vmem:[%s4 + $0x60] sm:$0xf]
  %v49 = vld [vmem:[%s0] sm:$0xff]
  %v50 = vld [vmem:[%s0 + $0x8] sm:$0xff]
  %v51 = vld [vmem:[%s0 + $0x10] sm:$0xff]
  %v52 = vld [vmem:[%s0 + $0x18] sm:$0xff]
  %v53 = vld [vmem:[%s0 + $0x20] sm:$0xff]
  %v54 = vld [vmem:[%s0 + $0x28] sm:$0xff]
  %v55 = vld [vmem:[%s0 + $0x30] sm:$0xff]
  %v56 = vld [vmem:[%s0 + $0x38] sm:$0xff]
  %v57 = vld [vmem:[%s0 + $0x40] sm:$0xff]
  %v58 = vld [vmem:[%s0 + $0x48] sm:$0xff]
  %v59 = vld [vmem:[%s0 + $0x50] sm:$0xff]
  %v60 = vld [vmem:[%s0 + $0x58] sm:$0xff]
  %v61 = vld [vmem:[%s0 + $0x60] sm:$0xff]
  %v62 = vld [vmem:[%s0 + $0x68] sm:$0xff]
  %v63 = vld [vmem:[%s0 + $0x70] sm:$0xff]
  %v64 = vld [vmem:[%s0 + $0x78] sm:$0xff]
  %v65 = vld [vmem:[%s0 + $0x80] sm:$0xff]
  %v66 = vld [vmem:[%s0 + $0x88] sm:$0xff]
  %v67 = vld [vmem:[%s0 + $0x90] sm:$0xff]
  %v68 = vld [vmem:[%s0 + $0x98] sm:$0xff]
  %v69 = vld [vmem:[%s0 + $0xa0] sm:$0xff]
  %v70 = vld [vmem:[%s0 + $0xa8] sm:$0xff]
  %v71 = vld [vmem:[%s0 + $0xb0] sm:$0xff]
  %v72 = vld [vmem:[%s0 + $0xb8] sm:$0xff]
  %v73 = vld [vmem:[%s0 + $0xc0] sm:$0xff]
  %v74 = vld [vmem:[%s0 + $0xc8] sm:$0xff]
  %v75 = vld [vmem:[%s0 + $0xd0] sm:$0xff]
  %v76 = vld [vmem:[%s0 + $0xd8] sm:$0xff]
  %v77 = vld [vmem:[%s0 + $0xe0] sm:$0xff]
  %v78 = vld [vmem:[%s0 + $0xe8] sm:$0xff]
  %v79 = vld [vmem:[%s0 + $0xf0] sm:$0xff]
  %v80 = vld [vmem:[%s0 + $0xf8] sm:$0xff]
  %v81 = vld [vmem:[%s0 + $0x100] sm:$0xff]
  %v82 = vld [vmem:[%s0 + $0x108] sm:$0xff]
  %v83 = vld [vmem:[%s0 + $0x110] sm:$0xff]
  %v84 = vld [vmem:[%s0 + $0x118] sm:$0xff]
  %v85 = vld [vmem:[%s0 + $0x120] sm:$0xff]
  %v86 = vld [vmem:[%s0 + $0x128] sm:$0xff]
  %v87 = vld [vmem:[%s0 + $0x130] sm:$0xff]
  %v88 = vld [vmem:[%s0 + $0x138] sm:$0xff]
  %v89 = vld [vmem:[%s0 + $0x140] sm:$0xff]
  %v90 = vld [vmem:[%s0 + $0x148] sm:$0xff]
  %v91 = vld [vmem:[%s0 + $0x150] sm:$0xff]
  %v92 = vld [vmem:[%s0 + $0x158] sm:$0xff]
  %v93 = vld [vmem:[%s0 + $0x160] sm:$0xff]
  %v94 = vld [vmem:[%s0 + $0x168] sm:$0xff]
  %v95 = vld [vmem:[%s0 + $0x170] sm:$0xff]
  %v96 = vld [vmem:[%s0 + $0x178] sm:$0xff]
  %v97 = vld [vmem:[%s0 + $0x180] sm:$0xff]
  %v98 = vld [vmem:[%s0 + $0x188] sm:$0xff]
  %v99 = vld [vmem:[%s0 + $0x190] sm:$0xff]
  %v100 = vld [vmem:[%s0 + $0x198] sm:$0xff]
  %v101 = vld [vmem:[%s0 + $0x1a0] sm:$0xff]
  %v102 = vld [vmem:[%s0 + $0x1a8] sm:$0xff]
  %v103 = vld [vmem:[%s0 + $0x1b0] sm:$0xff]
  %v104 = vld [vmem:[%s0 + $0x1b8] sm:$0xff]
  %v105 = vld [vmem:[%s0 + $0x1c0] sm:$0xff]
  %v106 = vld [vmem:[%s0 + $0x1c8] sm:$0xff]
  %v107 = vld [vmem:[%s0 + $0x1d0] sm:$0xff]
  %v108 = vld [vmem:[%s0 + $0x1d8] sm:$0xff]
  %v109 = vld [vmem:[%s0 + $0x1e0] sm:$0xff]
  %v110 = vld [vmem:[%s0 + $0x1e8] sm:$0xff]
  %v111 = vld [vmem:[%s0 + $0x1f0] sm:$0xff]
  %v112 = vld [vmem:[%s0 + $0x1f8] sm:$0xff]
  %v177 = vunpack.c.l.b16 %v49
  %v178 = vunpack.c.h.b16 %v49
  %v179 = vunpack.c.l.b16 %v50
  %v180 = vunpack.c.h.b16 %v50
  %v181 = vunpack.c.l.b16 %v51
  %v182 = vunpack.c.h.b16 %v51
  %v183 = vunpack.c.l.b16 %v52
  %v184 = vunpack.c.h.b16 %v52
  %v185 = vunpack.c.l.b16 %v53
  %v186 = vunpack.c.h.b16 %v53
  %v187 = vunpack.c.l.b16 %v54
  %v188 = vunpack.c.h.b16 %v54
  %v189 = vunpack.c.l.b16 %v55
  %v190 = vunpack.c.h.b16 %v55
  %v191 = vunpack.c.l.b16 %v56
  %v192 = vunpack.c.h.b16 %v56
  %v193 = vunpack.c.l.b16 %v57
  %v194 = vunpack.c.h.b16 %v57
  %v195 = vunpack.c.l.b16 %v58
  %v196 = vunpack.c.h.b16 %v58
  %v197 = vunpack.c.l.b16 %v59
  %v198 = vunpack.c.h.b16 %v59
  %v199 = vunpack.c.l.b16 %v60
  %v200 = vunpack.c.h.b16 %v60
  %v201 = vunpack.c.l.b16 %v61
  %v202 = vunpack.c.h.b16 %v61
  %v203 = vunpack.c.l.b16 %v62
  %v204 = vunpack.c.h.b16 %v62
  %v205 = vunpack.c.l.b16 %v63
  %v206 = vunpack.c.h.b16 %v63
  %v207 = vunpack.c.l.b16 %v64
  %v208 = vunpack.c.h.b16 %v64
  %v209 = vunpack.c.l.b16 %v65
  %v210 = vunpack.c.h.b16 %v65
  %v211 = vunpack.c.l.b16 %v66
  %v212 = vunpack.c.h.b16 %v66
  %v213 = vunpack.c.l.b16 %v67
  %v214 = vunpack.c.h.b16 %v67
  %v215 = vunpack.c.l.b16 %v68
  %v216 = vunpack.c.h.b16 %v68
  %v217 = vunpack.c.l.b16 %v69
  %v218 = vunpack.c.h.b16 %v69
  %v219 = vunpack.c.l.b16 %v70
  %v220 = vunpack.c.h.b16 %v70
  %v221 = vunpack.c.l.b16 %v71
  %v222 = vunpack.c.h.b16 %v71
  %v223 = vunpack.c.l.b16 %v72
  %v224 = vunpack.c.h.b16 %v72
  %v225 = vunpack.c.l.b16 %v73
  %v226 = vunpack.c.h.b16 %v73
  %v227 = vunpack.c.l.b16 %v74
  %v228 = vunpack.c.h.b16 %v74
  %v229 = vunpack.c.l.b16 %v75
  %v230 = vunpack.c.h.b16 %v75
  %v231 = vunpack.c.l.b16 %v76
  %v232 = vunpack.c.h.b16 %v76
  %v233 = vunpack.c.l.b16 %v77
  %v234 = vunpack.c.h.b16 %v77
  %v235 = vunpack.c.l.b16 %v78
  %v236 = vunpack.c.h.b16 %v78
  %v237 = vunpack.c.l.b16 %v79
  %v238 = vunpack.c.h.b16 %v79
  %v239 = vunpack.c.l.b16 %v80
  %v240 = vunpack.c.h.b16 %v80
  %v241 = vunpack.c.l.b16 %v81
  %v242 = vunpack.c.h.b16 %v81
  %v243 = vunpack.c.l.b16 %v82
  %v244 = vunpack.c.h.b16 %v82
  %v245 = vunpack.c.l.b16 %v83
  %v246 = vunpack.c.h.b16 %v83
  %v247 = vunpack.c.l.b16 %v84
  %v248 = vunpack.c.h.b16 %v84
  %v249 = vunpack.c.l.b16 %v85
  %v250 = vunpack.c.h.b16 %v85
  %v251 = vunpack.c.l.b16 %v86
  %v252 = vunpack.c.h.b16 %v86
  %v253 = vunpack.c.l.b16 %v87
  %v254 = vunpack.c.h.b16 %v87
  %v255 = vunpack.c.l.b16 %v88
  %v256 = vunpack.c.h.b16 %v88
  %v257 = vunpack.c.l.b16 %v89
  %v258 = vunpack.c.h.b16 %v89
  %v259 = vunpack.c.l.b16 %v90
  %v260 = vunpack.c.h.b16 %v90
  %v261 = vunpack.c.l.b16 %v91
  %v262 = vunpack.c.h.b16 %v91
  %v263 = vunpack.c.l.b16 %v92
  %v264 = vunpack.c.h.b16 %v92
  %v265 = vunpack.c.l.b16 %v93
  %v266 = vunpack.c.h.b16 %v93
  %v267 = vunpack.c.l.b16 %v94
  %v268 = vunpack.c.h.b16 %v94
  %v269 = vunpack.c.l.b16 %v95
  %v270 = vunpack.c.h.b16 %v95
  %v271 = vunpack.c.l.b16 %v96
  %v272 = vunpack.c.h.b16 %v96
  %v273 = vunpack.c.l.b16 %v97
  %v274 = vunpack.c.h.b16 %v97
  %v275 = vunpack.c.l.b16 %v98
  %v276 = vunpack.c.h.b16 %v98
  %v277 = vunpack.c.l.b16 %v99
  %v278 = vunpack.c.h.b16 %v99
  %v279 = vunpack.c.l.b16 %v100
  %v280 = vunpack.c.h.b16 %v100
  %v281 = vunpack.c.l.b16 %v101
  %v282 = vunpack.c.h.b16 %v101
  %v283 = vunpack.c.l.b16 %v102
  %v284 = vunpack.c.h.b16 %v102
  %v285 = vunpack.c.l.b16 %v103
  %v286 = vunpack.c.h.b16 %v103
  %v287 = vunpack.c.l.b16 %v104
  %v288 = vunpack.c.h.b16 %v104
  %v289 = vunpack.c.l.b16 %v105
  %v290 = vunpack.c.h.b16 %v105
  %v291 = vunpack.c.l.b16 %v106
  %v292 = vunpack.c.h.b16 %v106
  %v293 = vunpack.c.l.b16 %v107
  %v294 = vunpack.c.h.b16 %v107
  %v295 = vunpack.c.l.b16 %v108
  %v296 = vunpack.c.h.b16 %v108
  %v297 = vunpack.c.l.b16 %v109
  %v298 = vunpack.c.h.b16 %v109
  %v299 = vunpack.c.l.b16 %v110
  %v300 = vunpack.c.h.b16 %v110
  %v301 = vunpack.c.l.b16 %v111
  %v302 = vunpack.c.h.b16 %v111
  %v303 = vunpack.c.l.b16 %v112
  %v304 = vunpack.c.h.b16 %v112
  %v305 = vpack.c.b16 %v179, %v177
  %v306 = vpack.c.b16 %v180, %v178
  %v307 = vpack.c.b16 %v183, %v181
  %v308 = vpack.c.b16 %v184, %v182
  %v309 = vpack.c.b16 %v187, %v185
  %v310 = vpack.c.b16 %v188, %v186
  %v311 = vpack.c.b16 %v191, %v189
  %v312 = vpack.c.b16 %v192, %v190
  %v313 = vpack.c.b16 %v195, %v193
  %v314 = vpack.c.b16 %v196, %v194
  %v315 = vpack.c.b16 %v199, %v197
  %v316 = vpack.c.b16 %v200, %v198
  %v317 = vpack.c.b16 %v203, %v201
  %v318 = vpack.c.b16 %v204, %v202
  %v319 = vpack.c.b16 %v207, %v205
  %v320 = vpack.c.b16 %v208, %v206
  %v321 = vpack.c.b16 %v211, %v209
  %v322 = vpack.c.b16 %v212, %v210
  %v323 = vpack.c.b16 %v215, %v213
  %v324 = vpack.c.b16 %v216, %v214
  %v325 = vpack.c.b16 %v219, %v217
  %v326 = vpack.c.b16 %v220, %v218
  %v327 = vpack.c.b16 %v223, %v221
  %v328 = vpack.c.b16 %v224, %v222
  %v329 = vpack.c.b16 %v227, %v225
  %v330 = vpack.c.b16 %v228, %v226
  %v331 = vpack.c.b16 %v231, %v229
  %v332 = vpack.c.b16 %v232, %v230
  %v333 = vpack.c.b16 %v235, %v233
  %v334 = vpack.c.b16 %v236, %v234
  %v335 = vpack.c.b16 %v239, %v237
  %v336 = vpack.c.b16 %v240, %v238
  %v337 = vpack.c.b16 %v243, %v241
  %v338 = vpack.c.b16 %v244, %v242
  %v339 = vpack.c.b16 %v247, %v245
  %v340 = vpack.c.b16 %v248, %v246
  %v341 = vpack.c.b16 %v251, %v249
  %v342 = vpack.c.b16 %v252, %v250
  %v343 = vpack.c.b16 %v255, %v253
  %v344 = vpack.c.b16 %v256, %v254
  %v345 = vpack.c.b16 %v259, %v257
  %v346 = vpack.c.b16 %v260, %v258
  %v347 = vpack.c.b16 %v263, %v261
  %v348 = vpack.c.b16 %v264, %v262
  %v349 = vpack.c.b16 %v267, %v265
  %v350 = vpack.c.b16 %v268, %v266
  %v351 = vpack.c.b16 %v271, %v269
  %v352 = vpack.c.b16 %v272, %v270
  %v353 = vpack.c.b16 %v275, %v273
  %v354 = vpack.c.b16 %v276, %v274
  %v355 = vpack.c.b16 %v279, %v277
  %v356 = vpack.c.b16 %v280, %v278
  %v357 = vpack.c.b16 %v283, %v281
  %v358 = vpack.c.b16 %v284, %v282
  %v359 = vpack.c.b16 %v287, %v285
  %v360 = vpack.c.b16 %v288, %v286
  %v361 = vpack.c.b16 %v291, %v289
  %v362 = vpack.c.b16 %v292, %v290
  %v363 = vpack.c.b16 %v295, %v293
  %v364 = vpack.c.b16 %v296, %v294
  %v365 = vpack.c.b16 %v299, %v297
  %v366 = vpack.c.b16 %v300, %v298
  %v367 = vpack.c.b16 %v303, %v301
  %v368 = vpack.c.b16 %v304, %v302
  %v426 = vunpack.c.l.b16 %v24
  %v427 = vunpack.c.l.b16 %v25
  %v428 = vunpack.c.l.b16 %v26
  %v429 = vunpack.c.l.b16 %v27
  %v430 = vunpack.c.l.b16 %v28
  %v431 = vunpack.c.l.b16 %v29
  %v432 = vunpack.c.l.b16 %v30
  %v433 = vunpack.c.l.b16 %v31
  %v434 = vunpack.c.l.b16 %v32
  %v435 = vunpack.c.l.b16 %v33
  %v436 = vunpack.c.l.b16 %v34
  %v437 = vunpack.c.l.b16 %v35
  %v438 = vunpack.c.l.b16 %v36
  %v439 = vunpack.c.l.b16 %v37
  %v440 = vunpack.c.l.b16 %v38
  %v441 = vunpack.c.l.b16 %v39
  %v442 = vunpack.c.l.b16 %v40
  %v443 = vunpack.c.l.b16 %v41
  %v444 = vunpack.c.l.b16 %v42
  %v445 = vunpack.c.l.b16 %v43
  %v446 = vunpack.c.l.b16 %v44
  %v447 = vunpack.c.l.b16 %v45
  %v448 = vunpack.c.l.b16 %v46
  %v449 = vunpack.c.l.b16 %v47
  %v450 = vunpack.c.l.b16 %v48
  %v451 = vpack.c.b16 %v427, %v426
  %v452 = vpack.c.b16 %v429, %v428
  %v453 = vpack.c.b16 %v431, %v430
  %v454 = vpack.c.b16 %v433, %v432
  %v455 = vpack.c.b16 %v435, %v434
  %v456 = vpack.c.b16 %v437, %v436
  %v457 = vpack.c.b16 %v439, %v438
  %v458 = vpack.c.b16 %v441, %v440
  %v459 = vpack.c.b16 %v443, %v442
  %v460 = vpack.c.b16 %v445, %v444
  %v461 = vpack.c.b16 %v447, %v446
  %v462 = vpack.c.b16 %v449, %v448
  %v463 = vpack.c.b16 %v450, %v450
  %vm476 = vcmask 588800
  %v478 = vsel %vm476, %v306, 0
  %v481 = vsel %vm476, %v308, 0
  %v484 = vsel %vm476, %v310, 0
  %v487 = vsel %vm476, %v312, 0
  %v490 = vsel %vm476, %v314, 0
  %v493 = vsel %vm476, %v316, 0
  %v496 = vsel %vm476, %v318, 0
  %v499 = vsel %vm476, %v320, 0
  %v502 = vsel %vm476, %v322, 0
  %v505 = vsel %vm476, %v324, 0
  %v508 = vsel %vm476, %v326, 0
  %v511 = vsel %vm476, %v328, 0
  %v514 = vsel %vm476, %v330, 0
  %v517 = vsel %vm476, %v332, 0
  %v520 = vsel %vm476, %v334, 0
  %v523 = vsel %vm476, %v336, 0
  %v526 = vsel %vm476, %v338, 0
  %v529 = vsel %vm476, %v340, 0
  %v532 = vsel %vm476, %v342, 0
  %v535 = vsel %vm476, %v344, 0
  %v538 = vsel %vm476, %v346, 0
  %v541 = vsel %vm476, %v348, 0
  %v544 = vsel %vm476, %v350, 0
  %v547 = vsel %vm476, %v352, 0
  %v550 = vsel %vm476, %v354, 0
  %v553 = vsel %vm476, %v356, 0
  %v556 = vsel %vm476, %v358, 0
  %v559 = vsel %vm476, %v360, 0
  %v562 = vsel %vm476, %v362, 0
  %v565 = vsel %vm476, %v364, 0
  %v568 = vsel %vm476, %v366, 0
  %v571 = vsel %vm476, %v368, 0
  %vm573 = vcmask 1043456
  %v575 = vsel %vm573, %v463, 0
  %577 = vmatprep.subr.bf16.mxu0 0
  %578 = vmatpush1.bf16.msra.mxu0 %v451
  %579 = vmatprep.subr.bf16.mxu0 0
  %580 = vmatpush1.bf16.msra.mxu0 %v452
  %581 = vmatprep.subr.bf16.mxu0 0
  %582 = vmatpush1.bf16.msra.mxu0 %v453
  %583 = vmatprep.subr.bf16.mxu0 0
  %584 = vmatpush1.bf16.msra.mxu0 %v454
  %585 = vmatprep.subr.bf16.mxu0 0
  %586 = vmatpush1.bf16.msra.mxu0 %v455
  %587 = vmatprep.subr.bf16.mxu0 0
  %588 = vmatpush1.bf16.msra.mxu0 %v456
  %589 = vmatprep.subr.bf16.mxu0 0
  %590 = vmatpush1.bf16.msra.mxu0 %v457
  %591 = vmatprep.subr.bf16.mxu0 0
  %592 = vmatpush1.bf16.msra.mxu0 %v458
  %593 = vmatprep.subr.bf16.mxu0 0
  %594 = vmatpush1.bf16.msra.mxu0 %v459
  %595 = vmatprep.subr.bf16.mxu0 0
  %596 = vmatpush1.bf16.msra.mxu0 %v460
  %597 = vmatprep.subr.bf16.mxu0 0
  %598 = vmatpush1.bf16.msra.mxu0 %v461
  %599 = vmatprep.subr.bf16.mxu0 0
  %600 = vmatpush1.bf16.msra.mxu0 %v462
  %601 = vmatprep.subr.bf16.mxu0 0
  %602 = vmatpush1.bf16.msra.mxu0 %v575
  %603 = vmatprep.subr.bf16.mxu0 0
  %604 = vmatpush1.bf16.msra.mxu0 0
  %605 = vmatprep.subr.bf16.mxu0 0
  %606 = vmatpush1.bf16.msra.mxu0 0
  %607 = vmatprep.subr.bf16.mxu0 0
  %608 = vmatpush1.bf16.msra.mxu0 0
  %609 = vmatprep.mubr.bf16.mxu0 %v478
  %610 = vmatmul.mubr.bf16.gmra.mrb[0].mxu0 %v305
  %v611 = vpop.f32.mrb[0].mxu0
  %v612 = vadd.f32 0.0, %v611
  %v613 = vpop.f32.mrb[0].mxu0
  %v614 = vpop.f32.mrb[0].mxu0
  %v615 = vadd.f32 0.0, %v614
  %v616 = vpop.f32.mrb[0].mxu0
  %617 = vmatprep.mubr.bf16.mxu0 %v481
  %618 = vmatmul.mubr.bf16.gmra.mrb[0].mxu0 %v307
  %v619 = vpop.f32.mrb[0].mxu0
  %v620 = vadd.f32 0.0, %v619
  %v621 = vpop.f32.mrb[0].mxu0
  %v622 = vpop.f32.mrb[0].mxu0
  %v623 = vadd.f32 0.0, %v622
  %v624 = vpop.f32.mrb[0].mxu0
  %625 = vmatprep.mubr.bf16.mxu0 %v484
  %626 = vmatmul.mubr.bf16.gmra.mrb[0].mxu0 %v309
  %v627 = vpop.f32.mrb[0].mxu0
  %v628 = vadd.f32 0.0, %v627
  %v629 = vpop.f32.mrb[0].mxu0
  %v630 = vpop.f32.mrb[0].mxu0
  %v631 = vadd.f32 0.0, %v630
  %v632 = vpop.f32.mrb[0].mxu0
  %633 = vmatprep.mubr.bf16.mxu0 %v487
  %634 = vmatmul.mubr.bf16.gmra.mrb[0].mxu0 %v311
  %v635 = vpop.f32.mrb[0].mxu0
  %v636 = vadd.f32 0.0, %v635
  %v637 = vpop.f32.mrb[0].mxu0
  %v638 = vpop.f32.mrb[0].mxu0
  %v639 = vadd.f32 0.0, %v638
  %v640 = vpop.f32.mrb[0].mxu0
  %641 = vmatprep.mubr.bf16.mxu0 %v490
  %642 = vmatmul.mubr.bf16.gmra.mrb[0].mxu0 %v313
  %v643 = vpop.f32.mrb[0].mxu0
  %v644 = vadd.f32 0.0, %v643
  %v645 = vpop.f32.mrb[0].mxu0
  %v646 = vpop.f32.mrb[0].mxu0
  %v647 = vadd.f32 0.0, %v646
  %v648 = vpop.f32.mrb[0].mxu0
  %649 = vmatprep.mubr.bf16.mxu0 %v493
  %650 = vmatmul.mubr.bf16.gmra.mrb[0].mxu0 %v315
  %v651 = vpop.f32.mrb[0].mxu0
  %v652 = vadd.f32 0.0, %v651
  %v653 = vpop.f32.mrb[0].mxu0
  %v654 = vpop.f32.mrb[0].mxu0
  %v655 = vadd.f32 0.0, %v654
  %v656 = vpop.f32.mrb[0].mxu0
  %657 = vmatprep.mubr.bf16.mxu0 %v496
  %658 = vmatmul.mubr.bf16.gmra.mrb[0].mxu0 %v317
  %v659 = vpop.f32.mrb[0].mxu0
  %v660 = vadd.f32 0.0, %v659
  %v661 = vpop.f32.mrb[0].mxu0
  %v662 = vpop.f32.mrb[0].mxu0
  %v663 = vadd.f32 0.0, %v662
  %v664 = vpop.f32.mrb[0].mxu0
  %665 = vmatprep.mubr.bf16.mxu0 %v499
  %666 = vmatmul.mubr.bf16.gmra.mrb[0].mxu0 %v319
  %v667 = vpop.f32.mrb[0].mxu0
  %v668 = vadd.f32 0.0, %v667
  %v669 = vpop.f32.mrb[0].mxu0
  %v670 = vpop.f32.mrb[0].mxu0
  %v671 = vadd.f32 0.0, %v670
  %v672 = vpop.f32.mrb[0].mxu0
  %673 = vmatprep.mubr.bf16.mxu0 %v502
  %674 = vmatmul.mubr.bf16.gmra.mrb[0].mxu0 %v321
  %v675 = vpop.f32.mrb[0].mxu0
  %v676 = vadd.f32 0.0, %v675
  %v677 = vpop.f32.mrb[0].mxu0
  %v678 = vpop.f32.mrb[0].mxu0
  %v679 = vadd.f32 0.0, %v678
  %v680 = vpop.f32.mrb[0].mxu0
  %681 = vmatprep.mubr.bf16.mxu0 %v505
  %682 = vmatmul.mubr.bf16.gmra.mrb[0].mxu0 %v323
  %v683 = vpop.f32.mrb[0].mxu0
  %v684 = vadd.f32 0.0, %v683
  %v685 = vpop.f32.mrb[0].mxu0
  %v686 = vpop.f32.mrb[0].mxu0
  %v687 = vadd.f32 0.0, %v686
  %v688 = vpop.f32.mrb[0].mxu0
  %689 = vmatprep.mubr.bf16.mxu0 %v508
  %690 = vmatmul.mubr.bf16.gmra.mrb[0].mxu0 %v325
  %v691 = vpop.f32.mrb[0].mxu0
  %v692 = vadd.f32 0.0, %v691
  %v693 = vpop.f32.mrb[0].mxu0
  %v694 = vpop.f32.mrb[0].mxu0
  %v695 = vadd.f32 0.0, %v694
  %v696 = vpop.f32.mrb[0].mxu0
  %697 = vmatprep.mubr.bf16.mxu0 %v511
  %698 = vmatmul.mubr.bf16.gmra.mrb[0].mxu0 %v327
  %v699 = vpop.f32.mrb[0].mxu0
  %v700 = vadd.f32 0.0, %v699
  %v701 = vpop.f32.mrb[0].mxu0
  %v702 = vpop.f32.mrb[0].mxu0
  %v703 = vadd.f32 0.0, %v702
  %v704 = vpop.f32.mrb[0].mxu0
  %705 = vmatprep.mubr.bf16.mxu0 %v514
  %706 = vmatmul.mubr.bf16.gmra.mrb[0].mxu0 %v329
  %v707 = vpop.f32.mrb[0].mxu0
  %v708 = vadd.f32 0.0, %v707
  %v709 = vpop.f32.mrb[0].mxu0
  %v710 = vpop.f32.mrb[0].mxu0
  %v711 = vadd.f32 0.0, %v710
  %v712 = vpop.f32.mrb[0].mxu0
  %713 = vmatprep.mubr.bf16.mxu0 %v517
  %714 = vmatmul.mubr.bf16.gmra.mrb[0].mxu0 %v331
  %v715 = vpop.f32.mrb[0].mxu0
  %v716 = vadd.f32 0.0, %v715
  %v717 = vpop.f32.mrb[0].mxu0
  %v718 = vpop.f32.mrb[0].mxu0
  %v719 = vadd.f32 0.0, %v718
  %v720 = vpop.f32.mrb[0].mxu0
  %721 = vmatprep.mubr.bf16.mxu0 %v520
  %722 = vmatmul.mubr.bf16.gmra.mrb[0].mxu0 %v333
  %v723 = vpop.f32.mrb[0].mxu0
  %v724 = vadd.f32 0.0, %v723
  %v725 = vpop.f32.mrb[0].mxu0
  %v726 = vpop.f32.mrb[0].mxu0
  %v727 = vadd.f32 0.0, %v726
  %v728 = vpop.f32.mrb[0].mxu0
  %729 = vmatprep.mubr.bf16.mxu0 %v523
  %730 = vmatmul.mubr.bf16.gmra.mrb[0].mxu0 %v335
  %v731 = vpop.f32.mrb[0].mxu0
  %v732 = vadd.f32 0.0, %v731
  %v733 = vpop.f32.mrb[0].mxu0
  %v734 = vpop.f32.mrb[0].mxu0
  %v735 = vadd.f32 0.0, %v734
  %v736 = vpop.f32.mrb[0].mxu0
  %737 = vmatprep.mubr.bf16.mxu0 %v526
  %738 = vmatmul.mubr.bf16.gmra.mrb[0].mxu0 %v337
  %v739 = vpop.f32.mrb[0].mxu0
  %v740 = vadd.f32 0.0, %v739
  %v741 = vpop.f32.mrb[0].mxu0
  %v742 = vpop.f32.mrb[0].mxu0
  %v743 = vadd.f32 0.0, %v742
  %v744 = vpop.f32.mrb[0].mxu0
  %745 = vmatprep.mubr.bf16.mxu0 %v529
  %746 = vmatmul.mubr.bf16.gmra.mrb[0].mxu0 %v339
  %v747 = vpop.f32.mrb[0].mxu0
  %v748 = vadd.f32 0.0, %v747
  %v749 = vpop.f32.mrb[0].mxu0
  %v750 = vpop.f32.mrb[0].mxu0
  %v751 = vadd.f32 0.0, %v750
  %v752 = vpop.f32.mrb[0].mxu0
  %753 = vmatprep.mubr.bf16.mxu0 %v532
  %754 = vmatmul.mubr.bf16.gmra.mrb[0].mxu0 %v341
  %v755 = vpop.f32.mrb[0].mxu0
  %v756 = vadd.f32 0.0, %v755
  %v757 = vpop.f32.mrb[0].mxu0
  %v758 = vpop.f32.mrb[0].mxu0
  %v759 = vadd.f32 0.0, %v758
  %v760 = vpop.f32.mrb[0].mxu0
  %761 = vmatprep.mubr.bf16.mxu0 %v535
  %762 = vmatmul.mubr.bf16.gmra.mrb[0].mxu0 %v343
  %v763 = vpop.f32.mrb[0].mxu0
  %v764 = vadd.f32 0.0, %v763
  %v765 = vpop.f32.mrb[0].mxu0
  %v766 = vpop.f32.mrb[0].mxu0
  %v767 = vadd.f32 0.0, %v766
  %v768 = vpop.f32.mrb[0].mxu0
  %769 = vmatprep.mubr.bf16.mxu0 %v538
  %770 = vmatmul.mubr.bf16.gmra.mrb[0].mxu0 %v345
  %v771 = vpop.f32.mrb[0].mxu0
  %v772 = vadd.f32 0.0, %v771
  %v773 = vpop.f32.mrb[0].mxu0
  %v774 = vpop.f32.mrb[0].mxu0
  %v775 = vadd.f32 0.0, %v774
  %v776 = vpop.f32.mrb[0].mxu0
  %777 = vmatprep.mubr.bf16.mxu0 %v541
  %778 = vmatmul.mubr.bf16.gmra.mrb[0].mxu0 %v347
  %v779 = vpop.f32.mrb[0].mxu0
  %v780 = vadd.f32 0.0, %v779
  %v781 = vpop.f32.mrb[0].mxu0
  %v782 = vpop.f32.mrb[0].mxu0
  %v783 = vadd.f32 0.0, %v782
  %v784 = vpop.f32.mrb[0].mxu0
  %785 = vmatprep.mubr.bf16.mxu0 %v544
  %786 = vmatmul.mubr.bf16.gmra.mrb[0].mxu0 %v349
  %v787 = vpop.f32.mrb[0].mxu0
  %v788 = vadd.f32 0.0, %v787
  %v789 = vpop.f32.mrb[0].mxu0
  %v790 = vpop.f32.mrb[0].mxu0
  %v791 = vadd.f32 0.0, %v790
  %v792 = vpop.f32.mrb[0].mxu0
  %793 = vmatprep.mubr.bf16.mxu0 %v547
  %794 = vmatmul.mubr.bf16.gmra.mrb[0].mxu0 %v351
  %v795 = vpop.f32.mrb[0].mxu0
  %v796 = vadd.f32 0.0, %v795
  %v797 = vpop.f32.mrb[0].mxu0
  %v798 = vpop.f32.mrb[0].mxu0
  %v799 = vadd.f32 0.0, %v798
  %v800 = vpop.f32.mrb[0].mxu0
  %801 = vmatprep.mubr.bf16.mxu0 %v550
  %802 = vmatmul.mubr.bf16.gmra.mrb[0].mxu0 %v353
  %v803 = vpop.f32.mrb[0].mxu0
  %v804 = vadd.f32 0.0, %v803
  %v805 = vpop.f32.mrb[0].mxu0
  %v806 = vpop.f32.mrb[0].mxu0
  %v807 = vadd.f32 0.0, %v806
  %v808 = vpop.f32.mrb[0].mxu0
  %809 = vmatprep.mubr.bf16.mxu0 %v553
  %810 = vmatmul.mubr.bf16.gmra.mrb[0].mxu0 %v355
  %v811 = vpop.f32.mrb[0].mxu0
  %v812 = vadd.f32 0.0, %v811
  %v813 = vpop.f32.mrb[0].mxu0
  %v814 = vpop.f32.mrb[0].mxu0
  %v815 = vadd.f32 0.0, %v814
  %v816 = vpop.f32.mrb[0].mxu0
  %817 = vmatprep.mubr.bf16.mxu0 %v556
  %818 = vmatmul.mubr.bf16.gmra.mrb[0].mxu0 %v357
  %v819 = vpop.f32.mrb[0].mxu0
  %v820 = vadd.f32 0.0, %v819
  %v821 = vpop.f32.mrb[0].mxu0
  %v822 = vpop.f32.mrb[0].mxu0
  %v823 = vadd.f32 0.0, %v822
  %v824 = vpop.f32.mrb[0].mxu0
  %825 = vmatprep.mubr.bf16.mxu0 %v559
  %826 = vmatmul.mubr.bf16.gmra.mrb[0].mxu0 %v359
  %v827 = vpop.f32.mrb[0].mxu0
  %v828 = vadd.f32 0.0, %v827
  %v829 = vpop.f32.mrb[0].mxu0
  %v830 = vpop.f32.mrb[0].mxu0
  %v831 = vadd.f32 0.0, %v830
  %v832 = vpop.f32.mrb[0].mxu0
  %833 = vmatprep.mubr.bf16.mxu0 %v562
  %834 = vmatmul.mubr.bf16.gmra.mrb[0].mxu0 %v361
  %v835 = vpop.f32.mrb[0].mxu0
  %v836 = vadd.f32 0.0, %v835
  %v837 = vpop.f32.mrb[0].mxu0
  %v838 = vpop.f32.mrb[0].mxu0
  %v839 = vadd.f32 0.0, %v838
  %v840 = vpop.f32.mrb[0].mxu0
  %841 = vmatprep.mubr.bf16.mxu0 %v565
  %842 = vmatmul.mubr.bf16.gmra.mrb[0].mxu0 %v363
  %v843 = vpop.f32.mrb[0].mxu0
  %v844 = vadd.f32 0.0, %v843
  %v845 = vpop.f32.mrb[0].mxu0
  %v846 = vpop.f32.mrb[0].mxu0
  %v847 = vadd.f32 0.0, %v846
  %v848 = vpop.f32.mrb[0].mxu0
  %849 = vmatprep.mubr.bf16.mxu0 %v568
  %850 = vmatmul.mubr.bf16.gmra.mrb[0].mxu0 %v365
  %v851 = vpop.f32.mrb[0].mxu0
  %v852 = vadd.f32 0.0, %v851
  %v853 = vpop.f32.mrb[0].mxu0
  %v854 = vpop.f32.mrb[0].mxu0
  %v855 = vadd.f32 0.0, %v854
  %v856 = vpop.f32.mrb[0].mxu0
  %857 = vmatprep.mubr.bf16.mxu0 %v571
  %858 = vmatmul.mubr.bf16.gmra.mrb[0].mxu0 %v367
  %v859 = vpop.f32.mrb[0].mxu0
  %v860 = vadd.f32 0.0, %v859
  %v861 = vpop.f32.mrb[0].mxu0
  %v862 = vpop.f32.mrb[0].mxu0
  %v863 = vadd.f32 0.0, %v862
  %v864 = vpop.f32.mrb[0].mxu0
  %865 = vdwg.mxu0
  %v866 = vld [vmem:[%s1] sm:$0xff]
  %v867 = vld [vmem:[%s1 + $0x8] sm:$0xff]
  %v868 = vld [vmem:[%s1 + $0x10] sm:$0xff]
  %v869 = vld [vmem:[%s1 + $0x18] sm:$0xff]
  %v870 = vld [vmem:[%s1 + $0x20] sm:$0xff]
  %v871 = vld [vmem:[%s1 + $0x28] sm:$0xff]
  %v872 = vld [vmem:[%s1 + $0x30] sm:$0xff]
  %v873 = vld [vmem:[%s1 + $0x38] sm:$0xff]
  %v874 = vld [vmem:[%s1 + $0x40] sm:$0xff]
  %v875 = vld [vmem:[%s1 + $0x48] sm:$0xff]
  %v876 = vld [vmem:[%s1 + $0x50] sm:$0xff]
  %v877 = vld [vmem:[%s1 + $0x58] sm:$0xff]
  %v878 = vld [vmem:[%s1 + $0x60] sm:$0xff]
  %v879 = vld [vmem:[%s1 + $0x68] sm:$0xff]
  %v880 = vld [vmem:[%s1 + $0x70] sm:$0xff]
  %v881 = vld [vmem:[%s1 + $0x78] sm:$0xff]
  %v882 = vld [vmem:[%s1 + $0x80] sm:$0xff]
  %v883 = vld [vmem:[%s1 + $0x88] sm:$0xff]
  %v884 = vld [vmem:[%s1 + $0x90] sm:$0xff]
  %v885 = vld [vmem:[%s1 + $0x98] sm:$0xff]
  %v886 = vld [vmem:[%s1 + $0xa0] sm:$0xff]
  %v887 = vld [vmem:[%s1 + $0xa8] sm:$0xff]
  %v888 = vld [vmem:[%s1 + $0xb0] sm:$0xff]
  %v889 = vld [vmem:[%s1 + $0xb8] sm:$0xff]
  %v890 = vld [vmem:[%s1 + $0xc0] sm:$0xff]
  %v891 = vld [vmem:[%s1 + $0xc8] sm:$0xff]
  %v892 = vld [vmem:[%s1 + $0xd0] sm:$0xff]
  %v893 = vld [vmem:[%s1 + $0xd8] sm:$0xff]
  %v894 = vld [vmem:[%s1 + $0xe0] sm:$0xff]
  %v895 = vld [vmem:[%s1 + $0xe8] sm:$0xff]
  %v896 = vld [vmem:[%s1 + $0xf0] sm:$0xff]
  %v897 = vld [vmem:[%s1 + $0xf8] sm:$0xff]
  %v898 = vld [vmem:[%s1 + $0x100] sm:$0xff]
  %v899 = vld [vmem:[%s1 + $0x108] sm:$0xff]
  %v900 = vld [vmem:[%s1 + $0x110] sm:$0xff]
  %v901 = vld [vmem:[%s1 + $0x118] sm:$0xff]
  %v902 = vld [vmem:[%s1 + $0x120] sm:$0xff]
  %v903 = vld [vmem:[%s1 + $0x128] sm:$0xff]
  %v904 = vld [vmem:[%s1 + $0x130] sm:$0xff]
  %v905 = vld [vmem:[%s1 + $0x138] sm:$0xff]
  %v906 = vld [vmem:[%s1 + $0x140] sm:$0xff]
  %v907 = vld [vmem:[%s1 + $0x148] sm:$0xff]
  %v908 = vld [vmem:[%s1 + $0x150] sm:$0xff]
  %v909 = vld [vmem:[%s1 + $0x158] sm:$0xff]
  %v910 = vld [vmem:[%s1 + $0x160] sm:$0xff]
  %v911 = vld [vmem:[%s1 + $0x168] sm:$0xff]
  %v912 = vld [vmem:[%s1 + $0x170] sm:$0xff]
  %v913 = vld [vmem:[%s1 + $0x178] sm:$0xff]
  %v914 = vld [vmem:[%s1 + $0x180] sm:$0xff]
  %v915 = vld [vmem:[%s1 + $0x188] sm:$0xff]
  %v916 = vld [vmem:[%s1 + $0x190] sm:$0xff]
  %v917 = vld [vmem:[%s1 + $0x198] sm:$0xff]
  %v918 = vld [vmem:[%s1 + $0x1a0] sm:$0xff]
  %v919 = vld [vmem:[%s1 + $0x1a8] sm:$0xff]
  %v920 = vld [vmem:[%s1 + $0x1b0] sm:$0xff]
  %v921 = vld [vmem:[%s1 + $0x1b8] sm:$0xff]
  %v922 = vld [vmem:[%s1 + $0x1c0] sm:$0xff]
  %v923 = vld [vmem:[%s1 + $0x1c8] sm:$0xff]
  %v924 = vld [vmem:[%s1 + $0x1d0] sm:$0xff]
  %v925 = vld [vmem:[%s1 + $0x1d8] sm:$0xff]
  %v926 = vld [vmem:[%s1 + $0x1e0] sm:$0xff]
  %v927 = vld [vmem:[%s1 + $0x1e8] sm:$0xff]
  %v928 = vld [vmem:[%s1 + $0x1f0] sm:$0xff]
  %v929 = vld [vmem:[%s1 + $0x1f8] sm:$0xff]
  %v994 = vunpack.c.l.b16 %v866
  %v995 = vunpack.c.h.b16 %v866
  %v996 = vunpack.c.l.b16 %v867
  %v997 = vunpack.c.h.b16 %v867
  %v998 = vunpack.c.l.b16 %v868
  %v999 = vunpack.c.h.b16 %v868
  %v1000 = vunpack.c.l.b16 %v869
  %v1001 = vunpack.c.h.b16 %v869
  %v1002 = vunpack.c.l.b16 %v870
  %v1003 = vunpack.c.h.b16 %v870
  %v1004 = vunpack.c.l.b16 %v871
  %v1005 = vunpack.c.h.b16 %v871
  %v1006 = vunpack.c.l.b16 %v872
  %v1007 = vunpack.c.h.b16 %v872
  %v1008 = vunpack.c.l.b16 %v873
  %v1009 = vunpack.c.h.b16 %v873
  %v1010 = vunpack.c.l.b16 %v874
  %v1011 = vunpack.c.h.b16 %v874
  %v1012 = vunpack.c.l.b16 %v875
  %v1013 = vunpack.c.h.b16 %v875
  %v1014 = vunpack.c.l.b16 %v876
  %v1015 = vunpack.c.h.b16 %v876
  %v1016 = vunpack.c.l.b16 %v877
  %v1017 = vunpack.c.h.b16 %v877
  %v1018 = vunpack.c.l.b16 %v878
  %v1019 = vunpack.c.h.b16 %v878
  %v1020 = vunpack.c.l.b16 %v879
  %v1021 = vunpack.c.h.b16 %v879
  %v1022 = vunpack.c.l.b16 %v880
  %v1023 = vunpack.c.h.b16 %v880
  %v1024 = vunpack.c.l.b16 %v881
  %v1025 = vunpack.c.h.b16 %v881
  %v1026 = vunpack.c.l.b16 %v882
  %v1027 = vunpack.c.h.b16 %v882
  %v1028 = vunpack.c.l.b16 %v883
  %v1029 = vunpack.c.h.b16 %v883
  %v1030 = vunpack.c.l.b16 %v884
  %v1031 = vunpack.c.h.b16 %v884
  %v1032 = vunpack.c.l.b16 %v885
  %v1033 = vunpack.c.h.b16 %v885
  %v1034 = vunpack.c.l.b16 %v886
  %v1035 = vunpack.c.h.b16 %v886
  %v1036 = vunpack.c.l.b16 %v887
  %v1037 = vunpack.c.h.b16 %v887
  %v1038 = vunpack.c.l.b16 %v888
  %v1039 = vunpack.c.h.b16 %v888
  %v1040 = vunpack.c.l.b16 %v889
  %v1041 = vunpack.c.h.b16 %v889
  %v1042 = vunpack.c.l.b16 %v890
  %v1043 = vunpack.c.h.b16 %v890
  %v1044 = vunpack.c.l.b16 %v891
  %v1045 = vunpack.c.h.b16 %v891
  %v1046 = vunpack.c.l.b16 %v892
  %v1047 = vunpack.c.h.b16 %v892
  %v1048 = vunpack.c.l.b16 %v893
  %v1049 = vunpack.c.h.b16 %v893
  %v1050 = vunpack.c.l.b16 %v894
  %v1051 = vunpack.c.h.b16 %v894
  %v1052 = vunpack.c.l.b16 %v895
  %v1053 = vunpack.c.h.b16 %v895
  %v1054 = vunpack.c.l.b16 %v896
  %v1055 = vunpack.c.h.b16 %v896
  %v1056 = vunpack.c.l.b16 %v897
  %v1057 = vunpack.c.h.b16 %v897
  %v1058 = vunpack.c.l.b16 %v898
  %v1059 = vunpack.c.h.b16 %v898
  %v1060 = vunpack.c.l.b16 %v899
  %v1061 = vunpack.c.h.b16 %v899
  %v1062 = vunpack.c.l.b16 %v900
  %v1063 = vunpack.c.h.b16 %v900
  %v1064 = vunpack.c.l.b16 %v901
  %v1065 = vunpack.c.h.b16 %v901
  %v1066 = vunpack.c.l.b16 %v902
  %v1067 = vunpack.c.h.b16 %v902
  %v1068 = vunpack.c.l.b16 %v903
  %v1069 = vunpack.c.h.b16 %v903
  %v1070 = vunpack.c.l.b16 %v904
  %v1071 = vunpack.c.h.b16 %v904
  %v1072 = vunpack.c.l.b16 %v905
  %v1073 = vunpack.c.h.b16 %v905
  %v1074 = vunpack.c.l.b16 %v906
  %v1075 = vunpack.c.h.b16 %v906
  %v1076 = vunpack.c.l.b16 %v907
  %v1077 = vunpack.c.h.b16 %v907
  %v1078 = vunpack.c.l.b16 %v908
  %v1079 = vunpack.c.h.b16 %v908
  %v1080 = vunpack.c.l.b16 %v909
  %v1081 = vunpack.c.h.b16 %v909
  %v1082 = vunpack.c.l.b16 %v910
  %v1083 = vunpack.c.h.b16 %v910
  %v1084 = vunpack.c.l.b16 %v911
  %v1085 = vunpack.c.h.b16 %v911
  %v1086 = vunpack.c.l.b16 %v912
  %v1087 = vunpack.c.h.b16 %v912
  %v1088 = vunpack.c.l.b16 %v913
  %v1089 = vunpack.c.h.b16 %v913
  %v1090 = vunpack.c.l.b16 %v914
  %v1091 = vunpack.c.h.b16 %v914
  %v1092 = vunpack.c.l.b16 %v915
  %v1093 = vunpack.c.h.b16 %v915
  %v1094 = vunpack.c.l.b16 %v916
  %v1095 = vunpack.c.h.b16 %v916
  %v1096 = vunpack.c.l.b16 %v917
  %v1097 = vunpack.c.h.b16 %v917
  %v1098 = vunpack.c.l.b16 %v918
  %v1099 = vunpack.c.h.b16 %v918
  %v1100 = vunpack.c.l.b16 %v919
  %v1101 = vunpack.c.h.b16 %v919
  %v1102 = vunpack.c.l.b16 %v920
  %v1103 = vunpack.c.h.b16 %v920
  %v1104 = vunpack.c.l.b16 %v921
  %v1105 = vunpack.c.h.b16 %v921
  %v1106 = vunpack.c.l.b16 %v922
  %v1107 = vunpack.c.h.b16 %v922
  %v1108 = vunpack.c.l.b16 %v923
  %v1109 = vunpack.c.h.b16 %v923
  %v1110 = vunpack.c.l.b16 %v924
  %v1111 = vunpack.c.h.b16 %v924
  %v1112 = vunpack.c.l.b16 %v925
  %v1113 = vunpack.c.h.b16 %v925
  %v1114 = vunpack.c.l.b16 %v926
  %v1115 = vunpack.c.h.b16 %v926
  %v1116 = vunpack.c.l.b16 %v927
  %v1117 = vunpack.c.h.b16 %v927
  %v1118 = vunpack.c.l.b16 %v928
  %v1119 = vunpack.c.h.b16 %v928
  %v1120 = vunpack.c.l.b16 %v929
  %v1121 = vunpack.c.h.b16 %v929
  %v1122 = vpack.c.b16 %v996, %v994
  %v1123 = vpack.c.b16 %v997, %v995
  %v1124 = vpack.c.b16 %v1000, %v998
  %v1125 = vpack.c.b16 %v1001, %v999
  %v1126 = vpack.c.b16 %v1004, %v1002
  %v1127 = vpack.c.b16 %v1005, %v1003
  %v1128 = vpack.c.b16 %v1008, %v1006
  %v1129 = vpack.c.b16 %v1009, %v1007
  %v1130 = vpack.c.b16 %v1012, %v1010
  %v1131 = vpack.c.b16 %v1013, %v1011
  %v1132 = vpack.c.b16 %v1016, %v1014
  %v1133 = vpack.c.b16 %v1017, %v1015
  %v1134 = vpack.c.b16 %v1020, %v1018
  %v1135 = vpack.c.b16 %v1021, %v1019
  %v1136 = vpack.c.b16 %v1024, %v1022
  %v1137 = vpack.c.b16 %v1025, %v1023
  %v1138 = vpack.c.b16 %v1028, %v1026
  %v1139 = vpack.c.b16 %v1029, %v1027
  %v1140 = vpack.c.b16 %v1032, %v1030
  %v1141 = vpack.c.b16 %v1033, %v1031
  %v1142 = vpack.c.b16 %v1036, %v1034
  %v1143 = vpack.c.b16 %v1037, %v1035
  %v1144 = vpack.c.b16 %v1040, %v1038
  %v1145 = vpack.c.b16 %v1041, %v1039
  %v1146 = vpack.c.b16 %v1044, %v1042
  %v1147 = vpack.c.b16 %v1045, %v1043
  %v1148 = vpack.c.b16 %v1048, %v1046
  %v1149 = vpack.c.b16 %v1049, %v1047
  %v1150 = vpack.c.b16 %v1052, %v1050
  %v1151 = vpack.c.b16 %v1053, %v1051
  %v1152 = vpack.c.b16 %v1056, %v1054
  %v1153 = vpack.c.b16 %v1057, %v1055
  %v1154 = vpack.c.b16 %v1060, %v1058
  %v1155 = vpack.c.b16 %v1061, %v1059
  %v1156 = vpack.c.b16 %v1064, %v1062
  %v1157 = vpack.c.b16 %v1065, %v1063
  %v1158 = vpack.c.b16 %v1068, %v1066
  %v1159 = vpack.c.b16 %v1069, %v1067
  %v1160 = vpack.c.b16 %v1072, %v1070
  %v1161 = vpack.c.b16 %v1073, %v1071
  %v1162 = vpack.c.b16 %v1076, %v1074
  %v1163 = vpack.c.b16 %v1077, %v1075
  %v1164 = vpack.c.b16 %v1080, %v1078
  %v1165 = vpack.c.b16 %v1081, %v1079
  %v1166 = vpack.c.b16 %v1084, %v1082
  %v1167 = vpack.c.b16 %v1085, %v1083
  %v1168 = vpack.c.b16 %v1088, %v1086
  %v1169 = vpack.c.b16 %v1089, %v1087
  %v1170 = vpack.c.b16 %v1092, %v1090
  %v1171 = vpack.c.b16 %v1093, %v1091
  %v1172 = vpack.c.b16 %v1096, %v1094
  %v1173 = vpack.c.b16 %v1097, %v1095
  %v1174 = vpack.c.b16 %v1100, %v1098
  %v1175 = vpack.c.b16 %v1101, %v1099
  %v1176 = vpack.c.b16 %v1104, %v1102
  %v1177 = vpack.c.b16 %v1105, %v1103
  %v1178 = vpack.c.b16 %v1108, %v1106
  %v1179 = vpack.c.b16 %v1109, %v1107
  %v1180 = vpack.c.b16 %v1112, %v1110
  %v1181 = vpack.c.b16 %v1113, %v1111
  %v1182 = vpack.c.b16 %v1116, %v1114
  %v1183 = vpack.c.b16 %v1117, %v1115
  %v1184 = vpack.c.b16 %v1120, %v1118
  %v1185 = vpack.c.b16 %v1121, %v1119
  %v1219 = vsel %vm476, %v1123, 0
  %v1222 = vsel %vm476, %v1125, 0
  %v1225 = vsel %vm476, %v1127, 0
  %v1228 = vsel %vm476, %v1129, 0
  %v1231 = vsel %vm476, %v1131, 0
  %v1234 = vsel %vm476, %v1133, 0
  %v1237 = vsel %vm476, %v1135, 0
  %v1240 = vsel %vm476, %v1137, 0
  %v1243 = vsel %vm476, %v1139, 0
  %v1246 = vsel %vm476, %v1141, 0
  %v1249 = vsel %vm476, %v1143, 0
  %v1252 = vsel %vm476, %v1145, 0
  %v1255 = vsel %vm476, %v1147, 0
  %v1258 = vsel %vm476, %v1149, 0
  %v1261 = vsel %vm476, %v1151, 0
  %v1264 = vsel %vm476, %v1153, 0
  %v1267 = vsel %vm476, %v1155, 0
  %v1270 = vsel %vm476, %v1157, 0
  %v1273 = vsel %vm476, %v1159, 0
  %v1276 = vsel %vm476, %v1161, 0
  %v1279 = vsel %vm476, %v1163, 0
  %v1282 = vsel %vm476, %v1165, 0
  %v1285 = vsel %vm476, %v1167, 0
  %v1288 = vsel %vm476, %v1169, 0
  %v1291 = vsel %vm476, %v1171, 0
  %v1294 = vsel %vm476, %v1173, 0
  %v1297 = vsel %vm476, %v1175, 0
  %v1300 = vsel %vm476, %v1177, 0
  %v1303 = vsel %vm476, %v1179, 0
  %v1306 = vsel %vm476, %v1181, 0
  %v1309 = vsel %vm476, %v1183, 0
  %v1312 = vsel %vm476, %v1185, 0
  %1314 = vmatprep.subr.bf16.mxu0 0
  %1315 = vmatpush1.bf16.msra.mxu0 %v451
  %1316 = vmatprep.subr.bf16.mxu0 0
  %1317 = vmatpush1.bf16.msra.mxu0 %v452
  %1318 = vmatprep.subr.bf16.mxu0 0
  %1319 = vmatpush1.bf16.msra.mxu0 %v453
  %1320 = vmatprep.subr.bf16.mxu0 0
  %1321 = vmatpush1.bf16.msra.mxu0 %v454
  %1322 = vmatprep.subr.bf16.mxu0 0
  %1323 = vmatpush1.bf16.msra.mxu0 %v455
  %1324 = vmatprep.subr.bf16.mxu0 0
  %1325 = vmatpush1.bf16.msra.mxu0 %v456
  %1326 = vmatprep.subr.bf16.mxu0 0
  %1327 = vmatpush1.bf16.msra.mxu0 %v457
  %1328 = vmatprep.subr.bf16.mxu0 0
  %1329 = vmatpush1.bf16.msra.mxu0 %v458
  %1330 = vmatprep.subr.bf16.mxu0 0
  %1331 = vmatpush1.bf16.msra.mxu0 %v459
  %1332 = vmatprep.subr.bf16.mxu0 0
  %1333 = vmatpush1.bf16.msra.mxu0 %v460
  %1334 = vmatprep.subr.bf16.mxu0 0
  %1335 = vmatpush1.bf16.msra.mxu0 %v461
  %1336 = vmatprep.subr.bf16.mxu0 0
  %1337 = vmatpush1.bf16.msra.mxu0 %v462
  %1338 = vmatprep.subr.bf16.mxu0 0
  %1339 = vmatpush1.bf16.msra.mxu0 %v575
  %1340 = vmatprep.subr.bf16.mxu0 0
  %1341 = vmatpush1.bf16.msra.mxu0 0
  %1342 = vmatprep.subr.bf16.mxu0 0
  %1343 = vmatpush1.bf16.msra.mxu0 0
  %1344 = vmatprep.subr.bf16.mxu0 0
  %1345 = vmatpush1.bf16.msra.mxu0 0
  %1346 = vmatprep.mubr.bf16.mxu0 %v1219
  %1347 = vmatmul.mubr.bf16.gmra.mrb[0].mxu0 %v1122
  %v1348 = vpop.f32.mrb[0].mxu0
  %v1349 = vadd.f32 0.0, %v1348
  %v1350 = vpop.f32.mrb[0].mxu0
  %v1351 = vpop.f32.mrb[0].mxu0
  %v1352 = vadd.f32 0.0, %v1351
  %v1353 = vpop.f32.mrb[0].mxu0
  %1354 = vmatprep.mubr.bf16.mxu0 %v1222
  %1355 = vmatmul.mubr.bf16.gmra.mrb[0].mxu0 %v1124
  %v1356 = vpop.f32.mrb[0].mxu0
  %v1357 = vadd.f32 0.0, %v1356
  %v1358 = vpop.f32.mrb[0].mxu0
  %v1359 = vpop.f32.mrb[0].mxu0
  %v1360 = vadd.f32 0.0, %v1359
  %v1361 = vpop.f32.mrb[0].mxu0
  %1362 = vmatprep.mubr.bf16.mxu0 %v1225
  %1363 = vmatmul.mubr.bf16.gmra.mrb[0].mxu0 %v1126
  %v1364 = vpop.f32.mrb[0].mxu0
  %v1365 = vadd.f32 0.0, %v1364
  %v1366 = vpop.f32.mrb[0].mxu0
  %v1367 = vpop.f32.mrb[0].mxu0
  %v1368 = vadd.f32 0.0, %v1367
  %v1369 = vpop.f32.mrb[0].mxu0
  %1370 = vmatprep.mubr.bf16.mxu0 %v1228
  %1371 = vmatmul.mubr.bf16.gmra.mrb[0].mxu0 %v1128
  %v1372 = vpop.f32.mrb[0].mxu0
  %v1373 = vadd.f32 0.0, %v1372
  %v1374 = vpop.f32.mrb[0].mxu0
  %v1375 = vpop.f32.mrb[0].mxu0
  %v1376 = vadd.f32 0.0, %v1375
  %v1377 = vpop.f32.mrb[0].mxu0
  %1378 = vmatprep.mubr.bf16.mxu0 %v1231
  %1379 = vmatmul.mubr.bf16.gmra.mrb[0].mxu0 %v1130
  %v1380 = vpop.f32.mrb[0].mxu0
  %v1381 = vadd.f32 0.0, %v1380
  %v1382 = vpop.f32.mrb[0].mxu0
  %v1383 = vpop.f32.mrb[0].mxu0
  %v1384 = vadd.f32 0.0, %v1383
  %v1385 = vpop.f32.mrb[0].mxu0
  %1386 = vmatprep.mubr.bf16.mxu0 %v1234
  %1387 = vmatmul.mubr.bf16.gmra.mrb[0].mxu0 %v1132
  %v1388 = vpop.f32.mrb[0].mxu0
  %v1389 = vadd.f32 0.0, %v1388
  %v1390 = vpop.f32.mrb[0].mxu0
  %v1391 = vpop.f32.mrb[0].mxu0
  %v1392 = vadd.f32 0.0, %v1391
  %v1393 = vpop.f32.mrb[0].mxu0
  %1394 = vmatprep.mubr.bf16.mxu0 %v1237
  %1395 = vmatmul.mubr.bf16.gmra.mrb[0].mxu0 %v1134
  %v1396 = vpop.f32.mrb[0].mxu0
  %v1397 = vadd.f32 0.0, %v1396
  %v1398 = vpop.f32.mrb[0].mxu0
  %v1399 = vpop.f32.mrb[0].mxu0
  %v1400 = vadd.f32 0.0, %v1399
  %v1401 = vpop.f32.mrb[0].mxu0
  %1402 = vmatprep.mubr.bf16.mxu0 %v1240
  %1403 = vmatmul.mubr.bf16.gmra.mrb[0].mxu0 %v1136
  %v1404 = vpop.f32.mrb[0].mxu0
  %v1405 = vadd.f32 0.0, %v1404
  %v1406 = vpop.f32.mrb[0].mxu0
  %v1407 = vpop.f32.mrb[0].mxu0
  %v1408 = vadd.f32 0.0, %v1407
  %v1409 = vpop.f32.mrb[0].mxu0
  %1410 = vmatprep.mubr.bf16.mxu0 %v1243
  %1411 = vmatmul.mubr.bf16.gmra.mrb[0].mxu0 %v1138
  %v1412 = vpop.f32.mrb[0].mxu0
  %v1413 = vadd.f32 0.0, %v1412
  %v1414 = vpop.f32.mrb[0].mxu0
  %v1415 = vpop.f32.mrb[0].mxu0
  %v1416 = vadd.f32 0.0, %v1415
  %v1417 = vpop.f32.mrb[0].mxu0
  %1418 = vmatprep.mubr.bf16.mxu0 %v1246
  %1419 = vmatmul.mubr.bf16.gmra.mrb[0].mxu0 %v1140
  %v1420 = vpop.f32.mrb[0].mxu0
  %v1421 = vadd.f32 0.0, %v1420
  %v1422 = vpop.f32.mrb[0].mxu0
  %v1423 = vpop.f32.mrb[0].mxu0
  %v1424 = vadd.f32 0.0, %v1423
  %v1425 = vpop.f32.mrb[0].mxu0
  %1426 = vmatprep.mubr.bf16.mxu0 %v1249
  %1427 = vmatmul.mubr.bf16.gmra.mrb[0].mxu0 %v1142
  %v1428 = vpop.f32.mrb[0].mxu0
  %v1429 = vadd.f32 0.0, %v1428
  %v1430 = vpop.f32.mrb[0].mxu0
  %v1431 = vpop.f32.mrb[0].mxu0
  %v1432 = vadd.f32 0.0, %v1431
  %v1433 = vpop.f32.mrb[0].mxu0
  %1434 = vmatprep.mubr.bf16.mxu0 %v1252
  %1435 = vmatmul.mubr.bf16.gmra.mrb[0].mxu0 %v1144
  %v1436 = vpop.f32.mrb[0].mxu0
  %v1437 = vadd.f32 0.0, %v1436
  %v1438 = vpop.f32.mrb[0].mxu0
  %v1439 = vpop.f32.mrb[0].mxu0
  %v1440 = vadd.f32 0.0, %v1439
  %v1441 = vpop.f32.mrb[0].mxu0
  %1442 = vmatprep.mubr.bf16.mxu0 %v1255
  %1443 = vmatmul.mubr.bf16.gmra.mrb[0].mxu0 %v1146
  %v1444 = vpop.f32.mrb[0].mxu0
  %v1445 = vadd.f32 0.0, %v1444
  %v1446 = vpop.f32.mrb[0].mxu0
  %v1447 = vpop.f32.mrb[0].mxu0
  %v1448 = vadd.f32 0.0, %v1447
  %v1449 = vpop.f32.mrb[0].mxu0
  %1450 = vmatprep.mubr.bf16.mxu0 %v1258
  %1451 = vmatmul.mubr.bf16.gmra.mrb[0].mxu0 %v1148
  %v1452 = vpop.f32.mrb[0].mxu0
  %v1453 = vadd.f32 0.0, %v1452
  %v1454 = vpop.f32.mrb[0].mxu0
  %v1455 = vpop.f32.mrb[0].mxu0
  %v1456 = vadd.f32 0.0, %v1455
  %v1457 = vpop.f32.mrb[0].mxu0
  %1458 = vmatprep.mubr.bf16.mxu0 %v1261
  %1459 = vmatmul.mubr.bf16.gmra.mrb[0].mxu0 %v1150
  %v1460 = vpop.f32.mrb[0].mxu0
  %v1461 = vadd.f32 0.0, %v1460
  %v1462 = vpop.f32.mrb[0].mxu0
  %v1463 = vpop.f32.mrb[0].mxu0
  %v1464 = vadd.f32 0.0, %v1463
  %v1465 = vpop.f32.mrb[0].mxu0
  %1466 = vmatprep.mubr.bf16.mxu0 %v1264
  %1467 = vmatmul.mubr.bf16.gmra.mrb[0].mxu0 %v1152
  %v1468 = vpop.f32.mrb[0].mxu0
  %v1469 = vadd.f32 0.0, %v1468
  %v1470 = vpop.f32.mrb[0].mxu0
  %v1471 = vpop.f32.mrb[0].mxu0
  %v1472 = vadd.f32 0.0, %v1471
  %v1473 = vpop.f32.mrb[0].mxu0
  %1474 = vmatprep.mubr.bf16.mxu0 %v1267
  %1475 = vmatmul.mubr.bf16.gmra.mrb[0].mxu0 %v1154
  %v1476 = vpop.f32.mrb[0].mxu0
  %v1477 = vadd.f32 0.0, %v1476
  %v1478 = vpop.f32.mrb[0].mxu0
  %v1479 = vpop.f32.mrb[0].mxu0
  %v1480 = vadd.f32 0.0, %v1479
  %v1481 = vpop.f32.mrb[0].mxu0
  %1482 = vmatprep.mubr.bf16.mxu0 %v1270
  %1483 = vmatmul.mubr.bf16.gmra.mrb[0].mxu0 %v1156
  %v1484 = vpop.f32.mrb[0].mxu0
  %v1485 = vadd.f32 0.0, %v1484
  %v1486 = vpop.f32.mrb[0].mxu0
  %v1487 = vpop.f32.mrb[0].mxu0
  %v1488 = vadd.f32 0.0, %v1487
  %v1489 = vpop.f32.mrb[0].mxu0
  %1490 = vmatprep.mubr.bf16.mxu0 %v1273
  %1491 = vmatmul.mubr.bf16.gmra.mrb[0].mxu0 %v1158
  %v1492 = vpop.f32.mrb[0].mxu0
  %v1493 = vadd.f32 0.0, %v1492
  %v1494 = vpop.f32.mrb[0].mxu0
  %v1495 = vpop.f32.mrb[0].mxu0
  %v1496 = vadd.f32 0.0, %v1495
  %v1497 = vpop.f32.mrb[0].mxu0
  %1498 = vmatprep.mubr.bf16.mxu0 %v1276
  %1499 = vmatmul.mubr.bf16.gmra.mrb[0].mxu0 %v1160
  %v1500 = vpop.f32.mrb[0].mxu0
  %v1501 = vadd.f32 0.0, %v1500
  %v1502 = vpop.f32.mrb[0].mxu0
  %v1503 = vpop.f32.mrb[0].mxu0
  %v1504 = vadd.f32 0.0, %v1503
  %v1505 = vpop.f32.mrb[0].mxu0
  %1506 = vmatprep.mubr.bf16.mxu0 %v1279
  %1507 = vmatmul.mubr.bf16.gmra.mrb[0].mxu0 %v1162
  %v1508 = vpop.f32.mrb[0].mxu0
  %v1509 = vadd.f32 0.0, %v1508
  %v1510 = vpop.f32.mrb[0].mxu0
  %v1511 = vpop.f32.mrb[0].mxu0
  %v1512 = vadd.f32 0.0, %v1511
  %v1513 = vpop.f32.mrb[0].mxu0
  %1514 = vmatprep.mubr.bf16.mxu0 %v1282
  %1515 = vmatmul.mubr.bf16.gmra.mrb[0].mxu0 %v1164
  %v1516 = vpop.f32.mrb[0].mxu0
  %v1517 = vadd.f32 0.0, %v1516
  %v1518 = vpop.f32.mrb[0].mxu0
  %v1519 = vpop.f32.mrb[0].mxu0
  %v1520 = vadd.f32 0.0, %v1519
  %v1521 = vpop.f32.mrb[0].mxu0
  %1522 = vmatprep.mubr.bf16.mxu0 %v1285
  %1523 = vmatmul.mubr.bf16.gmra.mrb[0].mxu0 %v1166
  %v1524 = vpop.f32.mrb[0].mxu0
  %v1525 = vadd.f32 0.0, %v1524
  %v1526 = vpop.f32.mrb[0].mxu0
  %v1527 = vpop.f32.mrb[0].mxu0
  %v1528 = vadd.f32 0.0, %v1527
  %v1529 = vpop.f32.mrb[0].mxu0
  %1530 = vmatprep.mubr.bf16.mxu0 %v1288
  %1531 = vmatmul.mubr.bf16.gmra.mrb[0].mxu0 %v1168
  %v1532 = vpop.f32.mrb[0].mxu0
  %v1533 = vadd.f32 0.0, %v1532
  %v1534 = vpop.f32.mrb[0].mxu0
  %v1535 = vpop.f32.mrb[0].mxu0
  %v1536 = vadd.f32 0.0, %v1535
  %v1537 = vpop.f32.mrb[0].mxu0
  %1538 = vmatprep.mubr.bf16.mxu0 %v1291
  %1539 = vmatmul.mubr.bf16.gmra.mrb[0].mxu0 %v1170
  %v1540 = vpop.f32.mrb[0].mxu0
  %v1541 = vadd.f32 0.0, %v1540
  %v1542 = vpop.f32.mrb[0].mxu0
  %v1543 = vpop.f32.mrb[0].mxu0
  %v1544 = vadd.f32 0.0, %v1543
  %v1545 = vpop.f32.mrb[0].mxu0
  %1546 = vmatprep.mubr.bf16.mxu0 %v1294
  %1547 = vmatmul.mubr.bf16.gmra.mrb[0].mxu0 %v1172
  %v1548 = vpop.f32.mrb[0].mxu0
  %v1549 = vadd.f32 0.0, %v1548
  %v1550 = vpop.f32.mrb[0].mxu0
  %v1551 = vpop.f32.mrb[0].mxu0
  %v1552 = vadd.f32 0.0, %v1551
  %v1553 = vpop.f32.mrb[0].mxu0
  %1554 = vmatprep.mubr.bf16.mxu0 %v1297
  %1555 = vmatmul.mubr.bf16.gmra.mrb[0].mxu0 %v1174
  %v1556 = vpop.f32.mrb[0].mxu0
  %v1557 = vadd.f32 0.0, %v1556
  %v1558 = vpop.f32.mrb[0].mxu0
  %v1559 = vpop.f32.mrb[0].mxu0
  %v1560 = vadd.f32 0.0, %v1559
  %v1561 = vpop.f32.mrb[0].mxu0
  %1562 = vmatprep.mubr.bf16.mxu0 %v1300
  %1563 = vmatmul.mubr.bf16.gmra.mrb[0].mxu0 %v1176
  %v1564 = vpop.f32.mrb[0].mxu0
  %v1565 = vadd.f32 0.0, %v1564
  %v1566 = vpop.f32.mrb[0].mxu0
  %v1567 = vpop.f32.mrb[0].mxu0
  %v1568 = vadd.f32 0.0, %v1567
  %v1569 = vpop.f32.mrb[0].mxu0
  %1570 = vmatprep.mubr.bf16.mxu0 %v1303
  %1571 = vmatmul.mubr.bf16.gmra.mrb[0].mxu0 %v1178
  %v1572 = vpop.f32.mrb[0].mxu0
  %v1573 = vadd.f32 0.0, %v1572
  %v1574 = vpop.f32.mrb[0].mxu0
  %v1575 = vpop.f32.mrb[0].mxu0
  %v1576 = vadd.f32 0.0, %v1575
  %v1577 = vpop.f32.mrb[0].mxu0
  %1578 = vmatprep.mubr.bf16.mxu0 %v1306
  %1579 = vmatmul.mubr.bf16.gmra.mrb[0].mxu0 %v1180
  %v1580 = vpop.f32.mrb[0].mxu0
  %v1581 = vadd.f32 0.0, %v1580
  %v1582 = vpop.f32.mrb[0].mxu0
  %v1583 = vpop.f32.mrb[0].mxu0
  %v1584 = vadd.f32 0.0, %v1583
  %v1585 = vpop.f32.mrb[0].mxu0
  %1586 = vmatprep.mubr.bf16.mxu0 %v1309
  %1587 = vmatmul.mubr.bf16.gmra.mrb[0].mxu0 %v1182
  %v1588 = vpop.f32.mrb[0].mxu0
  %v1589 = vadd.f32 0.0, %v1588
  %v1590 = vpop.f32.mrb[0].mxu0
  %v1591 = vpop.f32.mrb[0].mxu0
  %v1592 = vadd.f32 0.0, %v1591
  %v1593 = vpop.f32.mrb[0].mxu0
  %1594 = vmatprep.mubr.bf16.mxu0 %v1312
  %1595 = vmatmul.mubr.bf16.gmra.mrb[0].mxu0 %v1184
  %v1596 = vpop.f32.mrb[0].mxu0
  %v1597 = vadd.f32 0.0, %v1596
  %v1598 = vpop.f32.mrb[0].mxu0
  %v1599 = vpop.f32.mrb[0].mxu0
  %v1600 = vadd.f32 0.0, %v1599
  %v1601 = vpop.f32.mrb[0].mxu0
  %1602 = vdwg.mxu0
  %v1603 = vmax.f32 %v612, %v1349
  %v1604 = vmax.f32 %v615, %v1352
  %v1605 = vmax.f32 %v620, %v1357
  %v1606 = vmax.f32 %v623, %v1360
  %v1607 = vmax.f32 %v628, %v1365
  %v1608 = vmax.f32 %v631, %v1368
  %v1609 = vmax.f32 %v636, %v1373
  %v1610 = vmax.f32 %v639, %v1376
  %v1611 = vmax.f32 %v644, %v1381
  %v1612 = vmax.f32 %v647, %v1384
  %v1613 = vmax.f32 %v652, %v1389
  %v1614 = vmax.f32 %v655, %v1392
  %v1615 = vmax.f32 %v660, %v1397
  %v1616 = vmax.f32 %v663, %v1400
  %v1617 = vmax.f32 %v668, %v1405
  %v1618 = vmax.f32 %v671, %v1408
  %v1619 = vmax.f32 %v676, %v1413
  %v1620 = vmax.f32 %v679, %v1416
  %v1621 = vmax.f32 %v684, %v1421
  %v1622 = vmax.f32 %v687, %v1424
  %v1623 = vmax.f32 %v692, %v1429
  %v1624 = vmax.f32 %v695, %v1432
  %v1625 = vmax.f32 %v700, %v1437
  %v1626 = vmax.f32 %v703, %v1440
  %v1627 = vmax.f32 %v708, %v1445
  %v1628 = vmax.f32 %v711, %v1448
  %v1629 = vmax.f32 %v716, %v1453
  %v1630 = vmax.f32 %v719, %v1456
  %v1631 = vmax.f32 %v724, %v1461
  %v1632 = vmax.f32 %v727, %v1464
  %v1633 = vmax.f32 %v732, %v1469
  %v1634 = vmax.f32 %v735, %v1472
  %v1635 = vmax.f32 %v740, %v1477
  %v1636 = vmax.f32 %v743, %v1480
  %v1637 = vmax.f32 %v748, %v1485
  %v1638 = vmax.f32 %v751, %v1488
  %v1639 = vmax.f32 %v756, %v1493
  %v1640 = vmax.f32 %v759, %v1496
  %v1641 = vmax.f32 %v764, %v1501
  %v1642 = vmax.f32 %v767, %v1504
  %v1643 = vmax.f32 %v772, %v1509
  %v1644 = vmax.f32 %v775, %v1512
  %v1645 = vmax.f32 %v780, %v1517
  %v1646 = vmax.f32 %v783, %v1520
  %v1647 = vmax.f32 %v788, %v1525
  %v1648 = vmax.f32 %v791, %v1528
  %v1649 = vmax.f32 %v796, %v1533
  %v1650 = vmax.f32 %v799, %v1536
  %v1651 = vmax.f32 %v804, %v1541
  %v1652 = vmax.f32 %v807, %v1544
  %v1653 = vmax.f32 %v812, %v1549
  %v1654 = vmax.f32 %v815, %v1552
  %v1655 = vmax.f32 %v820, %v1557
  %v1656 = vmax.f32 %v823, %v1560
  %v1657 = vmax.f32 %v828, %v1565
  %v1658 = vmax.f32 %v831, %v1568
  %v1659 = vmax.f32 %v836, %v1573
  %v1660 = vmax.f32 %v839, %v1576
  %v1661 = vmax.f32 %v844, %v1581
  %v1662 = vmax.f32 %v847, %v1584
  %v1663 = vmax.f32 %v852, %v1589
  %v1664 = vmax.f32 %v855, %v1592
  %v1665 = vmax.f32 %v860, %v1597
  %v1666 = vmax.f32 %v863, %v1600
  %v1667 = vld [vmem:[%s2] sm:$0xff]
  %v1668 = vld [vmem:[%s2 + $0x8] sm:$0xff]
  %v1669 = vld [vmem:[%s2 + $0x10] sm:$0xff]
  %v1670 = vld [vmem:[%s2 + $0x18] sm:$0xff]
  %v1671 = vld [vmem:[%s2 + $0x20] sm:$0xff]
  %v1672 = vld [vmem:[%s2 + $0x28] sm:$0xff]
  %v1673 = vld [vmem:[%s2 + $0x30] sm:$0xff]
  %v1674 = vld [vmem:[%s2 + $0x38] sm:$0xff]
  %v1675 = vld [vmem:[%s2 + $0x40] sm:$0xff]
  %v1676 = vld [vmem:[%s2 + $0x48] sm:$0xff]
  %v1677 = vld [vmem:[%s2 + $0x50] sm:$0xff]
  %v1678 = vld [vmem:[%s2 + $0x58] sm:$0xff]
  %v1679 = vld [vmem:[%s2 + $0x60] sm:$0xff]
  %v1680 = vld [vmem:[%s2 + $0x68] sm:$0xff]
  %v1681 = vld [vmem:[%s2 + $0x70] sm:$0xff]
  %v1682 = vld [vmem:[%s2 + $0x78] sm:$0xff]
  %v1683 = vld [vmem:[%s2 + $0x80] sm:$0xff]
  %v1684 = vld [vmem:[%s2 + $0x88] sm:$0xff]
  %v1685 = vld [vmem:[%s2 + $0x90] sm:$0xff]
  %v1686 = vld [vmem:[%s2 + $0x98] sm:$0xff]
  %v1687 = vld [vmem:[%s2 + $0xa0] sm:$0xff]
  %v1688 = vld [vmem:[%s2 + $0xa8] sm:$0xff]
  %v1689 = vld [vmem:[%s2 + $0xb0] sm:$0xff]
  %v1690 = vld [vmem:[%s2 + $0xb8] sm:$0xff]
  %v1691 = vld [vmem:[%s2 + $0xc0] sm:$0xff]
  %v1692 = vld [vmem:[%s2 + $0xc8] sm:$0xff]
  %v1693 = vld [vmem:[%s2 + $0xd0] sm:$0xff]
  %v1694 = vld [vmem:[%s2 + $0xd8] sm:$0xff]
  %v1695 = vld [vmem:[%s2 + $0xe0] sm:$0xff]
  %v1696 = vld [vmem:[%s2 + $0xe8] sm:$0xff]
  %v1697 = vld [vmem:[%s2 + $0xf0] sm:$0xff]
  %v1698 = vld [vmem:[%s2 + $0xf8] sm:$0xff]
  %v1699 = vld [vmem:[%s2 + $0x100] sm:$0xff]
  %v1700 = vld [vmem:[%s2 + $0x108] sm:$0xff]
  %v1701 = vld [vmem:[%s2 + $0x110] sm:$0xff]
  %v1702 = vld [vmem:[%s2 + $0x118] sm:$0xff]
  %v1703 = vld [vmem:[%s2 + $0x120] sm:$0xff]
  %v1704 = vld [vmem:[%s2 + $0x128] sm:$0xff]
  %v1705 = vld [vmem:[%s2 + $0x130] sm:$0xff]
  %v1706 = vld [vmem:[%s2 + $0x138] sm:$0xff]
  %v1707 = vld [vmem:[%s2 + $0x140] sm:$0xff]
  %v1708 = vld [vmem:[%s2 + $0x148] sm:$0xff]
  %v1709 = vld [vmem:[%s2 + $0x150] sm:$0xff]
  %v1710 = vld [vmem:[%s2 + $0x158] sm:$0xff]
  %v1711 = vld [vmem:[%s2 + $0x160] sm:$0xff]
  %v1712 = vld [vmem:[%s2 + $0x168] sm:$0xff]
  %v1713 = vld [vmem:[%s2 + $0x170] sm:$0xff]
  %v1714 = vld [vmem:[%s2 + $0x178] sm:$0xff]
  %v1715 = vld [vmem:[%s2 + $0x180] sm:$0xff]
  %v1716 = vld [vmem:[%s2 + $0x188] sm:$0xff]
  %v1717 = vld [vmem:[%s2 + $0x190] sm:$0xff]
  %v1718 = vld [vmem:[%s2 + $0x198] sm:$0xff]
  %v1719 = vld [vmem:[%s2 + $0x1a0] sm:$0xff]
  %v1720 = vld [vmem:[%s2 + $0x1a8] sm:$0xff]
  %v1721 = vld [vmem:[%s2 + $0x1b0] sm:$0xff]
  %v1722 = vld [vmem:[%s2 + $0x1b8] sm:$0xff]
  %v1723 = vld [vmem:[%s2 + $0x1c0] sm:$0xff]
  %v1724 = vld [vmem:[%s2 + $0x1c8] sm:$0xff]
  %v1725 = vld [vmem:[%s2 + $0x1d0] sm:$0xff]
  %v1726 = vld [vmem:[%s2 + $0x1d8] sm:$0xff]
  %v1727 = vld [vmem:[%s2 + $0x1e0] sm:$0xff]
  %v1728 = vld [vmem:[%s2 + $0x1e8] sm:$0xff]
  %v1729 = vld [vmem:[%s2 + $0x1f0] sm:$0xff]
  %v1730 = vld [vmem:[%s2 + $0x1f8] sm:$0xff]
  %v1795 = vunpack.c.l.b16 %v1667
  %v1796 = vunpack.c.h.b16 %v1667
  %v1797 = vunpack.c.l.b16 %v1668
  %v1798 = vunpack.c.h.b16 %v1668
  %v1799 = vunpack.c.l.b16 %v1669
  %v1800 = vunpack.c.h.b16 %v1669
  %v1801 = vunpack.c.l.b16 %v1670
  %v1802 = vunpack.c.h.b16 %v1670
  %v1803 = vunpack.c.l.b16 %v1671
  %v1804 = vunpack.c.h.b16 %v1671
  %v1805 = vunpack.c.l.b16 %v1672
  %v1806 = vunpack.c.h.b16 %v1672
  %v1807 = vunpack.c.l.b16 %v1673
  %v1808 = vunpack.c.h.b16 %v1673
  %v1809 = vunpack.c.l.b16 %v1674
  %v1810 = vunpack.c.h.b16 %v1674
  %v1811 = vunpack.c.l.b16 %v1675
  %v1812 = vunpack.c.h.b16 %v1675
  %v1813 = vunpack.c.l.b16 %v1676
  %v1814 = vunpack.c.h.b16 %v1676
  %v1815 = vunpack.c.l.b16 %v1677
  %v1816 = vunpack.c.h.b16 %v1677
  %v1817 = vunpack.c.l.b16 %v1678
  %v1818 = vunpack.c.h.b16 %v1678
  %v1819 = vunpack.c.l.b16 %v1679
  %v1820 = vunpack.c.h.b16 %v1679
  %v1821 = vunpack.c.l.b16 %v1680
  %v1822 = vunpack.c.h.b16 %v1680
  %v1823 = vunpack.c.l.b16 %v1681
  %v1824 = vunpack.c.h.b16 %v1681
  %v1825 = vunpack.c.l.b16 %v1682
  %v1826 = vunpack.c.h.b16 %v1682
  %v1827 = vunpack.c.l.b16 %v1683
  %v1828 = vunpack.c.h.b16 %v1683
  %v1829 = vunpack.c.l.b16 %v1684
  %v1830 = vunpack.c.h.b16 %v1684
  %v1831 = vunpack.c.l.b16 %v1685
  %v1832 = vunpack.c.h.b16 %v1685
  %v1833 = vunpack.c.l.b16 %v1686
  %v1834 = vunpack.c.h.b16 %v1686
  %v1835 = vunpack.c.l.b16 %v1687
  %v1836 = vunpack.c.h.b16 %v1687
  %v1837 = vunpack.c.l.b16 %v1688
  %v1838 = vunpack.c.h.b16 %v1688
  %v1839 = vunpack.c.l.b16 %v1689
  %v1840 = vunpack.c.h.b16 %v1689
  %v1841 = vunpack.c.l.b16 %v1690
  %v1842 = vunpack.c.h.b16 %v1690
  %v1843 = vunpack.c.l.b16 %v1691
  %v1844 = vunpack.c.h.b16 %v1691
  %v1845 = vunpack.c.l.b16 %v1692
  %v1846 = vunpack.c.h.b16 %v1692
  %v1847 = vunpack.c.l.b16 %v1693
  %v1848 = vunpack.c.h.b16 %v1693
  %v1849 = vunpack.c.l.b16 %v1694
  %v1850 = vunpack.c.h.b16 %v1694
  %v1851 = vunpack.c.l.b16 %v1695
  %v1852 = vunpack.c.h.b16 %v1695
  %v1853 = vunpack.c.l.b16 %v1696
  %v1854 = vunpack.c.h.b16 %v1696
  %v1855 = vunpack.c.l.b16 %v1697
  %v1856 = vunpack.c.h.b16 %v1697
  %v1857 = vunpack.c.l.b16 %v1698
  %v1858 = vunpack.c.h.b16 %v1698
  %v1859 = vunpack.c.l.b16 %v1699
  %v1860 = vunpack.c.h.b16 %v1699
  %v1861 = vunpack.c.l.b16 %v1700
  %v1862 = vunpack.c.h.b16 %v1700
  %v1863 = vunpack.c.l.b16 %v1701
  %v1864 = vunpack.c.h.b16 %v1701
  %v1865 = vunpack.c.l.b16 %v1702
  %v1866 = vunpack.c.h.b16 %v1702
  %v1867 = vunpack.c.l.b16 %v1703
  %v1868 = vunpack.c.h.b16 %v1703
  %v1869 = vunpack.c.l.b16 %v1704
  %v1870 = vunpack.c.h.b16 %v1704
  %v1871 = vunpack.c.l.b16 %v1705
  %v1872 = vunpack.c.h.b16 %v1705
  %v1873 = vunpack.c.l.b16 %v1706
  %v1874 = vunpack.c.h.b16 %v1706
  %v1875 = vunpack.c.l.b16 %v1707
  %v1876 = vunpack.c.h.b16 %v1707
  %v1877 = vunpack.c.l.b16 %v1708
  %v1878 = vunpack.c.h.b16 %v1708
  %v1879 = vunpack.c.l.b16 %v1709
  %v1880 = vunpack.c.h.b16 %v1709
  %v1881 = vunpack.c.l.b16 %v1710
  %v1882 = vunpack.c.h.b16 %v1710
  %v1883 = vunpack.c.l.b16 %v1711
  %v1884 = vunpack.c.h.b16 %v1711
  %v1885 = vunpack.c.l.b16 %v1712
  %v1886 = vunpack.c.h.b16 %v1712
  %v1887 = vunpack.c.l.b16 %v1713
  %v1888 = vunpack.c.h.b16 %v1713
  %v1889 = vunpack.c.l.b16 %v1714
  %v1890 = vunpack.c.h.b16 %v1714
  %v1891 = vunpack.c.l.b16 %v1715
  %v1892 = vunpack.c.h.b16 %v1715
  %v1893 = vunpack.c.l.b16 %v1716
  %v1894 = vunpack.c.h.b16 %v1716
  %v1895 = vunpack.c.l.b16 %v1717
  %v1896 = vunpack.c.h.b16 %v1717
  %v1897 = vunpack.c.l.b16 %v1718
  %v1898 = vunpack.c.h.b16 %v1718
  %v1899 = vunpack.c.l.b16 %v1719
  %v1900 = vunpack.c.h.b16 %v1719
  %v1901 = vunpack.c.l.b16 %v1720
  %v1902 = vunpack.c.h.b16 %v1720
  %v1903 = vunpack.c.l.b16 %v1721
  %v1904 = vunpack.c.h.b16 %v1721
  %v1905 = vunpack.c.l.b16 %v1722
  %v1906 = vunpack.c.h.b16 %v1722
  %v1907 = vunpack.c.l.b16 %v1723
  %v1908 = vunpack.c.h.b16 %v1723
  %v1909 = vunpack.c.l.b16 %v1724
  %v1910 = vunpack.c.h.b16 %v1724
  %v1911 = vunpack.c.l.b16 %v1725
  %v1912 = vunpack.c.h.b16 %v1725
  %v1913 = vunpack.c.l.b16 %v1726
  %v1914 = vunpack.c.h.b16 %v1726
  %v1915 = vunpack.c.l.b16 %v1727
  %v1916 = vunpack.c.h.b16 %v1727
  %v1917 = vunpack.c.l.b16 %v1728
  %v1918 = vunpack.c.h.b16 %v1728
  %v1919 = vunpack.c.l.b16 %v1729
  %v1920 = vunpack.c.h.b16 %v1729
  %v1921 = vunpack.c.l.b16 %v1730
  %v1922 = vunpack.c.h.b16 %v1730
  %v1923 = vpack.c.b16 %v1797, %v1795
  %v1924 = vpack.c.b16 %v1798, %v1796
  %v1925 = vpack.c.b16 %v1801, %v1799
  %v1926 = vpack.c.b16 %v1802, %v1800
  %v1927 = vpack.c.b16 %v1805, %v1803
  %v1928 = vpack.c.b16 %v1806, %v1804
  %v1929 = vpack.c.b16 %v1809, %v1807
  %v1930 = vpack.c.b16 %v1810, %v1808
  %v1931 = vpack.c.b16 %v1813, %v1811
  %v1932 = vpack.c.b16 %v1814, %v1812
  %v1933 = vpack.c.b16 %v1817, %v1815
  %v1934 = vpack.c.b16 %v1818, %v1816
  %v1935 = vpack.c.b16 %v1821, %v1819
  %v1936 = vpack.c.b16 %v1822, %v1820
  %v1937 = vpack.c.b16 %v1825, %v1823
  %v1938 = vpack.c.b16 %v1826, %v1824
  %v1939 = vpack.c.b16 %v1829, %v1827
  %v1940 = vpack.c.b16 %v1830, %v1828
  %v1941 = vpack.c.b16 %v1833, %v1831
  %v1942 = vpack.c.b16 %v1834, %v1832
  %v1943 = vpack.c.b16 %v1837, %v1835
  %v1944 = vpack.c.b16 %v1838, %v1836
  %v1945 = vpack.c.b16 %v1841, %v1839
  %v1946 = vpack.c.b16 %v1842, %v1840
  %v1947 = vpack.c.b16 %v1845, %v1843
  %v1948 = vpack.c.b16 %v1846, %v1844
  %v1949 = vpack.c.b16 %v1849, %v1847
  %v1950 = vpack.c.b16 %v1850, %v1848
  %v1951 = vpack.c.b16 %v1853, %v1851
  %v1952 = vpack.c.b16 %v1854, %v1852
  %v1953 = vpack.c.b16 %v1857, %v1855
  %v1954 = vpack.c.b16 %v1858, %v1856
  %v1955 = vpack.c.b16 %v1861, %v1859
  %v1956 = vpack.c.b16 %v1862, %v1860
  %v1957 = vpack.c.b16 %v1865, %v1863
  %v1958 = vpack.c.b16 %v1866, %v1864
  %v1959 = vpack.c.b16 %v1869, %v1867
  %v1960 = vpack.c.b16 %v1870, %v1868
  %v1961 = vpack.c.b16 %v1873, %v1871
  %v1962 = vpack.c.b16 %v1874, %v1872
  %v1963 = vpack.c.b16 %v1877, %v1875
  %v1964 = vpack.c.b16 %v1878, %v1876
  %v1965 = vpack.c.b16 %v1881, %v1879
  %v1966 = vpack.c.b16 %v1882, %v1880
  %v1967 = vpack.c.b16 %v1885, %v1883
  %v1968 = vpack.c.b16 %v1886, %v1884
  %v1969 = vpack.c.b16 %v1889, %v1887
  %v1970 = vpack.c.b16 %v1890, %v1888
  %v1971 = vpack.c.b16 %v1893, %v1891
  %v1972 = vpack.c.b16 %v1894, %v1892
  %v1973 = vpack.c.b16 %v1897, %v1895
  %v1974 = vpack.c.b16 %v1898, %v1896
  %v1975 = vpack.c.b16 %v1901, %v1899
  %v1976 = vpack.c.b16 %v1902, %v1900
  %v1977 = vpack.c.b16 %v1905, %v1903
  %v1978 = vpack.c.b16 %v1906, %v1904
  %v1979 = vpack.c.b16 %v1909, %v1907
  %v1980 = vpack.c.b16 %v1910, %v1908
  %v1981 = vpack.c.b16 %v1913, %v1911
  %v1982 = vpack.c.b16 %v1914, %v1912
  %v1983 = vpack.c.b16 %v1917, %v1915
  %v1984 = vpack.c.b16 %v1918, %v1916
  %v1985 = vpack.c.b16 %v1921, %v1919
  %v1986 = vpack.c.b16 %v1922, %v1920
  %v2020 = vsel %vm476, %v1924, 0
  %v2023 = vsel %vm476, %v1926, 0
  %v2026 = vsel %vm476, %v1928, 0
  %v2029 = vsel %vm476, %v1930, 0
  %v2032 = vsel %vm476, %v1932, 0
  %v2035 = vsel %vm476, %v1934, 0
  %v2038 = vsel %vm476, %v1936, 0
  %v2041 = vsel %vm476, %v1938, 0
  %v2044 = vsel %vm476, %v1940, 0
  %v2047 = vsel %vm476, %v1942, 0
  %v2050 = vsel %vm476, %v1944, 0
  %v2053 = vsel %vm476, %v1946, 0
  %v2056 = vsel %vm476, %v1948, 0
  %v2059 = vsel %vm476, %v1950, 0
  %v2062 = vsel %vm476, %v1952, 0
  %v2065 = vsel %vm476, %v1954, 0
  %v2068 = vsel %vm476, %v1956, 0
  %v2071 = vsel %vm476, %v1958, 0
  %v2074 = vsel %vm476, %v1960, 0
  %v2077 = vsel %vm476, %v1962, 0
  %v2080 = vsel %vm476, %v1964, 0
  %v2083 = vsel %vm476, %v1966, 0
  %v2086 = vsel %vm476, %v1968, 0
  %v2089 = vsel %vm476, %v1970, 0
  %v2092 = vsel %vm476, %v1972, 0
  %v2095 = vsel %vm476, %v1974, 0
  %v2098 = vsel %vm476, %v1976, 0
  %v2101 = vsel %vm476, %v1978, 0
  %v2104 = vsel %vm476, %v1980, 0
  %v2107 = vsel %vm476, %v1982, 0
  %v2110 = vsel %vm476, %v1984, 0
  %v2113 = vsel %vm476, %v1986, 0
  %2115 = vmatprep.subr.bf16.mxu0 0
  %2116 = vmatpush1.bf16.msra.mxu0 %v451
  %2117 = vmatprep.subr.bf16.mxu0 0
  %2118 = vmatpush1.bf16.msra.mxu0 %v452
  %2119 = vmatprep.subr.bf16.mxu0 0
  %2120 = vmatpush1.bf16.msra.mxu0 %v453
  %2121 = vmatprep.subr.bf16.mxu0 0
  %2122 = vmatpush1.bf16.msra.mxu0 %v454
  %2123 = vmatprep.subr.bf16.mxu0 0
  %2124 = vmatpush1.bf16.msra.mxu0 %v455
  %2125 = vmatprep.subr.bf16.mxu0 0
  %2126 = vmatpush1.bf16.msra.mxu0 %v456
  %2127 = vmatprep.subr.bf16.mxu0 0
  %2128 = vmatpush1.bf16.msra.mxu0 %v457
  %2129 = vmatprep.subr.bf16.mxu0 0
  %2130 = vmatpush1.bf16.msra.mxu0 %v458
  %2131 = vmatprep.subr.bf16.mxu0 0
  %2132 = vmatpush1.bf16.msra.mxu0 %v459
  %2133 = vmatprep.subr.bf16.mxu0 0
  %2134 = vmatpush1.bf16.msra.mxu0 %v460
  %2135 = vmatprep.subr.bf16.mxu0 0
  %2136 = vmatpush1.bf16.msra.mxu0 %v461
  %2137 = vmatprep.subr.bf16.mxu0 0
  %2138 = vmatpush1.bf16.msra.mxu0 %v462
  %2139 = vmatprep.subr.bf16.mxu0 0
  %2140 = vmatpush1.bf16.msra.mxu0 %v575
  %2141 = vmatprep.subr.bf16.mxu0 0
  %2142 = vmatpush1.bf16.msra.mxu0 0
  %2143 = vmatprep.subr.bf16.mxu0 0
  %2144 = vmatpush1.bf16.msra.mxu0 0
  %2145 = vmatprep.subr.bf16.mxu0 0
  %2146 = vmatpush1.bf16.msra.mxu0 0
  %2147 = vmatprep.mubr.bf16.mxu0 %v2020
  %2148 = vmatmul.mubr.bf16.gmra.mrb[0].mxu0 %v1923
  %v2149 = vpop.f32.mrb[0].mxu0
  %v2150 = vadd.f32 0.0, %v2149
  %v2151 = vpop.f32.mrb[0].mxu0
  %v2152 = vpop.f32.mrb[0].mxu0
  %v2153 = vadd.f32 0.0, %v2152
  %v2154 = vpop.f32.mrb[0].mxu0
  %2155 = vmatprep.mubr.bf16.mxu0 %v2023
  %2156 = vmatmul.mubr.bf16.gmra.mrb[0].mxu0 %v1925
  %v2157 = vpop.f32.mrb[0].mxu0
  %v2158 = vadd.f32 0.0, %v2157
  %v2159 = vpop.f32.mrb[0].mxu0
  %v2160 = vpop.f32.mrb[0].mxu0
  %v2161 = vadd.f32 0.0, %v2160
  %v2162 = vpop.f32.mrb[0].mxu0
  %2163 = vmatprep.mubr.bf16.mxu0 %v2026
  %2164 = vmatmul.mubr.bf16.gmra.mrb[0].mxu0 %v1927
  %v2165 = vpop.f32.mrb[0].mxu0
  %v2166 = vadd.f32 0.0, %v2165
  %v2167 = vpop.f32.mrb[0].mxu0
  %v2168 = vpop.f32.mrb[0].mxu0
  %v2169 = vadd.f32 0.0, %v2168
  %v2170 = vpop.f32.mrb[0].mxu0
  %2171 = vmatprep.mubr.bf16.mxu0 %v2029
  %2172 = vmatmul.mubr.bf16.gmra.mrb[0].mxu0 %v1929
  %v2173 = vpop.f32.mrb[0].mxu0
  %v2174 = vadd.f32 0.0, %v2173
  %v2175 = vpop.f32.mrb[0].mxu0
  %v2176 = vpop.f32.mrb[0].mxu0
  %v2177 = vadd.f32 0.0, %v2176
  %v2178 = vpop.f32.mrb[0].mxu0
  %2179 = vmatprep.mubr.bf16.mxu0 %v2032
  %2180 = vmatmul.mubr.bf16.gmra.mrb[0].mxu0 %v1931
  %v2181 = vpop.f32.mrb[0].mxu0
  %v2182 = vadd.f32 0.0, %v2181
  %v2183 = vpop.f32.mrb[0].mxu0
  %v2184 = vpop.f32.mrb[0].mxu0
  %v2185 = vadd.f32 0.0, %v2184
  %v2186 = vpop.f32.mrb[0].mxu0
  %2187 = vmatprep.mubr.bf16.mxu0 %v2035
  %2188 = vmatmul.mubr.bf16.gmra.mrb[0].mxu0 %v1933
  %v2189 = vpop.f32.mrb[0].mxu0
  %v2190 = vadd.f32 0.0, %v2189
  %v2191 = vpop.f32.mrb[0].mxu0
  %v2192 = vpop.f32.mrb[0].mxu0
  %v2193 = vadd.f32 0.0, %v2192
  %v2194 = vpop.f32.mrb[0].mxu0
  %2195 = vmatprep.mubr.bf16.mxu0 %v2038
  %2196 = vmatmul.mubr.bf16.gmra.mrb[0].mxu0 %v1935
  %v2197 = vpop.f32.mrb[0].mxu0
  %v2198 = vadd.f32 0.0, %v2197
  %v2199 = vpop.f32.mrb[0].mxu0
  %v2200 = vpop.f32.mrb[0].mxu0
  %v2201 = vadd.f32 0.0, %v2200
  %v2202 = vpop.f32.mrb[0].mxu0
  %2203 = vmatprep.mubr.bf16.mxu0 %v2041
  %2204 = vmatmul.mubr.bf16.gmra.mrb[0].mxu0 %v1937
  %v2205 = vpop.f32.mrb[0].mxu0
  %v2206 = vadd.f32 0.0, %v2205
  %v2207 = vpop.f32.mrb[0].mxu0
  %v2208 = vpop.f32.mrb[0].mxu0
  %v2209 = vadd.f32 0.0, %v2208
  %v2210 = vpop.f32.mrb[0].mxu0
  %2211 = vmatprep.mubr.bf16.mxu0 %v2044
  %2212 = vmatmul.mubr.bf16.gmra.mrb[0].mxu0 %v1939
  %v2213 = vpop.f32.mrb[0].mxu0
  %v2214 = vadd.f32 0.0, %v2213
  %v2215 = vpop.f32.mrb[0].mxu0
  %v2216 = vpop.f32.mrb[0].mxu0
  %v2217 = vadd.f32 0.0, %v2216
  %v2218 = vpop.f32.mrb[0].mxu0
  %2219 = vmatprep.mubr.bf16.mxu0 %v2047
  %2220 = vmatmul.mubr.bf16.gmra.mrb[0].mxu0 %v1941
  %v2221 = vpop.f32.mrb[0].mxu0
  %v2222 = vadd.f32 0.0, %v2221
  %v2223 = vpop.f32.mrb[0].mxu0
  %v2224 = vpop.f32.mrb[0].mxu0
  %v2225 = vadd.f32 0.0, %v2224
  %v2226 = vpop.f32.mrb[0].mxu0
  %2227 = vmatprep.mubr.bf16.mxu0 %v2050
  %2228 = vmatmul.mubr.bf16.gmra.mrb[0].mxu0 %v1943
  %v2229 = vpop.f32.mrb[0].mxu0
  %v2230 = vadd.f32 0.0, %v2229
  %v2231 = vpop.f32.mrb[0].mxu0
  %v2232 = vpop.f32.mrb[0].mxu0
  %v2233 = vadd.f32 0.0, %v2232
  %v2234 = vpop.f32.mrb[0].mxu0
  %2235 = vmatprep.mubr.bf16.mxu0 %v2053
  %2236 = vmatmul.mubr.bf16.gmra.mrb[0].mxu0 %v1945
  %v2237 = vpop.f32.mrb[0].mxu0
  %v2238 = vadd.f32 0.0, %v2237
  %v2239 = vpop.f32.mrb[0].mxu0
  %v2240 = vpop.f32.mrb[0].mxu0
  %v2241 = vadd.f32 0.0, %v2240
  %v2242 = vpop.f32.mrb[0].mxu0
  %2243 = vmatprep.mubr.bf16.mxu0 %v2056
  %2244 = vmatmul.mubr.bf16.gmra.mrb[0].mxu0 %v1947
  %v2245 = vpop.f32.mrb[0].mxu0
  %v2246 = vadd.f32 0.0, %v2245
  %v2247 = vpop.f32.mrb[0].mxu0
  %v2248 = vpop.f32.mrb[0].mxu0
  %v2249 = vadd.f32 0.0, %v2248
  %v2250 = vpop.f32.mrb[0].mxu0
  %2251 = vmatprep.mubr.bf16.mxu0 %v2059
  %2252 = vmatmul.mubr.bf16.gmra.mrb[0].mxu0 %v1949
  %v2253 = vpop.f32.mrb[0].mxu0
  %v2254 = vadd.f32 0.0, %v2253
  %v2255 = vpop.f32.mrb[0].mxu0
  %v2256 = vpop.f32.mrb[0].mxu0
  %v2257 = vadd.f32 0.0, %v2256
  %v2258 = vpop.f32.mrb[0].mxu0
  %2259 = vmatprep.mubr.bf16.mxu0 %v2062
  %2260 = vmatmul.mubr.bf16.gmra.mrb[0].mxu0 %v1951
  %v2261 = vpop.f32.mrb[0].mxu0
  %v2262 = vadd.f32 0.0, %v2261
  %v2263 = vpop.f32.mrb[0].mxu0
  %v2264 = vpop.f32.mrb[0].mxu0
  %v2265 = vadd.f32 0.0, %v2264
  %v2266 = vpop.f32.mrb[0].mxu0
  %2267 = vmatprep.mubr.bf16.mxu0 %v2065
  %2268 = vmatmul.mubr.bf16.gmra.mrb[0].mxu0 %v1953
  %v2269 = vpop.f32.mrb[0].mxu0
  %v2270 = vadd.f32 0.0, %v2269
  %v2271 = vpop.f32.mrb[0].mxu0
  %v2272 = vpop.f32.mrb[0].mxu0
  %v2273 = vadd.f32 0.0, %v2272
  %v2274 = vpop.f32.mrb[0].mxu0
  %2275 = vmatprep.mubr.bf16.mxu0 %v2068
  %2276 = vmatmul.mubr.bf16.gmra.mrb[0].mxu0 %v1955
  %v2277 = vpop.f32.mrb[0].mxu0
  %v2278 = vadd.f32 0.0, %v2277
  %v2279 = vpop.f32.mrb[0].mxu0
  %v2280 = vpop.f32.mrb[0].mxu0
  %v2281 = vadd.f32 0.0, %v2280
  %v2282 = vpop.f32.mrb[0].mxu0
  %2283 = vmatprep.mubr.bf16.mxu0 %v2071
  %2284 = vmatmul.mubr.bf16.gmra.mrb[0].mxu0 %v1957
  %v2285 = vpop.f32.mrb[0].mxu0
  %v2286 = vadd.f32 0.0, %v2285
  %v2287 = vpop.f32.mrb[0].mxu0
  %v2288 = vpop.f32.mrb[0].mxu0
  %v2289 = vadd.f32 0.0, %v2288
  %v2290 = vpop.f32.mrb[0].mxu0
  %2291 = vmatprep.mubr.bf16.mxu0 %v2074
  %2292 = vmatmul.mubr.bf16.gmra.mrb[0].mxu0 %v1959
  %v2293 = vpop.f32.mrb[0].mxu0
  %v2294 = vadd.f32 0.0, %v2293
  %v2295 = vpop.f32.mrb[0].mxu0
  %v2296 = vpop.f32.mrb[0].mxu0
  %v2297 = vadd.f32 0.0, %v2296
  %v2298 = vpop.f32.mrb[0].mxu0
  %2299 = vmatprep.mubr.bf16.mxu0 %v2077
  %2300 = vmatmul.mubr.bf16.gmra.mrb[0].mxu0 %v1961
  %v2301 = vpop.f32.mrb[0].mxu0
  %v2302 = vadd.f32 0.0, %v2301
  %v2303 = vpop.f32.mrb[0].mxu0
  %v2304 = vpop.f32.mrb[0].mxu0
  %v2305 = vadd.f32 0.0, %v2304
  %v2306 = vpop.f32.mrb[0].mxu0
  %2307 = vmatprep.mubr.bf16.mxu0 %v2080
  %2308 = vmatmul.mubr.bf16.gmra.mrb[0].mxu0 %v1963
  %v2309 = vpop.f32.mrb[0].mxu0
  %v2310 = vadd.f32 0.0, %v2309
  %v2311 = vpop.f32.mrb[0].mxu0
  %v2312 = vpop.f32.mrb[0].mxu0
  %v2313 = vadd.f32 0.0, %v2312
  %v2314 = vpop.f32.mrb[0].mxu0
  %2315 = vmatprep.mubr.bf16.mxu0 %v2083
  %2316 = vmatmul.mubr.bf16.gmra.mrb[0].mxu0 %v1965
  %v2317 = vpop.f32.mrb[0].mxu0
  %v2318 = vadd.f32 0.0, %v2317
  %v2319 = vpop.f32.mrb[0].mxu0
  %v2320 = vpop.f32.mrb[0].mxu0
  %v2321 = vadd.f32 0.0, %v2320
  %v2322 = vpop.f32.mrb[0].mxu0
  %2323 = vmatprep.mubr.bf16.mxu0 %v2086
  %2324 = vmatmul.mubr.bf16.gmra.mrb[0].mxu0 %v1967
  %v2325 = vpop.f32.mrb[0].mxu0
  %v2326 = vadd.f32 0.0, %v2325
  %v2327 = vpop.f32.mrb[0].mxu0
  %v2328 = vpop.f32.mrb[0].mxu0
  %v2329 = vadd.f32 0.0, %v2328
  %v2330 = vpop.f32.mrb[0].mxu0
  %2331 = vmatprep.mubr.bf16.mxu0 %v2089
  %2332 = vmatmul.mubr.bf16.gmra.mrb[0].mxu0 %v1969
  %v2333 = vpop.f32.mrb[0].mxu0
  %v2334 = vadd.f32 0.0, %v2333
  %v2335 = vpop.f32.mrb[0].mxu0
  %v2336 = vpop.f32.mrb[0].mxu0
  %v2337 = vadd.f32 0.0, %v2336
  %v2338 = vpop.f32.mrb[0].mxu0
  %2339 = vmatprep.mubr.bf16.mxu0 %v2092
  %2340 = vmatmul.mubr.bf16.gmra.mrb[0].mxu0 %v1971
  %v2341 = vpop.f32.mrb[0].mxu0
  %v2342 = vadd.f32 0.0, %v2341
  %v2343 = vpop.f32.mrb[0].mxu0
  %v2344 = vpop.f32.mrb[0].mxu0
  %v2345 = vadd.f32 0.0, %v2344
  %v2346 = vpop.f32.mrb[0].mxu0
  %2347 = vmatprep.mubr.bf16.mxu0 %v2095
  %2348 = vmatmul.mubr.bf16.gmra.mrb[0].mxu0 %v1973
  %v2349 = vpop.f32.mrb[0].mxu0
  %v2350 = vadd.f32 0.0, %v2349
  %v2351 = vpop.f32.mrb[0].mxu0
  %v2352 = vpop.f32.mrb[0].mxu0
  %v2353 = vadd.f32 0.0, %v2352
  %v2354 = vpop.f32.mrb[0].mxu0
  %2355 = vmatprep.mubr.bf16.mxu0 %v2098
  %2356 = vmatmul.mubr.bf16.gmra.mrb[0].mxu0 %v1975
  %v2357 = vpop.f32.mrb[0].mxu0
  %v2358 = vadd.f32 0.0, %v2357
  %v2359 = vpop.f32.mrb[0].mxu0
  %v2360 = vpop.f32.mrb[0].mxu0
  %v2361 = vadd.f32 0.0, %v2360
  %v2362 = vpop.f32.mrb[0].mxu0
  %2363 = vmatprep.mubr.bf16.mxu0 %v2101
  %2364 = vmatmul.mubr.bf16.gmra.mrb[0].mxu0 %v1977
  %v2365 = vpop.f32.mrb[0].mxu0
  %v2366 = vadd.f32 0.0, %v2365
  %v2367 = vpop.f32.mrb[0].mxu0
  %v2368 = vpop.f32.mrb[0].mxu0
  %v2369 = vadd.f32 0.0, %v2368
  %v2370 = vpop.f32.mrb[0].mxu0
  %2371 = vmatprep.mubr.bf16.mxu0 %v2104
  %2372 = vmatmul.mubr.bf16.gmra.mrb[0].mxu0 %v1979
  %v2373 = vpop.f32.mrb[0].mxu0
  %v2374 = vadd.f32 0.0, %v2373
  %v2375 = vpop.f32.mrb[0].mxu0
  %v2376 = vpop.f32.mrb[0].mxu0
  %v2377 = vadd.f32 0.0, %v2376
  %v2378 = vpop.f32.mrb[0].mxu0
  %2379 = vmatprep.mubr.bf16.mxu0 %v2107
  %2380 = vmatmul.mubr.bf16.gmra.mrb[0].mxu0 %v1981
  %v2381 = vpop.f32.mrb[0].mxu0
  %v2382 = vadd.f32 0.0, %v2381
  %v2383 = vpop.f32.mrb[0].mxu0
  %v2384 = vpop.f32.mrb[0].mxu0
  %v2385 = vadd.f32 0.0, %v2384
  %v2386 = vpop.f32.mrb[0].mxu0
  %2387 = vmatprep.mubr.bf16.mxu0 %v2110
  %2388 = vmatmul.mubr.bf16.gmra.mrb[0].mxu0 %v1983
  %v2389 = vpop.f32.mrb[0].mxu0
  %v2390 = vadd.f32 0.0, %v2389
  %v2391 = vpop.f32.mrb[0].mxu0
  %v2392 = vpop.f32.mrb[0].mxu0
  %v2393 = vadd.f32 0.0, %v2392
  %v2394 = vpop.f32.mrb[0].mxu0
  %2395 = vmatprep.mubr.bf16.mxu0 %v2113
  %2396 = vmatmul.mubr.bf16.gmra.mrb[0].mxu0 %v1985
  %v2397 = vpop.f32.mrb[0].mxu0
  %v2398 = vadd.f32 0.0, %v2397
  %v2399 = vpop.f32.mrb[0].mxu0
  %v2400 = vpop.f32.mrb[0].mxu0
  %v2401 = vadd.f32 0.0, %v2400
  %v2402 = vpop.f32.mrb[0].mxu0
  %2403 = vdwg.mxu0
  %v2404 = vmax.f32 %v1603, %v2150
  %v2405 = vmax.f32 %v1604, %v2153
  %v2406 = vmax.f32 %v1605, %v2158
  %v2407 = vmax.f32 %v1606, %v2161
  %v2408 = vmax.f32 %v1607, %v2166
  %v2409 = vmax.f32 %v1608, %v2169
  %v2410 = vmax.f32 %v1609, %v2174
  %v2411 = vmax.f32 %v1610, %v2177
  %v2412 = vmax.f32 %v1611, %v2182
  %v2413 = vmax.f32 %v1612, %v2185
  %v2414 = vmax.f32 %v1613, %v2190
  %v2415 = vmax.f32 %v1614, %v2193
  %v2416 = vmax.f32 %v1615, %v2198
  %v2417 = vmax.f32 %v1616, %v2201
  %v2418 = vmax.f32 %v1617, %v2206
  %v2419 = vmax.f32 %v1618, %v2209
  %v2420 = vmax.f32 %v1619, %v2214
  %v2421 = vmax.f32 %v1620, %v2217
  %v2422 = vmax.f32 %v1621, %v2222
  %v2423 = vmax.f32 %v1622, %v2225
  %v2424 = vmax.f32 %v1623, %v2230
  %v2425 = vmax.f32 %v1624, %v2233
  %v2426 = vmax.f32 %v1625, %v2238
  %v2427 = vmax.f32 %v1626, %v2241
  %v2428 = vmax.f32 %v1627, %v2246
  %v2429 = vmax.f32 %v1628, %v2249
  %v2430 = vmax.f32 %v1629, %v2254
  %v2431 = vmax.f32 %v1630, %v2257
  %v2432 = vmax.f32 %v1631, %v2262
  %v2433 = vmax.f32 %v1632, %v2265
  %v2434 = vmax.f32 %v1633, %v2270
  %v2435 = vmax.f32 %v1634, %v2273
  %v2436 = vmax.f32 %v1635, %v2278
  %v2437 = vmax.f32 %v1636, %v2281
  %v2438 = vmax.f32 %v1637, %v2286
  %v2439 = vmax.f32 %v1638, %v2289
  %v2440 = vmax.f32 %v1639, %v2294
  %v2441 = vmax.f32 %v1640, %v2297
  %v2442 = vmax.f32 %v1641, %v2302
  %v2443 = vmax.f32 %v1642, %v2305
  %v2444 = vmax.f32 %v1643, %v2310
  %v2445 = vmax.f32 %v1644, %v2313
  %v2446 = vmax.f32 %v1645, %v2318
  %v2447 = vmax.f32 %v1646, %v2321
  %v2448 = vmax.f32 %v1647, %v2326
  %v2449 = vmax.f32 %v1648, %v2329
  %v2450 = vmax.f32 %v1649, %v2334
  %v2451 = vmax.f32 %v1650, %v2337
  %v2452 = vmax.f32 %v1651, %v2342
  %v2453 = vmax.f32 %v1652, %v2345
  %v2454 = vmax.f32 %v1653, %v2350
  %v2455 = vmax.f32 %v1654, %v2353
  %v2456 = vmax.f32 %v1655, %v2358
  %v2457 = vmax.f32 %v1656, %v2361
  %v2458 = vmax.f32 %v1657, %v2366
  %v2459 = vmax.f32 %v1658, %v2369
  %v2460 = vmax.f32 %v1659, %v2374
  %v2461 = vmax.f32 %v1660, %v2377
  %v2462 = vmax.f32 %v1661, %v2382
  %v2463 = vmax.f32 %v1662, %v2385
  %v2464 = vmax.f32 %v1663, %v2390
  %v2465 = vmax.f32 %v1664, %v2393
  %v2466 = vmax.f32 %v1665, %v2398
  %v2467 = vmax.f32 %v1666, %v2401
  %v2468 = vld [vmem:[%s3] sm:$0xff]
  %v2469 = vld [vmem:[%s3 + $0x8] sm:$0xff]
  %v2470 = vld [vmem:[%s3 + $0x10] sm:$0xff]
  %v2471 = vld [vmem:[%s3 + $0x18] sm:$0xff]
  %v2472 = vld [vmem:[%s3 + $0x20] sm:$0xff]
  %v2473 = vld [vmem:[%s3 + $0x28] sm:$0xff]
  %v2474 = vld [vmem:[%s3 + $0x30] sm:$0xff]
  %v2475 = vld [vmem:[%s3 + $0x38] sm:$0xff]
  %v2476 = vld [vmem:[%s3 + $0x40] sm:$0xff]
  %v2477 = vld [vmem:[%s3 + $0x48] sm:$0xff]
  %v2478 = vld [vmem:[%s3 + $0x50] sm:$0xff]
  %v2479 = vld [vmem:[%s3 + $0x58] sm:$0xff]
  %v2480 = vld [vmem:[%s3 + $0x60] sm:$0xff]
  %v2481 = vld [vmem:[%s3 + $0x68] sm:$0xff]
  %v2482 = vld [vmem:[%s3 + $0x70] sm:$0xff]
  %v2483 = vld [vmem:[%s3 + $0x78] sm:$0xff]
  %v2484 = vld [vmem:[%s3 + $0x80] sm:$0xff]
  %v2485 = vld [vmem:[%s3 + $0x88] sm:$0xff]
  %v2486 = vld [vmem:[%s3 + $0x90] sm:$0xff]
  %v2487 = vld [vmem:[%s3 + $0x98] sm:$0xff]
  %v2488 = vld [vmem:[%s3 + $0xa0] sm:$0xff]
  %v2489 = vld [vmem:[%s3 + $0xa8] sm:$0xff]
  %v2490 = vld [vmem:[%s3 + $0xb0] sm:$0xff]
  %v2491 = vld [vmem:[%s3 + $0xb8] sm:$0xff]
  %v2492 = vld [vmem:[%s3 + $0xc0] sm:$0xff]
  %v2493 = vld [vmem:[%s3 + $0xc8] sm:$0xff]
  %v2494 = vld [vmem:[%s3 + $0xd0] sm:$0xff]
  %v2495 = vld [vmem:[%s3 + $0xd8] sm:$0xff]
  %v2496 = vld [vmem:[%s3 + $0xe0] sm:$0xff]
  %v2497 = vld [vmem:[%s3 + $0xe8] sm:$0xff]
  %v2498 = vld [vmem:[%s3 + $0xf0] sm:$0xff]
  %v2499 = vld [vmem:[%s3 + $0xf8] sm:$0xff]
  %v2500 = vld [vmem:[%s3 + $0x100] sm:$0xff]
  %v2501 = vld [vmem:[%s3 + $0x108] sm:$0xff]
  %v2502 = vld [vmem:[%s3 + $0x110] sm:$0xff]
  %v2503 = vld [vmem:[%s3 + $0x118] sm:$0xff]
  %v2504 = vld [vmem:[%s3 + $0x120] sm:$0xff]
  %v2505 = vld [vmem:[%s3 + $0x128] sm:$0xff]
  %v2506 = vld [vmem:[%s3 + $0x130] sm:$0xff]
  %v2507 = vld [vmem:[%s3 + $0x138] sm:$0xff]
  %v2508 = vld [vmem:[%s3 + $0x140] sm:$0xff]
  %v2509 = vld [vmem:[%s3 + $0x148] sm:$0xff]
  %v2510 = vld [vmem:[%s3 + $0x150] sm:$0xff]
  %v2511 = vld [vmem:[%s3 + $0x158] sm:$0xff]
  %v2512 = vld [vmem:[%s3 + $0x160] sm:$0xff]
  %v2513 = vld [vmem:[%s3 + $0x168] sm:$0xff]
  %v2514 = vld [vmem:[%s3 + $0x170] sm:$0xff]
  %v2515 = vld [vmem:[%s3 + $0x178] sm:$0xff]
  %v2516 = vld [vmem:[%s3 + $0x180] sm:$0xff]
  %v2517 = vld [vmem:[%s3 + $0x188] sm:$0xff]
  %v2518 = vld [vmem:[%s3 + $0x190] sm:$0xff]
  %v2519 = vld [vmem:[%s3 + $0x198] sm:$0xff]
  %v2520 = vld [vmem:[%s3 + $0x1a0] sm:$0xff]
  %v2521 = vld [vmem:[%s3 + $0x1a8] sm:$0xff]
  %v2522 = vld [vmem:[%s3 + $0x1b0] sm:$0xff]
  %v2523 = vld [vmem:[%s3 + $0x1b8] sm:$0xff]
  %v2524 = vld [vmem:[%s3 + $0x1c0] sm:$0xff]
  %v2525 = vld [vmem:[%s3 + $0x1c8] sm:$0xff]
  %v2526 = vld [vmem:[%s3 + $0x1d0] sm:$0xff]
  %v2527 = vld [vmem:[%s3 + $0x1d8] sm:$0xff]
  %v2528 = vld [vmem:[%s3 + $0x1e0] sm:$0xff]
  %v2529 = vld [vmem:[%s3 + $0x1e8] sm:$0xff]
  %v2530 = vld [vmem:[%s3 + $0x1f0] sm:$0xff]
  %v2531 = vld [vmem:[%s3 + $0x1f8] sm:$0xff]
  %v2596 = vunpack.c.l.b16 %v2468
  %v2597 = vunpack.c.h.b16 %v2468
  %v2598 = vunpack.c.l.b16 %v2469
  %v2599 = vunpack.c.h.b16 %v2469
  %v2600 = vunpack.c.l.b16 %v2470
  %v2601 = vunpack.c.h.b16 %v2470
  %v2602 = vunpack.c.l.b16 %v2471
  %v2603 = vunpack.c.h.b16 %v2471
  %v2604 = vunpack.c.l.b16 %v2472
  %v2605 = vunpack.c.h.b16 %v2472
  %v2606 = vunpack.c.l.b16 %v2473
  %v2607 = vunpack.c.h.b16 %v2473
  %v2608 = vunpack.c.l.b16 %v2474
  %v2609 = vunpack.c.h.b16 %v2474
  %v2610 = vunpack.c.l.b16 %v2475
  %v2611 = vunpack.c.h.b16 %v2475
  %v2612 = vunpack.c.l.b16 %v2476
  %v2613 = vunpack.c.h.b16 %v2476
  %v2614 = vunpack.c.l.b16 %v2477
  %v2615 = vunpack.c.h.b16 %v2477
  %v2616 = vunpack.c.l.b16 %v2478
  %v2617 = vunpack.c.h.b16 %v2478
  %v2618 = vunpack.c.l.b16 %v2479
  %v2619 = vunpack.c.h.b16 %v2479
  %v2620 = vunpack.c.l.b16 %v2480
  %v2621 = vunpack.c.h.b16 %v2480
  %v2622 = vunpack.c.l.b16 %v2481
  %v2623 = vunpack.c.h.b16 %v2481
  %v2624 = vunpack.c.l.b16 %v2482
  %v2625 = vunpack.c.h.b16 %v2482
  %v2626 = vunpack.c.l.b16 %v2483
  %v2627 = vunpack.c.h.b16 %v2483
  %v2628 = vunpack.c.l.b16 %v2484
  %v2629 = vunpack.c.h.b16 %v2484
  %v2630 = vunpack.c.l.b16 %v2485
  %v2631 = vunpack.c.h.b16 %v2485
  %v2632 = vunpack.c.l.b16 %v2486
  %v2633 = vunpack.c.h.b16 %v2486
  %v2634 = vunpack.c.l.b16 %v2487
  %v2635 = vunpack.c.h.b16 %v2487
  %v2636 = vunpack.c.l.b16 %v2488
  %v2637 = vunpack.c.h.b16 %v2488
  %v2638 = vunpack.c.l.b16 %v2489
  %v2639 = vunpack.c.h.b16 %v2489
  %v2640 = vunpack.c.l.b16 %v2490
  %v2641 = vunpack.c.h.b16 %v2490
  %v2642 = vunpack.c.l.b16 %v2491
  %v2643 = vunpack.c.h.b16 %v2491
  %v2644 = vunpack.c.l.b16 %v2492
  %v2645 = vunpack.c.h.b16 %v2492
  %v2646 = vunpack.c.l.b16 %v2493
  %v2647 = vunpack.c.h.b16 %v2493
  %v2648 = vunpack.c.l.b16 %v2494
  %v2649 = vunpack.c.h.b16 %v2494
  %v2650 = vunpack.c.l.b16 %v2495
  %v2651 = vunpack.c.h.b16 %v2495
  %v2652 = vunpack.c.l.b16 %v2496
  %v2653 = vunpack.c.h.b16 %v2496
  %v2654 = vunpack.c.l.b16 %v2497
  %v2655 = vunpack.c.h.b16 %v2497
  %v2656 = vunpack.c.l.b16 %v2498
  %v2657 = vunpack.c.h.b16 %v2498
  %v2658 = vunpack.c.l.b16 %v2499
  %v2659 = vunpack.c.h.b16 %v2499
  %v2660 = vunpack.c.l.b16 %v2500
  %v2661 = vunpack.c.h.b16 %v2500
  %v2662 = vunpack.c.l.b16 %v2501
  %v2663 = vunpack.c.h.b16 %v2501
  %v2664 = vunpack.c.l.b16 %v2502
  %v2665 = vunpack.c.h.b16 %v2502
  %v2666 = vunpack.c.l.b16 %v2503
  %v2667 = vunpack.c.h.b16 %v2503
  %v2668 = vunpack.c.l.b16 %v2504
  %v2669 = vunpack.c.h.b16 %v2504
  %v2670 = vunpack.c.l.b16 %v2505
  %v2671 = vunpack.c.h.b16 %v2505
  %v2672 = vunpack.c.l.b16 %v2506
  %v2673 = vunpack.c.h.b16 %v2506
  %v2674 = vunpack.c.l.b16 %v2507
  %v2675 = vunpack.c.h.b16 %v2507
  %v2676 = vunpack.c.l.b16 %v2508
  %v2677 = vunpack.c.h.b16 %v2508
  %v2678 = vunpack.c.l.b16 %v2509
  %v2679 = vunpack.c.h.b16 %v2509
  %v2680 = vunpack.c.l.b16 %v2510
  %v2681 = vunpack.c.h.b16 %v2510
  %v2682 = vunpack.c.l.b16 %v2511
  %v2683 = vunpack.c.h.b16 %v2511
  %v2684 = vunpack.c.l.b16 %v2512
  %v2685 = vunpack.c.h.b16 %v2512
  %v2686 = vunpack.c.l.b16 %v2513
  %v2687 = vunpack.c.h.b16 %v2513
  %v2688 = vunpack.c.l.b16 %v2514
  %v2689 = vunpack.c.h.b16 %v2514
  %v2690 = vunpack.c.l.b16 %v2515
  %v2691 = vunpack.c.h.b16 %v2515
  %v2692 = vunpack.c.l.b16 %v2516
  %v2693 = vunpack.c.h.b16 %v2516
  %v2694 = vunpack.c.l.b16 %v2517
  %v2695 = vunpack.c.h.b16 %v2517
  %v2696 = vunpack.c.l.b16 %v2518
  %v2697 = vunpack.c.h.b16 %v2518
  %v2698 = vunpack.c.l.b16 %v2519
  %v2699 = vunpack.c.h.b16 %v2519
  %v2700 = vunpack.c.l.b16 %v2520
  %v2701 = vunpack.c.h.b16 %v2520
  %v2702 = vunpack.c.l.b16 %v2521
  %v2703 = vunpack.c.h.b16 %v2521
  %v2704 = vunpack.c.l.b16 %v2522
  %v2705 = vunpack.c.h.b16 %v2522
  %v2706 = vunpack.c.l.b16 %v2523
  %v2707 = vunpack.c.h.b16 %v2523
  %v2708 = vunpack.c.l.b16 %v2524
  %v2709 = vunpack.c.h.b16 %v2524
  %v2710 = vunpack.c.l.b16 %v2525
  %v2711 = vunpack.c.h.b16 %v2525
  %v2712 = vunpack.c.l.b16 %v2526
  %v2713 = vunpack.c.h.b16 %v2526
  %v2714 = vunpack.c.l.b16 %v2527
  %v2715 = vunpack.c.h.b16 %v2527
  %v2716 = vunpack.c.l.b16 %v2528
  %v2717 = vunpack.c.h.b16 %v2528
  %v2718 = vunpack.c.l.b16 %v2529
  %v2719 = vunpack.c.h.b16 %v2529
  %v2720 = vunpack.c.l.b16 %v2530
  %v2721 = vunpack.c.h.b16 %v2530
  %v2722 = vunpack.c.l.b16 %v2531
  %v2723 = vunpack.c.h.b16 %v2531
  %v2724 = vpack.c.b16 %v2598, %v2596
  %v2725 = vpack.c.b16 %v2599, %v2597
  %v2726 = vpack.c.b16 %v2602, %v2600
  %v2727 = vpack.c.b16 %v2603, %v2601
  %v2728 = vpack.c.b16 %v2606, %v2604
  %v2729 = vpack.c.b16 %v2607, %v2605
  %v2730 = vpack.c.b16 %v2610, %v2608
  %v2731 = vpack.c.b16 %v2611, %v2609
  %v2732 = vpack.c.b16 %v2614, %v2612
  %v2733 = vpack.c.b16 %v2615, %v2613
  %v2734 = vpack.c.b16 %v2618, %v2616
  %v2735 = vpack.c.b16 %v2619, %v2617
  %v2736 = vpack.c.b16 %v2622, %v2620
  %v2737 = vpack.c.b16 %v2623, %v2621
  %v2738 = vpack.c.b16 %v2626, %v2624
  %v2739 = vpack.c.b16 %v2627, %v2625
  %v2740 = vpack.c.b16 %v2630, %v2628
  %v2741 = vpack.c.b16 %v2631, %v2629
  %v2742 = vpack.c.b16 %v2634, %v2632
  %v2743 = vpack.c.b16 %v2635, %v2633
  %v2744 = vpack.c.b16 %v2638, %v2636
  %v2745 = vpack.c.b16 %v2639, %v2637
  %v2746 = vpack.c.b16 %v2642, %v2640
  %v2747 = vpack.c.b16 %v2643, %v2641
  %v2748 = vpack.c.b16 %v2646, %v2644
  %v2749 = vpack.c.b16 %v2647, %v2645
  %v2750 = vpack.c.b16 %v2650, %v2648
  %v2751 = vpack.c.b16 %v2651, %v2649
  %v2752 = vpack.c.b16 %v2654, %v2652
  %v2753 = vpack.c.b16 %v2655, %v2653
  %v2754 = vpack.c.b16 %v2658, %v2656
  %v2755 = vpack.c.b16 %v2659, %v2657
  %v2756 = vpack.c.b16 %v2662, %v2660
  %v2757 = vpack.c.b16 %v2663, %v2661
  %v2758 = vpack.c.b16 %v2666, %v2664
  %v2759 = vpack.c.b16 %v2667, %v2665
  %v2760 = vpack.c.b16 %v2670, %v2668
  %v2761 = vpack.c.b16 %v2671, %v2669
  %v2762 = vpack.c.b16 %v2674, %v2672
  %v2763 = vpack.c.b16 %v2675, %v2673
  %v2764 = vpack.c.b16 %v2678, %v2676
  %v2765 = vpack.c.b16 %v2679, %v2677
  %v2766 = vpack.c.b16 %v2682, %v2680
  %v2767 = vpack.c.b16 %v2683, %v2681
  %v2768 = vpack.c.b16 %v2686, %v2684
  %v2769 = vpack.c.b16 %v2687, %v2685
  %v2770 = vpack.c.b16 %v2690, %v2688
  %v2771 = vpack.c.b16 %v2691, %v2689
  %v2772 = vpack.c.b16 %v2694, %v2692
  %v2773 = vpack.c.b16 %v2695, %v2693
  %v2774 = vpack.c.b16 %v2698, %v2696
  %v2775 = vpack.c.b16 %v2699, %v2697
  %v2776 = vpack.c.b16 %v2702, %v2700
  %v2777 = vpack.c.b16 %v2703, %v2701
  %v2778 = vpack.c.b16 %v2706, %v2704
  %v2779 = vpack.c.b16 %v2707, %v2705
  %v2780 = vpack.c.b16 %v2710, %v2708
  %v2781 = vpack.c.b16 %v2711, %v2709
  %v2782 = vpack.c.b16 %v2714, %v2712
  %v2783 = vpack.c.b16 %v2715, %v2713
  %v2784 = vpack.c.b16 %v2718, %v2716
  %v2785 = vpack.c.b16 %v2719, %v2717
  %v2786 = vpack.c.b16 %v2722, %v2720
  %v2787 = vpack.c.b16 %v2723, %v2721
  %v2821 = vsel %vm476, %v2725, 0
  %v2824 = vsel %vm476, %v2727, 0
  %v2827 = vsel %vm476, %v2729, 0
  %v2830 = vsel %vm476, %v2731, 0
  %v2833 = vsel %vm476, %v2733, 0
  %v2836 = vsel %vm476, %v2735, 0
  %v2839 = vsel %vm476, %v2737, 0
  %v2842 = vsel %vm476, %v2739, 0
  %v2845 = vsel %vm476, %v2741, 0
  %v2848 = vsel %vm476, %v2743, 0
  %v2851 = vsel %vm476, %v2745, 0
  %v2854 = vsel %vm476, %v2747, 0
  %v2857 = vsel %vm476, %v2749, 0
  %v2860 = vsel %vm476, %v2751, 0
  %v2863 = vsel %vm476, %v2753, 0
  %v2866 = vsel %vm476, %v2755, 0
  %v2869 = vsel %vm476, %v2757, 0
  %v2872 = vsel %vm476, %v2759, 0
  %v2875 = vsel %vm476, %v2761, 0
  %v2878 = vsel %vm476, %v2763, 0
  %v2881 = vsel %vm476, %v2765, 0
  %v2884 = vsel %vm476, %v2767, 0
  %v2887 = vsel %vm476, %v2769, 0
  %v2890 = vsel %vm476, %v2771, 0
  %v2893 = vsel %vm476, %v2773, 0
  %v2896 = vsel %vm476, %v2775, 0
  %v2899 = vsel %vm476, %v2777, 0
  %v2902 = vsel %vm476, %v2779, 0
  %v2905 = vsel %vm476, %v2781, 0
  %v2908 = vsel %vm476, %v2783, 0
  %v2911 = vsel %vm476, %v2785, 0
  %v2914 = vsel %vm476, %v2787, 0
  %2916 = vmatprep.subr.bf16.mxu0 0
  %2917 = vmatpush1.bf16.msra.mxu0 %v451
  %2918 = vmatprep.subr.bf16.mxu0 0
  %2919 = vmatpush1.bf16.msra.mxu0 %v452
  %2920 = vmatprep.subr.bf16.mxu0 0
  %2921 = vmatpush1.bf16.msra.mxu0 %v453
  %2922 = vmatprep.subr.bf16.mxu0 0
  %2923 = vmatpush1.bf16.msra.mxu0 %v454
  %2924 = vmatprep.subr.bf16.mxu0 0
  %2925 = vmatpush1.bf16.msra.mxu0 %v455
  %2926 = vmatprep.subr.bf16.mxu0 0
  %2927 = vmatpush1.bf16.msra.mxu0 %v456
  %2928 = vmatprep.subr.bf16.mxu0 0
  %2929 = vmatpush1.bf16.msra.mxu0 %v457
  %2930 = vmatprep.subr.bf16.mxu0 0
  %2931 = vmatpush1.bf16.msra.mxu0 %v458
  %2932 = vmatprep.subr.bf16.mxu0 0
  %2933 = vmatpush1.bf16.msra.mxu0 %v459
  %2934 = vmatprep.subr.bf16.mxu0 0
  %2935 = vmatpush1.bf16.msra.mxu0 %v460
  %2936 = vmatprep.subr.bf16.mxu0 0
  %2937 = vmatpush1.bf16.msra.mxu0 %v461
  %2938 = vmatprep.subr.bf16.mxu0 0
  %2939 = vmatpush1.bf16.msra.mxu0 %v462
  %2940 = vmatprep.subr.bf16.mxu0 0
  %2941 = vmatpush1.bf16.msra.mxu0 %v575
  %2942 = vmatprep.subr.bf16.mxu0 0
  %2943 = vmatpush1.bf16.msra.mxu0 0
  %2944 = vmatprep.subr.bf16.mxu0 0
  %2945 = vmatpush1.bf16.msra.mxu0 0
  %2946 = vmatprep.subr.bf16.mxu0 0
  %2947 = vmatpush1.bf16.msra.mxu0 0
  %2948 = vmatprep.mubr.bf16.mxu0 %v2821
  %2949 = vmatmul.mubr.bf16.gmra.mrb[0].mxu0 %v2724
  %v2950 = vpop.f32.mrb[0].mxu0
  %v2951 = vadd.f32 0.0, %v2950
  %v2952 = vpop.f32.mrb[0].mxu0
  %v2953 = vpop.f32.mrb[0].mxu0
  %v2954 = vadd.f32 0.0, %v2953
  %v2955 = vpop.f32.mrb[0].mxu0
  %2956 = vmatprep.mubr.bf16.mxu0 %v2824
  %2957 = vmatmul.mubr.bf16.gmra.mrb[0].mxu0 %v2726
  %v2958 = vpop.f32.mrb[0].mxu0
  %v2959 = vadd.f32 0.0, %v2958
  %v2960 = vpop.f32.mrb[0].mxu0
  %v2961 = vpop.f32.mrb[0].mxu0
  %v2962 = vadd.f32 0.0, %v2961
  %v2963 = vpop.f32.mrb[0].mxu0
  %2964 = vmatprep.mubr.bf16.mxu0 %v2827
  %2965 = vmatmul.mubr.bf16.gmra.mrb[0].mxu0 %v2728
  %v2966 = vpop.f32.mrb[0].mxu0
  %v2967 = vadd.f32 0.0, %v2966
  %v2968 = vpop.f32.mrb[0].mxu0
  %v2969 = vpop.f32.mrb[0].mxu0
  %v2970 = vadd.f32 0.0, %v2969
  %v2971 = vpop.f32.mrb[0].mxu0
  %2972 = vmatprep.mubr.bf16.mxu0 %v2830
  %2973 = vmatmul.mubr.bf16.gmra.mrb[0].mxu0 %v2730
  %v2974 = vpop.f32.mrb[0].mxu0
  %v2975 = vadd.f32 0.0, %v2974
  %v2976 = vpop.f32.mrb[0].mxu0
  %v2977 = vpop.f32.mrb[0].mxu0
  %v2978 = vadd.f32 0.0, %v2977
  %v2979 = vpop.f32.mrb[0].mxu0
  %2980 = vmatprep.mubr.bf16.mxu0 %v2833
  %2981 = vmatmul.mubr.bf16.gmra.mrb[0].mxu0 %v2732
  %v2982 = vpop.f32.mrb[0].mxu0
  %v2983 = vadd.f32 0.0, %v2982
  %v2984 = vpop.f32.mrb[0].mxu0
  %v2985 = vpop.f32.mrb[0].mxu0
  %v2986 = vadd.f32 0.0, %v2985
  %v2987 = vpop.f32.mrb[0].mxu0
  %2988 = vmatprep.mubr.bf16.mxu0 %v2836
  %2989 = vmatmul.mubr.bf16.gmra.mrb[0].mxu0 %v2734
  %v2990 = vpop.f32.mrb[0].mxu0
  %v2991 = vadd.f32 0.0, %v2990
  %v2992 = vpop.f32.mrb[0].mxu0
  %v2993 = vpop.f32.mrb[0].mxu0
  %v2994 = vadd.f32 0.0, %v2993
  %v2995 = vpop.f32.mrb[0].mxu0
  %2996 = vmatprep.mubr.bf16.mxu0 %v2839
  %2997 = vmatmul.mubr.bf16.gmra.mrb[0].mxu0 %v2736
  %v2998 = vpop.f32.mrb[0].mxu0
  %v2999 = vadd.f32 0.0, %v2998
  %v3000 = vpop.f32.mrb[0].mxu0
  %v3001 = vpop.f32.mrb[0].mxu0
  %v3002 = vadd.f32 0.0, %v3001
  %v3003 = vpop.f32.mrb[0].mxu0
  %3004 = vmatprep.mubr.bf16.mxu0 %v2842
  %3005 = vmatmul.mubr.bf16.gmra.mrb[0].mxu0 %v2738
  %v3006 = vpop.f32.mrb[0].mxu0
  %v3007 = vadd.f32 0.0, %v3006
  %v3008 = vpop.f32.mrb[0].mxu0
  %v3009 = vpop.f32.mrb[0].mxu0
  %v3010 = vadd.f32 0.0, %v3009
  %v3011 = vpop.f32.mrb[0].mxu0
  %3012 = vmatprep.mubr.bf16.mxu0 %v2845
  %3013 = vmatmul.mubr.bf16.gmra.mrb[0].mxu0 %v2740
  %v3014 = vpop.f32.mrb[0].mxu0
  %v3015 = vadd.f32 0.0, %v3014
  %v3016 = vpop.f32.mrb[0].mxu0
  %v3017 = vpop.f32.mrb[0].mxu0
  %v3018 = vadd.f32 0.0, %v3017
  %v3019 = vpop.f32.mrb[0].mxu0
  %3020 = vmatprep.mubr.bf16.mxu0 %v2848
  %3021 = vmatmul.mubr.bf16.gmra.mrb[0].mxu0 %v2742
  %v3022 = vpop.f32.mrb[0].mxu0
  %v3023 = vadd.f32 0.0, %v3022
  %v3024 = vpop.f32.mrb[0].mxu0
  %v3025 = vpop.f32.mrb[0].mxu0
  %v3026 = vadd.f32 0.0, %v3025
  %v3027 = vpop.f32.mrb[0].mxu0
  %3028 = vmatprep.mubr.bf16.mxu0 %v2851
  %3029 = vmatmul.mubr.bf16.gmra.mrb[0].mxu0 %v2744
  %v3030 = vpop.f32.mrb[0].mxu0
  %v3031 = vadd.f32 0.0, %v3030
  %v3032 = vpop.f32.mrb[0].mxu0
  %v3033 = vpop.f32.mrb[0].mxu0
  %v3034 = vadd.f32 0.0, %v3033
  %v3035 = vpop.f32.mrb[0].mxu0
  %3036 = vmatprep.mubr.bf16.mxu0 %v2854
  %3037 = vmatmul.mubr.bf16.gmra.mrb[0].mxu0 %v2746
  %v3038 = vpop.f32.mrb[0].mxu0
  %v3039 = vadd.f32 0.0, %v3038
  %v3040 = vpop.f32.mrb[0].mxu0
  %v3041 = vpop.f32.mrb[0].mxu0
  %v3042 = vadd.f32 0.0, %v3041
  %v3043 = vpop.f32.mrb[0].mxu0
  %3044 = vmatprep.mubr.bf16.mxu0 %v2857
  %3045 = vmatmul.mubr.bf16.gmra.mrb[0].mxu0 %v2748
  %v3046 = vpop.f32.mrb[0].mxu0
  %v3047 = vadd.f32 0.0, %v3046
  %v3048 = vpop.f32.mrb[0].mxu0
  %v3049 = vpop.f32.mrb[0].mxu0
  %v3050 = vadd.f32 0.0, %v3049
  %v3051 = vpop.f32.mrb[0].mxu0
  %3052 = vmatprep.mubr.bf16.mxu0 %v2860
  %3053 = vmatmul.mubr.bf16.gmra.mrb[0].mxu0 %v2750
  %v3054 = vpop.f32.mrb[0].mxu0
  %v3055 = vadd.f32 0.0, %v3054
  %v3056 = vpop.f32.mrb[0].mxu0
  %v3057 = vpop.f32.mrb[0].mxu0
  %v3058 = vadd.f32 0.0, %v3057
  %v3059 = vpop.f32.mrb[0].mxu0
  %3060 = vmatprep.mubr.bf16.mxu0 %v2863
  %3061 = vmatmul.mubr.bf16.gmra.mrb[0].mxu0 %v2752
  %v3062 = vpop.f32.mrb[0].mxu0
  %v3063 = vadd.f32 0.0, %v3062
  %v3064 = vpop.f32.mrb[0].mxu0
  %v3065 = vpop.f32.mrb[0].mxu0
  %v3066 = vadd.f32 0.0, %v3065
  %v3067 = vpop.f32.mrb[0].mxu0
  %3068 = vmatprep.mubr.bf16.mxu0 %v2866
  %3069 = vmatmul.mubr.bf16.gmra.mrb[0].mxu0 %v2754
  %v3070 = vpop.f32.mrb[0].mxu0
  %v3071 = vadd.f32 0.0, %v3070
  %v3072 = vpop.f32.mrb[0].mxu0
  %v3073 = vpop.f32.mrb[0].mxu0
  %v3074 = vadd.f32 0.0, %v3073
  %v3075 = vpop.f32.mrb[0].mxu0
  %3076 = vmatprep.mubr.bf16.mxu0 %v2869
  %3077 = vmatmul.mubr.bf16.gmra.mrb[0].mxu0 %v2756
  %v3078 = vpop.f32.mrb[0].mxu0
  %v3079 = vadd.f32 0.0, %v3078
  %v3080 = vpop.f32.mrb[0].mxu0
  %v3081 = vpop.f32.mrb[0].mxu0
  %v3082 = vadd.f32 0.0, %v3081
  %v3083 = vpop.f32.mrb[0].mxu0
  %3084 = vmatprep.mubr.bf16.mxu0 %v2872
  %3085 = vmatmul.mubr.bf16.gmra.mrb[0].mxu0 %v2758
  %v3086 = vpop.f32.mrb[0].mxu0
  %v3087 = vadd.f32 0.0, %v3086
  %v3088 = vpop.f32.mrb[0].mxu0
  %v3089 = vpop.f32.mrb[0].mxu0
  %v3090 = vadd.f32 0.0, %v3089
  %v3091 = vpop.f32.mrb[0].mxu0
  %3092 = vmatprep.mubr.bf16.mxu0 %v2875
  %3093 = vmatmul.mubr.bf16.gmra.mrb[0].mxu0 %v2760
  %v3094 = vpop.f32.mrb[0].mxu0
  %v3095 = vadd.f32 0.0, %v3094
  %v3096 = vpop.f32.mrb[0].mxu0
  %v3097 = vpop.f32.mrb[0].mxu0
  %v3098 = vadd.f32 0.0, %v3097
  %v3099 = vpop.f32.mrb[0].mxu0
  %3100 = vmatprep.mubr.bf16.mxu0 %v2878
  %3101 = vmatmul.mubr.bf16.gmra.mrb[0].mxu0 %v2762
  %v3102 = vpop.f32.mrb[0].mxu0
  %v3103 = vadd.f32 0.0, %v3102
  %v3104 = vpop.f32.mrb[0].mxu0
  %v3105 = vpop.f32.mrb[0].mxu0
  %v3106 = vadd.f32 0.0, %v3105
  %v3107 = vpop.f32.mrb[0].mxu0
  %3108 = vmatprep.mubr.bf16.mxu0 %v2881
  %3109 = vmatmul.mubr.bf16.gmra.mrb[0].mxu0 %v2764
  %v3110 = vpop.f32.mrb[0].mxu0
  %v3111 = vadd.f32 0.0, %v3110
  %v3112 = vpop.f32.mrb[0].mxu0
  %v3113 = vpop.f32.mrb[0].mxu0
  %v3114 = vadd.f32 0.0, %v3113
  %v3115 = vpop.f32.mrb[0].mxu0
  %3116 = vmatprep.mubr.bf16.mxu0 %v2884
  %3117 = vmatmul.mubr.bf16.gmra.mrb[0].mxu0 %v2766
  %v3118 = vpop.f32.mrb[0].mxu0
  %v3119 = vadd.f32 0.0, %v3118
  %v3120 = vpop.f32.mrb[0].mxu0
  %v3121 = vpop.f32.mrb[0].mxu0
  %v3122 = vadd.f32 0.0, %v3121
  %v3123 = vpop.f32.mrb[0].mxu0
  %3124 = vmatprep.mubr.bf16.mxu0 %v2887
  %3125 = vmatmul.mubr.bf16.gmra.mrb[0].mxu0 %v2768
  %v3126 = vpop.f32.mrb[0].mxu0
  %v3127 = vadd.f32 0.0, %v3126
  %v3128 = vpop.f32.mrb[0].mxu0
  %v3129 = vpop.f32.mrb[0].mxu0
  %v3130 = vadd.f32 0.0, %v3129
  %v3131 = vpop.f32.mrb[0].mxu0
  %3132 = vmatprep.mubr.bf16.mxu0 %v2890
  %3133 = vmatmul.mubr.bf16.gmra.mrb[0].mxu0 %v2770
  %v3134 = vpop.f32.mrb[0].mxu0
  %v3135 = vadd.f32 0.0, %v3134
  %v3136 = vpop.f32.mrb[0].mxu0
  %v3137 = vpop.f32.mrb[0].mxu0
  %v3138 = vadd.f32 0.0, %v3137
  %v3139 = vpop.f32.mrb[0].mxu0
  %3140 = vmatprep.mubr.bf16.mxu0 %v2893
  %3141 = vmatmul.mubr.bf16.gmra.mrb[0].mxu0 %v2772
  %v3142 = vpop.f32.mrb[0].mxu0
  %v3143 = vadd.f32 0.0, %v3142
  %v3144 = vpop.f32.mrb[0].mxu0
  %v3145 = vpop.f32.mrb[0].mxu0
  %v3146 = vadd.f32 0.0, %v3145
  %v3147 = vpop.f32.mrb[0].mxu0
  %3148 = vmatprep.mubr.bf16.mxu0 %v2896
  %3149 = vmatmul.mubr.bf16.gmra.mrb[0].mxu0 %v2774
  %v3150 = vpop.f32.mrb[0].mxu0
  %v3151 = vadd.f32 0.0, %v3150
  %v3152 = vpop.f32.mrb[0].mxu0
  %v3153 = vpop.f32.mrb[0].mxu0
  %v3154 = vadd.f32 0.0, %v3153
  %v3155 = vpop.f32.mrb[0].mxu0
  %3156 = vmatprep.mubr.bf16.mxu0 %v2899
  %3157 = vmatmul.mubr.bf16.gmra.mrb[0].mxu0 %v2776
  %v3158 = vpop.f32.mrb[0].mxu0
  %v3159 = vadd.f32 0.0, %v3158
  %v3160 = vpop.f32.mrb[0].mxu0
  %v3161 = vpop.f32.mrb[0].mxu0
  %v3162 = vadd.f32 0.0, %v3161
  %v3163 = vpop.f32.mrb[0].mxu0
  %3164 = vmatprep.mubr.bf16.mxu0 %v2902
  %3165 = vmatmul.mubr.bf16.gmra.mrb[0].mxu0 %v2778
  %v3166 = vpop.f32.mrb[0].mxu0
  %v3167 = vadd.f32 0.0, %v3166
  %v3168 = vpop.f32.mrb[0].mxu0
  %v3169 = vpop.f32.mrb[0].mxu0
  %v3170 = vadd.f32 0.0, %v3169
  %v3171 = vpop.f32.mrb[0].mxu0
  %3172 = vmatprep.mubr.bf16.mxu0 %v2905
  %3173 = vmatmul.mubr.bf16.gmra.mrb[0].mxu0 %v2780
  %v3174 = vpop.f32.mrb[0].mxu0
  %v3175 = vadd.f32 0.0, %v3174
  %v3176 = vpop.f32.mrb[0].mxu0
  %v3177 = vpop.f32.mrb[0].mxu0
  %v3178 = vadd.f32 0.0, %v3177
  %v3179 = vpop.f32.mrb[0].mxu0
  %3180 = vmatprep.mubr.bf16.mxu0 %v2908
  %3181 = vmatmul.mubr.bf16.gmra.mrb[0].mxu0 %v2782
  %v3182 = vpop.f32.mrb[0].mxu0
  %v3183 = vadd.f32 0.0, %v3182
  %v3184 = vpop.f32.mrb[0].mxu0
  %v3185 = vpop.f32.mrb[0].mxu0
  %v3186 = vadd.f32 0.0, %v3185
  %v3187 = vpop.f32.mrb[0].mxu0
  %3188 = vmatprep.mubr.bf16.mxu0 %v2911
  %3189 = vmatmul.mubr.bf16.gmra.mrb[0].mxu0 %v2784
  %v3190 = vpop.f32.mrb[0].mxu0
  %v3191 = vadd.f32 0.0, %v3190
  %v3192 = vpop.f32.mrb[0].mxu0
  %v3193 = vpop.f32.mrb[0].mxu0
  %v3194 = vadd.f32 0.0, %v3193
  %v3195 = vpop.f32.mrb[0].mxu0
  %3196 = vmatprep.mubr.bf16.mxu0 %v2914
  %3197 = vmatmul.mubr.bf16.gmra.mrb[0].mxu0 %v2786
  %v3198 = vpop.f32.mrb[0].mxu0
  %v3199 = vadd.f32 0.0, %v3198
  %v3200 = vpop.f32.mrb[0].mxu0
  %v3201 = vpop.f32.mrb[0].mxu0
  %v3202 = vadd.f32 0.0, %v3201
  %v3203 = vpop.f32.mrb[0].mxu0
  %3204 = vdwg.mxu0
  %v3205 = vmax.f32 %v2404, %v2951
  %v3206 = vmax.f32 %v2405, %v2954
  %v3207 = vmax.f32 %v2406, %v2959
  %v3208 = vmax.f32 %v2407, %v2962
  %v3209 = vmax.f32 %v2408, %v2967
  %v3210 = vmax.f32 %v2409, %v2970
  %v3211 = vmax.f32 %v2410, %v2975
  %v3212 = vmax.f32 %v2411, %v2978
  %v3213 = vmax.f32 %v2412, %v2983
  %v3214 = vmax.f32 %v2413, %v2986
  %v3215 = vmax.f32 %v2414, %v2991
  %v3216 = vmax.f32 %v2415, %v2994
  %v3217 = vmax.f32 %v2416, %v2999
  %v3218 = vmax.f32 %v2417, %v3002
  %v3219 = vmax.f32 %v2418, %v3007
  %v3220 = vmax.f32 %v2419, %v3010
  %v3221 = vmax.f32 %v2420, %v3015
  %v3222 = vmax.f32 %v2421, %v3018
  %v3223 = vmax.f32 %v2422, %v3023
  %v3224 = vmax.f32 %v2423, %v3026
  %v3225 = vmax.f32 %v2424, %v3031
  %v3226 = vmax.f32 %v2425, %v3034
  %v3227 = vmax.f32 %v2426, %v3039
  %v3228 = vmax.f32 %v2427, %v3042
  %v3229 = vmax.f32 %v2428, %v3047
  %v3230 = vmax.f32 %v2429, %v3050
  %v3231 = vmax.f32 %v2430, %v3055
  %v3232 = vmax.f32 %v2431, %v3058
  %v3233 = vmax.f32 %v2432, %v3063
  %v3234 = vmax.f32 %v2433, %v3066
  %v3235 = vmax.f32 %v2434, %v3071
  %v3236 = vmax.f32 %v2435, %v3074
  %v3237 = vmax.f32 %v2436, %v3079
  %v3238 = vmax.f32 %v2437, %v3082
  %v3239 = vmax.f32 %v2438, %v3087
  %v3240 = vmax.f32 %v2439, %v3090
  %v3241 = vmax.f32 %v2440, %v3095
  %v3242 = vmax.f32 %v2441, %v3098
  %v3243 = vmax.f32 %v2442, %v3103
  %v3244 = vmax.f32 %v2443, %v3106
  %v3245 = vmax.f32 %v2444, %v3111
  %v3246 = vmax.f32 %v2445, %v3114
  %v3247 = vmax.f32 %v2446, %v3119
  %v3248 = vmax.f32 %v2447, %v3122
  %v3249 = vmax.f32 %v2448, %v3127
  %v3250 = vmax.f32 %v2449, %v3130
  %v3251 = vmax.f32 %v2450, %v3135
  %v3252 = vmax.f32 %v2451, %v3138
  %v3253 = vmax.f32 %v2452, %v3143
  %v3254 = vmax.f32 %v2453, %v3146
  %v3255 = vmax.f32 %v2454, %v3151
  %v3256 = vmax.f32 %v2455, %v3154
  %v3257 = vmax.f32 %v2456, %v3159
  %v3258 = vmax.f32 %v2457, %v3162
  %v3259 = vmax.f32 %v2458, %v3167
  %v3260 = vmax.f32 %v2459, %v3170
  %v3261 = vmax.f32 %v2460, %v3175
  %v3262 = vmax.f32 %v2461, %v3178
  %v3263 = vmax.f32 %v2462, %v3183
  %v3264 = vmax.f32 %v2463, %v3186
  %v3265 = vmax.f32 %v2464, %v3191
  %v3266 = vmax.f32 %v2465, %v3194
  %v3267 = vmax.f32 %v2466, %v3199
  %v3268 = vmax.f32 %v2467, %v3202
  %v3269 = vld [vmem:[%s5] sm:$0x1]
  %v3271 = vlaneseq
  %v3272 = vshrl.u32 %v3271, 7
  %v3273 = vsub.s32 0, %v3272
  %v3274 = vrot.slane %v3269, %v3273
  %v3276 = vadd.f32 %v3205, %v3274
  %v3277 = vadd.f32 %v3206, %v3274
  %v3278 = vadd.f32 %v3207, %v3274
  %v3279 = vadd.f32 %v3208, %v3274
  %v3280 = vadd.f32 %v3209, %v3274
  %v3281 = vadd.f32 %v3210, %v3274
  %v3282 = vadd.f32 %v3211, %v3274
  %v3283 = vadd.f32 %v3212, %v3274
  %v3284 = vadd.f32 %v3213, %v3274
  %v3285 = vadd.f32 %v3214, %v3274
  %v3286 = vadd.f32 %v3215, %v3274
  %v3287 = vadd.f32 %v3216, %v3274
  %v3288 = vadd.f32 %v3217, %v3274
  %v3289 = vadd.f32 %v3218, %v3274
  %v3290 = vadd.f32 %v3219, %v3274
  %v3291 = vadd.f32 %v3220, %v3274
  %v3292 = vadd.f32 %v3221, %v3274
  %v3293 = vadd.f32 %v3222, %v3274
  %v3294 = vadd.f32 %v3223, %v3274
  %v3295 = vadd.f32 %v3224, %v3274
  %v3296 = vadd.f32 %v3225, %v3274
  %v3297 = vadd.f32 %v3226, %v3274
  %v3298 = vadd.f32 %v3227, %v3274
  %v3299 = vadd.f32 %v3228, %v3274
  %v3300 = vadd.f32 %v3229, %v3274
  %v3301 = vadd.f32 %v3230, %v3274
  %v3302 = vadd.f32 %v3231, %v3274
  %v3303 = vadd.f32 %v3232, %v3274
  %v3304 = vadd.f32 %v3233, %v3274
  %v3305 = vadd.f32 %v3234, %v3274
  %v3306 = vadd.f32 %v3235, %v3274
  %v3307 = vadd.f32 %v3236, %v3274
  %v3308 = vadd.f32 %v3237, %v3274
  %v3309 = vadd.f32 %v3238, %v3274
  %v3310 = vadd.f32 %v3239, %v3274
  %v3311 = vadd.f32 %v3240, %v3274
  %v3312 = vadd.f32 %v3241, %v3274
  %v3313 = vadd.f32 %v3242, %v3274
  %v3314 = vadd.f32 %v3243, %v3274
  %v3315 = vadd.f32 %v3244, %v3274
  %v3316 = vadd.f32 %v3245, %v3274
  %v3317 = vadd.f32 %v3246, %v3274
  %v3318 = vadd.f32 %v3247, %v3274
  %v3319 = vadd.f32 %v3248, %v3274
  %v3320 = vadd.f32 %v3249, %v3274
  %v3321 = vadd.f32 %v3250, %v3274
  %v3322 = vadd.f32 %v3251, %v3274
  %v3323 = vadd.f32 %v3252, %v3274
  %v3324 = vadd.f32 %v3253, %v3274
  %v3325 = vadd.f32 %v3254, %v3274
  %v3326 = vadd.f32 %v3255, %v3274
  %v3327 = vadd.f32 %v3256, %v3274
  %v3328 = vadd.f32 %v3257, %v3274
  %v3329 = vadd.f32 %v3258, %v3274
  %v3330 = vadd.f32 %v3259, %v3274
  %v3331 = vadd.f32 %v3260, %v3274
  %v3332 = vadd.f32 %v3261, %v3274
  %v3333 = vadd.f32 %v3262, %v3274
  %v3334 = vadd.f32 %v3263, %v3274
  %v3335 = vadd.f32 %v3264, %v3274
  %v3336 = vadd.f32 %v3265, %v3274
  %v3337 = vadd.f32 %v3266, %v3274
  %v3338 = vadd.f32 %v3267, %v3274
  %v3339 = vadd.f32 %v3268, %v3274
  %v3340 = vpack.c.bf16 %v3277, %v3276
  %v3341 = vpack.c.bf16 %v3279, %v3278
  %v3342 = vpack.c.bf16 %v3281, %v3280
  %v3343 = vpack.c.bf16 %v3283, %v3282
  %v3344 = vpack.c.bf16 %v3285, %v3284
  %v3345 = vpack.c.bf16 %v3287, %v3286
  %v3346 = vpack.c.bf16 %v3289, %v3288
  %v3347 = vpack.c.bf16 %v3291, %v3290
  %v3348 = vpack.c.bf16 %v3293, %v3292
  %v3349 = vpack.c.bf16 %v3295, %v3294
  %v3350 = vpack.c.bf16 %v3297, %v3296
  %v3351 = vpack.c.bf16 %v3299, %v3298
  %v3352 = vpack.c.bf16 %v3301, %v3300
  %v3353 = vpack.c.bf16 %v3303, %v3302
  %v3354 = vpack.c.bf16 %v3305, %v3304
  %v3355 = vpack.c.bf16 %v3307, %v3306
  %v3356 = vpack.c.bf16 %v3309, %v3308
  %v3357 = vpack.c.bf16 %v3311, %v3310
  %v3358 = vpack.c.bf16 %v3313, %v3312
  %v3359 = vpack.c.bf16 %v3315, %v3314
  %v3360 = vpack.c.bf16 %v3317, %v3316
  %v3361 = vpack.c.bf16 %v3319, %v3318
  %v3362 = vpack.c.bf16 %v3321, %v3320
  %v3363 = vpack.c.bf16 %v3323, %v3322
  %v3364 = vpack.c.bf16 %v3325, %v3324
  %v3365 = vpack.c.bf16 %v3327, %v3326
  %v3366 = vpack.c.bf16 %v3329, %v3328
  %v3367 = vpack.c.bf16 %v3331, %v3330
  %v3368 = vpack.c.bf16 %v3333, %v3332
  %v3369 = vpack.c.bf16 %v3335, %v3334
  %v3370 = vpack.c.bf16 %v3337, %v3336
  %v3371 = vpack.c.bf16 %v3339, %v3338
  %v3404 = vunpack.c.l.b16 %v3340
  %v3405 = vunpack.c.h.b16 %v3340
  %v3406 = vunpack.c.l.b16 %v3341
  %v3407 = vunpack.c.h.b16 %v3341
  %v3408 = vunpack.c.l.b16 %v3342
  %v3409 = vunpack.c.h.b16 %v3342
  %v3410 = vunpack.c.l.b16 %v3343
  %v3411 = vunpack.c.h.b16 %v3343
  %v3412 = vunpack.c.l.b16 %v3344
  %v3413 = vunpack.c.h.b16 %v3344
  %v3414 = vunpack.c.l.b16 %v3345
  %v3415 = vunpack.c.h.b16 %v3345
  %v3416 = vunpack.c.l.b16 %v3346
  %v3417 = vunpack.c.h.b16 %v3346
  %v3418 = vunpack.c.l.b16 %v3347
  %v3419 = vunpack.c.h.b16 %v3347
  %v3420 = vunpack.c.l.b16 %v3348
  %v3421 = vunpack.c.h.b16 %v3348
  %v3422 = vunpack.c.l.b16 %v3349
  %v3423 = vunpack.c.h.b16 %v3349
  %v3424 = vunpack.c.l.b16 %v3350
  %v3425 = vunpack.c.h.b16 %v3350
  %v3426 = vunpack.c.l.b16 %v3351
  %v3427 = vunpack.c.h.b16 %v3351
  %v3428 = vunpack.c.l.b16 %v3352
  %v3429 = vunpack.c.h.b16 %v3352
  %v3430 = vunpack.c.l.b16 %v3353
  %v3431 = vunpack.c.h.b16 %v3353
  %v3432 = vunpack.c.l.b16 %v3354
  %v3433 = vunpack.c.h.b16 %v3354
  %v3434 = vunpack.c.l.b16 %v3355
  %v3435 = vunpack.c.h.b16 %v3355
  %v3436 = vunpack.c.l.b16 %v3356
  %v3437 = vunpack.c.h.b16 %v3356
  %v3438 = vunpack.c.l.b16 %v3357
  %v3439 = vunpack.c.h.b16 %v3357
  %v3440 = vunpack.c.l.b16 %v3358
  %v3441 = vunpack.c.h.b16 %v3358
  %v3442 = vunpack.c.l.b16 %v3359
  %v3443 = vunpack.c.h.b16 %v3359
  %v3444 = vunpack.c.l.b16 %v3360
  %v3445 = vunpack.c.h.b16 %v3360
  %v3446 = vunpack.c.l.b16 %v3361
  %v3447 = vunpack.c.h.b16 %v3361
  %v3448 = vunpack.c.l.b16 %v3362
  %v3449 = vunpack.c.h.b16 %v3362
  %v3450 = vunpack.c.l.b16 %v3363
  %v3451 = vunpack.c.h.b16 %v3363
  %v3452 = vunpack.c.l.b16 %v3364
  %v3453 = vunpack.c.h.b16 %v3364
  %v3454 = vunpack.c.l.b16 %v3365
  %v3455 = vunpack.c.h.b16 %v3365
  %v3456 = vunpack.c.l.b16 %v3366
  %v3457 = vunpack.c.h.b16 %v3366
  %v3458 = vunpack.c.l.b16 %v3367
  %v3459 = vunpack.c.h.b16 %v3367
  %v3460 = vunpack.c.l.b16 %v3368
  %v3461 = vunpack.c.h.b16 %v3368
  %v3462 = vunpack.c.l.b16 %v3369
  %v3463 = vunpack.c.h.b16 %v3369
  %v3464 = vunpack.c.l.b16 %v3370
  %v3465 = vunpack.c.h.b16 %v3370
  %v3466 = vunpack.c.l.b16 %v3371
  %v3467 = vunpack.c.h.b16 %v3371
  %v3468 = vpack.c.b16 %v3404, %v3404
  %v3469 = vpack.c.b16 %v3405, %v3405
  %v3470 = vpack.c.b16 %v3406, %v3406
  %v3471 = vpack.c.b16 %v3407, %v3407
  %v3472 = vpack.c.b16 %v3408, %v3408
  %v3473 = vpack.c.b16 %v3409, %v3409
  %v3474 = vpack.c.b16 %v3410, %v3410
  %v3475 = vpack.c.b16 %v3411, %v3411
  %v3476 = vpack.c.b16 %v3412, %v3412
  %v3477 = vpack.c.b16 %v3413, %v3413
  %v3478 = vpack.c.b16 %v3414, %v3414
  %v3479 = vpack.c.b16 %v3415, %v3415
  %v3480 = vpack.c.b16 %v3416, %v3416
  %v3481 = vpack.c.b16 %v3417, %v3417
  %v3482 = vpack.c.b16 %v3418, %v3418
  %v3483 = vpack.c.b16 %v3419, %v3419
  %v3484 = vpack.c.b16 %v3420, %v3420
  %v3485 = vpack.c.b16 %v3421, %v3421
  %v3486 = vpack.c.b16 %v3422, %v3422
  %v3487 = vpack.c.b16 %v3423, %v3423
  %v3488 = vpack.c.b16 %v3424, %v3424
  %v3489 = vpack.c.b16 %v3425, %v3425
  %v3490 = vpack.c.b16 %v3426, %v3426
  %v3491 = vpack.c.b16 %v3427, %v3427
  %v3492 = vpack.c.b16 %v3428, %v3428
  %v3493 = vpack.c.b16 %v3429, %v3429
  %v3494 = vpack.c.b16 %v3430, %v3430
  %v3495 = vpack.c.b16 %v3431, %v3431
  %v3496 = vpack.c.b16 %v3432, %v3432
  %v3497 = vpack.c.b16 %v3433, %v3433
  %v3498 = vpack.c.b16 %v3434, %v3434
  %v3499 = vpack.c.b16 %v3435, %v3435
  %v3500 = vpack.c.b16 %v3436, %v3436
  %v3501 = vpack.c.b16 %v3437, %v3437
  %v3502 = vpack.c.b16 %v3438, %v3438
  %v3503 = vpack.c.b16 %v3439, %v3439
  %v3504 = vpack.c.b16 %v3440, %v3440
  %v3505 = vpack.c.b16 %v3441, %v3441
  %v3506 = vpack.c.b16 %v3442, %v3442
  %v3507 = vpack.c.b16 %v3443, %v3443
  %v3508 = vpack.c.b16 %v3444, %v3444
  %v3509 = vpack.c.b16 %v3445, %v3445
  %v3510 = vpack.c.b16 %v3446, %v3446
  %v3511 = vpack.c.b16 %v3447, %v3447
  %v3512 = vpack.c.b16 %v3448, %v3448
  %v3513 = vpack.c.b16 %v3449, %v3449
  %v3514 = vpack.c.b16 %v3450, %v3450
  %v3515 = vpack.c.b16 %v3451, %v3451
  %v3516 = vpack.c.b16 %v3452, %v3452
  %v3517 = vpack.c.b16 %v3453, %v3453
  %v3518 = vpack.c.b16 %v3454, %v3454
  %v3519 = vpack.c.b16 %v3455, %v3455
  %v3520 = vpack.c.b16 %v3456, %v3456
  %v3521 = vpack.c.b16 %v3457, %v3457
  %v3522 = vpack.c.b16 %v3458, %v3458
  %v3523 = vpack.c.b16 %v3459, %v3459
  %v3524 = vpack.c.b16 %v3460, %v3460
  %v3525 = vpack.c.b16 %v3461, %v3461
  %v3526 = vpack.c.b16 %v3462, %v3462
  %v3527 = vpack.c.b16 %v3463, %v3463
  %v3528 = vpack.c.b16 %v3464, %v3464
  %v3529 = vpack.c.b16 %v3465, %v3465
  %v3530 = vpack.c.b16 %v3466, %v3466
  %v3531 = vpack.c.b16 %v3467, %v3467
  %vm3596 = vcmask 257024
  %3597 = vst.msk [vmem:[%s6] sm:$0xf] %vm3596, %v3468
  %3598 = vst.msk [vmem:[%s6 + $0x4] sm:$0xf] %vm3596, %v3469
  %3599 = vst.msk [vmem:[%s6 + $0x8] sm:$0xf] %vm3596, %v3470
  %3600 = vst.msk [vmem:[%s6 + $0xc] sm:$0xf] %vm3596, %v3471
  %3601 = vst.msk [vmem:[%s6 + $0x10] sm:$0xf] %vm3596, %v3472
  %3602 = vst.msk [vmem:[%s6 + $0x14] sm:$0xf] %vm3596, %v3473
  %3603 = vst.msk [vmem:[%s6 + $0x18] sm:$0xf] %vm3596, %v3474
  %3604 = vst.msk [vmem:[%s6 + $0x1c] sm:$0xf] %vm3596, %v3475
  %3605 = vst.msk [vmem:[%s6 + $0x20] sm:$0xf] %vm3596, %v3476
  %3606 = vst.msk [vmem:[%s6 + $0x24] sm:$0xf] %vm3596, %v3477
  %3607 = vst.msk [vmem:[%s6 + $0x28] sm:$0xf] %vm3596, %v3478
  %3608 = vst.msk [vmem:[%s6 + $0x2c] sm:$0xf] %vm3596, %v3479
  %3609 = vst.msk [vmem:[%s6 + $0x30] sm:$0xf] %vm3596, %v3480
  %3610 = vst.msk [vmem:[%s6 + $0x34] sm:$0xf] %vm3596, %v3481
  %3611 = vst.msk [vmem:[%s6 + $0x38] sm:$0xf] %vm3596, %v3482
  %3612 = vst.msk [vmem:[%s6 + $0x3c] sm:$0xf] %vm3596, %v3483
  %3613 = vst.msk [vmem:[%s6 + $0x40] sm:$0xf] %vm3596, %v3484
  %3614 = vst.msk [vmem:[%s6 + $0x44] sm:$0xf] %vm3596, %v3485
  %3615 = vst.msk [vmem:[%s6 + $0x48] sm:$0xf] %vm3596, %v3486
  %3616 = vst.msk [vmem:[%s6 + $0x4c] sm:$0xf] %vm3596, %v3487
  %3617 = vst.msk [vmem:[%s6 + $0x50] sm:$0xf] %vm3596, %v3488
  %3618 = vst.msk [vmem:[%s6 + $0x54] sm:$0xf] %vm3596, %v3489
  %3619 = vst.msk [vmem:[%s6 + $0x58] sm:$0xf] %vm3596, %v3490
  %3620 = vst.msk [vmem:[%s6 + $0x5c] sm:$0xf] %vm3596, %v3491
  %3621 = vst.msk [vmem:[%s6 + $0x60] sm:$0xf] %vm3596, %v3492
  %3622 = vst.msk [vmem:[%s6 + $0x64] sm:$0xf] %vm3596, %v3493
  %3623 = vst.msk [vmem:[%s6 + $0x68] sm:$0xf] %vm3596, %v3494
  %3624 = vst.msk [vmem:[%s6 + $0x6c] sm:$0xf] %vm3596, %v3495
  %3625 = vst.msk [vmem:[%s6 + $0x70] sm:$0xf] %vm3596, %v3496
  %3626 = vst.msk [vmem:[%s6 + $0x74] sm:$0xf] %vm3596, %v3497
  %3627 = vst.msk [vmem:[%s6 + $0x78] sm:$0xf] %vm3596, %v3498
  %3628 = vst.msk [vmem:[%s6 + $0x7c] sm:$0xf] %vm3596, %v3499
  %3629 = vst.msk [vmem:[%s6 + $0x80] sm:$0xf] %vm3596, %v3500
  %3630 = vst.msk [vmem:[%s6 + $0x84] sm:$0xf] %vm3596, %v3501
  %3631 = vst.msk [vmem:[%s6 + $0x88] sm:$0xf] %vm3596, %v3502
  %3632 = vst.msk [vmem:[%s6 + $0x8c] sm:$0xf] %vm3596, %v3503
  %3633 = vst.msk [vmem:[%s6 + $0x90] sm:$0xf] %vm3596, %v3504
  %3634 = vst.msk [vmem:[%s6 + $0x94] sm:$0xf] %vm3596, %v3505
  %3635 = vst.msk [vmem:[%s6 + $0x98] sm:$0xf] %vm3596, %v3506
  %3636 = vst.msk [vmem:[%s6 + $0x9c] sm:$0xf] %vm3596, %v3507
  %3637 = vst.msk [vmem:[%s6 + $0xa0] sm:$0xf] %vm3596, %v3508
  %3638 = vst.msk [vmem:[%s6 + $0xa4] sm:$0xf] %vm3596, %v3509
  %3639 = vst.msk [vmem:[%s6 + $0xa8] sm:$0xf] %vm3596, %v3510
  %3640 = vst.msk [vmem:[%s6 + $0xac] sm:$0xf] %vm3596, %v3511
  %3641 = vst.msk [vmem:[%s6 + $0xb0] sm:$0xf] %vm3596, %v3512
  %3642 = vst.msk [vmem:[%s6 + $0xb4] sm:$0xf] %vm3596, %v3513
  %3643 = vst.msk [vmem:[%s6 + $0xb8] sm:$0xf] %vm3596, %v3514
  %3644 = vst.msk [vmem:[%s6 + $0xbc] sm:$0xf] %vm3596, %v3515
  %3645 = vst.msk [vmem:[%s6 + $0xc0] sm:$0xf] %vm3596, %v3516
  %3646 = vst.msk [vmem:[%s6 + $0xc4] sm:$0xf] %vm3596, %v3517
  %3647 = vst.msk [vmem:[%s6 + $0xc8] sm:$0xf] %vm3596, %v3518
  %3648 = vst.msk [vmem:[%s6 + $0xcc] sm:$0xf] %vm3596, %v3519
  %3649 = vst.msk [vmem:[%s6 + $0xd0] sm:$0xf] %vm3596, %v3520
  %3650 = vst.msk [vmem:[%s6 + $0xd4] sm:$0xf] %vm3596, %v3521
  %3651 = vst.msk [vmem:[%s6 + $0xd8] sm:$0xf] %vm3596, %v3522
  %3652 = vst.msk [vmem:[%s6 + $0xdc] sm:$0xf] %vm3596, %v3523
  %3653 = vst.msk [vmem:[%s6 + $0xe0] sm:$0xf] %vm3596, %v3524
  %3654 = vst.msk [vmem:[%s6 + $0xe4] sm:$0xf] %vm3596, %v3525
  %3655 = vst.msk [vmem:[%s6 + $0xe8] sm:$0xf] %vm3596, %v3526
  %3656 = vst.msk [vmem:[%s6 + $0xec] sm:$0xf] %vm3596, %v3527
  %3657 = vst.msk [vmem:[%s6 + $0xf0] sm:$0xf] %vm3596, %v3528
  %3658 = vst.msk [vmem:[%s6 + $0xf4] sm:$0xf] %vm3596, %v3529
  %3659 = vst.msk [vmem:[%s6 + $0xf8] sm:$0xf] %vm3596, %v3530
  %3660 = vst.msk [vmem:[%s6 + $0xfc] sm:$0xf] %vm3596, %v3531
  // Predicated region
  $region26: #{yuzhao_forward.4} parent=0 // pred_check
    _
  $region27: #{yuzhao_forward.4} parent=0 // pred_check_branch
    %3662 = sbr.rel (0) target = $region29
  $region28: #{yuzhao_forward.4} parent=0 // pred_region
    _
  $region29: #{yuzhao_forward.4} parent=0 // pred_fallthru
    _
  // Predicated region
  $region30: #{yuzhao_forward.4} parent=0 // pred_check
    _
  $region31: #{yuzhao_forward.4} parent=0 // pred_check_branch
    %3664 = sbr.rel (0) target = $region33
  $region32: #{yuzhao_forward.4} parent=0 // pred_region
    _
  $region33: #{yuzhao_forward.4} parent=0 // pred_fallthru
    _

// kernel: yuzhao_forward.5
$region0: #{yuzhao_forward.5}
  #allocation0 [shape = 'u32[]', space=smem, size = 0x4, offset = 0x4, fixed_abs, tag = 'smem constant byte address 0x4 - core index']
  #allocation1 [shape = 'u32[144,128]{1,0:T(1,128)}', space=vmem, size = 0x12000, scoped, tag = 'internal scratch']
  %s0 = inlined_call_operand.vmem [shape: bf16[2,64,800], index: 0, kind: input, shape index: {}]
  %s1 = inlined_call_operand.vmem [shape: bf16[2,64,800], index: 1, kind: input, shape index: {}]
  %s2 = inlined_call_operand.vmem [shape: bf16[2,64,800], index: 2, kind: input, shape index: {}]
  %s3 = inlined_call_operand.vmem [shape: bf16[2,64,800], index: 3, kind: input, shape index: {}]
  %s4 = inlined_call_operand.vmem [shape: bf16[800,32], index: 4, kind: input, shape index: {}]
  %s5 = inlined_call_operand.vmem [shape: f32[1,32], index: 5, kind: input, shape index: {}]
  %s6 = inlined_call_operand.vmem [shape: bf16[2,64,32], index: 6, kind: output, shape index: {}]
  %s7 = sld [smem:[#allocation0]]
  $region34: #{yuzhao_forward.5} parent=0
    _
  %s9 = ssub.s32 1, %s7
  %s10 = scalar_select 0, %s9, %s7
  // Predicated region
  $region2: #{yuzhao_forward.5} parent=0 // pred_check
    _
  $region3: #{yuzhao_forward.5} parent=0 // pred_check_branch
    %12 = sbr.rel (0) target = $region5
  $region4: #{yuzhao_forward.5} parent=0 // pred_region
    _
  $region5: #{yuzhao_forward.5} parent=0 // pred_fallthru
    _
  // Predicated region
  $region6: #{yuzhao_forward.5} parent=0 // pred_check
    _
  $region7: #{yuzhao_forward.5} parent=0 // pred_check_branch
    %14 = sbr.rel (0) target = $region9
  $region8: #{yuzhao_forward.5} parent=0 // pred_region
    _
  $region9: #{yuzhao_forward.5} parent=0 // pred_fallthru
    _
  // Predicated region
  $region10: #{yuzhao_forward.5} parent=0 // pred_check
    _
  $region11: #{yuzhao_forward.5} parent=0 // pred_check_branch
    %16 = sbr.rel (0) target = $region13
  $region12: #{yuzhao_forward.5} parent=0 // pred_region
    _
  $region13: #{yuzhao_forward.5} parent=0 // pred_fallthru
    _
  // Predicated region
  $region14: #{yuzhao_forward.5} parent=0 // pred_check
    _
  $region15: #{yuzhao_forward.5} parent=0 // pred_check_branch
    %18 = sbr.rel (0) target = $region17
  $region16: #{yuzhao_forward.5} parent=0 // pred_region
    _
  $region17: #{yuzhao_forward.5} parent=0 // pred_fallthru
    _
  // Predicated region
  $region18: #{yuzhao_forward.5} parent=0 // pred_check
    _
  $region19: #{yuzhao_forward.5} parent=0 // pred_check_branch
    %20 = sbr.rel (0) target = $region21
  $region20: #{yuzhao_forward.5} parent=0 // pred_region
    _
  $region21: #{yuzhao_forward.5} parent=0 // pred_fallthru
    _
  // Predicated region
  $region22: #{yuzhao_forward.5} parent=0 // pred_check
    _
  $region23: #{yuzhao_forward.5} parent=0 // pred_check_branch
    %22 = sbr.rel (0) target = $region25
  $region24: #{yuzhao_forward.5} parent=0 // pred_region
    _
  $region25: #{yuzhao_forward.5} parent=0 // pred_fallthru
    _
  %v24 = vld [vmem:[%s4] sm:$0xf]
  %v25 = vld [vmem:[%s4 + $0x4] sm:$0xf]
  %v26 = vld [vmem:[%s4 + $0x8] sm:$0xf]
  %v27 = vld [vmem:[%s4 + $0xc] sm:$0xf]
  %v28 = vld [vmem:[%s4 + $0x10] sm:$0xf]
  %v29 = vld [vmem:[%s4 + $0x14] sm:$0xf]
  %v30 = vld [vmem:[%s4 + $0x18] sm:$0xf]
  %v31 = vld [vmem:[%s4 + $0x1c] sm:$0xf]
  %v32 = vld [vmem:[%s4 + $0x20] sm:$0xf]
  %v33 = vld [vmem:[%s4 + $0x24] sm:$0xf]
  %v34 = vld [vmem:[%s4 + $0x28] sm:$0xf]
  %v35 = vld [vmem:[%s4 + $0x2c] sm:$0xf]
  %v36 = vld [vmem:[%s4 + $0x30] sm:$0xf]
  %v37 = vld [vmem:[%s4 + $0x34] sm:$0xf]
  %v38 = vld [vmem:[%s4 + $0x38] sm:$0xf]
  %v39 = vld [vmem:[%s4 + $0x3c] sm:$0xf]
  %v40 = vld [vmem:[%s4 + $0x40] sm:$0xf]
  %v41 = vld [vmem:[%s4 + $0x44] sm:$0xf]
  %v42 = vld [vmem:[%s4 + $0x48] sm:$0xf]
  %v43 = vld [vmem:[%s4 + $0x4c] sm:$0xf]
  %v44 = vld [vmem:[%s4 + $0x50] sm:$0xf]
  %v45 = vld [vmem:[%s4 + $0x54] sm:$0xf]
  %v46 = vld [vmem:[%s4 + $0x58] sm:$0xf]
  %v47 = vld [vmem:[%s4 + $0x5c] sm:$0xf]
  %v48 = vld [vmem:[%s4 + $0x60] sm:$0xf]
  %v49 = vld [vmem:[%s4 + $0x64] sm:$0xf]
  %v50 = vld [vmem:[%s4 + $0x68] sm:$0xf]
  %v51 = vld [vmem:[%s4 + $0x6c] sm:$0xf]
  %v52 = vld [vmem:[%s4 + $0x70] sm:$0xf]
  %v53 = vld [vmem:[%s4 + $0x74] sm:$0xf]
  %v54 = vld [vmem:[%s4 + $0x78] sm:$0xf]
  %v55 = vld [vmem:[%s4 + $0x7c] sm:$0xf]
  %v56 = vld [vmem:[%s4 + $0x80] sm:$0xf]
  %v57 = vld [vmem:[%s4 + $0x84] sm:$0xf]
  %v58 = vld [vmem:[%s4 + $0x88] sm:$0xf]
  %v59 = vld [vmem:[%s4 + $0x8c] sm:$0xf]
  %v60 = vld [vmem:[%s4 + $0x90] sm:$0xf]
  %v61 = vld [vmem:[%s4 + $0x94] sm:$0xf]
  %v62 = vld [vmem:[%s4 + $0x98] sm:$0xf]
  %v63 = vld [vmem:[%s4 + $0x9c] sm:$0xf]
  %v64 = vld [vmem:[%s4 + $0xa0] sm:$0xf]
  %v65 = vld [vmem:[%s4 + $0xa4] sm:$0xf]
  %v66 = vld [vmem:[%s4 + $0xa8] sm:$0xf]
  %v67 = vld [vmem:[%s4 + $0xac] sm:$0xf]
  %v68 = vld [vmem:[%s4 + $0xb0] sm:$0xf]
  %v69 = vld [vmem:[%s4 + $0xb4] sm:$0xf]
  %v70 = vld [vmem:[%s4 + $0xb8] sm:$0xf]
  %v71 = vld [vmem:[%s4 + $0xbc] sm:$0xf]
  %v72 = vld [vmem:[%s4 + $0xc0] sm:$0xf]
  %v73 = vld [vmem:[%s4 + $0xc4] sm:$0xf]
  %v74 = vld [vmem:[%s4 + $0xc8] sm:$0xf]
  %v75 = vld [vmem:[%s4 + $0xcc] sm:$0xf]
  %v76 = vld [vmem:[%s4 + $0xd0] sm:$0xf]
  %v77 = vld [vmem:[%s4 + $0xd4] sm:$0xf]
  %v78 = vld [vmem:[%s4 + $0xd8] sm:$0xf]
  %v79 = vld [vmem:[%s4 + $0xdc] sm:$0xf]
  %v80 = vld [vmem:[%s4 + $0xe0] sm:$0xf]
  %v81 = vld [vmem:[%s4 + $0xe4] sm:$0xf]
  %v82 = vld [vmem:[%s4 + $0xe8] sm:$0xf]
  %v83 = vld [vmem:[%s4 + $0xec] sm:$0xf]
  %v84 = vld [vmem:[%s4 + $0xf0] sm:$0xf]
  %v85 = vld [vmem:[%s4 + $0xf4] sm:$0xf]
  %v86 = vld [vmem:[%s4 + $0xf8] sm:$0xf]
  %v87 = vld [vmem:[%s4 + $0xfc] sm:$0xf]
  %v88 = vld [vmem:[%s4 + $0x100] sm:$0xf]
  %v89 = vld [vmem:[%s4 + $0x104] sm:$0xf]
  %v90 = vld [vmem:[%s4 + $0x108] sm:$0xf]
  %v91 = vld [vmem:[%s4 + $0x10c] sm:$0xf]
  %v92 = vld [vmem:[%s4 + $0x110] sm:$0xf]
  %v93 = vld [vmem:[%s4 + $0x114] sm:$0xf]
  %v94 = vld [vmem:[%s4 + $0x118] sm:$0xf]
  %v95 = vld [vmem:[%s4 + $0x11c] sm:$0xf]
  %v96 = vld [vmem:[%s4 + $0x120] sm:$0xf]
  %v97 = vld [vmem:[%s4 + $0x124] sm:$0xf]
  %v98 = vld [vmem:[%s4 + $0x128] sm:$0xf]
  %v99 = vld [vmem:[%s4 + $0x12c] sm:$0xf]
  %v100 = vld [vmem:[%s4 + $0x130] sm:$0xf]
  %v101 = vld [vmem:[%s4 + $0x134] sm:$0xf]
  %v102 = vld [vmem:[%s4 + $0x138] sm:$0xf]
  %v103 = vld [vmem:[%s4 + $0x13c] sm:$0xf]
  %v104 = vld [vmem:[%s4 + $0x140] sm:$0xf]
  %v105 = vld [vmem:[%s4 + $0x144] sm:$0xf]
  %v106 = vld [vmem:[%s4 + $0x148] sm:$0xf]
  %v107 = vld [vmem:[%s4 + $0x14c] sm:$0xf]
  %v108 = vld [vmem:[%s4 + $0x150] sm:$0xf]
  %v109 = vld [vmem:[%s4 + $0x154] sm:$0xf]
  %v110 = vld [vmem:[%s4 + $0x158] sm:$0xf]
  %v111 = vld [vmem:[%s4 + $0x15c] sm:$0xf]
  %v112 = vld [vmem:[%s4 + $0x160] sm:$0xf]
  %v113 = vld [vmem:[%s4 + $0x164] sm:$0xf]
  %v114 = vld [vmem:[%s4 + $0x168] sm:$0xf]
  %v115 = vld [vmem:[%s4 + $0x16c] sm:$0xf]
  %v116 = vld [vmem:[%s4 + $0x170] sm:$0xf]
  %v117 = vld [vmem:[%s4 + $0x174] sm:$0xf]
  %v118 = vld [vmem:[%s4 + $0x178] sm:$0xf]
  %v119 = vld [vmem:[%s4 + $0x17c] sm:$0xf]
  %v120 = vld [vmem:[%s4 + $0x180] sm:$0xf]
  %v121 = vld [vmem:[%s4 + $0x184] sm:$0xf]
  %v122 = vld [vmem:[%s4 + $0x188] sm:$0xf]
  %v123 = vld [vmem:[%s4 + $0x18c] sm:$0xf]
  %v124 = vld [vmem:[%s0] sm:$0xff]
  %v125 = vld [vmem:[%s0 + $0x8] sm:$0xff]
  %v126 = vld [vmem:[%s0 + $0x10] sm:$0xff]
  %v127 = vld [vmem:[%s0 + $0x18] sm:$0xf]
  %v128 = vld [vmem:[%s0 + $0x1c] sm:$0xff]
  %v129 = vld [vmem:[%s0 + $0x24] sm:$0xff]
  %v130 = vld [vmem:[%s0 + $0x2c] sm:$0xff]
  %v131 = vld [vmem:[%s0 + $0x34] sm:$0xf]
  %v132 = vld [vmem:[%s0 + $0x38] sm:$0xff]
  %v133 = vld [vmem:[%s0 + $0x40] sm:$0xff]
  %v134 = vld [vmem:[%s0 + $0x48] sm:$0xff]
  %v135 = vld [vmem:[%s0 + $0x50] sm:$0xf]
  %v136 = vld [vmem:[%s0 + $0x54] sm:$0xff]
  %v137 = vld [vmem:[%s0 + $0x5c] sm:$0xff]
  %v138 = vld [vmem:[%s0 + $0x64] sm:$0xff]
  %v139 = vld [vmem:[%s0 + $0x6c] sm:$0xf]
  %v140 = vld [vmem:[%s0 + $0x70] sm:$0xff]
  %v141 = vld [vmem:[%s0 + $0x78] sm:$0xff]
  %v142 = vld [vmem:[%s0 + $0x80] sm:$0xff]
  %v143 = vld [vmem:[%s0 + $0x88] sm:$0xf]
  %v144 = vld [vmem:[%s0 + $0x8c] sm:$0xff]
  %v145 = vld [vmem:[%s0 + $0x94] sm:$0xff]
  %v146 = vld [vmem:[%s0 + $0x9c] sm:$0xff]
  %v147 = vld [vmem:[%s0 + $0xa4] sm:$0xf]
  %v148 = vld [vmem:[%s0 + $0xa8] sm:$0xff]
  %v149 = vld [vmem:[%s0 + $0xb0] sm:$0xff]
  %v150 = vld [vmem:[%s0 + $0xb8] sm:$0xff]
  %v151 = vld [vmem:[%s0 + $0xc0] sm:$0xf]
  %v152 = vld [vmem:[%s0 + $0xc4] sm:$0xff]
  %v153 = vld [vmem:[%s0 + $0xcc] sm:$0xff]
  %v154 = vld [vmem:[%s0 + $0xd4] sm:$0xff]
  %v155 = vld [vmem:[%s0 + $0xdc] sm:$0xf]
  %v156 = vld [vmem:[%s0 + $0xe0] sm:$0xff]
  %v157 = vld [vmem:[%s0 + $0xe8] sm:$0xff]
  %v158 = vld [vmem:[%s0 + $0xf0] sm:$0xff]
  %v159 = vld [vmem:[%s0 + $0xf8] sm:$0xf]
  %v160 = vld [vmem:[%s0 + $0xfc] sm:$0xff]
  %v161 = vld [vmem:[%s0 + $0x104] sm:$0xff]
  %v162 = vld [vmem:[%s0 + $0x10c] sm:$0xff]
  %v163 = vld [vmem:[%s0 + $0x114] sm:$0xf]
  %v164 = vld [vmem:[%s0 + $0x118] sm:$0xff]
  %v165 = vld [vmem:[%s0 + $0x120] sm:$0xff]
  %v166 = vld [vmem:[%s0 + $0x128] sm:$0xff]
  %v167 = vld [vmem:[%s0 + $0x130] sm:$0xf]
  %v168 = vld [vmem:[%s0 + $0x134] sm:$0xff]
  %v169 = vld [vmem:[%s0 + $0x13c] sm:$0xff]
  %v170 = vld [vmem:[%s0 + $0x144] sm:$0xff]
  %v171 = vld [vmem:[%s0 + $0x14c] sm:$0xf]
  %v172 = vld [vmem:[%s0 + $0x150] sm:$0xff]
  %v173 = vld [vmem:[%s0 + $0x158] sm:$0xff]
  %v174 = vld [vmem:[%s0 + $0x160] sm:$0xff]
  %v175 = vld [vmem:[%s0 + $0x168] sm:$0xf]
  %v176 = vld [vmem:[%s0 + $0x16c] sm:$0xff]
  %v177 = vld [vmem:[%s0 + $0x174] sm:$0xff]
  %v178 = vld [vmem:[%s0 + $0x17c] sm:$0xff]
  %v179 = vld [vmem:[%s0 + $0x184] sm:$0xf]
  %v180 = vld [vmem:[%s0 + $0x188] sm:$0xff]
  %v181 = vld [vmem:[%s0 + $0x190] sm:$0xff]
  %v182 = vld [vmem:[%s0 + $0x198] sm:$0xff]
  %v183 = vld [vmem:[%s0 + $0x1a0] sm:$0xf]
  %v184 = vld [vmem:[%s0 + $0x1a4] sm:$0xff]
  %v185 = vld [vmem:[%s0 + $0x1ac] sm:$0xff]
  %v186 = vld [vmem:[%s0 + $0x1b4] sm:$0xff]
  %v187 = vld [vmem:[%s0 + $0x1bc] sm:$0xf]
  %v252 = vunpack.c.l.b16 %v124
  %v253 = vunpack.c.h.b16 %v124
  %v254 = vunpack.c.l.b16 %v125
  %v255 = vunpack.c.h.b16 %v125
  %v256 = vunpack.c.l.b16 %v126
  %v257 = vunpack.c.h.b16 %v126
  %v258 = vunpack.c.l.b16 %v127
  %v259 = vunpack.c.l.b16 %v128
  %v260 = vunpack.c.h.b16 %v128
  %v261 = vunpack.c.l.b16 %v129
  %v262 = vunpack.c.h.b16 %v129
  %v263 = vunpack.c.l.b16 %v130
  %v264 = vunpack.c.h.b16 %v130
  %v265 = vunpack.c.l.b16 %v131
  %v266 = vunpack.c.l.b16 %v132
  %v267 = vunpack.c.h.b16 %v132
  %v268 = vunpack.c.l.b16 %v133
  %v269 = vunpack.c.h.b16 %v133
  %v270 = vunpack.c.l.b16 %v134
  %v271 = vunpack.c.h.b16 %v134
  %v272 = vunpack.c.l.b16 %v135
  %v273 = vunpack.c.l.b16 %v136
  %v274 = vunpack.c.h.b16 %v136
  %v275 = vunpack.c.l.b16 %v137
  %v276 = vunpack.c.h.b16 %v137
  %v277 = vunpack.c.l.b16 %v138
  %v278 = vunpack.c.h.b16 %v138
  %v279 = vunpack.c.l.b16 %v139
  %v280 = vunpack.c.l.b16 %v140
  %v281 = vunpack.c.h.b16 %v140
  %v282 = vunpack.c.l.b16 %v141
  %v283 = vunpack.c.h.b16 %v141
  %v284 = vunpack.c.l.b16 %v142
  %v285 = vunpack.c.h.b16 %v142
  %v286 = vunpack.c.l.b16 %v143
  %v287 = vunpack.c.l.b16 %v144
  %v288 = vunpack.c.h.b16 %v144
  %v289 = vunpack.c.l.b16 %v145
  %v290 = vunpack.c.h.b16 %v145
  %v291 = vunpack.c.l.b16 %v146
  %v292 = vunpack.c.h.b16 %v146
  %v293 = vunpack.c.l.b16 %v147
  %v294 = vunpack.c.l.b16 %v148
  %v295 = vunpack.c.h.b16 %v148
  %v296 = vunpack.c.l.b16 %v149
  %v297 = vunpack.c.h.b16 %v149
  %v298 = vunpack.c.l.b16 %v150
  %v299 = vunpack.c.h.b16 %v150
  %v300 = vunpack.c.l.b16 %v151
  %v301 = vunpack.c.l.b16 %v152
  %v302 = vunpack.c.h.b16 %v152
  %v303 = vunpack.c.l.b16 %v153
  %v304 = vunpack.c.h.b16 %v153
  %v305 = vunpack.c.l.b16 %v154
  %v306 = vunpack.c.h.b16 %v154
  %v307 = vunpack.c.l.b16 %v155
  %v308 = vunpack.c.l.b16 %v156
  %v309 = vunpack.c.h.b16 %v156
  %v310 = vunpack.c.l.b16 %v157
  %v311 = vunpack.c.h.b16 %v157
  %v312 = vunpack.c.l.b16 %v158
  %v313 = vunpack.c.h.b16 %v158
  %v314 = vunpack.c.l.b16 %v159
  %v315 = vunpack.c.l.b16 %v160
  %v316 = vunpack.c.h.b16 %v160
  %v317 = vunpack.c.l.b16 %v161
  %v318 = vunpack.c.h.b16 %v161
  %v319 = vunpack.c.l.b16 %v162
  %v320 = vunpack.c.h.b16 %v162
  %v321 = vunpack.c.l.b16 %v163
  %v322 = vunpack.c.l.b16 %v164
  %v323 = vunpack.c.h.b16 %v164
  %v324 = vunpack.c.l.b16 %v165
  %v325 = vunpack.c.h.b16 %v165
  %v326 = vunpack.c.l.b16 %v166
  %v327 = vunpack.c.h.b16 %v166
  %v328 = vunpack.c.l.b16 %v167
  %v329 = vunpack.c.l.b16 %v168
  %v330 = vunpack.c.h.b16 %v168
  %v331 = vunpack.c.l.b16 %v169
  %v332 = vunpack.c.h.b16 %v169
  %v333 = vunpack.c.l.b16 %v170
  %v334 = vunpack.c.h.b16 %v170
  %v335 = vunpack.c.l.b16 %v171
  %v336 = vunpack.c.l.b16 %v172
  %v337 = vunpack.c.h.b16 %v172
  %v338 = vunpack.c.l.b16 %v173
  %v339 = vunpack.c.h.b16 %v173
  %v340 = vunpack.c.l.b16 %v174
  %v341 = vunpack.c.h.b16 %v174
  %v342 = vunpack.c.l.b16 %v175
  %v343 = vunpack.c.l.b16 %v176
  %v344 = vunpack.c.h.b16 %v176
  %v345 = vunpack.c.l.b16 %v177
  %v346 = vunpack.c.h.b16 %v177
  %v347 = vunpack.c.l.b16 %v178
  %v348 = vunpack.c.h.b16 %v178
  %v349 = vunpack.c.l.b16 %v179
  %v350 = vunpack.c.l.b16 %v180
  %v351 = vunpack.c.h.b16 %v180
  %v352 = vunpack.c.l.b16 %v181
  %v353 = vunpack.c.h.b16 %v181
  %v354 = vunpack.c.l.b16 %v182
  %v355 = vunpack.c.h.b16 %v182
  %v356 = vunpack.c.l.b16 %v183
  %v357 = vunpack.c.l.b16 %v184
  %v358 = vunpack.c.h.b16 %v184
  %v359 = vunpack.c.l.b16 %v185
  %v360 = vunpack.c.h.b16 %v185
  %v361 = vunpack.c.l.b16 %v186
  %v362 = vunpack.c.h.b16 %v186
  %v363 = vunpack.c.l.b16 %v187
  %v364 = vpack.c.b16 %v259, %v252
  %v365 = vpack.c.b16 %v260, %v253
  %v366 = vpack.c.b16 %v261, %v254
  %v367 = vpack.c.b16 %v262, %v255
  %v368 = vpack.c.b16 %v263, %v256
  %v369 = vpack.c.b16 %v264, %v257
  %v370 = vpack.c.b16 %v265, %v258
  %v371 = vpack.c.b16 %v273, %v266
  %v372 = vpack.c.b16 %v274, %v267
  %v373 = vpack.c.b16 %v275, %v268
  %v374 = vpack.c.b16 %v276, %v269
  %v375 = vpack.c.b16 %v277, %v270
  %v376 = vpack.c.b16 %v278, %v271
  %v377 = vpack.c.b16 %v279, %v272
  %v378 = vpack.c.b16 %v287, %v280
  %v379 = vpack.c.b16 %v288, %v281
  %v380 = vpack.c.b16 %v289, %v282
  %v381 = vpack.c.b16 %v290, %v283
  %v382 = vpack.c.b16 %v291, %v284
  %v383 = vpack.c.b16 %v292, %v285
  %v384 = vpack.c.b16 %v293, %v286
  %v385 = vpack.c.b16 %v301, %v294
  %v386 = vpack.c.b16 %v302, %v295
  %v387 = vpack.c.b16 %v303, %v296
  %v388 = vpack.c.b16 %v304, %v297
  %v389 = vpack.c.b16 %v305, %v298
  %v390 = vpack.c.b16 %v306, %v299
  %v391 = vpack.c.b16 %v307, %v300
  %v392 = vpack.c.b16 %v315, %v308
  %v393 = vpack.c.b16 %v316, %v309
  %v394 = vpack.c.b16 %v317, %v310
  %v395 = vpack.c.b16 %v318, %v311
  %v396 = vpack.c.b16 %v319, %v312
  %v397 = vpack.c.b16 %v320, %v313
  %v398 = vpack.c.b16 %v321, %v314
  %v399 = vpack.c.b16 %v329, %v322
  %v400 = vpack.c.b16 %v330, %v323
  %v401 = vpack.c.b16 %v331, %v324
  %v402 = vpack.c.b16 %v332, %v325
  %v403 = vpack.c.b16 %v333, %v326
  %v404 = vpack.c.b16 %v334, %v327
  %v405 = vpack.c.b16 %v335, %v328
  %v406 = vpack.c.b16 %v343, %v336
  %v407 = vpack.c.b16 %v344, %v337
  %v408 = vpack.c.b16 %v345, %v338
  %v409 = vpack.c.b16 %v346, %v339
  %v410 = vpack.c.b16 %v347, %v340
  %v411 = vpack.c.b16 %v348, %v341
  %v412 = vpack.c.b16 %v349, %v342
  %v413 = vpack.c.b16 %v357, %v350
  %v414 = vpack.c.b16 %v358, %v351
  %v415 = vpack.c.b16 %v359, %v352
  %v416 = vpack.c.b16 %v360, %v353
  %v417 = vpack.c.b16 %v361, %v354
  %v418 = vpack.c.b16 %v362, %v355
  %v419 = vpack.c.b16 %v363, %v356
  %v568 = vunpack.c.l.b16 %v24
  %v569 = vunpack.c.l.b16 %v25
  %v570 = vunpack.c.l.b16 %v26
  %v571 = vunpack.c.l.b16 %v27
  %v572 = vunpack.c.l.b16 %v28
  %v573 = vunpack.c.l.b16 %v29
  %v574 = vunpack.c.l.b16 %v30
  %v575 = vunpack.c.l.b16 %v31
  %v576 = vunpack.c.l.b16 %v32
  %v577 = vunpack.c.l.b16 %v33
  %v578 = vunpack.c.l.b16 %v34
  %v579 = vunpack.c.l.b16 %v35
  %v580 = vunpack.c.l.b16 %v36
  %v581 = vunpack.c.l.b16 %v37
  %v582 = vunpack.c.l.b16 %v38
  %v583 = vunpack.c.l.b16 %v39
  %v584 = vunpack.c.l.b16 %v40
  %v585 = vunpack.c.l.b16 %v41
  %v586 = vunpack.c.l.b16 %v42
  %v587 = vunpack.c.l.b16 %v43
  %v588 = vunpack.c.l.b16 %v44
  %v589 = vunpack.c.l.b16 %v45
  %v590 = vunpack.c.l.b16 %v46
  %v591 = vunpack.c.l.b16 %v47
  %v592 = vunpack.c.l.b16 %v48
  %v593 = vunpack.c.l.b16 %v49
  %v594 = vunpack.c.l.b16 %v50
  %v595 = vunpack.c.l.b16 %v51
  %v596 = vunpack.c.l.b16 %v52
  %v597 = vunpack.c.l.b16 %v53
  %v598 = vunpack.c.l.b16 %v54
  %v599 = vunpack.c.l.b16 %v55
  %v600 = vunpack.c.l.b16 %v56
  %v601 = vunpack.c.l.b16 %v57
  %v602 = vunpack.c.l.b16 %v58
  %v603 = vunpack.c.l.b16 %v59
  %v604 = vunpack.c.l.b16 %v60
  %v605 = vunpack.c.l.b16 %v61
  %v606 = vunpack.c.l.b16 %v62
  %v607 = vunpack.c.l.b16 %v63
  %v608 = vunpack.c.l.b16 %v64
  %v609 = vunpack.c.l.b16 %v65
  %v610 = vunpack.c.l.b16 %v66
  %v611 = vunpack.c.l.b16 %v67
  %v612 = vunpack.c.l.b16 %v68
  %v613 = vunpack.c.l.b16 %v69
  %v614 = vunpack.c.l.b16 %v70
  %v615 = vunpack.c.l.b16 %v71
  %v616 = vunpack.c.l.b16 %v72
  %v617 = vunpack.c.l.b16 %v73
  %v618 = vunpack.c.l.b16 %v74
  %v619 = vunpack.c.l.b16 %v75
  %v620 = vunpack.c.l.b16 %v76
  %v621 = vunpack.c.l.b16 %v77
  %v622 = vunpack.c.l.b16 %v78
  %v623 = vunpack.c.l.b16 %v79
  %v624 = vunpack.c.l.b16 %v80
  %v625 = vunpack.c.l.b16 %v81
  %v626 = vunpack.c.l.b16 %v82
  %v627 = vunpack.c.l.b16 %v83
  %v628 = vunpack.c.l.b16 %v84
  %v629 = vunpack.c.l.b16 %v85
  %v630 = vunpack.c.l.b16 %v86
  %v631 = vunpack.c.l.b16 %v87
  %v632 = vunpack.c.l.b16 %v88
  %v633 = vunpack.c.l.b16 %v89
  %v634 = vunpack.c.l.b16 %v90
  %v635 = vunpack.c.l.b16 %v91
  %v636 = vunpack.c.l.b16 %v92
  %v637 = vunpack.c.l.b16 %v93
  %v638 = vunpack.c.l.b16 %v94
  %v639 = vunpack.c.l.b16 %v95
  %v640 = vunpack.c.l.b16 %v96
  %v641 = vunpack.c.l.b16 %v97
  %v642 = vunpack.c.l.b16 %v98
  %v643 = vunpack.c.l.b16 %v99
  %v644 = vunpack.c.l.b16 %v100
  %v645 = vunpack.c.l.b16 %v101
  %v646 = vunpack.c.l.b16 %v102
  %v647 = vunpack.c.l.b16 %v103
  %v648 = vunpack.c.l.b16 %v104
  %v649 = vunpack.c.l.b16 %v105
  %v650 = vunpack.c.l.b16 %v106
  %v651 = vunpack.c.l.b16 %v107
  %v652 = vunpack.c.l.b16 %v108
  %v653 = vunpack.c.l.b16 %v109
  %v654 = vunpack.c.l.b16 %v110
  %v655 = vunpack.c.l.b16 %v111
  %v656 = vunpack.c.l.b16 %v112
  %v657 = vunpack.c.l.b16 %v113
  %v658 = vunpack.c.l.b16 %v114
  %v659 = vunpack.c.l.b16 %v115
  %v660 = vunpack.c.l.b16 %v116
  %v661 = vunpack.c.l.b16 %v117
  %v662 = vunpack.c.l.b16 %v118
  %v663 = vunpack.c.l.b16 %v119
  %v664 = vunpack.c.l.b16 %v120
  %v665 = vunpack.c.l.b16 %v121
  %v666 = vunpack.c.l.b16 %v122
  %v667 = vunpack.c.l.b16 %v123
  %v668 = vpack.c.b16 %v569, %v568
  %v669 = vpack.c.b16 %v571, %v570
  %v670 = vpack.c.b16 %v573, %v572
  %v671 = vpack.c.b16 %v575, %v574
  %v672 = vpack.c.b16 %v577, %v576
  %v673 = vpack.c.b16 %v579, %v578
  %v674 = vpack.c.b16 %v581, %v580
  %v675 = vpack.c.b16 %v583, %v582
  %v676 = vpack.c.b16 %v585, %v584
  %v677 = vpack.c.b16 %v587, %v586
  %v678 = vpack.c.b16 %v589, %v588
  %v679 = vpack.c.b16 %v591, %v590
  %v680 = vpack.c.b16 %v593, %v592
  %v681 = vpack.c.b16 %v595, %v594
  %v682 = vpack.c.b16 %v597, %v596
  %v683 = vpack.c.b16 %v599, %v598
  %v684 = vpack.c.b16 %v601, %v600
  %v685 = vpack.c.b16 %v603, %v602
  %v686 = vpack.c.b16 %v605, %v604
  %v687 = vpack.c.b16 %v607, %v606
  %v688 = vpack.c.b16 %v609, %v608
  %v689 = vpack.c.b16 %v611, %v610
  %v690 = vpack.c.b16 %v613, %v612
  %v691 = vpack.c.b16 %v615, %v614
  %v692 = vpack.c.b16 %v617, %v616
  %v693 = vpack.c.b16 %v619, %v618
  %v694 = vpack.c.b16 %v621, %v620
  %v695 = vpack.c.b16 %v623, %v622
  %v696 = vpack.c.b16 %v625, %v624
  %v697 = vpack.c.b16 %v627, %v626
  %v698 = vpack.c.b16 %v629, %v628
  %v699 = vpack.c.b16 %v631, %v630
  %v700 = vpack.c.b16 %v633, %v632
  %v701 = vpack.c.b16 %v635, %v634
  %v702 = vpack.c.b16 %v637, %v636
  %v703 = vpack.c.b16 %v639, %v638
  %v704 = vpack.c.b16 %v641, %v640
  %v705 = vpack.c.b16 %v643, %v642
  %v706 = vpack.c.b16 %v645, %v644
  %v707 = vpack.c.b16 %v647, %v646
  %v708 = vpack.c.b16 %v649, %v648
  %v709 = vpack.c.b16 %v651, %v650
  %v710 = vpack.c.b16 %v653, %v652
  %v711 = vpack.c.b16 %v655, %v654
  %v712 = vpack.c.b16 %v657, %v656
  %v713 = vpack.c.b16 %v659, %v658
  %v714 = vpack.c.b16 %v661, %v660
  %v715 = vpack.c.b16 %v663, %v662
  %v716 = vpack.c.b16 %v665, %v664
  %v717 = vpack.c.b16 %v667, %v666
  %vm768 = vcmask 261120
  %v770 = vsel %vm768, %v370, 0
  %v773 = vsel %vm768, %v377, 0
  %v776 = vsel %vm768, %v384, 0
  %v779 = vsel %vm768, %v391, 0
  %v782 = vsel %vm768, %v398, 0
  %v785 = vsel %vm768, %v405, 0
  %v788 = vsel %vm768, %v412, 0
  %v791 = vsel %vm768, %v419, 0
  %793 = vmatprep.subr.bf16.mxu0 0
  %794 = vmatpush1.bf16.msra.mxu0 %v668
  %795 = vmatprep.subr.bf16.mxu0 0
  %796 = vmatpush1.bf16.msra.mxu0 %v669
  %797 = vmatprep.subr.bf16.mxu0 0
  %798 = vmatpush1.bf16.msra.mxu0 %v670
  %799 = vmatprep.subr.bf16.mxu0 0
  %800 = vmatpush1.bf16.msra.mxu0 %v671
  %801 = vmatprep.subr.bf16.mxu0 0
  %802 = vmatpush1.bf16.msra.mxu0 %v672
  %803 = vmatprep.subr.bf16.mxu0 0
  %804 = vmatpush1.bf16.msra.mxu0 %v673
  %805 = vmatprep.subr.bf16.mxu0 0
  %806 = vmatpush1.bf16.msra.mxu0 %v674
  %807 = vmatprep.subr.bf16.mxu0 0
  %808 = vmatpush1.bf16.msra.mxu0 %v675
  %809 = vmatprep.subr.bf16.mxu0 0
  %810 = vmatpush1.bf16.msra.mxu0 %v676
  %811 = vmatprep.subr.bf16.mxu0 0
  %812 = vmatpush1.bf16.msra.mxu0 %v677
  %813 = vmatprep.subr.bf16.mxu0 0
  %814 = vmatpush1.bf16.msra.mxu0 %v678
  %815 = vmatprep.subr.bf16.mxu0 0
  %816 = vmatpush1.bf16.msra.mxu0 %v679
  %817 = vmatprep.subr.bf16.mxu0 0
  %818 = vmatpush1.bf16.msra.mxu0 %v680
  %819 = vmatprep.subr.bf16.mxu0 0
  %820 = vmatpush1.bf16.msra.mxu0 %v681
  %821 = vmatprep.subr.bf16.mxu0 0
  %822 = vmatpush1.bf16.msra.mxu0 %v682
  %823 = vmatprep.subr.bf16.mxu0 0
  %824 = vmatpush1.bf16.msra.mxu0 %v683
  %825 = vmatprep.mubr.bf16.mxu0 %v365
  %826 = vmatmul.mubr.bf16.gmra.mrb[0].mxu0 %v364
  %v827 = vpop.f32.mrb[0].mxu0
  %v828 = vadd.f32 0.0, %v827
  %v829 = vpop.f32.mrb[0].mxu0
  %v830 = vpop.f32.mrb[0].mxu0
  %v831 = vadd.f32 0.0, %v830
  %v832 = vpop.f32.mrb[0].mxu0
  %833 = vmatprep.mubr.bf16.mxu0 %v372
  %834 = vmatmul.mubr.bf16.gmra.mrb[0].mxu0 %v371
  %v835 = vpop.f32.mrb[0].mxu0
  %v836 = vadd.f32 0.0, %v835
  %v837 = vpop.f32.mrb[0].mxu0
  %v838 = vpop.f32.mrb[0].mxu0
  %v839 = vadd.f32 0.0, %v838
  %v840 = vpop.f32.mrb[0].mxu0
  %841 = vmatprep.mubr.bf16.mxu0 %v379
  %842 = vmatmul.mubr.bf16.gmra.mrb[0].mxu0 %v378
  %v843 = vpop.f32.mrb[0].mxu0
  %v844 = vadd.f32 0.0, %v843
  %v845 = vpop.f32.mrb[0].mxu0
  %v846 = vpop.f32.mrb[0].mxu0
  %v847 = vadd.f32 0.0, %v846
  %v848 = vpop.f32.mrb[0].mxu0
  %849 = vmatprep.mubr.bf16.mxu0 %v386
  %850 = vmatmul.mubr.bf16.gmra.mrb[0].mxu0 %v385
  %v851 = vpop.f32.mrb[0].mxu0
  %v852 = vadd.f32 0.0, %v851
  %v853 = vpop.f32.mrb[0].mxu0
  %v854 = vpop.f32.mrb[0].mxu0
  %v855 = vadd.f32 0.0, %v854
  %v856 = vpop.f32.mrb[0].mxu0
  %857 = vmatprep.mubr.bf16.mxu0 %v393
  %858 = vmatmul.mubr.bf16.gmra.mrb[0].mxu0 %v392
  %v859 = vpop.f32.mrb[0].mxu0
  %v860 = vadd.f32 0.0, %v859
  %v861 = vpop.f32.mrb[0].mxu0
  %v862 = vpop.f32.mrb[0].mxu0
  %v863 = vadd.f32 0.0, %v862
  %v864 = vpop.f32.mrb[0].mxu0
  %865 = vmatprep.mubr.bf16.mxu0 %v400
  %866 = vmatmul.mubr.bf16.gmra.mrb[0].mxu0 %v399
  %v867 = vpop.f32.mrb[0].mxu0
  %v868 = vadd.f32 0.0, %v867
  %v869 = vpop.f32.mrb[0].mxu0
  %v870 = vpop.f32.mrb[0].mxu0
  %v871 = vadd.f32 0.0, %v870
  %v872 = vpop.f32.mrb[0].mxu0
  %873 = vmatprep.mubr.bf16.mxu0 %v407
  %874 = vmatmul.mubr.bf16.gmra.mrb[0].mxu0 %v406
  %v875 = vpop.f32.mrb[0].mxu0
  %v876 = vadd.f32 0.0, %v875
  %v877 = vpop.f32.mrb[0].mxu0
  %v878 = vpop.f32.mrb[0].mxu0
  %v879 = vadd.f32 0.0, %v878
  %v880 = vpop.f32.mrb[0].mxu0
  %881 = vmatprep.mubr.bf16.mxu0 %v414
  %882 = vmatmul.mubr.bf16.gmra.mrb[0].mxu0 %v413
  %v883 = vpop.f32.mrb[0].mxu0
  %v884 = vadd.f32 0.0, %v883
  %v885 = vpop.f32.mrb[0].mxu0
  %v886 = vpop.f32.mrb[0].mxu0
  %v887 = vadd.f32 0.0, %v886
  %v888 = vpop.f32.mrb[0].mxu0
  %889 = vdwg.mxu0
  %890 = vmatprep.subr.bf16.mxu0 0
  %891 = vmatpush1.bf16.msra.mxu0 %v684
  %892 = vmatprep.subr.bf16.mxu0 0
  %893 = vmatpush1.bf16.msra.mxu0 %v685
  %894 = vmatprep.subr.bf16.mxu0 0
  %895 = vmatpush1.bf16.msra.mxu0 %v686
  %896 = vmatprep.subr.bf16.mxu0 0
  %897 = vmatpush1.bf16.msra.mxu0 %v687
  %898 = vmatprep.subr.bf16.mxu0 0
  %899 = vmatpush1.bf16.msra.mxu0 %v688
  %900 = vmatprep.subr.bf16.mxu0 0
  %901 = vmatpush1.bf16.msra.mxu0 %v689
  %902 = vmatprep.subr.bf16.mxu0 0
  %903 = vmatpush1.bf16.msra.mxu0 %v690
  %904 = vmatprep.subr.bf16.mxu0 0
  %905 = vmatpush1.bf16.msra.mxu0 %v691
  %906 = vmatprep.subr.bf16.mxu0 0
  %907 = vmatpush1.bf16.msra.mxu0 %v692
  %908 = vmatprep.subr.bf16.mxu0 0
  %909 = vmatpush1.bf16.msra.mxu0 %v693
  %910 = vmatprep.subr.bf16.mxu0 0
  %911 = vmatpush1.bf16.msra.mxu0 %v694
  %912 = vmatprep.subr.bf16.mxu0 0
  %913 = vmatpush1.bf16.msra.mxu0 %v695
  %914 = vmatprep.subr.bf16.mxu0 0
  %915 = vmatpush1.bf16.msra.mxu0 %v696
  %916 = vmatprep.subr.bf16.mxu0 0
  %917 = vmatpush1.bf16.msra.mxu0 %v697
  %918 = vmatprep.subr.bf16.mxu0 0
  %919 = vmatpush1.bf16.msra.mxu0 %v698
  %920 = vmatprep.subr.bf16.mxu0 0
  %921 = vmatpush1.bf16.msra.mxu0 %v699
  %922 = vmatprep.mubr.bf16.mxu0 %v367
  %923 = vmatmul.mubr.bf16.gmra.mrb[0].mxu0 %v366
  %v924 = vpop.f32.mrb[0].mxu0
  %v925 = vadd.f32 %v828, %v924
  %v926 = vpop.f32.mrb[0].mxu0
  %v927 = vpop.f32.mrb[0].mxu0
  %v928 = vadd.f32 %v831, %v927
  %v929 = vpop.f32.mrb[0].mxu0
  %930 = vmatprep.mubr.bf16.mxu0 %v374
  %931 = vmatmul.mubr.bf16.gmra.mrb[0].mxu0 %v373
  %v932 = vpop.f32.mrb[0].mxu0
  %v933 = vadd.f32 %v836, %v932
  %v934 = vpop.f32.mrb[0].mxu0
  %v935 = vpop.f32.mrb[0].mxu0
  %v936 = vadd.f32 %v839, %v935
  %v937 = vpop.f32.mrb[0].mxu0
  %938 = vmatprep.mubr.bf16.mxu0 %v381
  %939 = vmatmul.mubr.bf16.gmra.mrb[0].mxu0 %v380
  %v940 = vpop.f32.mrb[0].mxu0
  %v941 = vadd.f32 %v844, %v940
  %v942 = vpop.f32.mrb[0].mxu0
  %v943 = vpop.f32.mrb[0].mxu0
  %v944 = vadd.f32 %v847, %v943
  %v945 = vpop.f32.mrb[0].mxu0
  %946 = vmatprep.mubr.bf16.mxu0 %v388
  %947 = vmatmul.mubr.bf16.gmra.mrb[0].mxu0 %v387
  %v948 = vpop.f32.mrb[0].mxu0
  %v949 = vadd.f32 %v852, %v948
  %v950 = vpop.f32.mrb[0].mxu0
  %v951 = vpop.f32.mrb[0].mxu0
  %v952 = vadd.f32 %v855, %v951
  %v953 = vpop.f32.mrb[0].mxu0
  %954 = vmatprep.mubr.bf16.mxu0 %v395
  %955 = vmatmul.mubr.bf16.gmra.mrb[0].mxu0 %v394
  %v956 = vpop.f32.mrb[0].mxu0
  %v957 = vadd.f32 %v860, %v956
  %v958 = vpop.f32.mrb[0].mxu0
  %v959 = vpop.f32.mrb[0].mxu0
  %v960 = vadd.f32 %v863, %v959
  %v961 = vpop.f32.mrb[0].mxu0
  %962 = vmatprep.mubr.bf16.mxu0 %v402
  %963 = vmatmul.mubr.bf16.gmra.mrb[0].mxu0 %v401
  %v964 = vpop.f32.mrb[0].mxu0
  %v965 = vadd.f32 %v868, %v964
  %v966 = vpop.f32.mrb[0].mxu0
  %v967 = vpop.f32.mrb[0].mxu0
  %v968 = vadd.f32 %v871, %v967
  %v969 = vpop.f32.mrb[0].mxu0
  %970 = vmatprep.mubr.bf16.mxu0 %v409
  %971 = vmatmul.mubr.bf16.gmra.mrb[0].mxu0 %v408
  %v972 = vpop.f32.mrb[0].mxu0
  %v973 = vadd.f32 %v876, %v972
  %v974 = vpop.f32.mrb[0].mxu0
  %v975 = vpop.f32.mrb[0].mxu0
  %v976 = vadd.f32 %v879, %v975
  %v977 = vpop.f32.mrb[0].mxu0
  %978 = vmatprep.mubr.bf16.mxu0 %v416
  %979 = vmatmul.mubr.bf16.gmra.mrb[0].mxu0 %v415
  %v980 = vpop.f32.mrb[0].mxu0
  %v981 = vadd.f32 %v884, %v980
  %v982 = vpop.f32.mrb[0].mxu0
  %v983 = vpop.f32.mrb[0].mxu0
  %v984 = vadd.f32 %v887, %v983
  %v985 = vpop.f32.mrb[0].mxu0
  %986 = vdwg.mxu0
  %987 = vmatprep.subr.bf16.mxu0 0
  %988 = vmatpush1.bf16.msra.mxu0 %v700
  %989 = vmatprep.subr.bf16.mxu0 0
  %990 = vmatpush1.bf16.msra.mxu0 %v701
  %991 = vmatprep.subr.bf16.mxu0 0
  %992 = vmatpush1.bf16.msra.mxu0 %v702
  %993 = vmatprep.subr.bf16.mxu0 0
  %994 = vmatpush1.bf16.msra.mxu0 %v703
  %995 = vmatprep.subr.bf16.mxu0 0
  %996 = vmatpush1.bf16.msra.mxu0 %v704
  %997 = vmatprep.subr.bf16.mxu0 0
  %998 = vmatpush1.bf16.msra.mxu0 %v705
  %999 = vmatprep.subr.bf16.mxu0 0
  %1000 = vmatpush1.bf16.msra.mxu0 %v706
  %1001 = vmatprep.subr.bf16.mxu0 0
  %1002 = vmatpush1.bf16.msra.mxu0 %v707
  %1003 = vmatprep.subr.bf16.mxu0 0
  %1004 = vmatpush1.bf16.msra.mxu0 %v708
  %1005 = vmatprep.subr.bf16.mxu0 0
  %1006 = vmatpush1.bf16.msra.mxu0 %v709
  %1007 = vmatprep.subr.bf16.mxu0 0
  %1008 = vmatpush1.bf16.msra.mxu0 %v710
  %1009 = vmatprep.subr.bf16.mxu0 0
  %1010 = vmatpush1.bf16.msra.mxu0 %v711
  %1011 = vmatprep.subr.bf16.mxu0 0
  %1012 = vmatpush1.bf16.msra.mxu0 %v712
  %1013 = vmatprep.subr.bf16.mxu0 0
  %1014 = vmatpush1.bf16.msra.mxu0 %v713
  %1015 = vmatprep.subr.bf16.mxu0 0
  %1016 = vmatpush1.bf16.msra.mxu0 %v714
  %1017 = vmatprep.subr.bf16.mxu0 0
  %1018 = vmatpush1.bf16.msra.mxu0 %v715
  %1019 = vmatprep.mubr.bf16.mxu0 %v369
  %1020 = vmatmul.mubr.bf16.gmra.mrb[0].mxu0 %v368
  %v1021 = vpop.f32.mrb[0].mxu0
  %v1022 = vadd.f32 %v925, %v1021
  %v1023 = vpop.f32.mrb[0].mxu0
  %v1024 = vpop.f32.mrb[0].mxu0
  %v1025 = vadd.f32 %v928, %v1024
  %v1026 = vpop.f32.mrb[0].mxu0
  %1027 = vmatprep.mubr.bf16.mxu0 %v376
  %1028 = vmatmul.mubr.bf16.gmra.mrb[0].mxu0 %v375
  %v1029 = vpop.f32.mrb[0].mxu0
  %v1030 = vadd.f32 %v933, %v1029
  %v1031 = vpop.f32.mrb[0].mxu0
  %v1032 = vpop.f32.mrb[0].mxu0
  %v1033 = vadd.f32 %v936, %v1032
  %v1034 = vpop.f32.mrb[0].mxu0
  %1035 = vmatprep.mubr.bf16.mxu0 %v383
  %1036 = vmatmul.mubr.bf16.gmra.mrb[0].mxu0 %v382
  %v1037 = vpop.f32.mrb[0].mxu0
  %v1038 = vadd.f32 %v941, %v1037
  %v1039 = vpop.f32.mrb[0].mxu0
  %v1040 = vpop.f32.mrb[0].mxu0
  %v1041 = vadd.f32 %v944, %v1040
  %v1042 = vpop.f32.mrb[0].mxu0
  %1043 = vmatprep.mubr.bf16.mxu0 %v390
  %1044 = vmatmul.mubr.bf16.gmra.mrb[0].mxu0 %v389
  %v1045 = vpop.f32.mrb[0].mxu0
  %v1046 = vadd.f32 %v949, %v1045
  %v1047 = vpop.f32.mrb[0].mxu0
  %v1048 = vpop.f32.mrb[0].mxu0
  %v1049 = vadd.f32 %v952, %v1048
  %v1050 = vpop.f32.mrb[0].mxu0
  %1051 = vmatprep.mubr.bf16.mxu0 %v397
  %1052 = vmatmul.mubr.bf16.gmra.mrb[0].mxu0 %v396
  %v1053 = vpop.f32.mrb[0].mxu0
  %v1054 = vadd.f32 %v957, %v1053
  %v1055 = vpop.f32.mrb[0].mxu0
  %v1056 = vpop.f32.mrb[0].mxu0
  %v1057 = vadd.f32 %v960, %v1056
  %v1058 = vpop.f32.mrb[0].mxu0
  %1059 = vmatprep.mubr.bf16.mxu0 %v404
  %1060 = vmatmul.mubr.bf16.gmra.mrb[0].mxu0 %v403
  %v1061 = vpop.f32.mrb[0].mxu0
  %v1062 = vadd.f32 %v965, %v1061
  %v1063 = vpop.f32.mrb[0].mxu0
  %v1064 = vpop.f32.mrb[0].mxu0
  %v1065 = vadd.f32 %v968, %v1064
  %v1066 = vpop.f32.mrb[0].mxu0
  %1067 = vmatprep.mubr.bf16.mxu0 %v411
  %1068 = vmatmul.mubr.bf16.gmra.mrb[0].mxu0 %v410
  %v1069 = vpop.f32.mrb[0].mxu0
  %v1070 = vadd.f32 %v973, %v1069
  %v1071 = vpop.f32.mrb[0].mxu0
  %v1072 = vpop.f32.mrb[0].mxu0
  %v1073 = vadd.f32 %v976, %v1072
  %v1074 = vpop.f32.mrb[0].mxu0
  %1075 = vmatprep.mubr.bf16.mxu0 %v418
  %1076 = vmatmul.mubr.bf16.gmra.mrb[0].mxu0 %v417
  %v1077 = vpop.f32.mrb[0].mxu0
  %v1078 = vadd.f32 %v981, %v1077
  %v1079 = vpop.f32.mrb[0].mxu0
  %v1080 = vpop.f32.mrb[0].mxu0
  %v1081 = vadd.f32 %v984, %v1080
  %v1082 = vpop.f32.mrb[0].mxu0
  %1083 = vdwg.mxu0
  %1084 = vmatprep.subr.bf16.mxu0 0
  %1085 = vmatpush1.bf16.msra.mxu0 %v716
  %1086 = vmatprep.subr.bf16.mxu0 0
  %1087 = vmatpush1.bf16.msra.mxu0 %v717
  %1088 = vmatprep.subr.bf16.mxu0 0
  %1089 = vmatpush1.bf16.msra.mxu0 0
  %1090 = vmatprep.subr.bf16.mxu0 0
  %1091 = vmatpush1.bf16.msra.mxu0 0
  %1092 = vmatprep.subr.bf16.mxu0 0
  %1093 = vmatpush1.bf16.msra.mxu0 0
  %1094 = vmatprep.subr.bf16.mxu0 0
  %1095 = vmatpush1.bf16.msra.mxu0 0
  %1096 = vmatprep.subr.bf16.mxu0 0
  %1097 = vmatpush1.bf16.msra.mxu0 0
  %1098 = vmatprep.subr.bf16.mxu0 0
  %1099 = vmatpush1.bf16.msra.mxu0 0
  %1100 = vmatprep.subr.bf16.mxu0 0
  %1101 = vmatpush1.bf16.msra.mxu0 0
  %1102 = vmatprep.subr.bf16.mxu0 0
  %1103 = vmatpush1.bf16.msra.mxu0 0
  %1104 = vmatprep.subr.bf16.mxu0 0
  %1105 = vmatpush1.bf16.msra.mxu0 0
  %1106 = vmatprep.subr.bf16.mxu0 0
  %1107 = vmatpush1.bf16.msra.mxu0 0
  %1108 = vmatprep.subr.bf16.mxu0 0
  %1109 = vmatpush1.bf16.msra.mxu0 0
  %1110 = vmatprep.subr.bf16.mxu0 0
  %1111 = vmatpush1.bf16.msra.mxu0 0
  %1112 = vmatprep.subr.bf16.mxu0 0
  %1113 = vmatpush1.bf16.msra.mxu0 0
  %1114 = vmatprep.subr.bf16.mxu0 0
  %1115 = vmatpush1.bf16.msra.mxu0 0
  %1116 = vmatprep.mubr.bf16.mxu0 0
  %1117 = vmatmul.mubr.bf16.gmra.mrb[0].mxu0 %v770
  %v1118 = vpop.f32.mrb[0].mxu0
  %v1119 = vadd.f32 %v1022, %v1118
  %v1120 = vpop.f32.mrb[0].mxu0
  %v1121 = vpop.f32.mrb[0].mxu0
  %v1122 = vadd.f32 %v1025, %v1121
  %v1123 = vpop.f32.mrb[0].mxu0
  %1124 = vmatprep.mubr.bf16.mxu0 0
  %1125 = vmatmul.mubr.bf16.gmra.mrb[0].mxu0 %v773
  %v1126 = vpop.f32.mrb[0].mxu0
  %v1127 = vadd.f32 %v1030, %v1126
  %v1128 = vpop.f32.mrb[0].mxu0
  %v1129 = vpop.f32.mrb[0].mxu0
  %v1130 = vadd.f32 %v1033, %v1129
  %v1131 = vpop.f32.mrb[0].mxu0
  %1132 = vmatprep.mubr.bf16.mxu0 0
  %1133 = vmatmul.mubr.bf16.gmra.mrb[0].mxu0 %v776
  %v1134 = vpop.f32.mrb[0].mxu0
  %v1135 = vadd.f32 %v1038, %v1134
  %v1136 = vpop.f32.mrb[0].mxu0
  %v1137 = vpop.f32.mrb[0].mxu0
  %v1138 = vadd.f32 %v1041, %v1137
  %v1139 = vpop.f32.mrb[0].mxu0
  %1140 = vmatprep.mubr.bf16.mxu0 0
  %1141 = vmatmul.mubr.bf16.gmra.mrb[0].mxu0 %v779
  %v1142 = vpop.f32.mrb[0].mxu0
  %v1143 = vadd.f32 %v1046, %v1142
  %v1144 = vpop.f32.mrb[0].mxu0
  %v1145 = vpop.f32.mrb[0].mxu0
  %v1146 = vadd.f32 %v1049, %v1145
  %v1147 = vpop.f32.mrb[0].mxu0
  %1148 = vmatprep.mubr.bf16.mxu0 0
  %1149 = vmatmul.mubr.bf16.gmra.mrb[0].mxu0 %v782
  %v1150 = vpop.f32.mrb[0].mxu0
  %v1151 = vadd.f32 %v1054, %v1150
  %v1152 = vpop.f32.mrb[0].mxu0
  %v1153 = vpop.f32.mrb[0].mxu0
  %v1154 = vadd.f32 %v1057, %v1153
  %v1155 = vpop.f32.mrb[0].mxu0
  %1156 = vmatprep.mubr.bf16.mxu0 0
  %1157 = vmatmul.mubr.bf16.gmra.mrb[0].mxu0 %v785
  %v1158 = vpop.f32.mrb[0].mxu0
  %v1159 = vadd.f32 %v1062, %v1158
  %v1160 = vpop.f32.mrb[0].mxu0
  %v1161 = vpop.f32.mrb[0].mxu0
  %v1162 = vadd.f32 %v1065, %v1161
  %v1163 = vpop.f32.mrb[0].mxu0
  %1164 = vmatprep.mubr.bf16.mxu0 0
  %1165 = vmatmul.mubr.bf16.gmra.mrb[0].mxu0 %v788
  %v1166 = vpop.f32.mrb[0].mxu0
  %v1167 = vadd.f32 %v1070, %v1166
  %v1168 = vpop.f32.mrb[0].mxu0
  %v1169 = vpop.f32.mrb[0].mxu0
  %v1170 = vadd.f32 %v1073, %v1169
  %v1171 = vpop.f32.mrb[0].mxu0
  %1172 = vmatprep.mubr.bf16.mxu0 0
  %1173 = vmatmul.mubr.bf16.gmra.mrb[0].mxu0 %v791
  %v1174 = vpop.f32.mrb[0].mxu0
  %v1175 = vadd.f32 %v1078, %v1174
  %v1176 = vpop.f32.mrb[0].mxu0
  %v1177 = vpop.f32.mrb[0].mxu0
  %v1178 = vadd.f32 %v1081, %v1177
  %v1179 = vpop.f32.mrb[0].mxu0
  %1180 = vdwg.mxu0
  %v1181 = vld [vmem:[%s1] sm:$0xff]
  %v1182 = vld [vmem:[%s1 + $0x8] sm:$0xff]
  %v1183 = vld [vmem:[%s1 + $0x10] sm:$0xff]
  %v1184 = vld [vmem:[%s1 + $0x18] sm:$0xf]
  %v1185 = vld [vmem:[%s1 + $0x1c] sm:$0xff]
  %v1186 = vld [vmem:[%s1 + $0x24] sm:$0xff]
  %v1187 = vld [vmem:[%s1 + $0x2c] sm:$0xff]
  %v1188 = vld [vmem:[%s1 + $0x34] sm:$0xf]
  %v1189 = vld [vmem:[%s1 + $0x38] sm:$0xff]
  %v1190 = vld [vmem:[%s1 + $0x40] sm:$0xff]
  %v1191 = vld [vmem:[%s1 + $0x48] sm:$0xff]
  %v1192 = vld [vmem:[%s1 + $0x50] sm:$0xf]
  %v1193 = vld [vmem:[%s1 + $0x54] sm:$0xff]
  %v1194 = vld [vmem:[%s1 + $0x5c] sm:$0xff]
  %v1195 = vld [vmem:[%s1 + $0x64] sm:$0xff]
  %v1196 = vld [vmem:[%s1 + $0x6c] sm:$0xf]
  %v1197 = vld [vmem:[%s1 + $0x70] sm:$0xff]
  %v1198 = vld [vmem:[%s1 + $0x78] sm:$0xff]
  %v1199 = vld [vmem:[%s1 + $0x80] sm:$0xff]
  %v1200 = vld [vmem:[%s1 + $0x88] sm:$0xf]
  %v1201 = vld [vmem:[%s1 + $0x8c] sm:$0xff]
  %v1202 = vld [vmem:[%s1 + $0x94] sm:$0xff]
  %v1203 = vld [vmem:[%s1 + $0x9c] sm:$0xff]
  %v1204 = vld [vmem:[%s1 + $0xa4] sm:$0xf]
  %v1205 = vld [vmem:[%s1 + $0xa8] sm:$0xff]
  %v1206 = vld [vmem:[%s1 + $0xb0] sm:$0xff]
  %v1207 = vld [vmem:[%s1 + $0xb8] sm:$0xff]
  %v1208 = vld [vmem:[%s1 + $0xc0] sm:$0xf]
  %v1209 = vld [vmem:[%s1 + $0xc4] sm:$0xff]
  %v1210 = vld [vmem:[%s1 + $0xcc] sm:$0xff]
  %v1211 = vld [vmem:[%s1 + $0xd4] sm:$0xff]
  %v1212 = vld [vmem:[%s1 + $0xdc] sm:$0xf]
  %v1213 = vld [vmem:[%s1 + $0xe0] sm:$0xff]
  %v1214 = vld [vmem:[%s1 + $0xe8] sm:$0xff]
  %v1215 = vld [vmem:[%s1 + $0xf0] sm:$0xff]
  %v1216 = vld [vmem:[%s1 + $0xf8] sm:$0xf]
  %v1217 = vld [vmem:[%s1 + $0xfc] sm:$0xff]
  %v1218 = vld [vmem:[%s1 + $0x104] sm:$0xff]
  %v1219 = vld [vmem:[%s1 + $0x10c] sm:$0xff]
  %v1220 = vld [vmem:[%s1 + $0x114] sm:$0xf]
  %v1221 = vld [vmem:[%s1 + $0x118] sm:$0xff]
  %v1222 = vld [vmem:[%s1 + $0x120] sm:$0xff]
  %v1223 = vld [vmem:[%s1 + $0x128] sm:$0xff]
  %v1224 = vld [vmem:[%s1 + $0x130] sm:$0xf]
  %v1225 = vld [vmem:[%s1 + $0x134] sm:$0xff]
  %v1226 = vld [vmem:[%s1 + $0x13c] sm:$0xff]
  %v1227 = vld [vmem:[%s1 + $0x144] sm:$0xff]
  %v1228 = vld [vmem:[%s1 + $0x14c] sm:$0xf]
  %v1229 = vld [vmem:[%s1 + $0x150] sm:$0xff]
  %v1230 = vld [vmem:[%s1 + $0x158] sm:$0xff]
  %v1231 = vld [vmem:[%s1 + $0x160] sm:$0xff]
  %v1232 = vld [vmem:[%s1 + $0x168] sm:$0xf]
  %v1233 = vld [vmem:[%s1 + $0x16c] sm:$0xff]
  %v1234 = vld [vmem:[%s1 + $0x174] sm:$0xff]
  %v1235 = vld [vmem:[%s1 + $0x17c] sm:$0xff]
  %v1236 = vld [vmem:[%s1 + $0x184] sm:$0xf]
  %v1237 = vld [vmem:[%s1 + $0x188] sm:$0xff]
  %v1238 = vld [vmem:[%s1 + $0x190] sm:$0xff]
  %v1239 = vld [vmem:[%s1 + $0x198] sm:$0xff]
  %v1240 = vld [vmem:[%s1 + $0x1a0] sm:$0xf]
  %v1241 = vld [vmem:[%s1 + $0x1a4] sm:$0xff]
  %v1242 = vld [vmem:[%s1 + $0x1ac] sm:$0xff]
  %v1243 = vld [vmem:[%s1 + $0x1b4] sm:$0xff]
  %v1244 = vld [vmem:[%s1 + $0x1bc] sm:$0xf]
  %v1309 = vunpack.c.l.b16 %v1181
  %v1310 = vunpack.c.h.b16 %v1181
  %v1311 = vunpack.c.l.b16 %v1182
  %v1312 = vunpack.c.h.b16 %v1182
  %v1313 = vunpack.c.l.b16 %v1183
  %v1314 = vunpack.c.h.b16 %v1183
  %v1315 = vunpack.c.l.b16 %v1184
  %v1316 = vunpack.c.l.b16 %v1185
  %v1317 = vunpack.c.h.b16 %v1185
  %v1318 = vunpack.c.l.b16 %v1186
  %v1319 = vunpack.c.h.b16 %v1186
  %v1320 = vunpack.c.l.b16 %v1187
  %v1321 = vunpack.c.h.b16 %v1187
  %v1322 = vunpack.c.l.b16 %v1188
  %v1323 = vunpack.c.l.b16 %v1189
  %v1324 = vunpack.c.h.b16 %v1189
  %v1325 = vunpack.c.l.b16 %v1190
  %v1326 = vunpack.c.h.b16 %v1190
  %v1327 = vunpack.c.l.b16 %v1191
  %v1328 = vunpack.c.h.b16 %v1191
  %v1329 = vunpack.c.l.b16 %v1192
  %v1330 = vunpack.c.l.b16 %v1193
  %v1331 = vunpack.c.h.b16 %v1193
  %v1332 = vunpack.c.l.b16 %v1194
  %v1333 = vunpack.c.h.b16 %v1194
  %v1334 = vunpack.c.l.b16 %v1195
  %v1335 = vunpack.c.h.b16 %v1195
  %v1336 = vunpack.c.l.b16 %v1196
  %v1337 = vunpack.c.l.b16 %v1197
  %v1338 = vunpack.c.h.b16 %v1197
  %v1339 = vunpack.c.l.b16 %v1198
  %v1340 = vunpack.c.h.b16 %v1198
  %v1341 = vunpack.c.l.b16 %v1199
  %v1342 = vunpack.c.h.b16 %v1199
  %v1343 = vunpack.c.l.b16 %v1200
  %v1344 = vunpack.c.l.b16 %v1201
  %v1345 = vunpack.c.h.b16 %v1201
  %v1346 = vunpack.c.l.b16 %v1202
  %v1347 = vunpack.c.h.b16 %v1202
  %v1348 = vunpack.c.l.b16 %v1203
  %v1349 = vunpack.c.h.b16 %v1203
  %v1350 = vunpack.c.l.b16 %v1204
  %v1351 = vunpack.c.l.b16 %v1205
  %v1352 = vunpack.c.h.b16 %v1205
  %v1353 = vunpack.c.l.b16 %v1206
  %v1354 = vunpack.c.h.b16 %v1206
  %v1355 = vunpack.c.l.b16 %v1207
  %v1356 = vunpack.c.h.b16 %v1207
  %v1357 = vunpack.c.l.b16 %v1208
  %v1358 = vunpack.c.l.b16 %v1209
  %v1359 = vunpack.c.h.b16 %v1209
  %v1360 = vunpack.c.l.b16 %v1210
  %v1361 = vunpack.c.h.b16 %v1210
  %v1362 = vunpack.c.l.b16 %v1211
  %v1363 = vunpack.c.h.b16 %v1211
  %v1364 = vunpack.c.l.b16 %v1212
  %v1365 = vunpack.c.l.b16 %v1213
  %v1366 = vunpack.c.h.b16 %v1213
  %v1367 = vunpack.c.l.b16 %v1214
  %v1368 = vunpack.c.h.b16 %v1214
  %v1369 = vunpack.c.l.b16 %v1215
  %v1370 = vunpack.c.h.b16 %v1215
  %v1371 = vunpack.c.l.b16 %v1216
  %v1372 = vunpack.c.l.b16 %v1217
  %v1373 = vunpack.c.h.b16 %v1217
  %v1374 = vunpack.c.l.b16 %v1218
  %v1375 = vunpack.c.h.b16 %v1218
  %v1376 = vunpack.c.l.b16 %v1219
  %v1377 = vunpack.c.h.b16 %v1219
  %v1378 = vunpack.c.l.b16 %v1220
  %v1379 = vunpack.c.l.b16 %v1221
  %v1380 = vunpack.c.h.b16 %v1221
  %v1381 = vunpack.c.l.b16 %v1222
  %v1382 = vunpack.c.h.b16 %v1222
  %v1383 = vunpack.c.l.b16 %v1223
  %v1384 = vunpack.c.h.b16 %v1223
  %v1385 = vunpack.c.l.b16 %v1224
  %v1386 = vunpack.c.l.b16 %v1225
  %v1387 = vunpack.c.h.b16 %v1225
  %v1388 = vunpack.c.l.b16 %v1226
  %v1389 = vunpack.c.h.b16 %v1226
  %v1390 = vunpack.c.l.b16 %v1227
  %v1391 = vunpack.c.h.b16 %v1227
  %v1392 = vunpack.c.l.b16 %v1228
  %v1393 = vunpack.c.l.b16 %v1229
  %v1394 = vunpack.c.h.b16 %v1229
  %v1395 = vunpack.c.l.b16 %v1230
  %v1396 = vunpack.c.h.b16 %v1230
  %v1397 = vunpack.c.l.b16 %v1231
  %v1398 = vunpack.c.h.b16 %v1231
  %v1399 = vunpack.c.l.b16 %v1232
  %v1400 = vunpack.c.l.b16 %v1233
  %v1401 = vunpack.c.h.b16 %v1233
  %v1402 = vunpack.c.l.b16 %v1234
  %v1403 = vunpack.c.h.b16 %v1234
  %v1404 = vunpack.c.l.b16 %v1235
  %v1405 = vunpack.c.h.b16 %v1235
  %v1406 = vunpack.c.l.b16 %v1236
  %v1407 = vunpack.c.l.b16 %v1237
  %v1408 = vunpack.c.h.b16 %v1237
  %v1409 = vunpack.c.l.b16 %v1238
  %v1410 = vunpack.c.h.b16 %v1238
  %v1411 = vunpack.c.l.b16 %v1239
  %v1412 = vunpack.c.h.b16 %v1239
  %v1413 = vunpack.c.l.b16 %v1240
  %v1414 = vunpack.c.l.b16 %v1241
  %v1415 = vunpack.c.h.b16 %v1241
  %v1416 = vunpack.c.l.b16 %v1242
  %v1417 = vunpack.c.h.b16 %v1242
  %v1418 = vunpack.c.l.b16 %v1243
  %v1419 = vunpack.c.h.b16 %v1243
  %v1420 = vunpack.c.l.b16 %v1244
  %v1421 = vpack.c.b16 %v1316, %v1309
  %v1422 = vpack.c.b16 %v1317, %v1310
  %v1423 = vpack.c.b16 %v1318, %v1311
  %v1424 = vpack.c.b16 %v1319, %v1312
  %v1425 = vpack.c.b16 %v1320, %v1313
  %v1426 = vpack.c.b16 %v1321, %v1314
  %v1427 = vpack.c.b16 %v1322, %v1315
  %v1428 = vpack.c.b16 %v1330, %v1323
  %v1429 = vpack.c.b16 %v1331, %v1324
  %v1430 = vpack.c.b16 %v1332, %v1325
  %v1431 = vpack.c.b16 %v1333, %v1326
  %v1432 = vpack.c.b16 %v1334, %v1327
  %v1433 = vpack.c.b16 %v1335, %v1328
  %v1434 = vpack.c.b16 %v1336, %v1329
  %v1435 = vpack.c.b16 %v1344, %v1337
  %v1436 = vpack.c.b16 %v1345, %v1338
  %v1437 = vpack.c.b16 %v1346, %v1339
  %v1438 = vpack.c.b16 %v1347, %v1340
  %v1439 = vpack.c.b16 %v1348, %v1341
  %v1440 = vpack.c.b16 %v1349, %v1342
  %v1441 = vpack.c.b16 %v1350, %v1343
  %v1442 = vpack.c.b16 %v1358, %v1351
  %v1443 = vpack.c.b16 %v1359, %v1352
  %v1444 = vpack.c.b16 %v1360, %v1353
  %v1445 = vpack.c.b16 %v1361, %v1354
  %v1446 = vpack.c.b16 %v1362, %v1355
  %v1447 = vpack.c.b16 %v1363, %v1356
  %v1448 = vpack.c.b16 %v1364, %v1357
  %v1449 = vpack.c.b16 %v1372, %v1365
  %v1450 = vpack.c.b16 %v1373, %v1366
  %v1451 = vpack.c.b16 %v1374, %v1367
  %v1452 = vpack.c.b16 %v1375, %v1368
  %v1453 = vpack.c.b16 %v1376, %v1369
  %v1454 = vpack.c.b16 %v1377, %v1370
  %v1455 = vpack.c.b16 %v1378, %v1371
  %v1456 = vpack.c.b16 %v1386, %v1379
  %v1457 = vpack.c.b16 %v1387, %v1380
  %v1458 = vpack.c.b16 %v1388, %v1381
  %v1459 = vpack.c.b16 %v1389, %v1382
  %v1460 = vpack.c.b16 %v1390, %v1383
  %v1461 = vpack.c.b16 %v1391, %v1384
  %v1462 = vpack.c.b16 %v1392, %v1385
  %v1463 = vpack.c.b16 %v1400, %v1393
  %v1464 = vpack.c.b16 %v1401, %v1394
  %v1465 = vpack.c.b16 %v1402, %v1395
  %v1466 = vpack.c.b16 %v1403, %v1396
  %v1467 = vpack.c.b16 %v1404, %v1397
  %v1468 = vpack.c.b16 %v1405, %v1398
  %v1469 = vpack.c.b16 %v1406, %v1399
  %v1470 = vpack.c.b16 %v1414, %v1407
  %v1471 = vpack.c.b16 %v1415, %v1408
  %v1472 = vpack.c.b16 %v1416, %v1409
  %v1473 = vpack.c.b16 %v1417, %v1410
  %v1474 = vpack.c.b16 %v1418, %v1411
  %v1475 = vpack.c.b16 %v1419, %v1412
  %v1476 = vpack.c.b16 %v1420, %v1413
  %v1526 = vsel %vm768, %v1427, 0
  %v1529 = vsel %vm768, %v1434, 0
  %v1532 = vsel %vm768, %v1441, 0
  %v1535 = vsel %vm768, %v1448, 0
  %v1538 = vsel %vm768, %v1455, 0
  %v1541 = vsel %vm768, %v1462, 0
  %v1544 = vsel %vm768, %v1469, 0
  %v1547 = vsel %vm768, %v1476, 0
  %1549 = vmatprep.subr.bf16.mxu0 0
  %1550 = vmatpush1.bf16.msra.mxu0 %v668
  %1551 = vmatprep.subr.bf16.mxu0 0
  %1552 = vmatpush1.bf16.msra.mxu0 %v669
  %1553 = vmatprep.subr.bf16.mxu0 0
  %1554 = vmatpush1.bf16.msra.mxu0 %v670
  %1555 = vmatprep.subr.bf16.mxu0 0
  %1556 = vmatpush1.bf16.msra.mxu0 %v671
  %1557 = vmatprep.subr.bf16.mxu0 0
  %1558 = vmatpush1.bf16.msra.mxu0 %v672
  %1559 = vmatprep.subr.bf16.mxu0 0
  %1560 = vmatpush1.bf16.msra.mxu0 %v673
  %1561 = vmatprep.subr.bf16.mxu0 0
  %1562 = vmatpush1.bf16.msra.mxu0 %v674
  %1563 = vmatprep.subr.bf16.mxu0 0
  %1564 = vmatpush1.bf16.msra.mxu0 %v675
  %1565 = vmatprep.subr.bf16.mxu0 0
  %1566 = vmatpush1.bf16.msra.mxu0 %v676
  %1567 = vmatprep.subr.bf16.mxu0 0
  %1568 = vmatpush1.bf16.msra.mxu0 %v677
  %1569 = vmatprep.subr.bf16.mxu0 0
  %1570 = vmatpush1.bf16.msra.mxu0 %v678
  %1571 = vmatprep.subr.bf16.mxu0 0
  %1572 = vmatpush1.bf16.msra.mxu0 %v679
  %1573 = vmatprep.subr.bf16.mxu0 0
  %1574 = vmatpush1.bf16.msra.mxu0 %v680
  %1575 = vmatprep.subr.bf16.mxu0 0
  %1576 = vmatpush1.bf16.msra.mxu0 %v681
  %1577 = vmatprep.subr.bf16.mxu0 0
  %1578 = vmatpush1.bf16.msra.mxu0 %v682
  %1579 = vmatprep.subr.bf16.mxu0 0
  %1580 = vmatpush1.bf16.msra.mxu0 %v683
  %1581 = vmatprep.mubr.bf16.mxu0 %v1422
  %1582 = vmatmul.mubr.bf16.gmra.mrb[0].mxu0 %v1421
  %v1583 = vpop.f32.mrb[0].mxu0
  %v1584 = vadd.f32 0.0, %v1583
  %v1585 = vpop.f32.mrb[0].mxu0
  %v1586 = vpop.f32.mrb[0].mxu0
  %v1587 = vadd.f32 0.0, %v1586
  %v1588 = vpop.f32.mrb[0].mxu0
  %1589 = vmatprep.mubr.bf16.mxu0 %v1429
  %1590 = vmatmul.mubr.bf16.gmra.mrb[0].mxu0 %v1428
  %v1591 = vpop.f32.mrb[0].mxu0
  %v1592 = vadd.f32 0.0, %v1591
  %v1593 = vpop.f32.mrb[0].mxu0
  %v1594 = vpop.f32.mrb[0].mxu0
  %v1595 = vadd.f32 0.0, %v1594
  %v1596 = vpop.f32.mrb[0].mxu0
  %1597 = vmatprep.mubr.bf16.mxu0 %v1436
  %1598 = vmatmul.mubr.bf16.gmra.mrb[0].mxu0 %v1435
  %v1599 = vpop.f32.mrb[0].mxu0
  %v1600 = vadd.f32 0.0, %v1599
  %v1601 = vpop.f32.mrb[0].mxu0
  %v1602 = vpop.f32.mrb[0].mxu0
  %v1603 = vadd.f32 0.0, %v1602
  %v1604 = vpop.f32.mrb[0].mxu0
  %1605 = vmatprep.mubr.bf16.mxu0 %v1443
  %1606 = vmatmul.mubr.bf16.gmra.mrb[0].mxu0 %v1442
  %v1607 = vpop.f32.mrb[0].mxu0
  %v1608 = vadd.f32 0.0, %v1607
  %v1609 = vpop.f32.mrb[0].mxu0
  %v1610 = vpop.f32.mrb[0].mxu0
  %v1611 = vadd.f32 0.0, %v1610
  %v1612 = vpop.f32.mrb[0].mxu0
  %1613 = vmatprep.mubr.bf16.mxu0 %v1450
  %1614 = vmatmul.mubr.bf16.gmra.mrb[0].mxu0 %v1449
  %v1615 = vpop.f32.mrb[0].mxu0
  %v1616 = vadd.f32 0.0, %v1615
  %v1617 = vpop.f32.mrb[0].mxu0
  %v1618 = vpop.f32.mrb[0].mxu0
  %v1619 = vadd.f32 0.0, %v1618
  %v1620 = vpop.f32.mrb[0].mxu0
  %1621 = vmatprep.mubr.bf16.mxu0 %v1457
  %1622 = vmatmul.mubr.bf16.gmra.mrb[0].mxu0 %v1456
  %v1623 = vpop.f32.mrb[0].mxu0
  %v1624 = vadd.f32 0.0, %v1623
  %v1625 = vpop.f32.mrb[0].mxu0
  %v1626 = vpop.f32.mrb[0].mxu0
  %v1627 = vadd.f32 0.0, %v1626
  %v1628 = vpop.f32.mrb[0].mxu0
  %1629 = vmatprep.mubr.bf16.mxu0 %v1464
  %1630 = vmatmul.mubr.bf16.gmra.mrb[0].mxu0 %v1463
  %v1631 = vpop.f32.mrb[0].mxu0
  %v1632 = vadd.f32 0.0, %v1631
  %v1633 = vpop.f32.mrb[0].mxu0
  %v1634 = vpop.f32.mrb[0].mxu0
  %v1635 = vadd.f32 0.0, %v1634
  %v1636 = vpop.f32.mrb[0].mxu0
  %1637 = vmatprep.mubr.bf16.mxu0 %v1471
  %1638 = vmatmul.mubr.bf16.gmra.mrb[0].mxu0 %v1470
  %v1639 = vpop.f32.mrb[0].mxu0
  %v1640 = vadd.f32 0.0, %v1639
  %v1641 = vpop.f32.mrb[0].mxu0
  %v1642 = vpop.f32.mrb[0].mxu0
  %v1643 = vadd.f32 0.0, %v1642
  %v1644 = vpop.f32.mrb[0].mxu0
  %1645 = vdwg.mxu0
  %1646 = vmatprep.subr.bf16.mxu0 0
  %1647 = vmatpush1.bf16.msra.mxu0 %v684
  %1648 = vmatprep.subr.bf16.mxu0 0
  %1649 = vmatpush1.bf16.msra.mxu0 %v685
  %1650 = vmatprep.subr.bf16.mxu0 0
  %1651 = vmatpush1.bf16.msra.mxu0 %v686
  %1652 = vmatprep.subr.bf16.mxu0 0
  %1653 = vmatpush1.bf16.msra.mxu0 %v687
  %1654 = vmatprep.subr.bf16.mxu0 0
  %1655 = vmatpush1.bf16.msra.mxu0 %v688
  %1656 = vmatprep.subr.bf16.mxu0 0
  %1657 = vmatpush1.bf16.msra.mxu0 %v689
  %1658 = vmatprep.subr.bf16.mxu0 0
  %1659 = vmatpush1.bf16.msra.mxu0 %v690
  %1660 = vmatprep.subr.bf16.mxu0 0
  %1661 = vmatpush1.bf16.msra.mxu0 %v691
  %1662 = vmatprep.subr.bf16.mxu0 0
  %1663 = vmatpush1.bf16.msra.mxu0 %v692
  %1664 = vmatprep.subr.bf16.mxu0 0
  %1665 = vmatpush1.bf16.msra.mxu0 %v693
  %1666 = vmatprep.subr.bf16.mxu0 0
  %1667 = vmatpush1.bf16.msra.mxu0 %v694
  %1668 = vmatprep.subr.bf16.mxu0 0
  %1669 = vmatpush1.bf16.msra.mxu0 %v695
  %1670 = vmatprep.subr.bf16.mxu0 0
  %1671 = vmatpush1.bf16.msra.mxu0 %v696
  %1672 = vmatprep.subr.bf16.mxu0 0
  %1673 = vmatpush1.bf16.msra.mxu0 %v697
  %1674 = vmatprep.subr.bf16.mxu0 0
  %1675 = vmatpush1.bf16.msra.mxu0 %v698
  %1676 = vmatprep.subr.bf16.mxu0 0
  %1677 = vmatpush1.bf16.msra.mxu0 %v699
  %1678 = vmatprep.mubr.bf16.mxu0 %v1424
  %1679 = vmatmul.mubr.bf16.gmra.mrb[0].mxu0 %v1423
  %v1680 = vpop.f32.mrb[0].mxu0
  %v1681 = vadd.f32 %v1584, %v1680
  %v1682 = vpop.f32.mrb[0].mxu0
  %v1683 = vpop.f32.mrb[0].mxu0
  %v1684 = vadd.f32 %v1587, %v1683
  %v1685 = vpop.f32.mrb[0].mxu0
  %1686 = vmatprep.mubr.bf16.mxu0 %v1431
  %1687 = vmatmul.mubr.bf16.gmra.mrb[0].mxu0 %v1430
  %v1688 = vpop.f32.mrb[0].mxu0
  %v1689 = vadd.f32 %v1592, %v1688
  %v1690 = vpop.f32.mrb[0].mxu0
  %v1691 = vpop.f32.mrb[0].mxu0
  %v1692 = vadd.f32 %v1595, %v1691
  %v1693 = vpop.f32.mrb[0].mxu0
  %1694 = vmatprep.mubr.bf16.mxu0 %v1438
  %1695 = vmatmul.mubr.bf16.gmra.mrb[0].mxu0 %v1437
  %v1696 = vpop.f32.mrb[0].mxu0
  %v1697 = vadd.f32 %v1600, %v1696
  %v1698 = vpop.f32.mrb[0].mxu0
  %v1699 = vpop.f32.mrb[0].mxu0
  %v1700 = vadd.f32 %v1603, %v1699
  %v1701 = vpop.f32.mrb[0].mxu0
  %1702 = vmatprep.mubr.bf16.mxu0 %v1445
  %1703 = vmatmul.mubr.bf16.gmra.mrb[0].mxu0 %v1444
  %v1704 = vpop.f32.mrb[0].mxu0
  %v1705 = vadd.f32 %v1608, %v1704
  %v1706 = vpop.f32.mrb[0].mxu0
  %v1707 = vpop.f32.mrb[0].mxu0
  %v1708 = vadd.f32 %v1611, %v1707
  %v1709 = vpop.f32.mrb[0].mxu0
  %1710 = vmatprep.mubr.bf16.mxu0 %v1452
  %1711 = vmatmul.mubr.bf16.gmra.mrb[0].mxu0 %v1451
  %v1712 = vpop.f32.mrb[0].mxu0
  %v1713 = vadd.f32 %v1616, %v1712
  %v1714 = vpop.f32.mrb[0].mxu0
  %v1715 = vpop.f32.mrb[0].mxu0
  %v1716 = vadd.f32 %v1619, %v1715
  %v1717 = vpop.f32.mrb[0].mxu0
  %1718 = vmatprep.mubr.bf16.mxu0 %v1459
  %1719 = vmatmul.mubr.bf16.gmra.mrb[0].mxu0 %v1458
  %v1720 = vpop.f32.mrb[0].mxu0
  %v1721 = vadd.f32 %v1624, %v1720
  %v1722 = vpop.f32.mrb[0].mxu0
  %v1723 = vpop.f32.mrb[0].mxu0
  %v1724 = vadd.f32 %v1627, %v1723
  %v1725 = vpop.f32.mrb[0].mxu0
  %1726 = vmatprep.mubr.bf16.mxu0 %v1466
  %1727 = vmatmul.mubr.bf16.gmra.mrb[0].mxu0 %v1465
  %v1728 = vpop.f32.mrb[0].mxu0
  %v1729 = vadd.f32 %v1632, %v1728
  %v1730 = vpop.f32.mrb[0].mxu0
  %v1731 = vpop.f32.mrb[0].mxu0
  %v1732 = vadd.f32 %v1635, %v1731
  %v1733 = vpop.f32.mrb[0].mxu0
  %1734 = vmatprep.mubr.bf16.mxu0 %v1473
  %1735 = vmatmul.mubr.bf16.gmra.mrb[0].mxu0 %v1472
  %v1736 = vpop.f32.mrb[0].mxu0
  %v1737 = vadd.f32 %v1640, %v1736
  %v1738 = vpop.f32.mrb[0].mxu0
  %v1739 = vpop.f32.mrb[0].mxu0
  %v1740 = vadd.f32 %v1643, %v1739
  %v1741 = vpop.f32.mrb[0].mxu0
  %1742 = vdwg.mxu0
  %1743 = vmatprep.subr.bf16.mxu0 0
  %1744 = vmatpush1.bf16.msra.mxu0 %v700
  %1745 = vmatprep.subr.bf16.mxu0 0
  %1746 = vmatpush1.bf16.msra.mxu0 %v701
  %1747 = vmatprep.subr.bf16.mxu0 0
  %1748 = vmatpush1.bf16.msra.mxu0 %v702
  %1749 = vmatprep.subr.bf16.mxu0 0
  %1750 = vmatpush1.bf16.msra.mxu0 %v703
  %1751 = vmatprep.subr.bf16.mxu0 0
  %1752 = vmatpush1.bf16.msra.mxu0 %v704
  %1753 = vmatprep.subr.bf16.mxu0 0
  %1754 = vmatpush1.bf16.msra.mxu0 %v705
  %1755 = vmatprep.subr.bf16.mxu0 0
  %1756 = vmatpush1.bf16.msra.mxu0 %v706
  %1757 = vmatprep.subr.bf16.mxu0 0
  %1758 = vmatpush1.bf16.msra.mxu0 %v707
  %1759 = vmatprep.subr.bf16.mxu0 0
  %1760 = vmatpush1.bf16.msra.mxu0 %v708
  %1761 = vmatprep.subr.bf16.mxu0 0
  %1762 = vmatpush1.bf16.msra.mxu0 %v709
  %1763 = vmatprep.subr.bf16.mxu0 0
  %1764 = vmatpush1.bf16.msra.mxu0 %v710
  %1765 = vmatprep.subr.bf16.mxu0 0
  %1766 = vmatpush1.bf16.msra.mxu0 %v711
  %1767 = vmatprep.subr.bf16.mxu0 0
  %1768 = vmatpush1.bf16.msra.mxu0 %v712
  %1769 = vmatprep.subr.bf16.mxu0 0
  %1770 = vmatpush1.bf16.msra.mxu0 %v713
  %1771 = vmatprep.subr.bf16.mxu0 0
  %1772 = vmatpush1.bf16.msra.mxu0 %v714
  %1773 = vmatprep.subr.bf16.mxu0 0
  %1774 = vmatpush1.bf16.msra.mxu0 %v715
  %1775 = vmatprep.mubr.bf16.mxu0 %v1426
  %1776 = vmatmul.mubr.bf16.gmra.mrb[0].mxu0 %v1425
  %v1777 = vpop.f32.mrb[0].mxu0
  %v1778 = vadd.f32 %v1681, %v1777
  %v1779 = vpop.f32.mrb[0].mxu0
  %v1780 = vpop.f32.mrb[0].mxu0
  %v1781 = vadd.f32 %v1684, %v1780
  %v1782 = vpop.f32.mrb[0].mxu0
  %1783 = vmatprep.mubr.bf16.mxu0 %v1433
  %1784 = vmatmul.mubr.bf16.gmra.mrb[0].mxu0 %v1432
  %v1785 = vpop.f32.mrb[0].mxu0
  %v1786 = vadd.f32 %v1689, %v1785
  %v1787 = vpop.f32.mrb[0].mxu0
  %v1788 = vpop.f32.mrb[0].mxu0
  %v1789 = vadd.f32 %v1692, %v1788
  %v1790 = vpop.f32.mrb[0].mxu0
  %1791 = vmatprep.mubr.bf16.mxu0 %v1440
  %1792 = vmatmul.mubr.bf16.gmra.mrb[0].mxu0 %v1439
  %v1793 = vpop.f32.mrb[0].mxu0
  %v1794 = vadd.f32 %v1697, %v1793
  %v1795 = vpop.f32.mrb[0].mxu0
  %v1796 = vpop.f32.mrb[0].mxu0
  %v1797 = vadd.f32 %v1700, %v1796
  %v1798 = vpop.f32.mrb[0].mxu0
  %1799 = vmatprep.mubr.bf16.mxu0 %v1447
  %1800 = vmatmul.mubr.bf16.gmra.mrb[0].mxu0 %v1446
  %v1801 = vpop.f32.mrb[0].mxu0
  %v1802 = vadd.f32 %v1705, %v1801
  %v1803 = vpop.f32.mrb[0].mxu0
  %v1804 = vpop.f32.mrb[0].mxu0
  %v1805 = vadd.f32 %v1708, %v1804
  %v1806 = vpop.f32.mrb[0].mxu0
  %1807 = vmatprep.mubr.bf16.mxu0 %v1454
  %1808 = vmatmul.mubr.bf16.gmra.mrb[0].mxu0 %v1453
  %v1809 = vpop.f32.mrb[0].mxu0
  %v1810 = vadd.f32 %v1713, %v1809
  %v1811 = vpop.f32.mrb[0].mxu0
  %v1812 = vpop.f32.mrb[0].mxu0
  %v1813 = vadd.f32 %v1716, %v1812
  %v1814 = vpop.f32.mrb[0].mxu0
  %1815 = vmatprep.mubr.bf16.mxu0 %v1461
  %1816 = vmatmul.mubr.bf16.gmra.mrb[0].mxu0 %v1460
  %v1817 = vpop.f32.mrb[0].mxu0
  %v1818 = vadd.f32 %v1721, %v1817
  %v1819 = vpop.f32.mrb[0].mxu0
  %v1820 = vpop.f32.mrb[0].mxu0
  %v1821 = vadd.f32 %v1724, %v1820
  %v1822 = vpop.f32.mrb[0].mxu0
  %1823 = vmatprep.mubr.bf16.mxu0 %v1468
  %1824 = vmatmul.mubr.bf16.gmra.mrb[0].mxu0 %v1467
  %v1825 = vpop.f32.mrb[0].mxu0
  %v1826 = vadd.f32 %v1729, %v1825
  %v1827 = vpop.f32.mrb[0].mxu0
  %v1828 = vpop.f32.mrb[0].mxu0
  %v1829 = vadd.f32 %v1732, %v1828
  %v1830 = vpop.f32.mrb[0].mxu0
  %1831 = vmatprep.mubr.bf16.mxu0 %v1475
  %1832 = vmatmul.mubr.bf16.gmra.mrb[0].mxu0 %v1474
  %v1833 = vpop.f32.mrb[0].mxu0
  %v1834 = vadd.f32 %v1737, %v1833
  %v1835 = vpop.f32.mrb[0].mxu0
  %v1836 = vpop.f32.mrb[0].mxu0
  %v1837 = vadd.f32 %v1740, %v1836
  %v1838 = vpop.f32.mrb[0].mxu0
  %1839 = vdwg.mxu0
  %1840 = vmatprep.subr.bf16.mxu0 0
  %1841 = vmatpush1.bf16.msra.mxu0 %v716
  %1842 = vmatprep.subr.bf16.mxu0 0
  %1843 = vmatpush1.bf16.msra.mxu0 %v717
  %1844 = vmatprep.subr.bf16.mxu0 0
  %1845 = vmatpush1.bf16.msra.mxu0 0
  %1846 = vmatprep.subr.bf16.mxu0 0
  %1847 = vmatpush1.bf16.msra.mxu0 0
  %1848 = vmatprep.subr.bf16.mxu0 0
  %1849 = vmatpush1.bf16.msra.mxu0 0
  %1850 = vmatprep.subr.bf16.mxu0 0
  %1851 = vmatpush1.bf16.msra.mxu0 0
  %1852 = vmatprep.subr.bf16.mxu0 0
  %1853 = vmatpush1.bf16.msra.mxu0 0
  %1854 = vmatprep.subr.bf16.mxu0 0
  %1855 = vmatpush1.bf16.msra.mxu0 0
  %1856 = vmatprep.subr.bf16.mxu0 0
  %1857 = vmatpush1.bf16.msra.mxu0 0
  %1858 = vmatprep.subr.bf16.mxu0 0
  %1859 = vmatpush1.bf16.msra.mxu0 0
  %1860 = vmatprep.subr.bf16.mxu0 0
  %1861 = vmatpush1.bf16.msra.mxu0 0
  %1862 = vmatprep.subr.bf16.mxu0 0
  %1863 = vmatpush1.bf16.msra.mxu0 0
  %1864 = vmatprep.subr.bf16.mxu0 0
  %1865 = vmatpush1.bf16.msra.mxu0 0
  %1866 = vmatprep.subr.bf16.mxu0 0
  %1867 = vmatpush1.bf16.msra.mxu0 0
  %1868 = vmatprep.subr.bf16.mxu0 0
  %1869 = vmatpush1.bf16.msra.mxu0 0
  %1870 = vmatprep.subr.bf16.mxu0 0
  %1871 = vmatpush1.bf16.msra.mxu0 0
  %1872 = vmatprep.mubr.bf16.mxu0 0
  %1873 = vmatmul.mubr.bf16.gmra.mrb[0].mxu0 %v1526
  %v1874 = vpop.f32.mrb[0].mxu0
  %v1875 = vadd.f32 %v1778, %v1874
  %v1876 = vpop.f32.mrb[0].mxu0
  %v1877 = vpop.f32.mrb[0].mxu0
  %v1878 = vadd.f32 %v1781, %v1877
  %v1879 = vpop.f32.mrb[0].mxu0
  %1880 = vmatprep.mubr.bf16.mxu0 0
  %1881 = vmatmul.mubr.bf16.gmra.mrb[0].mxu0 %v1529
  %v1882 = vpop.f32.mrb[0].mxu0
  %v1883 = vadd.f32 %v1786, %v1882
  %v1884 = vpop.f32.mrb[0].mxu0
  %v1885 = vpop.f32.mrb[0].mxu0
  %v1886 = vadd.f32 %v1789, %v1885
  %v1887 = vpop.f32.mrb[0].mxu0
  %1888 = vmatprep.mubr.bf16.mxu0 0
  %1889 = vmatmul.mubr.bf16.gmra.mrb[0].mxu0 %v1532
  %v1890 = vpop.f32.mrb[0].mxu0
  %v1891 = vadd.f32 %v1794, %v1890
  %v1892 = vpop.f32.mrb[0].mxu0
  %v1893 = vpop.f32.mrb[0].mxu0
  %v1894 = vadd.f32 %v1797, %v1893
  %v1895 = vpop.f32.mrb[0].mxu0
  %1896 = vmatprep.mubr.bf16.mxu0 0
  %1897 = vmatmul.mubr.bf16.gmra.mrb[0].mxu0 %v1535
  %v1898 = vpop.f32.mrb[0].mxu0
  %v1899 = vadd.f32 %v1802, %v1898
  %v1900 = vpop.f32.mrb[0].mxu0
  %v1901 = vpop.f32.mrb[0].mxu0
  %v1902 = vadd.f32 %v1805, %v1901
  %v1903 = vpop.f32.mrb[0].mxu0
  %1904 = vmatprep.mubr.bf16.mxu0 0
  %1905 = vmatmul.mubr.bf16.gmra.mrb[0].mxu0 %v1538
  %v1906 = vpop.f32.mrb[0].mxu0
  %v1907 = vadd.f32 %v1810, %v1906
  %v1908 = vpop.f32.mrb[0].mxu0
  %v1909 = vpop.f32.mrb[0].mxu0
  %v1910 = vadd.f32 %v1813, %v1909
  %v1911 = vpop.f32.mrb[0].mxu0
  %1912 = vmatprep.mubr.bf16.mxu0 0
  %1913 = vmatmul.mubr.bf16.gmra.mrb[0].mxu0 %v1541
  %v1914 = vpop.f32.mrb[0].mxu0
  %v1915 = vadd.f32 %v1818, %v1914
  %v1916 = vpop.f32.mrb[0].mxu0
  %v1917 = vpop.f32.mrb[0].mxu0
  %v1918 = vadd.f32 %v1821, %v1917
  %v1919 = vpop.f32.mrb[0].mxu0
  %1920 = vmatprep.mubr.bf16.mxu0 0
  %1921 = vmatmul.mubr.bf16.gmra.mrb[0].mxu0 %v1544
  %v1922 = vpop.f32.mrb[0].mxu0
  %v1923 = vadd.f32 %v1826, %v1922
  %v1924 = vpop.f32.mrb[0].mxu0
  %v1925 = vpop.f32.mrb[0].mxu0
  %v1926 = vadd.f32 %v1829, %v1925
  %v1927 = vpop.f32.mrb[0].mxu0
  %1928 = vmatprep.mubr.bf16.mxu0 0
  %1929 = vmatmul.mubr.bf16.gmra.mrb[0].mxu0 %v1547
  %v1930 = vpop.f32.mrb[0].mxu0
  %v1931 = vadd.f32 %v1834, %v1930
  %v1932 = vpop.f32.mrb[0].mxu0
  %v1933 = vpop.f32.mrb[0].mxu0
  %v1934 = vadd.f32 %v1837, %v1933
  %v1935 = vpop.f32.mrb[0].mxu0
  %1936 = vdwg.mxu0
  %v1937 = vmax.f32 %v1119, %v1875
  %v1938 = vmax.f32 %v1122, %v1878
  %v1939 = vmax.f32 %v1127, %v1883
  %v1940 = vmax.f32 %v1130, %v1886
  %v1941 = vmax.f32 %v1135, %v1891
  %v1942 = vmax.f32 %v1138, %v1894
  %v1943 = vmax.f32 %v1143, %v1899
  %v1944 = vmax.f32 %v1146, %v1902
  %v1945 = vmax.f32 %v1151, %v1907
  %v1946 = vmax.f32 %v1154, %v1910
  %v1947 = vmax.f32 %v1159, %v1915
  %v1948 = vmax.f32 %v1162, %v1918
  %v1949 = vmax.f32 %v1167, %v1923
  %v1950 = vmax.f32 %v1170, %v1926
  %v1951 = vmax.f32 %v1175, %v1931
  %v1952 = vmax.f32 %v1178, %v1934
  %v1953 = vld [vmem:[%s2] sm:$0xff]
  %v1954 = vld [vmem:[%s2 + $0x8] sm:$0xff]
  %v1955 = vld [vmem:[%s2 + $0x10] sm:$0xff]
  %v1956 = vld [vmem:[%s2 + $0x18] sm:$0xf]
  %v1957 = vld [vmem:[%s2 + $0x1c] sm:$0xff]
  %v1958 = vld [vmem:[%s2 + $0x24] sm:$0xff]
  %v1959 = vld [vmem:[%s2 + $0x2c] sm:$0xff]
  %v1960 = vld [vmem:[%s2 + $0x34] sm:$0xf]
  %v1961 = vld [vmem:[%s2 + $0x38] sm:$0xff]
  %v1962 = vld [vmem:[%s2 + $0x40] sm:$0xff]
  %v1963 = vld [vmem:[%s2 + $0x48] sm:$0xff]
  %v1964 = vld [vmem:[%s2 + $0x50] sm:$0xf]
  %v1965 = vld [vmem:[%s2 + $0x54] sm:$0xff]
  %v1966 = vld [vmem:[%s2 + $0x5c] sm:$0xff]
  %v1967 = vld [vmem:[%s2 + $0x64] sm:$0xff]
  %v1968 = vld [vmem:[%s2 + $0x6c] sm:$0xf]
  %v1969 = vld [vmem:[%s2 + $0x70] sm:$0xff]
  %v1970 = vld [vmem:[%s2 + $0x78] sm:$0xff]
  %v1971 = vld [vmem:[%s2 + $0x80] sm:$0xff]
  %v1972 = vld [vmem:[%s2 + $0x88] sm:$0xf]
  %v1973 = vld [vmem:[%s2 + $0x8c] sm:$0xff]
  %v1974 = vld [vmem:[%s2 + $0x94] sm:$0xff]
  %v1975 = vld [vmem:[%s2 + $0x9c] sm:$0xff]
  %v1976 = vld [vmem:[%s2 + $0xa4] sm:$0xf]
  %v1977 = vld [vmem:[%s2 + $0xa8] sm:$0xff]
  %v1978 = vld [vmem:[%s2 + $0xb0] sm:$0xff]
  %v1979 = vld [vmem:[%s2 + $0xb8] sm:$0xff]
  %v1980 = vld [vmem:[%s2 + $0xc0] sm:$0xf]
  %v1981 = vld [vmem:[%s2 + $0xc4] sm:$0xff]
  %v1982 = vld [vmem:[%s2 + $0xcc] sm:$0xff]
  %v1983 = vld [vmem:[%s2 + $0xd4] sm:$0xff]
  %v1984 = vld [vmem:[%s2 + $0xdc] sm:$0xf]
  %v1985 = vld [vmem:[%s2 + $0xe0] sm:$0xff]
  %v1986 = vld [vmem:[%s2 + $0xe8] sm:$0xff]
  %v1987 = vld [vmem:[%s2 + $0xf0] sm:$0xff]
  %v1988 = vld [vmem:[%s2 + $0xf8] sm:$0xf]
  %v1989 = vld [vmem:[%s2 + $0xfc] sm:$0xff]
  %v1990 = vld [vmem:[%s2 + $0x104] sm:$0xff]
  %v1991 = vld [vmem:[%s2 + $0x10c] sm:$0xff]
  %v1992 = vld [vmem:[%s2 + $0x114] sm:$0xf]
  %v1993 = vld [vmem:[%s2 + $0x118] sm:$0xff]
  %v1994 = vld [vmem:[%s2 + $0x120] sm:$0xff]
  %v1995 = vld [vmem:[%s2 + $0x128] sm:$0xff]
  %v1996 = vld [vmem:[%s2 + $0x130] sm:$0xf]
  %v1997 = vld [vmem:[%s2 + $0x134] sm:$0xff]
  %v1998 = vld [vmem:[%s2 + $0x13c] sm:$0xff]
  %v1999 = vld [vmem:[%s2 + $0x144] sm:$0xff]
  %v2000 = vld [vmem:[%s2 + $0x14c] sm:$0xf]
  %v2001 = vld [vmem:[%s2 + $0x150] sm:$0xff]
  %v2002 = vld [vmem:[%s2 + $0x158] sm:$0xff]
  %v2003 = vld [vmem:[%s2 + $0x160] sm:$0xff]
  %v2004 = vld [vmem:[%s2 + $0x168] sm:$0xf]
  %v2005 = vld [vmem:[%s2 + $0x16c] sm:$0xff]
  %v2006 = vld [vmem:[%s2 + $0x174] sm:$0xff]
  %v2007 = vld [vmem:[%s2 + $0x17c] sm:$0xff]
  %v2008 = vld [vmem:[%s2 + $0x184] sm:$0xf]
  %v2009 = vld [vmem:[%s2 + $0x188] sm:$0xff]
  %v2010 = vld [vmem:[%s2 + $0x190] sm:$0xff]
  %v2011 = vld [vmem:[%s2 + $0x198] sm:$0xff]
  %v2012 = vld [vmem:[%s2 + $0x1a0] sm:$0xf]
  %v2013 = vld [vmem:[%s2 + $0x1a4] sm:$0xff]
  %v2014 = vld [vmem:[%s2 + $0x1ac] sm:$0xff]
  %v2015 = vld [vmem:[%s2 + $0x1b4] sm:$0xff]
  %v2016 = vld [vmem:[%s2 + $0x1bc] sm:$0xf]
  %v2081 = vunpack.c.l.b16 %v1953
  %v2082 = vunpack.c.h.b16 %v1953
  %v2083 = vunpack.c.l.b16 %v1954
  %v2084 = vunpack.c.h.b16 %v1954
  %v2085 = vunpack.c.l.b16 %v1955
  %v2086 = vunpack.c.h.b16 %v1955
  %v2087 = vunpack.c.l.b16 %v1956
  %v2088 = vunpack.c.l.b16 %v1957
  %v2089 = vunpack.c.h.b16 %v1957
  %v2090 = vunpack.c.l.b16 %v1958
  %v2091 = vunpack.c.h.b16 %v1958
  %v2092 = vunpack.c.l.b16 %v1959
  %v2093 = vunpack.c.h.b16 %v1959
  %v2094 = vunpack.c.l.b16 %v1960
  %v2095 = vunpack.c.l.b16 %v1961
  %v2096 = vunpack.c.h.b16 %v1961
  %v2097 = vunpack.c.l.b16 %v1962
  %v2098 = vunpack.c.h.b16 %v1962
  %v2099 = vunpack.c.l.b16 %v1963
  %v2100 = vunpack.c.h.b16 %v1963
  %v2101 = vunpack.c.l.b16 %v1964
  %v2102 = vunpack.c.l.b16 %v1965
  %v2103 = vunpack.c.h.b16 %v1965
  %v2104 = vunpack.c.l.b16 %v1966
  %v2105 = vunpack.c.h.b16 %v1966
  %v2106 = vunpack.c.l.b16 %v1967
  %v2107 = vunpack.c.h.b16 %v1967
  %v2108 = vunpack.c.l.b16 %v1968
  %v2109 = vunpack.c.l.b16 %v1969
  %v2110 = vunpack.c.h.b16 %v1969
  %v2111 = vunpack.c.l.b16 %v1970
  %v2112 = vunpack.c.h.b16 %v1970
  %v2113 = vunpack.c.l.b16 %v1971
  %v2114 = vunpack.c.h.b16 %v1971
  %v2115 = vunpack.c.l.b16 %v1972
  %v2116 = vunpack.c.l.b16 %v1973
  %v2117 = vunpack.c.h.b16 %v1973
  %v2118 = vunpack.c.l.b16 %v1974
  %v2119 = vunpack.c.h.b16 %v1974
  %v2120 = vunpack.c.l.b16 %v1975
  %v2121 = vunpack.c.h.b16 %v1975
  %v2122 = vunpack.c.l.b16 %v1976
  %v2123 = vunpack.c.l.b16 %v1977
  %v2124 = vunpack.c.h.b16 %v1977
  %v2125 = vunpack.c.l.b16 %v1978
  %v2126 = vunpack.c.h.b16 %v1978
  %v2127 = vunpack.c.l.b16 %v1979
  %v2128 = vunpack.c.h.b16 %v1979
  %v2129 = vunpack.c.l.b16 %v1980
  %v2130 = vunpack.c.l.b16 %v1981
  %v2131 = vunpack.c.h.b16 %v1981
  %v2132 = vunpack.c.l.b16 %v1982
  %v2133 = vunpack.c.h.b16 %v1982
  %v2134 = vunpack.c.l.b16 %v1983
  %v2135 = vunpack.c.h.b16 %v1983
  %v2136 = vunpack.c.l.b16 %v1984
  %v2137 = vunpack.c.l.b16 %v1985
  %v2138 = vunpack.c.h.b16 %v1985
  %v2139 = vunpack.c.l.b16 %v1986
  %v2140 = vunpack.c.h.b16 %v1986
  %v2141 = vunpack.c.l.b16 %v1987
  %v2142 = vunpack.c.h.b16 %v1987
  %v2143 = vunpack.c.l.b16 %v1988
  %v2144 = vunpack.c.l.b16 %v1989
  %v2145 = vunpack.c.h.b16 %v1989
  %v2146 = vunpack.c.l.b16 %v1990
  %v2147 = vunpack.c.h.b16 %v1990
  %v2148 = vunpack.c.l.b16 %v1991
  %v2149 = vunpack.c.h.b16 %v1991
  %v2150 = vunpack.c.l.b16 %v1992
  %v2151 = vunpack.c.l.b16 %v1993
  %v2152 = vunpack.c.h.b16 %v1993
  %v2153 = vunpack.c.l.b16 %v1994
  %v2154 = vunpack.c.h.b16 %v1994
  %v2155 = vunpack.c.l.b16 %v1995
  %v2156 = vunpack.c.h.b16 %v1995
  %v2157 = vunpack.c.l.b16 %v1996
  %v2158 = vunpack.c.l.b16 %v1997
  %v2159 = vunpack.c.h.b16 %v1997
  %v2160 = vunpack.c.l.b16 %v1998
  %v2161 = vunpack.c.h.b16 %v1998
  %v2162 = vunpack.c.l.b16 %v1999
  %v2163 = vunpack.c.h.b16 %v1999
  %v2164 = vunpack.c.l.b16 %v2000
  %v2165 = vunpack.c.l.b16 %v2001
  %v2166 = vunpack.c.h.b16 %v2001
  %v2167 = vunpack.c.l.b16 %v2002
  %v2168 = vunpack.c.h.b16 %v2002
  %v2169 = vunpack.c.l.b16 %v2003
  %v2170 = vunpack.c.h.b16 %v2003
  %v2171 = vunpack.c.l.b16 %v2004
  %v2172 = vunpack.c.l.b16 %v2005
  %v2173 = vunpack.c.h.b16 %v2005
  %v2174 = vunpack.c.l.b16 %v2006
  %v2175 = vunpack.c.h.b16 %v2006
  %v2176 = vunpack.c.l.b16 %v2007
  %v2177 = vunpack.c.h.b16 %v2007
  %v2178 = vunpack.c.l.b16 %v2008
  %v2179 = vunpack.c.l.b16 %v2009
  %v2180 = vunpack.c.h.b16 %v2009
  %v2181 = vunpack.c.l.b16 %v2010
  %v2182 = vunpack.c.h.b16 %v2010
  %v2183 = vunpack.c.l.b16 %v2011
  %v2184 = vunpack.c.h.b16 %v2011
  %v2185 = vunpack.c.l.b16 %v2012
  %v2186 = vunpack.c.l.b16 %v2013
  %v2187 = vunpack.c.h.b16 %v2013
  %v2188 = vunpack.c.l.b16 %v2014
  %v2189 = vunpack.c.h.b16 %v2014
  %v2190 = vunpack.c.l.b16 %v2015
  %v2191 = vunpack.c.h.b16 %v2015
  %v2192 = vunpack.c.l.b16 %v2016
  %v2193 = vpack.c.b16 %v2088, %v2081
  %v2194 = vpack.c.b16 %v2089, %v2082
  %v2195 = vpack.c.b16 %v2090, %v2083
  %v2196 = vpack.c.b16 %v2091, %v2084
  %v2197 = vpack.c.b16 %v2092, %v2085
  %v2198 = vpack.c.b16 %v2093, %v2086
  %v2199 = vpack.c.b16 %v2094, %v2087
  %v2200 = vpack.c.b16 %v2102, %v2095
  %v2201 = vpack.c.b16 %v2103, %v2096
  %v2202 = vpack.c.b16 %v2104, %v2097
  %v2203 = vpack.c.b16 %v2105, %v2098
  %v2204 = vpack.c.b16 %v2106, %v2099
  %v2205 = vpack.c.b16 %v2107, %v2100
  %v2206 = vpack.c.b16 %v2108, %v2101
  %v2207 = vpack.c.b16 %v2116, %v2109
  %v2208 = vpack.c.b16 %v2117, %v2110
  %v2209 = vpack.c.b16 %v2118, %v2111
  %v2210 = vpack.c.b16 %v2119, %v2112
  %v2211 = vpack.c.b16 %v2120, %v2113
  %v2212 = vpack.c.b16 %v2121, %v2114
  %v2213 = vpack.c.b16 %v2122, %v2115
  %v2214 = vpack.c.b16 %v2130, %v2123
  %v2215 = vpack.c.b16 %v2131, %v2124
  %v2216 = vpack.c.b16 %v2132, %v2125
  %v2217 = vpack.c.b16 %v2133, %v2126
  %v2218 = vpack.c.b16 %v2134, %v2127
  %v2219 = vpack.c.b16 %v2135, %v2128
  %v2220 = vpack.c.b16 %v2136, %v2129
  %v2221 = vpack.c.b16 %v2144, %v2137
  %v2222 = vpack.c.b16 %v2145, %v2138
  %v2223 = vpack.c.b16 %v2146, %v2139
  %v2224 = vpack.c.b16 %v2147, %v2140
  %v2225 = vpack.c.b16 %v2148, %v2141
  %v2226 = vpack.c.b16 %v2149, %v2142
  %v2227 = vpack.c.b16 %v2150, %v2143
  %v2228 = vpack.c.b16 %v2158, %v2151
  %v2229 = vpack.c.b16 %v2159, %v2152
  %v2230 = vpack.c.b16 %v2160, %v2153
  %v2231 = vpack.c.b16 %v2161, %v2154
  %v2232 = vpack.c.b16 %v2162, %v2155
  %v2233 = vpack.c.b16 %v2163, %v2156
  %v2234 = vpack.c.b16 %v2164, %v2157
  %v2235 = vpack.c.b16 %v2172, %v2165
  %v2236 = vpack.c.b16 %v2173, %v2166
  %v2237 = vpack.c.b16 %v2174, %v2167
  %v2238 = vpack.c.b16 %v2175, %v2168
  %v2239 = vpack.c.b16 %v2176, %v2169
  %v2240 = vpack.c.b16 %v2177, %v2170
  %v2241 = vpack.c.b16 %v2178, %v2171
  %v2242 = vpack.c.b16 %v2186, %v2179
  %v2243 = vpack.c.b16 %v2187, %v2180
  %v2244 = vpack.c.b16 %v2188, %v2181
  %v2245 = vpack.c.b16 %v2189, %v2182
  %v2246 = vpack.c.b16 %v2190, %v2183
  %v2247 = vpack.c.b16 %v2191, %v2184
  %v2248 = vpack.c.b16 %v2192, %v2185
  %v2298 = vsel %vm768, %v2199, 0
  %v2301 = vsel %vm768, %v2206, 0
  %v2304 = vsel %vm768, %v2213, 0
  %v2307 = vsel %vm768, %v2220, 0
  %v2310 = vsel %vm768, %v2227, 0
  %v2313 = vsel %vm768, %v2234, 0
  %v2316 = vsel %vm768, %v2241, 0
  %v2319 = vsel %vm768, %v2248, 0
  %2321 = vmatprep.subr.bf16.mxu0 0
  %2322 = vmatpush1.bf16.msra.mxu0 %v668
  %2323 = vmatprep.subr.bf16.mxu0 0
  %2324 = vmatpush1.bf16.msra.mxu0 %v669
  %2325 = vmatprep.subr.bf16.mxu0 0
  %2326 = vmatpush1.bf16.msra.mxu0 %v670
  %2327 = vmatprep.subr.bf16.mxu0 0
  %2328 = vmatpush1.bf16.msra.mxu0 %v671
  %2329 = vmatprep.subr.bf16.mxu0 0
  %2330 = vmatpush1.bf16.msra.mxu0 %v672
  %2331 = vmatprep.subr.bf16.mxu0 0
  %2332 = vmatpush1.bf16.msra.mxu0 %v673
  %2333 = vmatprep.subr.bf16.mxu0 0
  %2334 = vmatpush1.bf16.msra.mxu0 %v674
  %2335 = vmatprep.subr.bf16.mxu0 0
  %2336 = vmatpush1.bf16.msra.mxu0 %v675
  %2337 = vmatprep.subr.bf16.mxu0 0
  %2338 = vmatpush1.bf16.msra.mxu0 %v676
  %2339 = vmatprep.subr.bf16.mxu0 0
  %2340 = vmatpush1.bf16.msra.mxu0 %v677
  %2341 = vmatprep.subr.bf16.mxu0 0
  %2342 = vmatpush1.bf16.msra.mxu0 %v678
  %2343 = vmatprep.subr.bf16.mxu0 0
  %2344 = vmatpush1.bf16.msra.mxu0 %v679
  %2345 = vmatprep.subr.bf16.mxu0 0
  %2346 = vmatpush1.bf16.msra.mxu0 %v680
  %2347 = vmatprep.subr.bf16.mxu0 0
  %2348 = vmatpush1.bf16.msra.mxu0 %v681
  %2349 = vmatprep.subr.bf16.mxu0 0
  %2350 = vmatpush1.bf16.msra.mxu0 %v682
  %2351 = vmatprep.subr.bf16.mxu0 0
  %2352 = vmatpush1.bf16.msra.mxu0 %v683
  %2353 = vmatprep.mubr.bf16.mxu0 %v2194
  %2354 = vmatmul.mubr.bf16.gmra.mrb[0].mxu0 %v2193
  %v2355 = vpop.f32.mrb[0].mxu0
  %v2356 = vadd.f32 0.0, %v2355
  %v2357 = vpop.f32.mrb[0].mxu0
  %v2358 = vpop.f32.mrb[0].mxu0
  %v2359 = vadd.f32 0.0, %v2358
  %v2360 = vpop.f32.mrb[0].mxu0
  %2361 = vmatprep.mubr.bf16.mxu0 %v2201
  %2362 = vmatmul.mubr.bf16.gmra.mrb[0].mxu0 %v2200
  %v2363 = vpop.f32.mrb[0].mxu0
  %v2364 = vadd.f32 0.0, %v2363
  %v2365 = vpop.f32.mrb[0].mxu0
  %v2366 = vpop.f32.mrb[0].mxu0
  %v2367 = vadd.f32 0.0, %v2366
  %v2368 = vpop.f32.mrb[0].mxu0
  %2369 = vmatprep.mubr.bf16.mxu0 %v2208
  %2370 = vmatmul.mubr.bf16.gmra.mrb[0].mxu0 %v2207
  %v2371 = vpop.f32.mrb[0].mxu0
  %v2372 = vadd.f32 0.0, %v2371
  %v2373 = vpop.f32.mrb[0].mxu0
  %v2374 = vpop.f32.mrb[0].mxu0
  %v2375 = vadd.f32 0.0, %v2374
  %v2376 = vpop.f32.mrb[0].mxu0
  %2377 = vmatprep.mubr.bf16.mxu0 %v2215
  %2378 = vmatmul.mubr.bf16.gmra.mrb[0].mxu0 %v2214
  %v2379 = vpop.f32.mrb[0].mxu0
  %v2380 = vadd.f32 0.0, %v2379
  %v2381 = vpop.f32.mrb[0].mxu0
  %v2382 = vpop.f32.mrb[0].mxu0
  %v2383 = vadd.f32 0.0, %v2382
  %v2384 = vpop.f32.mrb[0].mxu0
  %2385 = vmatprep.mubr.bf16.mxu0 %v2222
  %2386 = vmatmul.mubr.bf16.gmra.mrb[0].mxu0 %v2221
  %v2387 = vpop.f32.mrb[0].mxu0
  %v2388 = vadd.f32 0.0, %v2387
  %v2389 = vpop.f32.mrb[0].mxu0
  %v2390 = vpop.f32.mrb[0].mxu0
  %v2391 = vadd.f32 0.0, %v2390
  %v2392 = vpop.f32.mrb[0].mxu0
  %2393 = vmatprep.mubr.bf16.mxu0 %v2229
  %2394 = vmatmul.mubr.bf16.gmra.mrb[0].mxu0 %v2228
  %v2395 = vpop.f32.mrb[0].mxu0
  %v2396 = vadd.f32 0.0, %v2395
  %v2397 = vpop.f32.mrb[0].mxu0
  %v2398 = vpop.f32.mrb[0].mxu0
  %v2399 = vadd.f32 0.0, %v2398
  %v2400 = vpop.f32.mrb[0].mxu0
  %2401 = vmatprep.mubr.bf16.mxu0 %v2236
  %2402 = vmatmul.mubr.bf16.gmra.mrb[0].mxu0 %v2235
  %v2403 = vpop.f32.mrb[0].mxu0
  %v2404 = vadd.f32 0.0, %v2403
  %v2405 = vpop.f32.mrb[0].mxu0
  %v2406 = vpop.f32.mrb[0].mxu0
  %v2407 = vadd.f32 0.0, %v2406
  %v2408 = vpop.f32.mrb[0].mxu0
  %2409 = vmatprep.mubr.bf16.mxu0 %v2243
  %2410 = vmatmul.mubr.bf16.gmra.mrb[0].mxu0 %v2242
  %v2411 = vpop.f32.mrb[0].mxu0
  %v2412 = vadd.f32 0.0, %v2411
  %v2413 = vpop.f32.mrb[0].mxu0
  %v2414 = vpop.f32.mrb[0].mxu0
  %v2415 = vadd.f32 0.0, %v2414
  %v2416 = vpop.f32.mrb[0].mxu0
  %2417 = vdwg.mxu0
  %2418 = vmatprep.subr.bf16.mxu0 0
  %2419 = vmatpush1.bf16.msra.mxu0 %v684
  %2420 = vmatprep.subr.bf16.mxu0 0
  %2421 = vmatpush1.bf16.msra.mxu0 %v685
  %2422 = vmatprep.subr.bf16.mxu0 0
  %2423 = vmatpush1.bf16.msra.mxu0 %v686
  %2424 = vmatprep.subr.bf16.mxu0 0
  %2425 = vmatpush1.bf16.msra.mxu0 %v687
  %2426 = vmatprep.subr.bf16.mxu0 0
  %2427 = vmatpush1.bf16.msra.mxu0 %v688
  %2428 = vmatprep.subr.bf16.mxu0 0
  %2429 = vmatpush1.bf16.msra.mxu0 %v689
  %2430 = vmatprep.subr.bf16.mxu0 0
  %2431 = vmatpush1.bf16.msra.mxu0 %v690
  %2432 = vmatprep.subr.bf16.mxu0 0
  %2433 = vmatpush1.bf16.msra.mxu0 %v691
  %2434 = vmatprep.subr.bf16.mxu0 0
  %2435 = vmatpush1.bf16.msra.mxu0 %v692
  %2436 = vmatprep.subr.bf16.mxu0 0
  %2437 = vmatpush1.bf16.msra.mxu0 %v693
  %2438 = vmatprep.subr.bf16.mxu0 0
  %2439 = vmatpush1.bf16.msra.mxu0 %v694
  %2440 = vmatprep.subr.bf16.mxu0 0
  %2441 = vmatpush1.bf16.msra.mxu0 %v695
  %2442 = vmatprep.subr.bf16.mxu0 0
  %2443 = vmatpush1.bf16.msra.mxu0 %v696
  %2444 = vmatprep.subr.bf16.mxu0 0
  %2445 = vmatpush1.bf16.msra.mxu0 %v697
  %2446 = vmatprep.subr.bf16.mxu0 0
  %2447 = vmatpush1.bf16.msra.mxu0 %v698
  %2448 = vmatprep.subr.bf16.mxu0 0
  %2449 = vmatpush1.bf16.msra.mxu0 %v699
  %2450 = vmatprep.mubr.bf16.mxu0 %v2196
  %2451 = vmatmul.mubr.bf16.gmra.mrb[0].mxu0 %v2195
  %v2452 = vpop.f32.mrb[0].mxu0
  %v2453 = vadd.f32 %v2356, %v2452
  %v2454 = vpop.f32.mrb[0].mxu0
  %v2455 = vpop.f32.mrb[0].mxu0
  %v2456 = vadd.f32 %v2359, %v2455
  %v2457 = vpop.f32.mrb[0].mxu0
  %2458 = vmatprep.mubr.bf16.mxu0 %v2203
  %2459 = vmatmul.mubr.bf16.gmra.mrb[0].mxu0 %v2202
  %v2460 = vpop.f32.mrb[0].mxu0
  %v2461 = vadd.f32 %v2364, %v2460
  %v2462 = vpop.f32.mrb[0].mxu0
  %v2463 = vpop.f32.mrb[0].mxu0
  %v2464 = vadd.f32 %v2367, %v2463
  %v2465 = vpop.f32.mrb[0].mxu0
  %2466 = vmatprep.mubr.bf16.mxu0 %v2210
  %2467 = vmatmul.mubr.bf16.gmra.mrb[0].mxu0 %v2209
  %v2468 = vpop.f32.mrb[0].mxu0
  %v2469 = vadd.f32 %v2372, %v2468
  %v2470 = vpop.f32.mrb[0].mxu0
  %v2471 = vpop.f32.mrb[0].mxu0
  %v2472 = vadd.f32 %v2375, %v2471
  %v2473 = vpop.f32.mrb[0].mxu0
  %2474 = vmatprep.mubr.bf16.mxu0 %v2217
  %2475 = vmatmul.mubr.bf16.gmra.mrb[0].mxu0 %v2216
  %v2476 = vpop.f32.mrb[0].mxu0
  %v2477 = vadd.f32 %v2380, %v2476
  %v2478 = vpop.f32.mrb[0].mxu0
  %v2479 = vpop.f32.mrb[0].mxu0
  %v2480 = vadd.f32 %v2383, %v2479
  %v2481 = vpop.f32.mrb[0].mxu0
  %2482 = vmatprep.mubr.bf16.mxu0 %v2224
  %2483 = vmatmul.mubr.bf16.gmra.mrb[0].mxu0 %v2223
  %v2484 = vpop.f32.mrb[0].mxu0
  %v2485 = vadd.f32 %v2388, %v2484
  %v2486 = vpop.f32.mrb[0].mxu0
  %v2487 = vpop.f32.mrb[0].mxu0
  %v2488 = vadd.f32 %v2391, %v2487
  %v2489 = vpop.f32.mrb[0].mxu0
  %2490 = vmatprep.mubr.bf16.mxu0 %v2231
  %2491 = vmatmul.mubr.bf16.gmra.mrb[0].mxu0 %v2230
  %v2492 = vpop.f32.mrb[0].mxu0
  %v2493 = vadd.f32 %v2396, %v2492
  %v2494 = vpop.f32.mrb[0].mxu0
  %v2495 = vpop.f32.mrb[0].mxu0
  %v2496 = vadd.f32 %v2399, %v2495
  %v2497 = vpop.f32.mrb[0].mxu0
  %2498 = vmatprep.mubr.bf16.mxu0 %v2238
  %2499 = vmatmul.mubr.bf16.gmra.mrb[0].mxu0 %v2237
  %v2500 = vpop.f32.mrb[0].mxu0
  %v2501 = vadd.f32 %v2404, %v2500
  %v2502 = vpop.f32.mrb[0].mxu0
  %v2503 = vpop.f32.mrb[0].mxu0
  %v2504 = vadd.f32 %v2407, %v2503
  %v2505 = vpop.f32.mrb[0].mxu0
  %2506 = vmatprep.mubr.bf16.mxu0 %v2245
  %2507 = vmatmul.mubr.bf16.gmra.mrb[0].mxu0 %v2244
  %v2508 = vpop.f32.mrb[0].mxu0
  %v2509 = vadd.f32 %v2412, %v2508
  %v2510 = vpop.f32.mrb[0].mxu0
  %v2511 = vpop.f32.mrb[0].mxu0
  %v2512 = vadd.f32 %v2415, %v2511
  %v2513 = vpop.f32.mrb[0].mxu0
  %2514 = vdwg.mxu0
  %2515 = vmatprep.subr.bf16.mxu0 0
  %2516 = vmatpush1.bf16.msra.mxu0 %v700
  %2517 = vmatprep.subr.bf16.mxu0 0
  %2518 = vmatpush1.bf16.msra.mxu0 %v701
  %2519 = vmatprep.subr.bf16.mxu0 0
  %2520 = vmatpush1.bf16.msra.mxu0 %v702
  %2521 = vmatprep.subr.bf16.mxu0 0
  %2522 = vmatpush1.bf16.msra.mxu0 %v703
  %2523 = vmatprep.subr.bf16.mxu0 0
  %2524 = vmatpush1.bf16.msra.mxu0 %v704
  %2525 = vmatprep.subr.bf16.mxu0 0
  %2526 = vmatpush1.bf16.msra.mxu0 %v705
  %2527 = vmatprep.subr.bf16.mxu0 0
  %2528 = vmatpush1.bf16.msra.mxu0 %v706
  %2529 = vmatprep.subr.bf16.mxu0 0
  %2530 = vmatpush1.bf16.msra.mxu0 %v707
  %2531 = vmatprep.subr.bf16.mxu0 0
  %2532 = vmatpush1.bf16.msra.mxu0 %v708
  %2533 = vmatprep.subr.bf16.mxu0 0
  %2534 = vmatpush1.bf16.msra.mxu0 %v709
  %2535 = vmatprep.subr.bf16.mxu0 0
  %2536 = vmatpush1.bf16.msra.mxu0 %v710
  %2537 = vmatprep.subr.bf16.mxu0 0
  %2538 = vmatpush1.bf16.msra.mxu0 %v711
  %2539 = vmatprep.subr.bf16.mxu0 0
  %2540 = vmatpush1.bf16.msra.mxu0 %v712
  %2541 = vmatprep.subr.bf16.mxu0 0
  %2542 = vmatpush1.bf16.msra.mxu0 %v713
  %2543 = vmatprep.subr.bf16.mxu0 0
  %2544 = vmatpush1.bf16.msra.mxu0 %v714
  %2545 = vmatprep.subr.bf16.mxu0 0
  %2546 = vmatpush1.bf16.msra.mxu0 %v715
  %2547 = vmatprep.mubr.bf16.mxu0 %v2198
  %2548 = vmatmul.mubr.bf16.gmra.mrb[0].mxu0 %v2197
  %v2549 = vpop.f32.mrb[0].mxu0
  %v2550 = vadd.f32 %v2453, %v2549
  %v2551 = vpop.f32.mrb[0].mxu0
  %v2552 = vpop.f32.mrb[0].mxu0
  %v2553 = vadd.f32 %v2456, %v2552
  %v2554 = vpop.f32.mrb[0].mxu0
  %2555 = vmatprep.mubr.bf16.mxu0 %v2205
  %2556 = vmatmul.mubr.bf16.gmra.mrb[0].mxu0 %v2204
  %v2557 = vpop.f32.mrb[0].mxu0
  %v2558 = vadd.f32 %v2461, %v2557
  %v2559 = vpop.f32.mrb[0].mxu0
  %v2560 = vpop.f32.mrb[0].mxu0
  %v2561 = vadd.f32 %v2464, %v2560
  %v2562 = vpop.f32.mrb[0].mxu0
  %2563 = vmatprep.mubr.bf16.mxu0 %v2212
  %2564 = vmatmul.mubr.bf16.gmra.mrb[0].mxu0 %v2211
  %v2565 = vpop.f32.mrb[0].mxu0
  %v2566 = vadd.f32 %v2469, %v2565
  %v2567 = vpop.f32.mrb[0].mxu0
  %v2568 = vpop.f32.mrb[0].mxu0
  %v2569 = vadd.f32 %v2472, %v2568
  %v2570 = vpop.f32.mrb[0].mxu0
  %2571 = vmatprep.mubr.bf16.mxu0 %v2219
  %2572 = vmatmul.mubr.bf16.gmra.mrb[0].mxu0 %v2218
  %v2573 = vpop.f32.mrb[0].mxu0
  %v2574 = vadd.f32 %v2477, %v2573
  %v2575 = vpop.f32.mrb[0].mxu0
  %v2576 = vpop.f32.mrb[0].mxu0
  %v2577 = vadd.f32 %v2480, %v2576
  %v2578 = vpop.f32.mrb[0].mxu0
  %2579 = vmatprep.mubr.bf16.mxu0 %v2226
  %2580 = vmatmul.mubr.bf16.gmra.mrb[0].mxu0 %v2225
  %v2581 = vpop.f32.mrb[0].mxu0
  %v2582 = vadd.f32 %v2485, %v2581
  %v2583 = vpop.f32.mrb[0].mxu0
  %v2584 = vpop.f32.mrb[0].mxu0
  %v2585 = vadd.f32 %v2488, %v2584
  %v2586 = vpop.f32.mrb[0].mxu0
  %2587 = vmatprep.mubr.bf16.mxu0 %v2233
  %2588 = vmatmul.mubr.bf16.gmra.mrb[0].mxu0 %v2232
  %v2589 = vpop.f32.mrb[0].mxu0
  %v2590 = vadd.f32 %v2493, %v2589
  %v2591 = vpop.f32.mrb[0].mxu0
  %v2592 = vpop.f32.mrb[0].mxu0
  %v2593 = vadd.f32 %v2496, %v2592
  %v2594 = vpop.f32.mrb[0].mxu0
  %2595 = vmatprep.mubr.bf16.mxu0 %v2240
  %2596 = vmatmul.mubr.bf16.gmra.mrb[0].mxu0 %v2239
  %v2597 = vpop.f32.mrb[0].mxu0
  %v2598 = vadd.f32 %v2501, %v2597
  %v2599 = vpop.f32.mrb[0].mxu0
  %v2600 = vpop.f32.mrb[0].mxu0
  %v2601 = vadd.f32 %v2504, %v2600
  %v2602 = vpop.f32.mrb[0].mxu0
  %2603 = vmatprep.mubr.bf16.mxu0 %v2247
  %2604 = vmatmul.mubr.bf16.gmra.mrb[0].mxu0 %v2246
  %v2605 = vpop.f32.mrb[0].mxu0
  %v2606 = vadd.f32 %v2509, %v2605
  %v2607 = vpop.f32.mrb[0].mxu0
  %v2608 = vpop.f32.mrb[0].mxu0
  %v2609 = vadd.f32 %v2512, %v2608
  %v2610 = vpop.f32.mrb[0].mxu0
  %2611 = vdwg.mxu0
  %2612 = vmatprep.subr.bf16.mxu0 0
  %2613 = vmatpush1.bf16.msra.mxu0 %v716
  %2614 = vmatprep.subr.bf16.mxu0 0
  %2615 = vmatpush1.bf16.msra.mxu0 %v717
  %2616 = vmatprep.subr.bf16.mxu0 0
  %2617 = vmatpush1.bf16.msra.mxu0 0
  %2618 = vmatprep.subr.bf16.mxu0 0
  %2619 = vmatpush1.bf16.msra.mxu0 0
  %2620 = vmatprep.subr.bf16.mxu0 0
  %2621 = vmatpush1.bf16.msra.mxu0 0
  %2622 = vmatprep.subr.bf16.mxu0 0
  %2623 = vmatpush1.bf16.msra.mxu0 0
  %2624 = vmatprep.subr.bf16.mxu0 0
  %2625 = vmatpush1.bf16.msra.mxu0 0
  %2626 = vmatprep.subr.bf16.mxu0 0
  %2627 = vmatpush1.bf16.msra.mxu0 0
  %2628 = vmatprep.subr.bf16.mxu0 0
  %2629 = vmatpush1.bf16.msra.mxu0 0
  %2630 = vmatprep.subr.bf16.mxu0 0
  %2631 = vmatpush1.bf16.msra.mxu0 0
  %2632 = vmatprep.subr.bf16.mxu0 0
  %2633 = vmatpush1.bf16.msra.mxu0 0
  %2634 = vmatprep.subr.bf16.mxu0 0
  %2635 = vmatpush1.bf16.msra.mxu0 0
  %2636 = vmatprep.subr.bf16.mxu0 0
  %2637 = vmatpush1.bf16.msra.mxu0 0
  %2638 = vmatprep.subr.bf16.mxu0 0
  %2639 = vmatpush1.bf16.msra.mxu0 0
  %2640 = vmatprep.subr.bf16.mxu0 0
  %2641 = vmatpush1.bf16.msra.mxu0 0
  %2642 = vmatprep.subr.bf16.mxu0 0
  %2643 = vmatpush1.bf16.msra.mxu0 0
  %2644 = vmatprep.mubr.bf16.mxu0 0
  %2645 = vmatmul.mubr.bf16.gmra.mrb[0].mxu0 %v2298
  %v2646 = vpop.f32.mrb[0].mxu0
  %v2647 = vadd.f32 %v2550, %v2646
  %v2648 = vpop.f32.mrb[0].mxu0
  %v2649 = vpop.f32.mrb[0].mxu0
  %v2650 = vadd.f32 %v2553, %v2649
  %v2651 = vpop.f32.mrb[0].mxu0
  %2652 = vmatprep.mubr.bf16.mxu0 0
  %2653 = vmatmul.mubr.bf16.gmra.mrb[0].mxu0 %v2301
  %v2654 = vpop.f32.mrb[0].mxu0
  %v2655 = vadd.f32 %v2558, %v2654
  %v2656 = vpop.f32.mrb[0].mxu0
  %v2657 = vpop.f32.mrb[0].mxu0
  %v2658 = vadd.f32 %v2561, %v2657
  %v2659 = vpop.f32.mrb[0].mxu0
  %2660 = vmatprep.mubr.bf16.mxu0 0
  %2661 = vmatmul.mubr.bf16.gmra.mrb[0].mxu0 %v2304
  %v2662 = vpop.f32.mrb[0].mxu0
  %v2663 = vadd.f32 %v2566, %v2662
  %v2664 = vpop.f32.mrb[0].mxu0
  %v2665 = vpop.f32.mrb[0].mxu0
  %v2666 = vadd.f32 %v2569, %v2665
  %v2667 = vpop.f32.mrb[0].mxu0
  %2668 = vmatprep.mubr.bf16.mxu0 0
  %2669 = vmatmul.mubr.bf16.gmra.mrb[0].mxu0 %v2307
  %v2670 = vpop.f32.mrb[0].mxu0
  %v2671 = vadd.f32 %v2574, %v2670
  %v2672 = vpop.f32.mrb[0].mxu0
  %v2673 = vpop.f32.mrb[0].mxu0
  %v2674 = vadd.f32 %v2577, %v2673
  %v2675 = vpop.f32.mrb[0].mxu0
  %2676 = vmatprep.mubr.bf16.mxu0 0
  %2677 = vmatmul.mubr.bf16.gmra.mrb[0].mxu0 %v2310
  %v2678 = vpop.f32.mrb[0].mxu0
  %v2679 = vadd.f32 %v2582, %v2678
  %v2680 = vpop.f32.mrb[0].mxu0
  %v2681 = vpop.f32.mrb[0].mxu0
  %v2682 = vadd.f32 %v2585, %v2681
  %v2683 = vpop.f32.mrb[0].mxu0
  %2684 = vmatprep.mubr.bf16.mxu0 0
  %2685 = vmatmul.mubr.bf16.gmra.mrb[0].mxu0 %v2313
  %v2686 = vpop.f32.mrb[0].mxu0
  %v2687 = vadd.f32 %v2590, %v2686
  %v2688 = vpop.f32.mrb[0].mxu0
  %v2689 = vpop.f32.mrb[0].mxu0
  %v2690 = vadd.f32 %v2593, %v2689
  %v2691 = vpop.f32.mrb[0].mxu0
  %2692 = vmatprep.mubr.bf16.mxu0 0
  %2693 = vmatmul.mubr.bf16.gmra.mrb[0].mxu0 %v2316
  %v2694 = vpop.f32.mrb[0].mxu0
  %v2695 = vadd.f32 %v2598, %v2694
  %v2696 = vpop.f32.mrb[0].mxu0
  %v2697 = vpop.f32.mrb[0].mxu0
  %v2698 = vadd.f32 %v2601, %v2697
  %v2699 = vpop.f32.mrb[0].mxu0
  %2700 = vmatprep.mubr.bf16.mxu0 0
  %2701 = vmatmul.mubr.bf16.gmra.mrb[0].mxu0 %v2319
  %v2702 = vpop.f32.mrb[0].mxu0
  %v2703 = vadd.f32 %v2606, %v2702
  %v2704 = vpop.f32.mrb[0].mxu0
  %v2705 = vpop.f32.mrb[0].mxu0
  %v2706 = vadd.f32 %v2609, %v2705
  %v2707 = vpop.f32.mrb[0].mxu0
  %2708 = vdwg.mxu0
  %v2709 = vmax.f32 %v1937, %v2647
  %v2710 = vmax.f32 %v1938, %v2650
  %v2711 = vmax.f32 %v1939, %v2655
  %v2712 = vmax.f32 %v1940, %v2658
  %v2713 = vmax.f32 %v1941, %v2663
  %v2714 = vmax.f32 %v1942, %v2666
  %v2715 = vmax.f32 %v1943, %v2671
  %v2716 = vmax.f32 %v1944, %v2674
  %v2717 = vmax.f32 %v1945, %v2679
  %v2718 = vmax.f32 %v1946, %v2682
  %v2719 = vmax.f32 %v1947, %v2687
  %v2720 = vmax.f32 %v1948, %v2690
  %v2721 = vmax.f32 %v1949, %v2695
  %v2722 = vmax.f32 %v1950, %v2698
  %v2723 = vmax.f32 %v1951, %v2703
  %v2724 = vmax.f32 %v1952, %v2706
  %v2725 = vld [vmem:[%s3] sm:$0xff]
  %v2726 = vld [vmem:[%s3 + $0x8] sm:$0xff]
  %v2727 = vld [vmem:[%s3 + $0x10] sm:$0xff]
  %v2728 = vld [vmem:[%s3 + $0x18] sm:$0xf]
  %v2729 = vld [vmem:[%s3 + $0x1c] sm:$0xff]
  %v2730 = vld [vmem:[%s3 + $0x24] sm:$0xff]
  %v2731 = vld [vmem:[%s3 + $0x2c] sm:$0xff]
  %v2732 = vld [vmem:[%s3 + $0x34] sm:$0xf]
  %v2733 = vld [vmem:[%s3 + $0x38] sm:$0xff]
  %v2734 = vld [vmem:[%s3 + $0x40] sm:$0xff]
  %v2735 = vld [vmem:[%s3 + $0x48] sm:$0xff]
  %v2736 = vld [vmem:[%s3 + $0x50] sm:$0xf]
  %v2737 = vld [vmem:[%s3 + $0x54] sm:$0xff]
  %v2738 = vld [vmem:[%s3 + $0x5c] sm:$0xff]
  %v2739 = vld [vmem:[%s3 + $0x64] sm:$0xff]
  %v2740 = vld [vmem:[%s3 + $0x6c] sm:$0xf]
  %v2741 = vld [vmem:[%s3 + $0x70] sm:$0xff]
  %v2742 = vld [vmem:[%s3 + $0x78] sm:$0xff]
  %v2743 = vld [vmem:[%s3 + $0x80] sm:$0xff]
  %v2744 = vld [vmem:[%s3 + $0x88] sm:$0xf]
  %v2745 = vld [vmem:[%s3 + $0x8c] sm:$0xff]
  %v2746 = vld [vmem:[%s3 + $0x94] sm:$0xff]
  %v2747 = vld [vmem:[%s3 + $0x9c] sm:$0xff]
  %v2748 = vld [vmem:[%s3 + $0xa4] sm:$0xf]
  %v2749 = vld [vmem:[%s3 + $0xa8] sm:$0xff]
  %v2750 = vld [vmem:[%s3 + $0xb0] sm:$0xff]
  %v2751 = vld [vmem:[%s3 + $0xb8] sm:$0xff]
  %v2752 = vld [vmem:[%s3 + $0xc0] sm:$0xf]
  %v2753 = vld [vmem:[%s3 + $0xc4] sm:$0xff]
  %v2754 = vld [vmem:[%s3 + $0xcc] sm:$0xff]
  %v2755 = vld [vmem:[%s3 + $0xd4] sm:$0xff]
  %v2756 = vld [vmem:[%s3 + $0xdc] sm:$0xf]
  %v2757 = vld [vmem:[%s3 + $0xe0] sm:$0xff]
  %v2758 = vld [vmem:[%s3 + $0xe8] sm:$0xff]
  %v2759 = vld [vmem:[%s3 + $0xf0] sm:$0xff]
  %v2760 = vld [vmem:[%s3 + $0xf8] sm:$0xf]
  %v2761 = vld [vmem:[%s3 + $0xfc] sm:$0xff]
  %v2762 = vld [vmem:[%s3 + $0x104] sm:$0xff]
  %v2763 = vld [vmem:[%s3 + $0x10c] sm:$0xff]
  %v2764 = vld [vmem:[%s3 + $0x114] sm:$0xf]
  %v2765 = vld [vmem:[%s3 + $0x118] sm:$0xff]
  %v2766 = vld [vmem:[%s3 + $0x120] sm:$0xff]
  %v2767 = vld [vmem:[%s3 + $0x128] sm:$0xff]
  %v2768 = vld [vmem:[%s3 + $0x130] sm:$0xf]
  %v2769 = vld [vmem:[%s3 + $0x134] sm:$0xff]
  %v2770 = vld [vmem:[%s3 + $0x13c] sm:$0xff]
  %v2771 = vld [vmem:[%s3 + $0x144] sm:$0xff]
  %v2772 = vld [vmem:[%s3 + $0x14c] sm:$0xf]
  %v2773 = vld [vmem:[%s3 + $0x150] sm:$0xff]
  %v2774 = vld [vmem:[%s3 + $0x158] sm:$0xff]
  %v2775 = vld [vmem:[%s3 + $0x160] sm:$0xff]
  %v2776 = vld [vmem:[%s3 + $0x168] sm:$0xf]
  %v2777 = vld [vmem:[%s3 + $0x16c] sm:$0xff]
  %v2778 = vld [vmem:[%s3 + $0x174] sm:$0xff]
  %v2779 = vld [vmem:[%s3 + $0x17c] sm:$0xff]
  %v2780 = vld [vmem:[%s3 + $0x184] sm:$0xf]
  %v2781 = vld [vmem:[%s3 + $0x188] sm:$0xff]
  %v2782 = vld [vmem:[%s3 + $0x190] sm:$0xff]
  %v2783 = vld [vmem:[%s3 + $0x198] sm:$0xff]
  %v2784 = vld [vmem:[%s3 + $0x1a0] sm:$0xf]
  %v2785 = vld [vmem:[%s3 + $0x1a4] sm:$0xff]
  %v2786 = vld [vmem:[%s3 + $0x1ac] sm:$0xff]
  %v2787 = vld [vmem:[%s3 + $0x1b4] sm:$0xff]
  %v2788 = vld [vmem:[%s3 + $0x1bc] sm:$0xf]
  %v2853 = vunpack.c.l.b16 %v2725
  %v2854 = vunpack.c.h.b16 %v2725
  %v2855 = vunpack.c.l.b16 %v2726
  %v2856 = vunpack.c.h.b16 %v2726
  %v2857 = vunpack.c.l.b16 %v2727
  %v2858 = vunpack.c.h.b16 %v2727
  %v2859 = vunpack.c.l.b16 %v2728
  %v2860 = vunpack.c.l.b16 %v2729
  %v2861 = vunpack.c.h.b16 %v2729
  %v2862 = vunpack.c.l.b16 %v2730
  %v2863 = vunpack.c.h.b16 %v2730
  %v2864 = vunpack.c.l.b16 %v2731
  %v2865 = vunpack.c.h.b16 %v2731
  %v2866 = vunpack.c.l.b16 %v2732
  %v2867 = vunpack.c.l.b16 %v2733
  %v2868 = vunpack.c.h.b16 %v2733
  %v2869 = vunpack.c.l.b16 %v2734
  %v2870 = vunpack.c.h.b16 %v2734
  %v2871 = vunpack.c.l.b16 %v2735
  %v2872 = vunpack.c.h.b16 %v2735
  %v2873 = vunpack.c.l.b16 %v2736
  %v2874 = vunpack.c.l.b16 %v2737
  %v2875 = vunpack.c.h.b16 %v2737
  %v2876 = vunpack.c.l.b16 %v2738
  %v2877 = vunpack.c.h.b16 %v2738
  %v2878 = vunpack.c.l.b16 %v2739
  %v2879 = vunpack.c.h.b16 %v2739
  %v2880 = vunpack.c.l.b16 %v2740
  %v2881 = vunpack.c.l.b16 %v2741
  %v2882 = vunpack.c.h.b16 %v2741
  %v2883 = vunpack.c.l.b16 %v2742
  %v2884 = vunpack.c.h.b16 %v2742
  %v2885 = vunpack.c.l.b16 %v2743
  %v2886 = vunpack.c.h.b16 %v2743
  %v2887 = vunpack.c.l.b16 %v2744
  %v2888 = vunpack.c.l.b16 %v2745
  %v2889 = vunpack.c.h.b16 %v2745
  %v2890 = vunpack.c.l.b16 %v2746
  %v2891 = vunpack.c.h.b16 %v2746
  %v2892 = vunpack.c.l.b16 %v2747
  %v2893 = vunpack.c.h.b16 %v2747
  %v2894 = vunpack.c.l.b16 %v2748
  %v2895 = vunpack.c.l.b16 %v2749
  %v2896 = vunpack.c.h.b16 %v2749
  %v2897 = vunpack.c.l.b16 %v2750
  %v2898 = vunpack.c.h.b16 %v2750
  %v2899 = vunpack.c.l.b16 %v2751
  %v2900 = vunpack.c.h.b16 %v2751
  %v2901 = vunpack.c.l.b16 %v2752
  %v2902 = vunpack.c.l.b16 %v2753
  %v2903 = vunpack.c.h.b16 %v2753
  %v2904 = vunpack.c.l.b16 %v2754
  %v2905 = vunpack.c.h.b16 %v2754
  %v2906 = vunpack.c.l.b16 %v2755
  %v2907 = vunpack.c.h.b16 %v2755
  %v2908 = vunpack.c.l.b16 %v2756
  %v2909 = vunpack.c.l.b16 %v2757
  %v2910 = vunpack.c.h.b16 %v2757
  %v2911 = vunpack.c.l.b16 %v2758
  %v2912 = vunpack.c.h.b16 %v2758
  %v2913 = vunpack.c.l.b16 %v2759
  %v2914 = vunpack.c.h.b16 %v2759
  %v2915 = vunpack.c.l.b16 %v2760
  %v2916 = vunpack.c.l.b16 %v2761
  %v2917 = vunpack.c.h.b16 %v2761
  %v2918 = vunpack.c.l.b16 %v2762
  %v2919 = vunpack.c.h.b16 %v2762
  %v2920 = vunpack.c.l.b16 %v2763
  %v2921 = vunpack.c.h.b16 %v2763
  %v2922 = vunpack.c.l.b16 %v2764
  %v2923 = vunpack.c.l.b16 %v2765
  %v2924 = vunpack.c.h.b16 %v2765
  %v2925 = vunpack.c.l.b16 %v2766
  %v2926 = vunpack.c.h.b16 %v2766
  %v2927 = vunpack.c.l.b16 %v2767
  %v2928 = vunpack.c.h.b16 %v2767
  %v2929 = vunpack.c.l.b16 %v2768
  %v2930 = vunpack.c.l.b16 %v2769
  %v2931 = vunpack.c.h.b16 %v2769
  %v2932 = vunpack.c.l.b16 %v2770
  %v2933 = vunpack.c.h.b16 %v2770
  %v2934 = vunpack.c.l.b16 %v2771
  %v2935 = vunpack.c.h.b16 %v2771
  %v2936 = vunpack.c.l.b16 %v2772
  %v2937 = vunpack.c.l.b16 %v2773
  %v2938 = vunpack.c.h.b16 %v2773
  %v2939 = vunpack.c.l.b16 %v2774
  %v2940 = vunpack.c.h.b16 %v2774
  %v2941 = vunpack.c.l.b16 %v2775
  %v2942 = vunpack.c.h.b16 %v2775
  %v2943 = vunpack.c.l.b16 %v2776
  %v2944 = vunpack.c.l.b16 %v2777
  %v2945 = vunpack.c.h.b16 %v2777
  %v2946 = vunpack.c.l.b16 %v2778
  %v2947 = vunpack.c.h.b16 %v2778
  %v2948 = vunpack.c.l.b16 %v2779
  %v2949 = vunpack.c.h.b16 %v2779
  %v2950 = vunpack.c.l.b16 %v2780
  %v2951 = vunpack.c.l.b16 %v2781
  %v2952 = vunpack.c.h.b16 %v2781
  %v2953 = vunpack.c.l.b16 %v2782
  %v2954 = vunpack.c.h.b16 %v2782
  %v2955 = vunpack.c.l.b16 %v2783
  %v2956 = vunpack.c.h.b16 %v2783
  %v2957 = vunpack.c.l.b16 %v2784
  %v2958 = vunpack.c.l.b16 %v2785
  %v2959 = vunpack.c.h.b16 %v2785
  %v2960 = vunpack.c.l.b16 %v2786
  %v2961 = vunpack.c.h.b16 %v2786
  %v2962 = vunpack.c.l.b16 %v2787
  %v2963 = vunpack.c.h.b16 %v2787
  %v2964 = vunpack.c.l.b16 %v2788
  %v2965 = vpack.c.b16 %v2860, %v2853
  %v2966 = vpack.c.b16 %v2861, %v2854
  %v2967 = vpack.c.b16 %v2862, %v2855
  %v2968 = vpack.c.b16 %v2863, %v2856
  %v2969 = vpack.c.b16 %v2864, %v2857
  %v2970 = vpack.c.b16 %v2865, %v2858
  %v2971 = vpack.c.b16 %v2866, %v2859
  %v2972 = vpack.c.b16 %v2874, %v2867
  %v2973 = vpack.c.b16 %v2875, %v2868
  %v2974 = vpack.c.b16 %v2876, %v2869
  %v2975 = vpack.c.b16 %v2877, %v2870
  %v2976 = vpack.c.b16 %v2878, %v2871
  %v2977 = vpack.c.b16 %v2879, %v2872
  %v2978 = vpack.c.b16 %v2880, %v2873
  %v2979 = vpack.c.b16 %v2888, %v2881
  %v2980 = vpack.c.b16 %v2889, %v2882
  %v2981 = vpack.c.b16 %v2890, %v2883
  %v2982 = vpack.c.b16 %v2891, %v2884
  %v2983 = vpack.c.b16 %v2892, %v2885
  %v2984 = vpack.c.b16 %v2893, %v2886
  %v2985 = vpack.c.b16 %v2894, %v2887
  %v2986 = vpack.c.b16 %v2902, %v2895
  %v2987 = vpack.c.b16 %v2903, %v2896
  %v2988 = vpack.c.b16 %v2904, %v2897
  %v2989 = vpack.c.b16 %v2905, %v2898
  %v2990 = vpack.c.b16 %v2906, %v2899
  %v2991 = vpack.c.b16 %v2907, %v2900
  %v2992 = vpack.c.b16 %v2908, %v2901
  %v2993 = vpack.c.b16 %v2916, %v2909
  %v2994 = vpack.c.b16 %v2917, %v2910
  %v2995 = vpack.c.b16 %v2918, %v2911
  %v2996 = vpack.c.b16 %v2919, %v2912
  %v2997 = vpack.c.b16 %v2920, %v2913
  %v2998 = vpack.c.b16 %v2921, %v2914
  %v2999 = vpack.c.b16 %v2922, %v2915
  %v3000 = vpack.c.b16 %v2930, %v2923
  %v3001 = vpack.c.b16 %v2931, %v2924
  %v3002 = vpack.c.b16 %v2932, %v2925
  %v3003 = vpack.c.b16 %v2933, %v2926
  %v3004 = vpack.c.b16 %v2934, %v2927
  %v3005 = vpack.c.b16 %v2935, %v2928
  %v3006 = vpack.c.b16 %v2936, %v2929
  %v3007 = vpack.c.b16 %v2944, %v2937
  %v3008 = vpack.c.b16 %v2945, %v2938
  %v3009 = vpack.c.b16 %v2946, %v2939
  %v3010 = vpack.c.b16 %v2947, %v2940
  %v3011 = vpack.c.b16 %v2948, %v2941
  %v3012 = vpack.c.b16 %v2949, %v2942
  %v3013 = vpack.c.b16 %v2950, %v2943
  %v3014 = vpack.c.b16 %v2958, %v2951
  %v3015 = vpack.c.b16 %v2959, %v2952
  %v3016 = vpack.c.b16 %v2960, %v2953
  %v3017 = vpack.c.b16 %v2961, %v2954
  %v3018 = vpack.c.b16 %v2962, %v2955
  %v3019 = vpack.c.b16 %v2963, %v2956
  %v3020 = vpack.c.b16 %v2964, %v2957
  %v3070 = vsel %vm768, %v2971, 0
  %v3073 = vsel %vm768, %v2978, 0
  %v3076 = vsel %vm768, %v2985, 0
  %v3079 = vsel %vm768, %v2992, 0
  %v3082 = vsel %vm768, %v2999, 0
  %v3085 = vsel %vm768, %v3006, 0
  %v3088 = vsel %vm768, %v3013, 0
  %v3091 = vsel %vm768, %v3020, 0
  %3093 = vmatprep.subr.bf16.mxu0 0
  %3094 = vmatpush1.bf16.msra.mxu0 %v668
  %3095 = vmatprep.subr.bf16.mxu0 0
  %3096 = vmatpush1.bf16.msra.mxu0 %v669
  %3097 = vmatprep.subr.bf16.mxu0 0
  %3098 = vmatpush1.bf16.msra.mxu0 %v670
  %3099 = vmatprep.subr.bf16.mxu0 0
  %3100 = vmatpush1.bf16.msra.mxu0 %v671
  %3101 = vmatprep.subr.bf16.mxu0 0
  %3102 = vmatpush1.bf16.msra.mxu0 %v672
  %3103 = vmatprep.subr.bf16.mxu0 0
  %3104 = vmatpush1.bf16.msra.mxu0 %v673
  %3105 = vmatprep.subr.bf16.mxu0 0
  %3106 = vmatpush1.bf16.msra.mxu0 %v674
  %3107 = vmatprep.subr.bf16.mxu0 0
  %3108 = vmatpush1.bf16.msra.mxu0 %v675
  %3109 = vmatprep.subr.bf16.mxu0 0
  %3110 = vmatpush1.bf16.msra.mxu0 %v676
  %3111 = vmatprep.subr.bf16.mxu0 0
  %3112 = vmatpush1.bf16.msra.mxu0 %v677
  %3113 = vmatprep.subr.bf16.mxu0 0
  %3114 = vmatpush1.bf16.msra.mxu0 %v678
  %3115 = vmatprep.subr.bf16.mxu0 0
  %3116 = vmatpush1.bf16.msra.mxu0 %v679
  %3117 = vmatprep.subr.bf16.mxu0 0
  %3118 = vmatpush1.bf16.msra.mxu0 %v680
  %3119 = vmatprep.subr.bf16.mxu0 0
  %3120 = vmatpush1.bf16.msra.mxu0 %v681
  %3121 = vmatprep.subr.bf16.mxu0 0
  %3122 = vmatpush1.bf16.msra.mxu0 %v682
  %3123 = vmatprep.subr.bf16.mxu0 0
  %3124 = vmatpush1.bf16.msra.mxu0 %v683
  %3125 = vmatprep.mubr.bf16.mxu0 %v2966
  %3126 = vmatmul.mubr.bf16.gmra.mrb[0].mxu0 %v2965
  %v3127 = vpop.f32.mrb[0].mxu0
  %v3128 = vadd.f32 0.0, %v3127
  %v3129 = vpop.f32.mrb[0].mxu0
  %v3130 = vpop.f32.mrb[0].mxu0
  %v3131 = vadd.f32 0.0, %v3130
  %v3132 = vpop.f32.mrb[0].mxu0
  %3133 = vmatprep.mubr.bf16.mxu0 %v2973
  %3134 = vmatmul.mubr.bf16.gmra.mrb[0].mxu0 %v2972
  %v3135 = vpop.f32.mrb[0].mxu0
  %v3136 = vadd.f32 0.0, %v3135
  %v3137 = vpop.f32.mrb[0].mxu0
  %v3138 = vpop.f32.mrb[0].mxu0
  %v3139 = vadd.f32 0.0, %v3138
  %v3140 = vpop.f32.mrb[0].mxu0
  %3141 = vmatprep.mubr.bf16.mxu0 %v2980
  %3142 = vmatmul.mubr.bf16.gmra.mrb[0].mxu0 %v2979
  %v3143 = vpop.f32.mrb[0].mxu0
  %v3144 = vadd.f32 0.0, %v3143
  %v3145 = vpop.f32.mrb[0].mxu0
  %v3146 = vpop.f32.mrb[0].mxu0
  %v3147 = vadd.f32 0.0, %v3146
  %v3148 = vpop.f32.mrb[0].mxu0
  %3149 = vmatprep.mubr.bf16.mxu0 %v2987
  %3150 = vmatmul.mubr.bf16.gmra.mrb[0].mxu0 %v2986
  %v3151 = vpop.f32.mrb[0].mxu0
  %v3152 = vadd.f32 0.0, %v3151
  %v3153 = vpop.f32.mrb[0].mxu0
  %v3154 = vpop.f32.mrb[0].mxu0
  %v3155 = vadd.f32 0.0, %v3154
  %v3156 = vpop.f32.mrb[0].mxu0
  %3157 = vmatprep.mubr.bf16.mxu0 %v2994
  %3158 = vmatmul.mubr.bf16.gmra.mrb[0].mxu0 %v2993
  %v3159 = vpop.f32.mrb[0].mxu0
  %v3160 = vadd.f32 0.0, %v3159
  %v3161 = vpop.f32.mrb[0].mxu0
  %v3162 = vpop.f32.mrb[0].mxu0
  %v3163 = vadd.f32 0.0, %v3162
  %v3164 = vpop.f32.mrb[0].mxu0
  %3165 = vmatprep.mubr.bf16.mxu0 %v3001
  %3166 = vmatmul.mubr.bf16.gmra.mrb[0].mxu0 %v3000
  %v3167 = vpop.f32.mrb[0].mxu0
  %v3168 = vadd.f32 0.0, %v3167
  %v3169 = vpop.f32.mrb[0].mxu0
  %v3170 = vpop.f32.mrb[0].mxu0
  %v3171 = vadd.f32 0.0, %v3170
  %v3172 = vpop.f32.mrb[0].mxu0
  %3173 = vmatprep.mubr.bf16.mxu0 %v3008
  %3174 = vmatmul.mubr.bf16.gmra.mrb[0].mxu0 %v3007
  %v3175 = vpop.f32.mrb[0].mxu0
  %v3176 = vadd.f32 0.0, %v3175
  %v3177 = vpop.f32.mrb[0].mxu0
  %v3178 = vpop.f32.mrb[0].mxu0
  %v3179 = vadd.f32 0.0, %v3178
  %v3180 = vpop.f32.mrb[0].mxu0
  %3181 = vmatprep.mubr.bf16.mxu0 %v3015
  %3182 = vmatmul.mubr.bf16.gmra.mrb[0].mxu0 %v3014
  %v3183 = vpop.f32.mrb[0].mxu0
  %v3184 = vadd.f32 0.0, %v3183
  %v3185 = vpop.f32.mrb[0].mxu0
  %v3186 = vpop.f32.mrb[0].mxu0
  %v3187 = vadd.f32 0.0, %v3186
  %v3188 = vpop.f32.mrb[0].mxu0
  %3189 = vdwg.mxu0
  %3190 = vmatprep.subr.bf16.mxu0 0
  %3191 = vmatpush1.bf16.msra.mxu0 %v684
  %3192 = vmatprep.subr.bf16.mxu0 0
  %3193 = vmatpush1.bf16.msra.mxu0 %v685
  %3194 = vmatprep.subr.bf16.mxu0 0
  %3195 = vmatpush1.bf16.msra.mxu0 %v686
  %3196 = vmatprep.subr.bf16.mxu0 0
  %3197 = vmatpush1.bf16.msra.mxu0 %v687
  %3198 = vmatprep.subr.bf16.mxu0 0
  %3199 = vmatpush1.bf16.msra.mxu0 %v688
  %3200 = vmatprep.subr.bf16.mxu0 0
  %3201 = vmatpush1.bf16.msra.mxu0 %v689
  %3202 = vmatprep.subr.bf16.mxu0 0
  %3203 = vmatpush1.bf16.msra.mxu0 %v690
  %3204 = vmatprep.subr.bf16.mxu0 0
  %3205 = vmatpush1.bf16.msra.mxu0 %v691
  %3206 = vmatprep.subr.bf16.mxu0 0
  %3207 = vmatpush1.bf16.msra.mxu0 %v692
  %3208 = vmatprep.subr.bf16.mxu0 0
  %3209 = vmatpush1.bf16.msra.mxu0 %v693
  %3210 = vmatprep.subr.bf16.mxu0 0
  %3211 = vmatpush1.bf16.msra.mxu0 %v694
  %3212 = vmatprep.subr.bf16.mxu0 0
  %3213 = vmatpush1.bf16.msra.mxu0 %v695
  %3214 = vmatprep.subr.bf16.mxu0 0
  %3215 = vmatpush1.bf16.msra.mxu0 %v696
  %3216 = vmatprep.subr.bf16.mxu0 0
  %3217 = vmatpush1.bf16.msra.mxu0 %v697
  %3218 = vmatprep.subr.bf16.mxu0 0
  %3219 = vmatpush1.bf16.msra.mxu0 %v698
  %3220 = vmatprep.subr.bf16.mxu0 0
  %3221 = vmatpush1.bf16.msra.mxu0 %v699
  %3222 = vmatprep.mubr.bf16.mxu0 %v2968
  %3223 = vmatmul.mubr.bf16.gmra.mrb[0].mxu0 %v2967
  %v3224 = vpop.f32.mrb[0].mxu0
  %v3225 = vadd.f32 %v3128, %v3224
  %v3226 = vpop.f32.mrb[0].mxu0
  %v3227 = vpop.f32.mrb[0].mxu0
  %v3228 = vadd.f32 %v3131, %v3227
  %v3229 = vpop.f32.mrb[0].mxu0
  %3230 = vmatprep.mubr.bf16.mxu0 %v2975
  %3231 = vmatmul.mubr.bf16.gmra.mrb[0].mxu0 %v2974
  %v3232 = vpop.f32.mrb[0].mxu0
  %v3233 = vadd.f32 %v3136, %v3232
  %v3234 = vpop.f32.mrb[0].mxu0
  %v3235 = vpop.f32.mrb[0].mxu0
  %v3236 = vadd.f32 %v3139, %v3235
  %v3237 = vpop.f32.mrb[0].mxu0
  %3238 = vmatprep.mubr.bf16.mxu0 %v2982
  %3239 = vmatmul.mubr.bf16.gmra.mrb[0].mxu0 %v2981
  %v3240 = vpop.f32.mrb[0].mxu0
  %v3241 = vadd.f32 %v3144, %v3240
  %v3242 = vpop.f32.mrb[0].mxu0
  %v3243 = vpop.f32.mrb[0].mxu0
  %v3244 = vadd.f32 %v3147, %v3243
  %v3245 = vpop.f32.mrb[0].mxu0
  %3246 = vmatprep.mubr.bf16.mxu0 %v2989
  %3247 = vmatmul.mubr.bf16.gmra.mrb[0].mxu0 %v2988
  %v3248 = vpop.f32.mrb[0].mxu0
  %v3249 = vadd.f32 %v3152, %v3248
  %v3250 = vpop.f32.mrb[0].mxu0
  %v3251 = vpop.f32.mrb[0].mxu0
  %v3252 = vadd.f32 %v3155, %v3251
  %v3253 = vpop.f32.mrb[0].mxu0
  %3254 = vmatprep.mubr.bf16.mxu0 %v2996
  %3255 = vmatmul.mubr.bf16.gmra.mrb[0].mxu0 %v2995
  %v3256 = vpop.f32.mrb[0].mxu0
  %v3257 = vadd.f32 %v3160, %v3256
  %v3258 = vpop.f32.mrb[0].mxu0
  %v3259 = vpop.f32.mrb[0].mxu0
  %v3260 = vadd.f32 %v3163, %v3259
  %v3261 = vpop.f32.mrb[0].mxu0
  %3262 = vmatprep.mubr.bf16.mxu0 %v3003
  %3263 = vmatmul.mubr.bf16.gmra.mrb[0].mxu0 %v3002
  %v3264 = vpop.f32.mrb[0].mxu0
  %v3265 = vadd.f32 %v3168, %v3264
  %v3266 = vpop.f32.mrb[0].mxu0
  %v3267 = vpop.f32.mrb[0].mxu0
  %v3268 = vadd.f32 %v3171, %v3267
  %v3269 = vpop.f32.mrb[0].mxu0
  %3270 = vmatprep.mubr.bf16.mxu0 %v3010
  %3271 = vmatmul.mubr.bf16.gmra.mrb[0].mxu0 %v3009
  %v3272 = vpop.f32.mrb[0].mxu0
  %v3273 = vadd.f32 %v3176, %v3272
  %v3274 = vpop.f32.mrb[0].mxu0
  %v3275 = vpop.f32.mrb[0].mxu0
  %v3276 = vadd.f32 %v3179, %v3275
  %v3277 = vpop.f32.mrb[0].mxu0
  %3278 = vmatprep.mubr.bf16.mxu0 %v3017
  %3279 = vmatmul.mubr.bf16.gmra.mrb[0].mxu0 %v3016
  %v3280 = vpop.f32.mrb[0].mxu0
  %v3281 = vadd.f32 %v3184, %v3280
  %v3282 = vpop.f32.mrb[0].mxu0
  %v3283 = vpop.f32.mrb[0].mxu0
  %v3284 = vadd.f32 %v3187, %v3283
  %v3285 = vpop.f32.mrb[0].mxu0
  %3286 = vdwg.mxu0
  %3287 = vmatprep.subr.bf16.mxu0 0
  %3288 = vmatpush1.bf16.msra.mxu0 %v700
  %3289 = vmatprep.subr.bf16.mxu0 0
  %3290 = vmatpush1.bf16.msra.mxu0 %v701
  %3291 = vmatprep.subr.bf16.mxu0 0
  %3292 = vmatpush1.bf16.msra.mxu0 %v702
  %3293 = vmatprep.subr.bf16.mxu0 0
  %3294 = vmatpush1.bf16.msra.mxu0 %v703
  %3295 = vmatprep.subr.bf16.mxu0 0
  %3296 = vmatpush1.bf16.msra.mxu0 %v704
  %3297 = vmatprep.subr.bf16.mxu0 0
  %3298 = vmatpush1.bf16.msra.mxu0 %v705
  %3299 = vmatprep.subr.bf16.mxu0 0
  %3300 = vmatpush1.bf16.msra.mxu0 %v706
  %3301 = vmatprep.subr.bf16.mxu0 0
  %3302 = vmatpush1.bf16.msra.mxu0 %v707
  %3303 = vmatprep.subr.bf16.mxu0 0
  %3304 = vmatpush1.bf16.msra.mxu0 %v708
  %3305 = vmatprep.subr.bf16.mxu0 0
  %3306 = vmatpush1.bf16.msra.mxu0 %v709
  %3307 = vmatprep.subr.bf16.mxu0 0
  %3308 = vmatpush1.bf16.msra.mxu0 %v710
  %3309 = vmatprep.subr.bf16.mxu0 0
  %3310 = vmatpush1.bf16.msra.mxu0 %v711
  %3311 = vmatprep.subr.bf16.mxu0 0
  %3312 = vmatpush1.bf16.msra.mxu0 %v712
  %3313 = vmatprep.subr.bf16.mxu0 0
  %3314 = vmatpush1.bf16.msra.mxu0 %v713
  %3315 = vmatprep.subr.bf16.mxu0 0
  %3316 = vmatpush1.bf16.msra.mxu0 %v714
  %3317 = vmatprep.subr.bf16.mxu0 0
  %3318 = vmatpush1.bf16.msra.mxu0 %v715
  %3319 = vmatprep.mubr.bf16.mxu0 %v2970
  %3320 = vmatmul.mubr.bf16.gmra.mrb[0].mxu0 %v2969
  %v3321 = vpop.f32.mrb[0].mxu0
  %v3322 = vadd.f32 %v3225, %v3321
  %v3323 = vpop.f32.mrb[0].mxu0
  %v3324 = vpop.f32.mrb[0].mxu0
  %v3325 = vadd.f32 %v3228, %v3324
  %v3326 = vpop.f32.mrb[0].mxu0
  %3327 = vmatprep.mubr.bf16.mxu0 %v2977
  %3328 = vmatmul.mubr.bf16.gmra.mrb[0].mxu0 %v2976
  %v3329 = vpop.f32.mrb[0].mxu0
  %v3330 = vadd.f32 %v3233, %v3329
  %v3331 = vpop.f32.mrb[0].mxu0
  %v3332 = vpop.f32.mrb[0].mxu0
  %v3333 = vadd.f32 %v3236, %v3332
  %v3334 = vpop.f32.mrb[0].mxu0
  %3335 = vmatprep.mubr.bf16.mxu0 %v2984
  %3336 = vmatmul.mubr.bf16.gmra.mrb[0].mxu0 %v2983
  %v3337 = vpop.f32.mrb[0].mxu0
  %v3338 = vadd.f32 %v3241, %v3337
  %v3339 = vpop.f32.mrb[0].mxu0
  %v3340 = vpop.f32.mrb[0].mxu0
  %v3341 = vadd.f32 %v3244, %v3340
  %v3342 = vpop.f32.mrb[0].mxu0
  %3343 = vmatprep.mubr.bf16.mxu0 %v2991
  %3344 = vmatmul.mubr.bf16.gmra.mrb[0].mxu0 %v2990
  %v3345 = vpop.f32.mrb[0].mxu0
  %v3346 = vadd.f32 %v3249, %v3345
  %v3347 = vpop.f32.mrb[0].mxu0
  %v3348 = vpop.f32.mrb[0].mxu0
  %v3349 = vadd.f32 %v3252, %v3348
  %v3350 = vpop.f32.mrb[0].mxu0
  %3351 = vmatprep.mubr.bf16.mxu0 %v2998
  %3352 = vmatmul.mubr.bf16.gmra.mrb[0].mxu0 %v2997
  %v3353 = vpop.f32.mrb[0].mxu0
  %v3354 = vadd.f32 %v3257, %v3353
  %v3355 = vpop.f32.mrb[0].mxu0
  %v3356 = vpop.f32.mrb[0].mxu0
  %v3357 = vadd.f32 %v3260, %v3356
  %v3358 = vpop.f32.mrb[0].mxu0
  %3359 = vmatprep.mubr.bf16.mxu0 %v3005
  %3360 = vmatmul.mubr.bf16.gmra.mrb[0].mxu0 %v3004
  %v3361 = vpop.f32.mrb[0].mxu0
  %v3362 = vadd.f32 %v3265, %v3361
  %v3363 = vpop.f32.mrb[0].mxu0
  %v3364 = vpop.f32.mrb[0].mxu0
  %v3365 = vadd.f32 %v3268, %v3364
  %v3366 = vpop.f32.mrb[0].mxu0
  %3367 = vmatprep.mubr.bf16.mxu0 %v3012
  %3368 = vmatmul.mubr.bf16.gmra.mrb[0].mxu0 %v3011
  %v3369 = vpop.f32.mrb[0].mxu0
  %v3370 = vadd.f32 %v3273, %v3369
  %v3371 = vpop.f32.mrb[0].mxu0
  %v3372 = vpop.f32.mrb[0].mxu0
  %v3373 = vadd.f32 %v3276, %v3372
  %v3374 = vpop.f32.mrb[0].mxu0
  %3375 = vmatprep.mubr.bf16.mxu0 %v3019
  %3376 = vmatmul.mubr.bf16.gmra.mrb[0].mxu0 %v3018
  %v3377 = vpop.f32.mrb[0].mxu0
  %v3378 = vadd.f32 %v3281, %v3377
  %v3379 = vpop.f32.mrb[0].mxu0
  %v3380 = vpop.f32.mrb[0].mxu0
  %v3381 = vadd.f32 %v3284, %v3380
  %v3382 = vpop.f32.mrb[0].mxu0
  %3383 = vdwg.mxu0
  %3384 = vmatprep.subr.bf16.mxu0 0
  %3385 = vmatpush1.bf16.msra.mxu0 %v716
  %3386 = vmatprep.subr.bf16.mxu0 0
  %3387 = vmatpush1.bf16.msra.mxu0 %v717
  %3388 = vmatprep.subr.bf16.mxu0 0
  %3389 = vmatpush1.bf16.msra.mxu0 0
  %3390 = vmatprep.subr.bf16.mxu0 0
  %3391 = vmatpush1.bf16.msra.mxu0 0
  %3392 = vmatprep.subr.bf16.mxu0 0
  %3393 = vmatpush1.bf16.msra.mxu0 0
  %3394 = vmatprep.subr.bf16.mxu0 0
  %3395 = vmatpush1.bf16.msra.mxu0 0
  %3396 = vmatprep.subr.bf16.mxu0 0
  %3397 = vmatpush1.bf16.msra.mxu0 0
  %3398 = vmatprep.subr.bf16.mxu0 0
  %3399 = vmatpush1.bf16.msra.mxu0 0
  %3400 = vmatprep.subr.bf16.mxu0 0
  %3401 = vmatpush1.bf16.msra.mxu0 0
  %3402 = vmatprep.subr.bf16.mxu0 0
  %3403 = vmatpush1.bf16.msra.mxu0 0
  %3404 = vmatprep.subr.bf16.mxu0 0
  %3405 = vmatpush1.bf16.msra.mxu0 0
  %3406 = vmatprep.subr.bf16.mxu0 0
  %3407 = vmatpush1.bf16.msra.mxu0 0
  %3408 = vmatprep.subr.bf16.mxu0 0
  %3409 = vmatpush1.bf16.msra.mxu0 0
  %3410 = vmatprep.subr.bf16.mxu0 0
  %3411 = vmatpush1.bf16.msra.mxu0 0
  %3412 = vmatprep.subr.bf16.mxu0 0
  %3413 = vmatpush1.bf16.msra.mxu0 0
  %3414 = vmatprep.subr.bf16.mxu0 0
  %3415 = vmatpush1.bf16.msra.mxu0 0
  %3416 = vmatprep.mubr.bf16.mxu0 0
  %3417 = vmatmul.mubr.bf16.gmra.mrb[0].mxu0 %v3070
  %v3418 = vpop.f32.mrb[0].mxu0
  %v3419 = vadd.f32 %v3322, %v3418
  %v3420 = vpop.f32.mrb[0].mxu0
  %v3421 = vpop.f32.mrb[0].mxu0
  %v3422 = vadd.f32 %v3325, %v3421
  %v3423 = vpop.f32.mrb[0].mxu0
  %3424 = vmatprep.mubr.bf16.mxu0 0
  %3425 = vmatmul.mubr.bf16.gmra.mrb[0].mxu0 %v3073
  %v3426 = vpop.f32.mrb[0].mxu0
  %v3427 = vadd.f32 %v3330, %v3426
  %v3428 = vpop.f32.mrb[0].mxu0
  %v3429 = vpop.f32.mrb[0].mxu0
  %v3430 = vadd.f32 %v3333, %v3429
  %v3431 = vpop.f32.mrb[0].mxu0
  %3432 = vmatprep.mubr.bf16.mxu0 0
  %3433 = vmatmul.mubr.bf16.gmra.mrb[0].mxu0 %v3076
  %v3434 = vpop.f32.mrb[0].mxu0
  %v3435 = vadd.f32 %v3338, %v3434
  %v3436 = vpop.f32.mrb[0].mxu0
  %v3437 = vpop.f32.mrb[0].mxu0
  %v3438 = vadd.f32 %v3341, %v3437
  %v3439 = vpop.f32.mrb[0].mxu0
  %3440 = vmatprep.mubr.bf16.mxu0 0
  %3441 = vmatmul.mubr.bf16.gmra.mrb[0].mxu0 %v3079
  %v3442 = vpop.f32.mrb[0].mxu0
  %v3443 = vadd.f32 %v3346, %v3442
  %v3444 = vpop.f32.mrb[0].mxu0
  %v3445 = vpop.f32.mrb[0].mxu0
  %v3446 = vadd.f32 %v3349, %v3445
  %v3447 = vpop.f32.mrb[0].mxu0
  %3448 = vmatprep.mubr.bf16.mxu0 0
  %3449 = vmatmul.mubr.bf16.gmra.mrb[0].mxu0 %v3082
  %v3450 = vpop.f32.mrb[0].mxu0
  %v3451 = vadd.f32 %v3354, %v3450
  %v3452 = vpop.f32.mrb[0].mxu0
  %v3453 = vpop.f32.mrb[0].mxu0
  %v3454 = vadd.f32 %v3357, %v3453
  %v3455 = vpop.f32.mrb[0].mxu0
  %3456 = vmatprep.mubr.bf16.mxu0 0
  %3457 = vmatmul.mubr.bf16.gmra.mrb[0].mxu0 %v3085
  %v3458 = vpop.f32.mrb[0].mxu0
  %v3459 = vadd.f32 %v3362, %v3458
  %v3460 = vpop.f32.mrb[0].mxu0
  %v3461 = vpop.f32.mrb[0].mxu0
  %v3462 = vadd.f32 %v3365, %v3461
  %v3463 = vpop.f32.mrb[0].mxu0
  %3464 = vmatprep.mubr.bf16.mxu0 0
  %3465 = vmatmul.mubr.bf16.gmra.mrb[0].mxu0 %v3088
  %v3466 = vpop.f32.mrb[0].mxu0
  %v3467 = vadd.f32 %v3370, %v3466
  %v3468 = vpop.f32.mrb[0].mxu0
  %v3469 = vpop.f32.mrb[0].mxu0
  %v3470 = vadd.f32 %v3373, %v3469
  %v3471 = vpop.f32.mrb[0].mxu0
  %3472 = vmatprep.mubr.bf16.mxu0 0
  %3473 = vmatmul.mubr.bf16.gmra.mrb[0].mxu0 %v3091
  %v3474 = vpop.f32.mrb[0].mxu0
  %v3475 = vadd.f32 %v3378, %v3474
  %v3476 = vpop.f32.mrb[0].mxu0
  %v3477 = vpop.f32.mrb[0].mxu0
  %v3478 = vadd.f32 %v3381, %v3477
  %v3479 = vpop.f32.mrb[0].mxu0
  %3480 = vdwg.mxu0
  %v3481 = vmax.f32 %v2709, %v3419
  %v3482 = vmax.f32 %v2710, %v3422
  %v3483 = vmax.f32 %v2711, %v3427
  %v3484 = vmax.f32 %v2712, %v3430
  %v3485 = vmax.f32 %v2713, %v3435
  %v3486 = vmax.f32 %v2714, %v3438
  %v3487 = vmax.f32 %v2715, %v3443
  %v3488 = vmax.f32 %v2716, %v3446
  %v3489 = vmax.f32 %v2717, %v3451
  %v3490 = vmax.f32 %v2718, %v3454
  %v3491 = vmax.f32 %v2719, %v3459
  %v3492 = vmax.f32 %v2720, %v3462
  %v3493 = vmax.f32 %v2721, %v3467
  %v3494 = vmax.f32 %v2722, %v3470
  %v3495 = vmax.f32 %v2723, %v3475
  %v3496 = vmax.f32 %v2724, %v3478
  %v3497 = vld [vmem:[%s5] sm:$0x1]
  %v3499 = vlaneseq
  %v3500 = vshrl.u32 %v3499, 7
  %v3501 = vsub.s32 0, %v3500
  %v3502 = vrot.slane %v3497, %v3501
  %v3504 = vadd.f32 %v3481, %v3502
  %v3505 = vadd.f32 %v3482, %v3502
  %v3506 = vadd.f32 %v3483, %v3502
  %v3507 = vadd.f32 %v3484, %v3502
  %v3508 = vadd.f32 %v3485, %v3502
  %v3509 = vadd.f32 %v3486, %v3502
  %v3510 = vadd.f32 %v3487, %v3502
  %v3511 = vadd.f32 %v3488, %v3502
  %v3512 = vadd.f32 %v3489, %v3502
  %v3513 = vadd.f32 %v3490, %v3502
  %v3514 = vadd.f32 %v3491, %v3502
  %v3515 = vadd.f32 %v3492, %v3502
  %v3516 = vadd.f32 %v3493, %v3502
  %v3517 = vadd.f32 %v3494, %v3502
  %v3518 = vadd.f32 %v3495, %v3502
  %v3519 = vadd.f32 %v3496, %v3502
  %v3520 = vpack.c.bf16 %v3505, %v3504
  %v3521 = vpack.c.bf16 %v3507, %v3506
  %v3522 = vpack.c.bf16 %v3509, %v3508
  %v3523 = vpack.c.bf16 %v3511, %v3510
  %v3524 = vpack.c.bf16 %v3513, %v3512
  %v3525 = vpack.c.bf16 %v3515, %v3514
  %v3526 = vpack.c.bf16 %v3517, %v3516
  %v3527 = vpack.c.bf16 %v3519, %v3518
  %v3536 = vunpack.c.l.b16 %v3520
  %v3537 = vunpack.c.h.b16 %v3520
  %v3538 = vunpack.c.l.b16 %v3521
  %v3539 = vunpack.c.h.b16 %v3521
  %v3540 = vunpack.c.l.b16 %v3522
  %v3541 = vunpack.c.h.b16 %v3522
  %v3542 = vunpack.c.l.b16 %v3523
  %v3543 = vunpack.c.h.b16 %v3523
  %v3544 = vunpack.c.l.b16 %v3524
  %v3545 = vunpack.c.h.b16 %v3524
  %v3546 = vunpack.c.l.b16 %v3525
  %v3547 = vunpack.c.h.b16 %v3525
  %v3548 = vunpack.c.l.b16 %v3526
  %v3549 = vunpack.c.h.b16 %v3526
  %v3550 = vunpack.c.l.b16 %v3527
  %v3551 = vunpack.c.h.b16 %v3527
  %v3552 = vpack.c.b16 %v3536, %v3536
  %v3553 = vpack.c.b16 %v3537, %v3537
  %v3554 = vpack.c.b16 %v3538, %v3538
  %v3555 = vpack.c.b16 %v3539, %v3539
  %v3556 = vpack.c.b16 %v3540, %v3540
  %v3557 = vpack.c.b16 %v3541, %v3541
  %v3558 = vpack.c.b16 %v3542, %v3542
  %v3559 = vpack.c.b16 %v3543, %v3543
  %v3560 = vpack.c.b16 %v3544, %v3544
  %v3561 = vpack.c.b16 %v3545, %v3545
  %v3562 = vpack.c.b16 %v3546, %v3546
  %v3563 = vpack.c.b16 %v3547, %v3547
  %v3564 = vpack.c.b16 %v3548, %v3548
  %v3565 = vpack.c.b16 %v3549, %v3549
  %v3566 = vpack.c.b16 %v3550, %v3550
  %v3567 = vpack.c.b16 %v3551, %v3551
  %vm3584 = vcmask 257024
  %3585 = vst.msk [vmem:[%s6] sm:$0xf] %vm3584, %v3552
  %3586 = vst.msk [vmem:[%s6 + $0x4] sm:$0xf] %vm3584, %v3553
  %3587 = vst.msk [vmem:[%s6 + $0x8] sm:$0xf] %vm3584, %v3554
  %3588 = vst.msk [vmem:[%s6 + $0xc] sm:$0xf] %vm3584, %v3555
  %3589 = vst.msk [vmem:[%s6 + $0x10] sm:$0xf] %vm3584, %v3556
  %3590 = vst.msk [vmem:[%s6 + $0x14] sm:$0xf] %vm3584, %v3557
  %3591 = vst.msk [vmem:[%s6 + $0x18] sm:$0xf] %vm3584, %v3558
  %3592 = vst.msk [vmem:[%s6 + $0x1c] sm:$0xf] %vm3584, %v3559
  %3593 = vst.msk [vmem:[%s6 + $0x20] sm:$0xf] %vm3584, %v3560
  %3594 = vst.msk [vmem:[%s6 + $0x24] sm:$0xf] %vm3584, %v3561
  %3595 = vst.msk [vmem:[%s6 + $0x28] sm:$0xf] %vm3584, %v3562
  %3596 = vst.msk [vmem:[%s6 + $0x2c] sm:$0xf] %vm3584, %v3563
  %3597 = vst.msk [vmem:[%s6 + $0x30] sm:$0xf] %vm3584, %v3564
  %3598 = vst.msk [vmem:[%s6 + $0x34] sm:$0xf] %vm3584, %v3565
  %3599 = vst.msk [vmem:[%s6 + $0x38] sm:$0xf] %vm3584, %v3566
  %3600 = vst.msk [vmem:[%s6 + $0x3c] sm:$0xf] %vm3584, %v3567
  // Predicated region
  $region26: #{yuzhao_forward.5} parent=0 // pred_check
    _
  $region27: #{yuzhao_forward.5} parent=0 // pred_check_branch
    %3602 = sbr.rel (0) target = $region29
  $region28: #{yuzhao_forward.5} parent=0 // pred_region
    _
  $region29: #{yuzhao_forward.5} parent=0 // pred_fallthru
    _
  // Predicated region
  $region30: #{yuzhao_forward.5} parent=0 // pred_check
    _
  $region31: #{yuzhao_forward.5} parent=0 // pred_check_branch
    %3604 = sbr.rel (0) target = $region33
  $region32: #{yuzhao_forward.5} parent=0 // pred_region
    _
  $region33: #{yuzhao_forward.5} parent=0 // pred_fallthru
    _

// kernel: yuzhao_forward.6
$region0: #{yuzhao_forward.6}
  #allocation0 [shape = 'u32[]', space=smem, size = 0x4, offset = 0x4, fixed_abs, tag = 'smem constant byte address 0x4 - core index']
  #allocation1 [shape = 'u32[144,128]{1,0:T(1,128)}', space=vmem, size = 0x12000, scoped, tag = 'internal scratch']
  %s0 = inlined_call_operand.vmem [shape: bf16[2,16,800], index: 0, kind: input, shape index: {}]
  %s1 = inlined_call_operand.vmem [shape: bf16[2,16,800], index: 1, kind: input, shape index: {}]
  %s2 = inlined_call_operand.vmem [shape: bf16[2,16,800], index: 2, kind: input, shape index: {}]
  %s3 = inlined_call_operand.vmem [shape: bf16[2,16,800], index: 3, kind: input, shape index: {}]
  %s4 = inlined_call_operand.vmem [shape: bf16[800,64], index: 4, kind: input, shape index: {}]
  %s5 = inlined_call_operand.vmem [shape: f32[1,64], index: 5, kind: input, shape index: {}]
  %s6 = inlined_call_operand.vmem [shape: bf16[2,16,64], index: 6, kind: output, shape index: {}]
  %s7 = sld [smem:[#allocation0]]
  $region34: #{yuzhao_forward.6} parent=0
    _
  %s9 = ssub.s32 1, %s7
  %s10 = scalar_select 0, %s9, %s7
  // Predicated region
  $region2: #{yuzhao_forward.6} parent=0 // pred_check
    _
  $region3: #{yuzhao_forward.6} parent=0 // pred_check_branch
    %12 = sbr.rel (0) target = $region5
  $region4: #{yuzhao_forward.6} parent=0 // pred_region
    _
  $region5: #{yuzhao_forward.6} parent=0 // pred_fallthru
    _
  // Predicated region
  $region6: #{yuzhao_forward.6} parent=0 // pred_check
    _
  $region7: #{yuzhao_forward.6} parent=0 // pred_check_branch
    %14 = sbr.rel (0) target = $region9
  $region8: #{yuzhao_forward.6} parent=0 // pred_region
    _
  $region9: #{yuzhao_forward.6} parent=0 // pred_fallthru
    _
  // Predicated region
  $region10: #{yuzhao_forward.6} parent=0 // pred_check
    _
  $region11: #{yuzhao_forward.6} parent=0 // pred_check_branch
    %16 = sbr.rel (0) target = $region13
  $region12: #{yuzhao_forward.6} parent=0 // pred_region
    _
  $region13: #{yuzhao_forward.6} parent=0 // pred_fallthru
    _
  // Predicated region
  $region14: #{yuzhao_forward.6} parent=0 // pred_check
    _
  $region15: #{yuzhao_forward.6} parent=0 // pred_check_branch
    %18 = sbr.rel (0) target = $region17
  $region16: #{yuzhao_forward.6} parent=0 // pred_region
    _
  $region17: #{yuzhao_forward.6} parent=0 // pred_fallthru
    _
  // Predicated region
  $region18: #{yuzhao_forward.6} parent=0 // pred_check
    _
  $region19: #{yuzhao_forward.6} parent=0 // pred_check_branch
    %20 = sbr.rel (0) target = $region21
  $region20: #{yuzhao_forward.6} parent=0 // pred_region
    _
  $region21: #{yuzhao_forward.6} parent=0 // pred_fallthru
    _
  // Predicated region
  $region22: #{yuzhao_forward.6} parent=0 // pred_check
    _
  $region23: #{yuzhao_forward.6} parent=0 // pred_check_branch
    %22 = sbr.rel (0) target = $region25
  $region24: #{yuzhao_forward.6} parent=0 // pred_region
    _
  $region25: #{yuzhao_forward.6} parent=0 // pred_fallthru
    _
  %v24 = vld [vmem:[%s4] sm:$0xf]
  %v25 = vld [vmem:[%s4 + $0x4] sm:$0xf]
  %v26 = vld [vmem:[%s4 + $0x8] sm:$0xf]
  %v27 = vld [vmem:[%s4 + $0xc] sm:$0xf]
  %v28 = vld [vmem:[%s4 + $0x10] sm:$0xf]
  %v29 = vld [vmem:[%s4 + $0x14] sm:$0xf]
  %v30 = vld [vmem:[%s4 + $0x18] sm:$0xf]
  %v31 = vld [vmem:[%s4 + $0x1c] sm:$0xf]
  %v32 = vld [vmem:[%s4 + $0x20] sm:$0xf]
  %v33 = vld [vmem:[%s4 + $0x24] sm:$0xf]
  %v34 = vld [vmem:[%s4 + $0x28] sm:$0xf]
  %v35 = vld [vmem:[%s4 + $0x2c] sm:$0xf]
  %v36 = vld [vmem:[%s4 + $0x30] sm:$0xf]
  %v37 = vld [vmem:[%s4 + $0x34] sm:$0xf]
  %v38 = vld [vmem:[%s4 + $0x38] sm:$0xf]
  %v39 = vld [vmem:[%s4 + $0x3c] sm:$0xf]
  %v40 = vld [vmem:[%s4 + $0x40] sm:$0xf]
  %v41 = vld [vmem:[%s4 + $0x44] sm:$0xf]
  %v42 = vld [vmem:[%s4 + $0x48] sm:$0xf]
  %v43 = vld [vmem:[%s4 + $0x4c] sm:$0xf]
  %v44 = vld [vmem:[%s4 + $0x50] sm:$0xf]
  %v45 = vld [vmem:[%s4 + $0x54] sm:$0xf]
  %v46 = vld [vmem:[%s4 + $0x58] sm:$0xf]
  %v47 = vld [vmem:[%s4 + $0x5c] sm:$0xf]
  %v48 = vld [vmem:[%s4 + $0x60] sm:$0xf]
  %v49 = vld [vmem:[%s4 + $0x64] sm:$0xf]
  %v50 = vld [vmem:[%s4 + $0x68] sm:$0xf]
  %v51 = vld [vmem:[%s4 + $0x6c] sm:$0xf]
  %v52 = vld [vmem:[%s4 + $0x70] sm:$0xf]
  %v53 = vld [vmem:[%s4 + $0x74] sm:$0xf]
  %v54 = vld [vmem:[%s4 + $0x78] sm:$0xf]
  %v55 = vld [vmem:[%s4 + $0x7c] sm:$0xf]
  %v56 = vld [vmem:[%s4 + $0x80] sm:$0xf]
  %v57 = vld [vmem:[%s4 + $0x84] sm:$0xf]
  %v58 = vld [vmem:[%s4 + $0x88] sm:$0xf]
  %v59 = vld [vmem:[%s4 + $0x8c] sm:$0xf]
  %v60 = vld [vmem:[%s4 + $0x90] sm:$0xf]
  %v61 = vld [vmem:[%s4 + $0x94] sm:$0xf]
  %v62 = vld [vmem:[%s4 + $0x98] sm:$0xf]
  %v63 = vld [vmem:[%s4 + $0x9c] sm:$0xf]
  %v64 = vld [vmem:[%s4 + $0xa0] sm:$0xf]
  %v65 = vld [vmem:[%s4 + $0xa4] sm:$0xf]
  %v66 = vld [vmem:[%s4 + $0xa8] sm:$0xf]
  %v67 = vld [vmem:[%s4 + $0xac] sm:$0xf]
  %v68 = vld [vmem:[%s4 + $0xb0] sm:$0xf]
  %v69 = vld [vmem:[%s4 + $0xb4] sm:$0xf]
  %v70 = vld [vmem:[%s4 + $0xb8] sm:$0xf]
  %v71 = vld [vmem:[%s4 + $0xbc] sm:$0xf]
  %v72 = vld [vmem:[%s4 + $0xc0] sm:$0xf]
  %v73 = vld [vmem:[%s4 + $0xc4] sm:$0xf]
  %v74 = vld [vmem:[%s4 + $0xc8] sm:$0xf]
  %v75 = vld [vmem:[%s4 + $0xcc] sm:$0xf]
  %v76 = vld [vmem:[%s4 + $0xd0] sm:$0xf]
  %v77 = vld [vmem:[%s4 + $0xd4] sm:$0xf]
  %v78 = vld [vmem:[%s4 + $0xd8] sm:$0xf]
  %v79 = vld [vmem:[%s4 + $0xdc] sm:$0xf]
  %v80 = vld [vmem:[%s4 + $0xe0] sm:$0xf]
  %v81 = vld [vmem:[%s4 + $0xe4] sm:$0xf]
  %v82 = vld [vmem:[%s4 + $0xe8] sm:$0xf]
  %v83 = vld [vmem:[%s4 + $0xec] sm:$0xf]
  %v84 = vld [vmem:[%s4 + $0xf0] sm:$0xf]
  %v85 = vld [vmem:[%s4 + $0xf4] sm:$0xf]
  %v86 = vld [vmem:[%s4 + $0xf8] sm:$0xf]
  %v87 = vld [vmem:[%s4 + $0xfc] sm:$0xf]
  %v88 = vld [vmem:[%s4 + $0x100] sm:$0xf]
  %v89 = vld [vmem:[%s4 + $0x104] sm:$0xf]
  %v90 = vld [vmem:[%s4 + $0x108] sm:$0xf]
  %v91 = vld [vmem:[%s4 + $0x10c] sm:$0xf]
  %v92 = vld [vmem:[%s4 + $0x110] sm:$0xf]
  %v93 = vld [vmem:[%s4 + $0x114] sm:$0xf]
  %v94 = vld [vmem:[%s4 + $0x118] sm:$0xf]
  %v95 = vld [vmem:[%s4 + $0x11c] sm:$0xf]
  %v96 = vld [vmem:[%s4 + $0x120] sm:$0xf]
  %v97 = vld [vmem:[%s4 + $0x124] sm:$0xf]
  %v98 = vld [vmem:[%s4 + $0x128] sm:$0xf]
  %v99 = vld [vmem:[%s4 + $0x12c] sm:$0xf]
  %v100 = vld [vmem:[%s4 + $0x130] sm:$0xf]
  %v101 = vld [vmem:[%s4 + $0x134] sm:$0xf]
  %v102 = vld [vmem:[%s4 + $0x138] sm:$0xf]
  %v103 = vld [vmem:[%s4 + $0x13c] sm:$0xf]
  %v104 = vld [vmem:[%s4 + $0x140] sm:$0xf]
  %v105 = vld [vmem:[%s4 + $0x144] sm:$0xf]
  %v106 = vld [vmem:[%s4 + $0x148] sm:$0xf]
  %v107 = vld [vmem:[%s4 + $0x14c] sm:$0xf]
  %v108 = vld [vmem:[%s4 + $0x150] sm:$0xf]
  %v109 = vld [vmem:[%s4 + $0x154] sm:$0xf]
  %v110 = vld [vmem:[%s4 + $0x158] sm:$0xf]
  %v111 = vld [vmem:[%s4 + $0x15c] sm:$0xf]
  %v112 = vld [vmem:[%s4 + $0x160] sm:$0xf]
  %v113 = vld [vmem:[%s4 + $0x164] sm:$0xf]
  %v114 = vld [vmem:[%s4 + $0x168] sm:$0xf]
  %v115 = vld [vmem:[%s4 + $0x16c] sm:$0xf]
  %v116 = vld [vmem:[%s4 + $0x170] sm:$0xf]
  %v117 = vld [vmem:[%s4 + $0x174] sm:$0xf]
  %v118 = vld [vmem:[%s4 + $0x178] sm:$0xf]
  %v119 = vld [vmem:[%s4 + $0x17c] sm:$0xf]
  %v120 = vld [vmem:[%s4 + $0x180] sm:$0xf]
  %v121 = vld [vmem:[%s4 + $0x184] sm:$0xf]
  %v122 = vld [vmem:[%s4 + $0x188] sm:$0xf]
  %v123 = vld [vmem:[%s4 + $0x18c] sm:$0xf]
  %v124 = vld [vmem:[%s0] sm:$0xff]
  %v125 = vld [vmem:[%s0 + $0x8] sm:$0xff]
  %v126 = vld [vmem:[%s0 + $0x10] sm:$0xff]
  %v127 = vld [vmem:[%s0 + $0x18] sm:$0xf]
  %v128 = vld [vmem:[%s0 + $0x1c] sm:$0xff]
  %v129 = vld [vmem:[%s0 + $0x24] sm:$0xff]
  %v130 = vld [vmem:[%s0 + $0x2c] sm:$0xff]
  %v131 = vld [vmem:[%s0 + $0x34] sm:$0xf]
  %v132 = vld [vmem:[%s0 + $0x38] sm:$0xff]
  %v133 = vld [vmem:[%s0 + $0x40] sm:$0xff]
  %v134 = vld [vmem:[%s0 + $0x48] sm:$0xff]
  %v135 = vld [vmem:[%s0 + $0x50] sm:$0xf]
  %v136 = vld [vmem:[%s0 + $0x54] sm:$0xff]
  %v137 = vld [vmem:[%s0 + $0x5c] sm:$0xff]
  %v138 = vld [vmem:[%s0 + $0x64] sm:$0xff]
  %v139 = vld [vmem:[%s0 + $0x6c] sm:$0xf]
  %v156 = vunpack.c.l.b16 %v124
  %v157 = vunpack.c.h.b16 %v124
  %v158 = vunpack.c.l.b16 %v125
  %v159 = vunpack.c.h.b16 %v125
  %v160 = vunpack.c.l.b16 %v126
  %v161 = vunpack.c.h.b16 %v126
  %v162 = vunpack.c.l.b16 %v127
  %v163 = vunpack.c.l.b16 %v128
  %v164 = vunpack.c.h.b16 %v128
  %v165 = vunpack.c.l.b16 %v129
  %v166 = vunpack.c.h.b16 %v129
  %v167 = vunpack.c.l.b16 %v130
  %v168 = vunpack.c.h.b16 %v130
  %v169 = vunpack.c.l.b16 %v131
  %v170 = vunpack.c.l.b16 %v132
  %v171 = vunpack.c.h.b16 %v132
  %v172 = vunpack.c.l.b16 %v133
  %v173 = vunpack.c.h.b16 %v133
  %v174 = vunpack.c.l.b16 %v134
  %v175 = vunpack.c.h.b16 %v134
  %v176 = vunpack.c.l.b16 %v135
  %v177 = vunpack.c.l.b16 %v136
  %v178 = vunpack.c.h.b16 %v136
  %v179 = vunpack.c.l.b16 %v137
  %v180 = vunpack.c.h.b16 %v137
  %v181 = vunpack.c.l.b16 %v138
  %v182 = vunpack.c.h.b16 %v138
  %v183 = vunpack.c.l.b16 %v139
  %v184 = vpack.c.b16 %v163, %v156
  %v185 = vpack.c.b16 %v164, %v157
  %v186 = vpack.c.b16 %v165, %v158
  %v187 = vpack.c.b16 %v166, %v159
  %v188 = vpack.c.b16 %v167, %v160
  %v189 = vpack.c.b16 %v168, %v161
  %v190 = vpack.c.b16 %v169, %v162
  %v191 = vpack.c.b16 %v177, %v170
  %v192 = vpack.c.b16 %v178, %v171
  %v193 = vpack.c.b16 %v179, %v172
  %v194 = vpack.c.b16 %v180, %v173
  %v195 = vpack.c.b16 %v181, %v174
  %v196 = vpack.c.b16 %v182, %v175
  %v197 = vpack.c.b16 %v183, %v176
  %v310 = vunpack.c.l.b16 %v24
  %v311 = vunpack.c.l.b16 %v25
  %v312 = vunpack.c.l.b16 %v26
  %v313 = vunpack.c.l.b16 %v27
  %v314 = vunpack.c.l.b16 %v28
  %v315 = vunpack.c.l.b16 %v29
  %v316 = vunpack.c.l.b16 %v30
  %v317 = vunpack.c.l.b16 %v31
  %v318 = vunpack.c.l.b16 %v32
  %v319 = vunpack.c.l.b16 %v33
  %v320 = vunpack.c.l.b16 %v34
  %v321 = vunpack.c.l.b16 %v35
  %v322 = vunpack.c.l.b16 %v36
  %v323 = vunpack.c.l.b16 %v37
  %v324 = vunpack.c.l.b16 %v38
  %v325 = vunpack.c.l.b16 %v39
  %v326 = vunpack.c.l.b16 %v40
  %v327 = vunpack.c.l.b16 %v41
  %v328 = vunpack.c.l.b16 %v42
  %v329 = vunpack.c.l.b16 %v43
  %v330 = vunpack.c.l.b16 %v44
  %v331 = vunpack.c.l.b16 %v45
  %v332 = vunpack.c.l.b16 %v46
  %v333 = vunpack.c.l.b16 %v47
  %v334 = vunpack.c.l.b16 %v48
  %v335 = vunpack.c.l.b16 %v49
  %v336 = vunpack.c.l.b16 %v50
  %v337 = vunpack.c.l.b16 %v51
  %v338 = vunpack.c.l.b16 %v52
  %v339 = vunpack.c.l.b16 %v53
  %v340 = vunpack.c.l.b16 %v54
  %v341 = vunpack.c.l.b16 %v55
  %v342 = vunpack.c.l.b16 %v56
  %v343 = vunpack.c.l.b16 %v57
  %v344 = vunpack.c.l.b16 %v58
  %v345 = vunpack.c.l.b16 %v59
  %v346 = vunpack.c.l.b16 %v60
  %v347 = vunpack.c.l.b16 %v61
  %v348 = vunpack.c.l.b16 %v62
  %v349 = vunpack.c.l.b16 %v63
  %v350 = vunpack.c.l.b16 %v64
  %v351 = vunpack.c.l.b16 %v65
  %v352 = vunpack.c.l.b16 %v66
  %v353 = vunpack.c.l.b16 %v67
  %v354 = vunpack.c.l.b16 %v68
  %v355 = vunpack.c.l.b16 %v69
  %v356 = vunpack.c.l.b16 %v70
  %v357 = vunpack.c.l.b16 %v71
  %v358 = vunpack.c.l.b16 %v72
  %v359 = vunpack.c.l.b16 %v73
  %v360 = vunpack.c.l.b16 %v74
  %v361 = vunpack.c.l.b16 %v75
  %v362 = vunpack.c.l.b16 %v76
  %v363 = vunpack.c.l.b16 %v77
  %v364 = vunpack.c.l.b16 %v78
  %v365 = vunpack.c.l.b16 %v79
  %v366 = vunpack.c.l.b16 %v80
  %v367 = vunpack.c.l.b16 %v81
  %v368 = vunpack.c.l.b16 %v82
  %v369 = vunpack.c.l.b16 %v83
  %v370 = vunpack.c.l.b16 %v84
  %v371 = vunpack.c.l.b16 %v85
  %v372 = vunpack.c.l.b16 %v86
  %v373 = vunpack.c.l.b16 %v87
  %v374 = vunpack.c.l.b16 %v88
  %v375 = vunpack.c.l.b16 %v89
  %v376 = vunpack.c.l.b16 %v90
  %v377 = vunpack.c.l.b16 %v91
  %v378 = vunpack.c.l.b16 %v92
  %v379 = vunpack.c.l.b16 %v93
  %v380 = vunpack.c.l.b16 %v94
  %v381 = vunpack.c.l.b16 %v95
  %v382 = vunpack.c.l.b16 %v96
  %v383 = vunpack.c.l.b16 %v97
  %v384 = vunpack.c.l.b16 %v98
  %v385 = vunpack.c.l.b16 %v99
  %v386 = vunpack.c.l.b16 %v100
  %v387 = vunpack.c.l.b16 %v101
  %v388 = vunpack.c.l.b16 %v102
  %v389 = vunpack.c.l.b16 %v103
  %v390 = vunpack.c.l.b16 %v104
  %v391 = vunpack.c.l.b16 %v105
  %v392 = vunpack.c.l.b16 %v106
  %v393 = vunpack.c.l.b16 %v107
  %v394 = vunpack.c.l.b16 %v108
  %v395 = vunpack.c.l.b16 %v109
  %v396 = vunpack.c.l.b16 %v110
  %v397 = vunpack.c.l.b16 %v111
  %v398 = vunpack.c.l.b16 %v112
  %v399 = vunpack.c.l.b16 %v113
  %v400 = vunpack.c.l.b16 %v114
  %v401 = vunpack.c.l.b16 %v115
  %v402 = vunpack.c.l.b16 %v116
  %v403 = vunpack.c.l.b16 %v117
  %v404 = vunpack.c.l.b16 %v118
  %v405 = vunpack.c.l.b16 %v119
  %v406 = vunpack.c.l.b16 %v120
  %v407 = vunpack.c.l.b16 %v121
  %v408 = vunpack.c.l.b16 %v122
  %v409 = vunpack.c.l.b16 %v123
  %v410 = vpack.c.b16 %v311, %v310
  %v411 = vpack.c.b16 %v313, %v312
  %v412 = vpack.c.b16 %v315, %v314
  %v413 = vpack.c.b16 %v317, %v316
  %v414 = vpack.c.b16 %v319, %v318
  %v415 = vpack.c.b16 %v321, %v320
  %v416 = vpack.c.b16 %v323, %v322
  %v417 = vpack.c.b16 %v325, %v324
  %v418 = vpack.c.b16 %v327, %v326
  %v419 = vpack.c.b16 %v329, %v328
  %v420 = vpack.c.b16 %v331, %v330
  %v421 = vpack.c.b16 %v333, %v332
  %v422 = vpack.c.b16 %v335, %v334
  %v423 = vpack.c.b16 %v337, %v336
  %v424 = vpack.c.b16 %v339, %v338
  %v425 = vpack.c.b16 %v341, %v340
  %v426 = vpack.c.b16 %v343, %v342
  %v427 = vpack.c.b16 %v345, %v344
  %v428 = vpack.c.b16 %v347, %v346
  %v429 = vpack.c.b16 %v349, %v348
  %v430 = vpack.c.b16 %v351, %v350
  %v431 = vpack.c.b16 %v353, %v352
  %v432 = vpack.c.b16 %v355, %v354
  %v433 = vpack.c.b16 %v357, %v356
  %v434 = vpack.c.b16 %v359, %v358
  %v435 = vpack.c.b16 %v361, %v360
  %v436 = vpack.c.b16 %v363, %v362
  %v437 = vpack.c.b16 %v365, %v364
  %v438 = vpack.c.b16 %v367, %v366
  %v439 = vpack.c.b16 %v369, %v368
  %v440 = vpack.c.b16 %v371, %v370
  %v441 = vpack.c.b16 %v373, %v372
  %v442 = vpack.c.b16 %v375, %v374
  %v443 = vpack.c.b16 %v377, %v376
  %v444 = vpack.c.b16 %v379, %v378
  %v445 = vpack.c.b16 %v381, %v380
  %v446 = vpack.c.b16 %v383, %v382
  %v447 = vpack.c.b16 %v385, %v384
  %v448 = vpack.c.b16 %v387, %v386
  %v449 = vpack.c.b16 %v389, %v388
  %v450 = vpack.c.b16 %v391, %v390
  %v451 = vpack.c.b16 %v393, %v392
  %v452 = vpack.c.b16 %v395, %v394
  %v453 = vpack.c.b16 %v397, %v396
  %v454 = vpack.c.b16 %v399, %v398
  %v455 = vpack.c.b16 %v401, %v400
  %v456 = vpack.c.b16 %v403, %v402
  %v457 = vpack.c.b16 %v405, %v404
  %v458 = vpack.c.b16 %v407, %v406
  %v459 = vpack.c.b16 %v409, %v408
  %vm510 = vcmask 261120
  %v512 = vsel %vm510, %v190, 0
  %v515 = vsel %vm510, %v197, 0
  %517 = vmatprep.subr.bf16.mxu0 0
  %518 = vmatpush1.bf16.msra.mxu0 %v410
  %519 = vmatprep.subr.bf16.mxu0 0
  %520 = vmatpush1.bf16.msra.mxu0 %v411
  %521 = vmatprep.subr.bf16.mxu0 0
  %522 = vmatpush1.bf16.msra.mxu0 %v412
  %523 = vmatprep.subr.bf16.mxu0 0
  %524 = vmatpush1.bf16.msra.mxu0 %v413
  %525 = vmatprep.subr.bf16.mxu0 0
  %526 = vmatpush1.bf16.msra.mxu0 %v414
  %527 = vmatprep.subr.bf16.mxu0 0
  %528 = vmatpush1.bf16.msra.mxu0 %v415
  %529 = vmatprep.subr.bf16.mxu0 0
  %530 = vmatpush1.bf16.msra.mxu0 %v416
  %531 = vmatprep.subr.bf16.mxu0 0
  %532 = vmatpush1.bf16.msra.mxu0 %v417
  %533 = vmatprep.subr.bf16.mxu0 0
  %534 = vmatpush1.bf16.msra.mxu0 %v418
  %535 = vmatprep.subr.bf16.mxu0 0
  %536 = vmatpush1.bf16.msra.mxu0 %v419
  %537 = vmatprep.subr.bf16.mxu0 0
  %538 = vmatpush1.bf16.msra.mxu0 %v420
  %539 = vmatprep.subr.bf16.mxu0 0
  %540 = vmatpush1.bf16.msra.mxu0 %v421
  %541 = vmatprep.subr.bf16.mxu0 0
  %542 = vmatpush1.bf16.msra.mxu0 %v422
  %543 = vmatprep.subr.bf16.mxu0 0
  %544 = vmatpush1.bf16.msra.mxu0 %v423
  %545 = vmatprep.subr.bf16.mxu0 0
  %546 = vmatpush1.bf16.msra.mxu0 %v424
  %547 = vmatprep.subr.bf16.mxu0 0
  %548 = vmatpush1.bf16.msra.mxu0 %v425
  %549 = vmatprep.mubr.bf16.mxu0 %v185
  %550 = vmatmul.mubr.bf16.gmra.mrb[0].mxu0 %v184
  %v551 = vpop.f32.mrb[0].mxu0
  %v552 = vadd.f32 0.0, %v551
  %v553 = vpop.f32.mrb[0].mxu0
  %v554 = vpop.f32.mrb[0].mxu0
  %v555 = vadd.f32 0.0, %v554
  %v556 = vpop.f32.mrb[0].mxu0
  %557 = vmatprep.mubr.bf16.mxu0 %v192
  %558 = vmatmul.mubr.bf16.gmra.mrb[0].mxu0 %v191
  %v559 = vpop.f32.mrb[0].mxu0
  %v560 = vadd.f32 0.0, %v559
  %v561 = vpop.f32.mrb[0].mxu0
  %v562 = vpop.f32.mrb[0].mxu0
  %v563 = vadd.f32 0.0, %v562
  %v564 = vpop.f32.mrb[0].mxu0
  %565 = vdwg.mxu0
  %566 = vmatprep.subr.bf16.mxu0 0
  %567 = vmatpush1.bf16.msra.mxu0 %v426
  %568 = vmatprep.subr.bf16.mxu0 0
  %569 = vmatpush1.bf16.msra.mxu0 %v427
  %570 = vmatprep.subr.bf16.mxu0 0
  %571 = vmatpush1.bf16.msra.mxu0 %v428
  %572 = vmatprep.subr.bf16.mxu0 0
  %573 = vmatpush1.bf16.msra.mxu0 %v429
  %574 = vmatprep.subr.bf16.mxu0 0
  %575 = vmatpush1.bf16.msra.mxu0 %v430
  %576 = vmatprep.subr.bf16.mxu0 0
  %577 = vmatpush1.bf16.msra.mxu0 %v431
  %578 = vmatprep.subr.bf16.mxu0 0
  %579 = vmatpush1.bf16.msra.mxu0 %v432
  %580 = vmatprep.subr.bf16.mxu0 0
  %581 = vmatpush1.bf16.msra.mxu0 %v433
  %582 = vmatprep.subr.bf16.mxu0 0
  %583 = vmatpush1.bf16.msra.mxu0 %v434
  %584 = vmatprep.subr.bf16.mxu0 0
  %585 = vmatpush1.bf16.msra.mxu0 %v435
  %586 = vmatprep.subr.bf16.mxu0 0
  %587 = vmatpush1.bf16.msra.mxu0 %v436
  %588 = vmatprep.subr.bf16.mxu0 0
  %589 = vmatpush1.bf16.msra.mxu0 %v437
  %590 = vmatprep.subr.bf16.mxu0 0
  %591 = vmatpush1.bf16.msra.mxu0 %v438
  %592 = vmatprep.subr.bf16.mxu0 0
  %593 = vmatpush1.bf16.msra.mxu0 %v439
  %594 = vmatprep.subr.bf16.mxu0 0
  %595 = vmatpush1.bf16.msra.mxu0 %v440
  %596 = vmatprep.subr.bf16.mxu0 0
  %597 = vmatpush1.bf16.msra.mxu0 %v441
  %598 = vmatprep.mubr.bf16.mxu0 %v187
  %599 = vmatmul.mubr.bf16.gmra.mrb[0].mxu0 %v186
  %v600 = vpop.f32.mrb[0].mxu0
  %v601 = vadd.f32 %v552, %v600
  %v602 = vpop.f32.mrb[0].mxu0
  %v603 = vpop.f32.mrb[0].mxu0
  %v604 = vadd.f32 %v555, %v603
  %v605 = vpop.f32.mrb[0].mxu0
  %606 = vmatprep.mubr.bf16.mxu0 %v194
  %607 = vmatmul.mubr.bf16.gmra.mrb[0].mxu0 %v193
  %v608 = vpop.f32.mrb[0].mxu0
  %v609 = vadd.f32 %v560, %v608
  %v610 = vpop.f32.mrb[0].mxu0
  %v611 = vpop.f32.mrb[0].mxu0
  %v612 = vadd.f32 %v563, %v611
  %v613 = vpop.f32.mrb[0].mxu0
  %614 = vdwg.mxu0
  %615 = vmatprep.subr.bf16.mxu0 0
  %616 = vmatpush1.bf16.msra.mxu0 %v442
  %617 = vmatprep.subr.bf16.mxu0 0
  %618 = vmatpush1.bf16.msra.mxu0 %v443
  %619 = vmatprep.subr.bf16.mxu0 0
  %620 = vmatpush1.bf16.msra.mxu0 %v444
  %621 = vmatprep.subr.bf16.mxu0 0
  %622 = vmatpush1.bf16.msra.mxu0 %v445
  %623 = vmatprep.subr.bf16.mxu0 0
  %624 = vmatpush1.bf16.msra.mxu0 %v446
  %625 = vmatprep.subr.bf16.mxu0 0
  %626 = vmatpush1.bf16.msra.mxu0 %v447
  %627 = vmatprep.subr.bf16.mxu0 0
  %628 = vmatpush1.bf16.msra.mxu0 %v448
  %629 = vmatprep.subr.bf16.mxu0 0
  %630 = vmatpush1.bf16.msra.mxu0 %v449
  %631 = vmatprep.subr.bf16.mxu0 0
  %632 = vmatpush1.bf16.msra.mxu0 %v450
  %633 = vmatprep.subr.bf16.mxu0 0
  %634 = vmatpush1.bf16.msra.mxu0 %v451
  %635 = vmatprep.subr.bf16.mxu0 0
  %636 = vmatpush1.bf16.msra.mxu0 %v452
  %637 = vmatprep.subr.bf16.mxu0 0
  %638 = vmatpush1.bf16.msra.mxu0 %v453
  %639 = vmatprep.subr.bf16.mxu0 0
  %640 = vmatpush1.bf16.msra.mxu0 %v454
  %641 = vmatprep.subr.bf16.mxu0 0
  %642 = vmatpush1.bf16.msra.mxu0 %v455
  %643 = vmatprep.subr.bf16.mxu0 0
  %644 = vmatpush1.bf16.msra.mxu0 %v456
  %645 = vmatprep.subr.bf16.mxu0 0
  %646 = vmatpush1.bf16.msra.mxu0 %v457
  %647 = vmatprep.mubr.bf16.mxu0 %v189
  %648 = vmatmul.mubr.bf16.gmra.mrb[0].mxu0 %v188
  %v649 = vpop.f32.mrb[0].mxu0
  %v650 = vadd.f32 %v601, %v649
  %v651 = vpop.f32.mrb[0].mxu0
  %v652 = vpop.f32.mrb[0].mxu0
  %v653 = vadd.f32 %v604, %v652
  %v654 = vpop.f32.mrb[0].mxu0
  %655 = vmatprep.mubr.bf16.mxu0 %v196
  %656 = vmatmul.mubr.bf16.gmra.mrb[0].mxu0 %v195
  %v657 = vpop.f32.mrb[0].mxu0
  %v658 = vadd.f32 %v609, %v657
  %v659 = vpop.f32.mrb[0].mxu0
  %v660 = vpop.f32.mrb[0].mxu0
  %v661 = vadd.f32 %v612, %v660
  %v662 = vpop.f32.mrb[0].mxu0
  %663 = vdwg.mxu0
  %664 = vmatprep.subr.bf16.mxu0 0
  %665 = vmatpush1.bf16.msra.mxu0 %v458
  %666 = vmatprep.subr.bf16.mxu0 0
  %667 = vmatpush1.bf16.msra.mxu0 %v459
  %668 = vmatprep.subr.bf16.mxu0 0
  %669 = vmatpush1.bf16.msra.mxu0 0
  %670 = vmatprep.subr.bf16.mxu0 0
  %671 = vmatpush1.bf16.msra.mxu0 0
  %672 = vmatprep.subr.bf16.mxu0 0
  %673 = vmatpush1.bf16.msra.mxu0 0
  %674 = vmatprep.subr.bf16.mxu0 0
  %675 = vmatpush1.bf16.msra.mxu0 0
  %676 = vmatprep.subr.bf16.mxu0 0
  %677 = vmatpush1.bf16.msra.mxu0 0
  %678 = vmatprep.subr.bf16.mxu0 0
  %679 = vmatpush1.bf16.msra.mxu0 0
  %680 = vmatprep.subr.bf16.mxu0 0
  %681 = vmatpush1.bf16.msra.mxu0 0
  %682 = vmatprep.subr.bf16.mxu0 0
  %683 = vmatpush1.bf16.msra.mxu0 0
  %684 = vmatprep.subr.bf16.mxu0 0
  %685 = vmatpush1.bf16.msra.mxu0 0
  %686 = vmatprep.subr.bf16.mxu0 0
  %687 = vmatpush1.bf16.msra.mxu0 0
  %688 = vmatprep.subr.bf16.mxu0 0
  %689 = vmatpush1.bf16.msra.mxu0 0
  %690 = vmatprep.subr.bf16.mxu0 0
  %691 = vmatpush1.bf16.msra.mxu0 0
  %692 = vmatprep.subr.bf16.mxu0 0
  %693 = vmatpush1.bf16.msra.mxu0 0
  %694 = vmatprep.subr.bf16.mxu0 0
  %695 = vmatpush1.bf16.msra.mxu0 0
  %696 = vmatprep.mubr.bf16.mxu0 0
  %697 = vmatmul.mubr.bf16.gmra.mrb[0].mxu0 %v512
  %v698 = vpop.f32.mrb[0].mxu0
  %v699 = vadd.f32 %v650, %v698
  %v700 = vpop.f32.mrb[0].mxu0
  %v701 = vpop.f32.mrb[0].mxu0
  %v702 = vadd.f32 %v653, %v701
  %v703 = vpop.f32.mrb[0].mxu0
  %704 = vmatprep.mubr.bf16.mxu0 0
  %705 = vmatmul.mubr.bf16.gmra.mrb[0].mxu0 %v515
  %v706 = vpop.f32.mrb[0].mxu0
  %v707 = vadd.f32 %v658, %v706
  %v708 = vpop.f32.mrb[0].mxu0
  %v709 = vpop.f32.mrb[0].mxu0
  %v710 = vadd.f32 %v661, %v709
  %v711 = vpop.f32.mrb[0].mxu0
  %712 = vdwg.mxu0
  %v713 = vld [vmem:[%s1] sm:$0xff]
  %v714 = vld [vmem:[%s1 + $0x8] sm:$0xff]
  %v715 = vld [vmem:[%s1 + $0x10] sm:$0xff]
  %v716 = vld [vmem:[%s1 + $0x18] sm:$0xf]
  %v717 = vld [vmem:[%s1 + $0x1c] sm:$0xff]
  %v718 = vld [vmem:[%s1 + $0x24] sm:$0xff]
  %v719 = vld [vmem:[%s1 + $0x2c] sm:$0xff]
  %v720 = vld [vmem:[%s1 + $0x34] sm:$0xf]
  %v721 = vld [vmem:[%s1 + $0x38] sm:$0xff]
  %v722 = vld [vmem:[%s1 + $0x40] sm:$0xff]
  %v723 = vld [vmem:[%s1 + $0x48] sm:$0xff]
  %v724 = vld [vmem:[%s1 + $0x50] sm:$0xf]
  %v725 = vld [vmem:[%s1 + $0x54] sm:$0xff]
  %v726 = vld [vmem:[%s1 + $0x5c] sm:$0xff]
  %v727 = vld [vmem:[%s1 + $0x64] sm:$0xff]
  %v728 = vld [vmem:[%s1 + $0x6c] sm:$0xf]
  %v745 = vunpack.c.l.b16 %v713
  %v746 = vunpack.c.h.b16 %v713
  %v747 = vunpack.c.l.b16 %v714
  %v748 = vunpack.c.h.b16 %v714
  %v749 = vunpack.c.l.b16 %v715
  %v750 = vunpack.c.h.b16 %v715
  %v751 = vunpack.c.l.b16 %v716
  %v752 = vunpack.c.l.b16 %v717
  %v753 = vunpack.c.h.b16 %v717
  %v754 = vunpack.c.l.b16 %v718
  %v755 = vunpack.c.h.b16 %v718
  %v756 = vunpack.c.l.b16 %v719
  %v757 = vunpack.c.h.b16 %v719
  %v758 = vunpack.c.l.b16 %v720
  %v759 = vunpack.c.l.b16 %v721
  %v760 = vunpack.c.h.b16 %v721
  %v761 = vunpack.c.l.b16 %v722
  %v762 = vunpack.c.h.b16 %v722
  %v763 = vunpack.c.l.b16 %v723
  %v764 = vunpack.c.h.b16 %v723
  %v765 = vunpack.c.l.b16 %v724
  %v766 = vunpack.c.l.b16 %v725
  %v767 = vunpack.c.h.b16 %v725
  %v768 = vunpack.c.l.b16 %v726
  %v769 = vunpack.c.h.b16 %v726
  %v770 = vunpack.c.l.b16 %v727
  %v771 = vunpack.c.h.b16 %v727
  %v772 = vunpack.c.l.b16 %v728
  %v773 = vpack.c.b16 %v752, %v745
  %v774 = vpack.c.b16 %v753, %v746
  %v775 = vpack.c.b16 %v754, %v747
  %v776 = vpack.c.b16 %v755, %v748
  %v777 = vpack.c.b16 %v756, %v749
  %v778 = vpack.c.b16 %v757, %v750
  %v779 = vpack.c.b16 %v758, %v751
  %v780 = vpack.c.b16 %v766, %v759
  %v781 = vpack.c.b16 %v767, %v760
  %v782 = vpack.c.b16 %v768, %v761
  %v783 = vpack.c.b16 %v769, %v762
  %v784 = vpack.c.b16 %v770, %v763
  %v785 = vpack.c.b16 %v771, %v764
  %v786 = vpack.c.b16 %v772, %v765
  %v800 = vsel %vm510, %v779, 0
  %v803 = vsel %vm510, %v786, 0
  %805 = vmatprep.subr.bf16.mxu0 0
  %806 = vmatpush1.bf16.msra.mxu0 %v410
  %807 = vmatprep.subr.bf16.mxu0 0
  %808 = vmatpush1.bf16.msra.mxu0 %v411
  %809 = vmatprep.subr.bf16.mxu0 0
  %810 = vmatpush1.bf16.msra.mxu0 %v412
  %811 = vmatprep.subr.bf16.mxu0 0
  %812 = vmatpush1.bf16.msra.mxu0 %v413
  %813 = vmatprep.subr.bf16.mxu0 0
  %814 = vmatpush1.bf16.msra.mxu0 %v414
  %815 = vmatprep.subr.bf16.mxu0 0
  %816 = vmatpush1.bf16.msra.mxu0 %v415
  %817 = vmatprep.subr.bf16.mxu0 0
  %818 = vmatpush1.bf16.msra.mxu0 %v416
  %819 = vmatprep.subr.bf16.mxu0 0
  %820 = vmatpush1.bf16.msra.mxu0 %v417
  %821 = vmatprep.subr.bf16.mxu0 0
  %822 = vmatpush1.bf16.msra.mxu0 %v418
  %823 = vmatprep.subr.bf16.mxu0 0
  %824 = vmatpush1.bf16.msra.mxu0 %v419
  %825 = vmatprep.subr.bf16.mxu0 0
  %826 = vmatpush1.bf16.msra.mxu0 %v420
  %827 = vmatprep.subr.bf16.mxu0 0
  %828 = vmatpush1.bf16.msra.mxu0 %v421
  %829 = vmatprep.subr.bf16.mxu0 0
  %830 = vmatpush1.bf16.msra.mxu0 %v422
  %831 = vmatprep.subr.bf16.mxu0 0
  %832 = vmatpush1.bf16.msra.mxu0 %v423
  %833 = vmatprep.subr.bf16.mxu0 0
  %834 = vmatpush1.bf16.msra.mxu0 %v424
  %835 = vmatprep.subr.bf16.mxu0 0
  %836 = vmatpush1.bf16.msra.mxu0 %v425
  %837 = vmatprep.mubr.bf16.mxu0 %v774
  %838 = vmatmul.mubr.bf16.gmra.mrb[0].mxu0 %v773
  %v839 = vpop.f32.mrb[0].mxu0
  %v840 = vadd.f32 0.0, %v839
  %v841 = vpop.f32.mrb[0].mxu0
  %v842 = vpop.f32.mrb[0].mxu0
  %v843 = vadd.f32 0.0, %v842
  %v844 = vpop.f32.mrb[0].mxu0
  %845 = vmatprep.mubr.bf16.mxu0 %v781
  %846 = vmatmul.mubr.bf16.gmra.mrb[0].mxu0 %v780
  %v847 = vpop.f32.mrb[0].mxu0
  %v848 = vadd.f32 0.0, %v847
  %v849 = vpop.f32.mrb[0].mxu0
  %v850 = vpop.f32.mrb[0].mxu0
  %v851 = vadd.f32 0.0, %v850
  %v852 = vpop.f32.mrb[0].mxu0
  %853 = vdwg.mxu0
  %854 = vmatprep.subr.bf16.mxu0 0
  %855 = vmatpush1.bf16.msra.mxu0 %v426
  %856 = vmatprep.subr.bf16.mxu0 0
  %857 = vmatpush1.bf16.msra.mxu0 %v427
  %858 = vmatprep.subr.bf16.mxu0 0
  %859 = vmatpush1.bf16.msra.mxu0 %v428
  %860 = vmatprep.subr.bf16.mxu0 0
  %861 = vmatpush1.bf16.msra.mxu0 %v429
  %862 = vmatprep.subr.bf16.mxu0 0
  %863 = vmatpush1.bf16.msra.mxu0 %v430
  %864 = vmatprep.subr.bf16.mxu0 0
  %865 = vmatpush1.bf16.msra.mxu0 %v431
  %866 = vmatprep.subr.bf16.mxu0 0
  %867 = vmatpush1.bf16.msra.mxu0 %v432
  %868 = vmatprep.subr.bf16.mxu0 0
  %869 = vmatpush1.bf16.msra.mxu0 %v433
  %870 = vmatprep.subr.bf16.mxu0 0
  %871 = vmatpush1.bf16.msra.mxu0 %v434
  %872 = vmatprep.subr.bf16.mxu0 0
  %873 = vmatpush1.bf16.msra.mxu0 %v435
  %874 = vmatprep.subr.bf16.mxu0 0
  %875 = vmatpush1.bf16.msra.mxu0 %v436
  %876 = vmatprep.subr.bf16.mxu0 0
  %877 = vmatpush1.bf16.msra.mxu0 %v437
  %878 = vmatprep.subr.bf16.mxu0 0
  %879 = vmatpush1.bf16.msra.mxu0 %v438
  %880 = vmatprep.subr.bf16.mxu0 0
  %881 = vmatpush1.bf16.msra.mxu0 %v439
  %882 = vmatprep.subr.bf16.mxu0 0
  %883 = vmatpush1.bf16.msra.mxu0 %v440
  %884 = vmatprep.subr.bf16.mxu0 0
  %885 = vmatpush1.bf16.msra.mxu0 %v441
  %886 = vmatprep.mubr.bf16.mxu0 %v776
  %887 = vmatmul.mubr.bf16.gmra.mrb[0].mxu0 %v775
  %v888 = vpop.f32.mrb[0].mxu0
  %v889 = vadd.f32 %v840, %v888
  %v890 = vpop.f32.mrb[0].mxu0
  %v891 = vpop.f32.mrb[0].mxu0
  %v892 = vadd.f32 %v843, %v891
  %v893 = vpop.f32.mrb[0].mxu0
  %894 = vmatprep.mubr.bf16.mxu0 %v783
  %895 = vmatmul.mubr.bf16.gmra.mrb[0].mxu0 %v782
  %v896 = vpop.f32.mrb[0].mxu0
  %v897 = vadd.f32 %v848, %v896
  %v898 = vpop.f32.mrb[0].mxu0
  %v899 = vpop.f32.mrb[0].mxu0
  %v900 = vadd.f32 %v851, %v899
  %v901 = vpop.f32.mrb[0].mxu0
  %902 = vdwg.mxu0
  %903 = vmatprep.subr.bf16.mxu0 0
  %904 = vmatpush1.bf16.msra.mxu0 %v442
  %905 = vmatprep.subr.bf16.mxu0 0
  %906 = vmatpush1.bf16.msra.mxu0 %v443
  %907 = vmatprep.subr.bf16.mxu0 0
  %908 = vmatpush1.bf16.msra.mxu0 %v444
  %909 = vmatprep.subr.bf16.mxu0 0
  %910 = vmatpush1.bf16.msra.mxu0 %v445
  %911 = vmatprep.subr.bf16.mxu0 0
  %912 = vmatpush1.bf16.msra.mxu0 %v446
  %913 = vmatprep.subr.bf16.mxu0 0
  %914 = vmatpush1.bf16.msra.mxu0 %v447
  %915 = vmatprep.subr.bf16.mxu0 0
  %916 = vmatpush1.bf16.msra.mxu0 %v448
  %917 = vmatprep.subr.bf16.mxu0 0
  %918 = vmatpush1.bf16.msra.mxu0 %v449
  %919 = vmatprep.subr.bf16.mxu0 0
  %920 = vmatpush1.bf16.msra.mxu0 %v450
  %921 = vmatprep.subr.bf16.mxu0 0
  %922 = vmatpush1.bf16.msra.mxu0 %v451
  %923 = vmatprep.subr.bf16.mxu0 0
  %924 = vmatpush1.bf16.msra.mxu0 %v452
  %925 = vmatprep.subr.bf16.mxu0 0
  %926 = vmatpush1.bf16.msra.mxu0 %v453
  %927 = vmatprep.subr.bf16.mxu0 0
  %928 = vmatpush1.bf16.msra.mxu0 %v454
  %929 = vmatprep.subr.bf16.mxu0 0
  %930 = vmatpush1.bf16.msra.mxu0 %v455
  %931 = vmatprep.subr.bf16.mxu0 0
  %932 = vmatpush1.bf16.msra.mxu0 %v456
  %933 = vmatprep.subr.bf16.mxu0 0
  %934 = vmatpush1.bf16.msra.mxu0 %v457
  %935 = vmatprep.mubr.bf16.mxu0 %v778
  %936 = vmatmul.mubr.bf16.gmra.mrb[0].mxu0 %v777
  %v937 = vpop.f32.mrb[0].mxu0
  %v938 = vadd.f32 %v889, %v937
  %v939 = vpop.f32.mrb[0].mxu0
  %v940 = vpop.f32.mrb[0].mxu0
  %v941 = vadd.f32 %v892, %v940
  %v942 = vpop.f32.mrb[0].mxu0
  %943 = vmatprep.mubr.bf16.mxu0 %v785
  %944 = vmatmul.mubr.bf16.gmra.mrb[0].mxu0 %v784
  %v945 = vpop.f32.mrb[0].mxu0
  %v946 = vadd.f32 %v897, %v945
  %v947 = vpop.f32.mrb[0].mxu0
  %v948 = vpop.f32.mrb[0].mxu0
  %v949 = vadd.f32 %v900, %v948
  %v950 = vpop.f32.mrb[0].mxu0
  %951 = vdwg.mxu0
  %952 = vmatprep.subr.bf16.mxu0 0
  %953 = vmatpush1.bf16.msra.mxu0 %v458
  %954 = vmatprep.subr.bf16.mxu0 0
  %955 = vmatpush1.bf16.msra.mxu0 %v459
  %956 = vmatprep.subr.bf16.mxu0 0
  %957 = vmatpush1.bf16.msra.mxu0 0
  %958 = vmatprep.subr.bf16.mxu0 0
  %959 = vmatpush1.bf16.msra.mxu0 0
  %960 = vmatprep.subr.bf16.mxu0 0
  %961 = vmatpush1.bf16.msra.mxu0 0
  %962 = vmatprep.subr.bf16.mxu0 0
  %963 = vmatpush1.bf16.msra.mxu0 0
  %964 = vmatprep.subr.bf16.mxu0 0
  %965 = vmatpush1.bf16.msra.mxu0 0
  %966 = vmatprep.subr.bf16.mxu0 0
  %967 = vmatpush1.bf16.msra.mxu0 0
  %968 = vmatprep.subr.bf16.mxu0 0
  %969 = vmatpush1.bf16.msra.mxu0 0
  %970 = vmatprep.subr.bf16.mxu0 0
  %971 = vmatpush1.bf16.msra.mxu0 0
  %972 = vmatprep.subr.bf16.mxu0 0
  %973 = vmatpush1.bf16.msra.mxu0 0
  %974 = vmatprep.subr.bf16.mxu0 0
  %975 = vmatpush1.bf16.msra.mxu0 0
  %976 = vmatprep.subr.bf16.mxu0 0
  %977 = vmatpush1.bf16.msra.mxu0 0
  %978 = vmatprep.subr.bf16.mxu0 0
  %979 = vmatpush1.bf16.msra.mxu0 0
  %980 = vmatprep.subr.bf16.mxu0 0
  %981 = vmatpush1.bf16.msra.mxu0 0
  %982 = vmatprep.subr.bf16.mxu0 0
  %983 = vmatpush1.bf16.msra.mxu0 0
  %984 = vmatprep.mubr.bf16.mxu0 0
  %985 = vmatmul.mubr.bf16.gmra.mrb[0].mxu0 %v800
  %v986 = vpop.f32.mrb[0].mxu0
  %v987 = vadd.f32 %v938, %v986
  %v988 = vpop.f32.mrb[0].mxu0
  %v989 = vpop.f32.mrb[0].mxu0
  %v990 = vadd.f32 %v941, %v989
  %v991 = vpop.f32.mrb[0].mxu0
  %992 = vmatprep.mubr.bf16.mxu0 0
  %993 = vmatmul.mubr.bf16.gmra.mrb[0].mxu0 %v803
  %v994 = vpop.f32.mrb[0].mxu0
  %v995 = vadd.f32 %v946, %v994
  %v996 = vpop.f32.mrb[0].mxu0
  %v997 = vpop.f32.mrb[0].mxu0
  %v998 = vadd.f32 %v949, %v997
  %v999 = vpop.f32.mrb[0].mxu0
  %1000 = vdwg.mxu0
  %v1001 = vmax.f32 %v699, %v987
  %v1002 = vmax.f32 %v702, %v990
  %v1003 = vmax.f32 %v707, %v995
  %v1004 = vmax.f32 %v710, %v998
  %v1005 = vld [vmem:[%s2] sm:$0xff]
  %v1006 = vld [vmem:[%s2 + $0x8] sm:$0xff]
  %v1007 = vld [vmem:[%s2 + $0x10] sm:$0xff]
  %v1008 = vld [vmem:[%s2 + $0x18] sm:$0xf]
  %v1009 = vld [vmem:[%s2 + $0x1c] sm:$0xff]
  %v1010 = vld [vmem:[%s2 + $0x24] sm:$0xff]
  %v1011 = vld [vmem:[%s2 + $0x2c] sm:$0xff]
  %v1012 = vld [vmem:[%s2 + $0x34] sm:$0xf]
  %v1013 = vld [vmem:[%s2 + $0x38] sm:$0xff]
  %v1014 = vld [vmem:[%s2 + $0x40] sm:$0xff]
  %v1015 = vld [vmem:[%s2 + $0x48] sm:$0xff]
  %v1016 = vld [vmem:[%s2 + $0x50] sm:$0xf]
  %v1017 = vld [vmem:[%s2 + $0x54] sm:$0xff]
  %v1018 = vld [vmem:[%s2 + $0x5c] sm:$0xff]
  %v1019 = vld [vmem:[%s2 + $0x64] sm:$0xff]
  %v1020 = vld [vmem:[%s2 + $0x6c] sm:$0xf]
  %v1037 = vunpack.c.l.b16 %v1005
  %v1038 = vunpack.c.h.b16 %v1005
  %v1039 = vunpack.c.l.b16 %v1006
  %v1040 = vunpack.c.h.b16 %v1006
  %v1041 = vunpack.c.l.b16 %v1007
  %v1042 = vunpack.c.h.b16 %v1007
  %v1043 = vunpack.c.l.b16 %v1008
  %v1044 = vunpack.c.l.b16 %v1009
  %v1045 = vunpack.c.h.b16 %v1009
  %v1046 = vunpack.c.l.b16 %v1010
  %v1047 = vunpack.c.h.b16 %v1010
  %v1048 = vunpack.c.l.b16 %v1011
  %v1049 = vunpack.c.h.b16 %v1011
  %v1050 = vunpack.c.l.b16 %v1012
  %v1051 = vunpack.c.l.b16 %v1013
  %v1052 = vunpack.c.h.b16 %v1013
  %v1053 = vunpack.c.l.b16 %v1014
  %v1054 = vunpack.c.h.b16 %v1014
  %v1055 = vunpack.c.l.b16 %v1015
  %v1056 = vunpack.c.h.b16 %v1015
  %v1057 = vunpack.c.l.b16 %v1016
  %v1058 = vunpack.c.l.b16 %v1017
  %v1059 = vunpack.c.h.b16 %v1017
  %v1060 = vunpack.c.l.b16 %v1018
  %v1061 = vunpack.c.h.b16 %v1018
  %v1062 = vunpack.c.l.b16 %v1019
  %v1063 = vunpack.c.h.b16 %v1019
  %v1064 = vunpack.c.l.b16 %v1020
  %v1065 = vpack.c.b16 %v1044, %v1037
  %v1066 = vpack.c.b16 %v1045, %v1038
  %v1067 = vpack.c.b16 %v1046, %v1039
  %v1068 = vpack.c.b16 %v1047, %v1040
  %v1069 = vpack.c.b16 %v1048, %v1041
  %v1070 = vpack.c.b16 %v1049, %v1042
  %v1071 = vpack.c.b16 %v1050, %v1043
  %v1072 = vpack.c.b16 %v1058, %v1051
  %v1073 = vpack.c.b16 %v1059, %v1052
  %v1074 = vpack.c.b16 %v1060, %v1053
  %v1075 = vpack.c.b16 %v1061, %v1054
  %v1076 = vpack.c.b16 %v1062, %v1055
  %v1077 = vpack.c.b16 %v1063, %v1056
  %v1078 = vpack.c.b16 %v1064, %v1057
  %v1092 = vsel %vm510, %v1071, 0
  %v1095 = vsel %vm510, %v1078, 0
  %1097 = vmatprep.subr.bf16.mxu0 0
  %1098 = vmatpush1.bf16.msra.mxu0 %v410
  %1099 = vmatprep.subr.bf16.mxu0 0
  %1100 = vmatpush1.bf16.msra.mxu0 %v411
  %1101 = vmatprep.subr.bf16.mxu0 0
  %1102 = vmatpush1.bf16.msra.mxu0 %v412
  %1103 = vmatprep.subr.bf16.mxu0 0
  %1104 = vmatpush1.bf16.msra.mxu0 %v413
  %1105 = vmatprep.subr.bf16.mxu0 0
  %1106 = vmatpush1.bf16.msra.mxu0 %v414
  %1107 = vmatprep.subr.bf16.mxu0 0
  %1108 = vmatpush1.bf16.msra.mxu0 %v415
  %1109 = vmatprep.subr.bf16.mxu0 0
  %1110 = vmatpush1.bf16.msra.mxu0 %v416
  %1111 = vmatprep.subr.bf16.mxu0 0
  %1112 = vmatpush1.bf16.msra.mxu0 %v417
  %1113 = vmatprep.subr.bf16.mxu0 0
  %1114 = vmatpush1.bf16.msra.mxu0 %v418
  %1115 = vmatprep.subr.bf16.mxu0 0
  %1116 = vmatpush1.bf16.msra.mxu0 %v419
  %1117 = vmatprep.subr.bf16.mxu0 0
  %1118 = vmatpush1.bf16.msra.mxu0 %v420
  %1119 = vmatprep.subr.bf16.mxu0 0
  %1120 = vmatpush1.bf16.msra.mxu0 %v421
  %1121 = vmatprep.subr.bf16.mxu0 0
  %1122 = vmatpush1.bf16.msra.mxu0 %v422
  %1123 = vmatprep.subr.bf16.mxu0 0
  %1124 = vmatpush1.bf16.msra.mxu0 %v423
  %1125 = vmatprep.subr.bf16.mxu0 0
  %1126 = vmatpush1.bf16.msra.mxu0 %v424
  %1127 = vmatprep.subr.bf16.mxu0 0
  %1128 = vmatpush1.bf16.msra.mxu0 %v425
  %1129 = vmatprep.mubr.bf16.mxu0 %v1066
  %1130 = vmatmul.mubr.bf16.gmra.mrb[0].mxu0 %v1065
  %v1131 = vpop.f32.mrb[0].mxu0
  %v1132 = vadd.f32 0.0, %v1131
  %v1133 = vpop.f32.mrb[0].mxu0
  %v1134 = vpop.f32.mrb[0].mxu0
  %v1135 = vadd.f32 0.0, %v1134
  %v1136 = vpop.f32.mrb[0].mxu0
  %1137 = vmatprep.mubr.bf16.mxu0 %v1073
  %1138 = vmatmul.mubr.bf16.gmra.mrb[0].mxu0 %v1072
  %v1139 = vpop.f32.mrb[0].mxu0
  %v1140 = vadd.f32 0.0, %v1139
  %v1141 = vpop.f32.mrb[0].mxu0
  %v1142 = vpop.f32.mrb[0].mxu0
  %v1143 = vadd.f32 0.0, %v1142
  %v1144 = vpop.f32.mrb[0].mxu0
  %1145 = vdwg.mxu0
  %1146 = vmatprep.subr.bf16.mxu0 0
  %1147 = vmatpush1.bf16.msra.mxu0 %v426
  %1148 = vmatprep.subr.bf16.mxu0 0
  %1149 = vmatpush1.bf16.msra.mxu0 %v427
  %1150 = vmatprep.subr.bf16.mxu0 0
  %1151 = vmatpush1.bf16.msra.mxu0 %v428
  %1152 = vmatprep.subr.bf16.mxu0 0
  %1153 = vmatpush1.bf16.msra.mxu0 %v429
  %1154 = vmatprep.subr.bf16.mxu0 0
  %1155 = vmatpush1.bf16.msra.mxu0 %v430
  %1156 = vmatprep.subr.bf16.mxu0 0
  %1157 = vmatpush1.bf16.msra.mxu0 %v431
  %1158 = vmatprep.subr.bf16.mxu0 0
  %1159 = vmatpush1.bf16.msra.mxu0 %v432
  %1160 = vmatprep.subr.bf16.mxu0 0
  %1161 = vmatpush1.bf16.msra.mxu0 %v433
  %1162 = vmatprep.subr.bf16.mxu0 0
  %1163 = vmatpush1.bf16.msra.mxu0 %v434
  %1164 = vmatprep.subr.bf16.mxu0 0
  %1165 = vmatpush1.bf16.msra.mxu0 %v435
  %1166 = vmatprep.subr.bf16.mxu0 0
  %1167 = vmatpush1.bf16.msra.mxu0 %v436
  %1168 = vmatprep.subr.bf16.mxu0 0
  %1169 = vmatpush1.bf16.msra.mxu0 %v437
  %1170 = vmatprep.subr.bf16.mxu0 0
  %1171 = vmatpush1.bf16.msra.mxu0 %v438
  %1172 = vmatprep.subr.bf16.mxu0 0
  %1173 = vmatpush1.bf16.msra.mxu0 %v439
  %1174 = vmatprep.subr.bf16.mxu0 0
  %1175 = vmatpush1.bf16.msra.mxu0 %v440
  %1176 = vmatprep.subr.bf16.mxu0 0
  %1177 = vmatpush1.bf16.msra.mxu0 %v441
  %1178 = vmatprep.mubr.bf16.mxu0 %v1068
  %1179 = vmatmul.mubr.bf16.gmra.mrb[0].mxu0 %v1067
  %v1180 = vpop.f32.mrb[0].mxu0
  %v1181 = vadd.f32 %v1132, %v1180
  %v1182 = vpop.f32.mrb[0].mxu0
  %v1183 = vpop.f32.mrb[0].mxu0
  %v1184 = vadd.f32 %v1135, %v1183
  %v1185 = vpop.f32.mrb[0].mxu0
  %1186 = vmatprep.mubr.bf16.mxu0 %v1075
  %1187 = vmatmul.mubr.bf16.gmra.mrb[0].mxu0 %v1074
  %v1188 = vpop.f32.mrb[0].mxu0
  %v1189 = vadd.f32 %v1140, %v1188
  %v1190 = vpop.f32.mrb[0].mxu0
  %v1191 = vpop.f32.mrb[0].mxu0
  %v1192 = vadd.f32 %v1143, %v1191
  %v1193 = vpop.f32.mrb[0].mxu0
  %1194 = vdwg.mxu0
  %1195 = vmatprep.subr.bf16.mxu0 0
  %1196 = vmatpush1.bf16.msra.mxu0 %v442
  %1197 = vmatprep.subr.bf16.mxu0 0
  %1198 = vmatpush1.bf16.msra.mxu0 %v443
  %1199 = vmatprep.subr.bf16.mxu0 0
  %1200 = vmatpush1.bf16.msra.mxu0 %v444
  %1201 = vmatprep.subr.bf16.mxu0 0
  %1202 = vmatpush1.bf16.msra.mxu0 %v445
  %1203 = vmatprep.subr.bf16.mxu0 0
  %1204 = vmatpush1.bf16.msra.mxu0 %v446
  %1205 = vmatprep.subr.bf16.mxu0 0
  %1206 = vmatpush1.bf16.msra.mxu0 %v447
  %1207 = vmatprep.subr.bf16.mxu0 0
  %1208 = vmatpush1.bf16.msra.mxu0 %v448
  %1209 = vmatprep.subr.bf16.mxu0 0
  %1210 = vmatpush1.bf16.msra.mxu0 %v449
  %1211 = vmatprep.subr.bf16.mxu0 0
  %1212 = vmatpush1.bf16.msra.mxu0 %v450
  %1213 = vmatprep.subr.bf16.mxu0 0
  %1214 = vmatpush1.bf16.msra.mxu0 %v451
  %1215 = vmatprep.subr.bf16.mxu0 0
  %1216 = vmatpush1.bf16.msra.mxu0 %v452
  %1217 = vmatprep.subr.bf16.mxu0 0
  %1218 = vmatpush1.bf16.msra.mxu0 %v453
  %1219 = vmatprep.subr.bf16.mxu0 0
  %1220 = vmatpush1.bf16.msra.mxu0 %v454
  %1221 = vmatprep.subr.bf16.mxu0 0
  %1222 = vmatpush1.bf16.msra.mxu0 %v455
  %1223 = vmatprep.subr.bf16.mxu0 0
  %1224 = vmatpush1.bf16.msra.mxu0 %v456
  %1225 = vmatprep.subr.bf16.mxu0 0
  %1226 = vmatpush1.bf16.msra.mxu0 %v457
  %1227 = vmatprep.mubr.bf16.mxu0 %v1070
  %1228 = vmatmul.mubr.bf16.gmra.mrb[0].mxu0 %v1069
  %v1229 = vpop.f32.mrb[0].mxu0
  %v1230 = vadd.f32 %v1181, %v1229
  %v1231 = vpop.f32.mrb[0].mxu0
  %v1232 = vpop.f32.mrb[0].mxu0
  %v1233 = vadd.f32 %v1184, %v1232
  %v1234 = vpop.f32.mrb[0].mxu0
  %1235 = vmatprep.mubr.bf16.mxu0 %v1077
  %1236 = vmatmul.mubr.bf16.gmra.mrb[0].mxu0 %v1076
  %v1237 = vpop.f32.mrb[0].mxu0
  %v1238 = vadd.f32 %v1189, %v1237
  %v1239 = vpop.f32.mrb[0].mxu0
  %v1240 = vpop.f32.mrb[0].mxu0
  %v1241 = vadd.f32 %v1192, %v1240
  %v1242 = vpop.f32.mrb[0].mxu0
  %1243 = vdwg.mxu0
  %1244 = vmatprep.subr.bf16.mxu0 0
  %1245 = vmatpush1.bf16.msra.mxu0 %v458
  %1246 = vmatprep.subr.bf16.mxu0 0
  %1247 = vmatpush1.bf16.msra.mxu0 %v459
  %1248 = vmatprep.subr.bf16.mxu0 0
  %1249 = vmatpush1.bf16.msra.mxu0 0
  %1250 = vmatprep.subr.bf16.mxu0 0
  %1251 = vmatpush1.bf16.msra.mxu0 0
  %1252 = vmatprep.subr.bf16.mxu0 0
  %1253 = vmatpush1.bf16.msra.mxu0 0
  %1254 = vmatprep.subr.bf16.mxu0 0
  %1255 = vmatpush1.bf16.msra.mxu0 0
  %1256 = vmatprep.subr.bf16.mxu0 0
  %1257 = vmatpush1.bf16.msra.mxu0 0
  %1258 = vmatprep.subr.bf16.mxu0 0
  %1259 = vmatpush1.bf16.msra.mxu0 0
  %1260 = vmatprep.subr.bf16.mxu0 0
  %1261 = vmatpush1.bf16.msra.mxu0 0
  %1262 = vmatprep.subr.bf16.mxu0 0
  %1263 = vmatpush1.bf16.msra.mxu0 0
  %1264 = vmatprep.subr.bf16.mxu0 0
  %1265 = vmatpush1.bf16.msra.mxu0 0
  %1266 = vmatprep.subr.bf16.mxu0 0
  %1267 = vmatpush1.bf16.msra.mxu0 0
  %1268 = vmatprep.subr.bf16.mxu0 0
  %1269 = vmatpush1.bf16.msra.mxu0 0
  %1270 = vmatprep.subr.bf16.mxu0 0
  %1271 = vmatpush1.bf16.msra.mxu0 0
  %1272 = vmatprep.subr.bf16.mxu0 0
  %1273 = vmatpush1.bf16.msra.mxu0 0
  %1274 = vmatprep.subr.bf16.mxu0 0
  %1275 = vmatpush1.bf16.msra.mxu0 0
  %1276 = vmatprep.mubr.bf16.mxu0 0
  %1277 = vmatmul.mubr.bf16.gmra.mrb[0].mxu0 %v1092
  %v1278 = vpop.f32.mrb[0].mxu0
  %v1279 = vadd.f32 %v1230, %v1278
  %v1280 = vpop.f32.mrb[0].mxu0
  %v1281 = vpop.f32.mrb[0].mxu0
  %v1282 = vadd.f32 %v1233, %v1281
  %v1283 = vpop.f32.mrb[0].mxu0
  %1284 = vmatprep.mubr.bf16.mxu0 0
  %1285 = vmatmul.mubr.bf16.gmra.mrb[0].mxu0 %v1095
  %v1286 = vpop.f32.mrb[0].mxu0
  %v1287 = vadd.f32 %v1238, %v1286
  %v1288 = vpop.f32.mrb[0].mxu0
  %v1289 = vpop.f32.mrb[0].mxu0
  %v1290 = vadd.f32 %v1241, %v1289
  %v1291 = vpop.f32.mrb[0].mxu0
  %1292 = vdwg.mxu0
  %v1293 = vmax.f32 %v1001, %v1279
  %v1294 = vmax.f32 %v1002, %v1282
  %v1295 = vmax.f32 %v1003, %v1287
  %v1296 = vmax.f32 %v1004, %v1290
  %v1297 = vld [vmem:[%s3] sm:$0xff]
  %v1298 = vld [vmem:[%s3 + $0x8] sm:$0xff]
  %v1299 = vld [vmem:[%s3 + $0x10] sm:$0xff]
  %v1300 = vld [vmem:[%s3 + $0x18] sm:$0xf]
  %v1301 = vld [vmem:[%s3 + $0x1c] sm:$0xff]
  %v1302 = vld [vmem:[%s3 + $0x24] sm:$0xff]
  %v1303 = vld [vmem:[%s3 + $0x2c] sm:$0xff]
  %v1304 = vld [vmem:[%s3 + $0x34] sm:$0xf]
  %v1305 = vld [vmem:[%s3 + $0x38] sm:$0xff]
  %v1306 = vld [vmem:[%s3 + $0x40] sm:$0xff]
  %v1307 = vld [vmem:[%s3 + $0x48] sm:$0xff]
  %v1308 = vld [vmem:[%s3 + $0x50] sm:$0xf]
  %v1309 = vld [vmem:[%s3 + $0x54] sm:$0xff]
  %v1310 = vld [vmem:[%s3 + $0x5c] sm:$0xff]
  %v1311 = vld [vmem:[%s3 + $0x64] sm:$0xff]
  %v1312 = vld [vmem:[%s3 + $0x6c] sm:$0xf]
  %v1329 = vunpack.c.l.b16 %v1297
  %v1330 = vunpack.c.h.b16 %v1297
  %v1331 = vunpack.c.l.b16 %v1298
  %v1332 = vunpack.c.h.b16 %v1298
  %v1333 = vunpack.c.l.b16 %v1299
  %v1334 = vunpack.c.h.b16 %v1299
  %v1335 = vunpack.c.l.b16 %v1300
  %v1336 = vunpack.c.l.b16 %v1301
  %v1337 = vunpack.c.h.b16 %v1301
  %v1338 = vunpack.c.l.b16 %v1302
  %v1339 = vunpack.c.h.b16 %v1302
  %v1340 = vunpack.c.l.b16 %v1303
  %v1341 = vunpack.c.h.b16 %v1303
  %v1342 = vunpack.c.l.b16 %v1304
  %v1343 = vunpack.c.l.b16 %v1305
  %v1344 = vunpack.c.h.b16 %v1305
  %v1345 = vunpack.c.l.b16 %v1306
  %v1346 = vunpack.c.h.b16 %v1306
  %v1347 = vunpack.c.l.b16 %v1307
  %v1348 = vunpack.c.h.b16 %v1307
  %v1349 = vunpack.c.l.b16 %v1308
  %v1350 = vunpack.c.l.b16 %v1309
  %v1351 = vunpack.c.h.b16 %v1309
  %v1352 = vunpack.c.l.b16 %v1310
  %v1353 = vunpack.c.h.b16 %v1310
  %v1354 = vunpack.c.l.b16 %v1311
  %v1355 = vunpack.c.h.b16 %v1311
  %v1356 = vunpack.c.l.b16 %v1312
  %v1357 = vpack.c.b16 %v1336, %v1329
  %v1358 = vpack.c.b16 %v1337, %v1330
  %v1359 = vpack.c.b16 %v1338, %v1331
  %v1360 = vpack.c.b16 %v1339, %v1332
  %v1361 = vpack.c.b16 %v1340, %v1333
  %v1362 = vpack.c.b16 %v1341, %v1334
  %v1363 = vpack.c.b16 %v1342, %v1335
  %v1364 = vpack.c.b16 %v1350, %v1343
  %v1365 = vpack.c.b16 %v1351, %v1344
  %v1366 = vpack.c.b16 %v1352, %v1345
  %v1367 = vpack.c.b16 %v1353, %v1346
  %v1368 = vpack.c.b16 %v1354, %v1347
  %v1369 = vpack.c.b16 %v1355, %v1348
  %v1370 = vpack.c.b16 %v1356, %v1349
  %v1384 = vsel %vm510, %v1363, 0
  %v1387 = vsel %vm510, %v1370, 0
  %1389 = vmatprep.subr.bf16.mxu0 0
  %1390 = vmatpush1.bf16.msra.mxu0 %v410
  %1391 = vmatprep.subr.bf16.mxu0 0
  %1392 = vmatpush1.bf16.msra.mxu0 %v411
  %1393 = vmatprep.subr.bf16.mxu0 0
  %1394 = vmatpush1.bf16.msra.mxu0 %v412
  %1395 = vmatprep.subr.bf16.mxu0 0
  %1396 = vmatpush1.bf16.msra.mxu0 %v413
  %1397 = vmatprep.subr.bf16.mxu0 0
  %1398 = vmatpush1.bf16.msra.mxu0 %v414
  %1399 = vmatprep.subr.bf16.mxu0 0
  %1400 = vmatpush1.bf16.msra.mxu0 %v415
  %1401 = vmatprep.subr.bf16.mxu0 0
  %1402 = vmatpush1.bf16.msra.mxu0 %v416
  %1403 = vmatprep.subr.bf16.mxu0 0
  %1404 = vmatpush1.bf16.msra.mxu0 %v417
  %1405 = vmatprep.subr.bf16.mxu0 0
  %1406 = vmatpush1.bf16.msra.mxu0 %v418
  %1407 = vmatprep.subr.bf16.mxu0 0
  %1408 = vmatpush1.bf16.msra.mxu0 %v419
  %1409 = vmatprep.subr.bf16.mxu0 0
  %1410 = vmatpush1.bf16.msra.mxu0 %v420
  %1411 = vmatprep.subr.bf16.mxu0 0
  %1412 = vmatpush1.bf16.msra.mxu0 %v421
  %1413 = vmatprep.subr.bf16.mxu0 0
  %1414 = vmatpush1.bf16.msra.mxu0 %v422
  %1415 = vmatprep.subr.bf16.mxu0 0
  %1416 = vmatpush1.bf16.msra.mxu0 %v423
  %1417 = vmatprep.subr.bf16.mxu0 0
  %1418 = vmatpush1.bf16.msra.mxu0 %v424
  %1419 = vmatprep.subr.bf16.mxu0 0
  %1420 = vmatpush1.bf16.msra.mxu0 %v425
  %1421 = vmatprep.mubr.bf16.mxu0 %v1358
  %1422 = vmatmul.mubr.bf16.gmra.mrb[0].mxu0 %v1357
  %v1423 = vpop.f32.mrb[0].mxu0
  %v1424 = vadd.f32 0.0, %v1423
  %v1425 = vpop.f32.mrb[0].mxu0
  %v1426 = vpop.f32.mrb[0].mxu0
  %v1427 = vadd.f32 0.0, %v1426
  %v1428 = vpop.f32.mrb[0].mxu0
  %1429 = vmatprep.mubr.bf16.mxu0 %v1365
  %1430 = vmatmul.mubr.bf16.gmra.mrb[0].mxu0 %v1364
  %v1431 = vpop.f32.mrb[0].mxu0
  %v1432 = vadd.f32 0.0, %v1431
  %v1433 = vpop.f32.mrb[0].mxu0
  %v1434 = vpop.f32.mrb[0].mxu0
  %v1435 = vadd.f32 0.0, %v1434
  %v1436 = vpop.f32.mrb[0].mxu0
  %1437 = vdwg.mxu0
  %1438 = vmatprep.subr.bf16.mxu0 0
  %1439 = vmatpush1.bf16.msra.mxu0 %v426
  %1440 = vmatprep.subr.bf16.mxu0 0
  %1441 = vmatpush1.bf16.msra.mxu0 %v427
  %1442 = vmatprep.subr.bf16.mxu0 0
  %1443 = vmatpush1.bf16.msra.mxu0 %v428
  %1444 = vmatprep.subr.bf16.mxu0 0
  %1445 = vmatpush1.bf16.msra.mxu0 %v429
  %1446 = vmatprep.subr.bf16.mxu0 0
  %1447 = vmatpush1.bf16.msra.mxu0 %v430
  %1448 = vmatprep.subr.bf16.mxu0 0
  %1449 = vmatpush1.bf16.msra.mxu0 %v431
  %1450 = vmatprep.subr.bf16.mxu0 0
  %1451 = vmatpush1.bf16.msra.mxu0 %v432
  %1452 = vmatprep.subr.bf16.mxu0 0
  %1453 = vmatpush1.bf16.msra.mxu0 %v433
  %1454 = vmatprep.subr.bf16.mxu0 0
  %1455 = vmatpush1.bf16.msra.mxu0 %v434
  %1456 = vmatprep.subr.bf16.mxu0 0
  %1457 = vmatpush1.bf16.msra.mxu0 %v435
  %1458 = vmatprep.subr.bf16.mxu0 0
  %1459 = vmatpush1.bf16.msra.mxu0 %v436
  %1460 = vmatprep.subr.bf16.mxu0 0
  %1461 = vmatpush1.bf16.msra.mxu0 %v437
  %1462 = vmatprep.subr.bf16.mxu0 0
  %1463 = vmatpush1.bf16.msra.mxu0 %v438
  %1464 = vmatprep.subr.bf16.mxu0 0
  %1465 = vmatpush1.bf16.msra.mxu0 %v439
  %1466 = vmatprep.subr.bf16.mxu0 0
  %1467 = vmatpush1.bf16.msra.mxu0 %v440
  %1468 = vmatprep.subr.bf16.mxu0 0
  %1469 = vmatpush1.bf16.msra.mxu0 %v441
  %1470 = vmatprep.mubr.bf16.mxu0 %v1360
  %1471 = vmatmul.mubr.bf16.gmra.mrb[0].mxu0 %v1359
  %v1472 = vpop.f32.mrb[0].mxu0
  %v1473 = vadd.f32 %v1424, %v1472
  %v1474 = vpop.f32.mrb[0].mxu0
  %v1475 = vpop.f32.mrb[0].mxu0
  %v1476 = vadd.f32 %v1427, %v1475
  %v1477 = vpop.f32.mrb[0].mxu0
  %1478 = vmatprep.mubr.bf16.mxu0 %v1367
  %1479 = vmatmul.mubr.bf16.gmra.mrb[0].mxu0 %v1366
  %v1480 = vpop.f32.mrb[0].mxu0
  %v1481 = vadd.f32 %v1432, %v1480
  %v1482 = vpop.f32.mrb[0].mxu0
  %v1483 = vpop.f32.mrb[0].mxu0
  %v1484 = vadd.f32 %v1435, %v1483
  %v1485 = vpop.f32.mrb[0].mxu0
  %1486 = vdwg.mxu0
  %1487 = vmatprep.subr.bf16.mxu0 0
  %1488 = vmatpush1.bf16.msra.mxu0 %v442
  %1489 = vmatprep.subr.bf16.mxu0 0
  %1490 = vmatpush1.bf16.msra.mxu0 %v443
  %1491 = vmatprep.subr.bf16.mxu0 0
  %1492 = vmatpush1.bf16.msra.mxu0 %v444
  %1493 = vmatprep.subr.bf16.mxu0 0
  %1494 = vmatpush1.bf16.msra.mxu0 %v445
  %1495 = vmatprep.subr.bf16.mxu0 0
  %1496 = vmatpush1.bf16.msra.mxu0 %v446
  %1497 = vmatprep.subr.bf16.mxu0 0
  %1498 = vmatpush1.bf16.msra.mxu0 %v447
  %1499 = vmatprep.subr.bf16.mxu0 0
  %1500 = vmatpush1.bf16.msra.mxu0 %v448
  %1501 = vmatprep.subr.bf16.mxu0 0
  %1502 = vmatpush1.bf16.msra.mxu0 %v449
  %1503 = vmatprep.subr.bf16.mxu0 0
  %1504 = vmatpush1.bf16.msra.mxu0 %v450
  %1505 = vmatprep.subr.bf16.mxu0 0
  %1506 = vmatpush1.bf16.msra.mxu0 %v451
  %1507 = vmatprep.subr.bf16.mxu0 0
  %1508 = vmatpush1.bf16.msra.mxu0 %v452
  %1509 = vmatprep.subr.bf16.mxu0 0
  %1510 = vmatpush1.bf16.msra.mxu0 %v453
  %1511 = vmatprep.subr.bf16.mxu0 0
  %1512 = vmatpush1.bf16.msra.mxu0 %v454
  %1513 = vmatprep.subr.bf16.mxu0 0
  %1514 = vmatpush1.bf16.msra.mxu0 %v455
  %1515 = vmatprep.subr.bf16.mxu0 0
  %1516 = vmatpush1.bf16.msra.mxu0 %v456
  %1517 = vmatprep.subr.bf16.mxu0 0
  %1518 = vmatpush1.bf16.msra.mxu0 %v457
  %1519 = vmatprep.mubr.bf16.mxu0 %v1362
  %1520 = vmatmul.mubr.bf16.gmra.mrb[0].mxu0 %v1361
  %v1521 = vpop.f32.mrb[0].mxu0
  %v1522 = vadd.f32 %v1473, %v1521
  %v1523 = vpop.f32.mrb[0].mxu0
  %v1524 = vpop.f32.mrb[0].mxu0
  %v1525 = vadd.f32 %v1476, %v1524
  %v1526 = vpop.f32.mrb[0].mxu0
  %1527 = vmatprep.mubr.bf16.mxu0 %v1369
  %1528 = vmatmul.mubr.bf16.gmra.mrb[0].mxu0 %v1368
  %v1529 = vpop.f32.mrb[0].mxu0
  %v1530 = vadd.f32 %v1481, %v1529
  %v1531 = vpop.f32.mrb[0].mxu0
  %v1532 = vpop.f32.mrb[0].mxu0
  %v1533 = vadd.f32 %v1484, %v1532
  %v1534 = vpop.f32.mrb[0].mxu0
  %1535 = vdwg.mxu0
  %1536 = vmatprep.subr.bf16.mxu0 0
  %1537 = vmatpush1.bf16.msra.mxu0 %v458
  %1538 = vmatprep.subr.bf16.mxu0 0
  %1539 = vmatpush1.bf16.msra.mxu0 %v459
  %1540 = vmatprep.subr.bf16.mxu0 0
  %1541 = vmatpush1.bf16.msra.mxu0 0
  %1542 = vmatprep.subr.bf16.mxu0 0
  %1543 = vmatpush1.bf16.msra.mxu0 0
  %1544 = vmatprep.subr.bf16.mxu0 0
  %1545 = vmatpush1.bf16.msra.mxu0 0
  %1546 = vmatprep.subr.bf16.mxu0 0
  %1547 = vmatpush1.bf16.msra.mxu0 0
  %1548 = vmatprep.subr.bf16.mxu0 0
  %1549 = vmatpush1.bf16.msra.mxu0 0
  %1550 = vmatprep.subr.bf16.mxu0 0
  %1551 = vmatpush1.bf16.msra.mxu0 0
  %1552 = vmatprep.subr.bf16.mxu0 0
  %1553 = vmatpush1.bf16.msra.mxu0 0
  %1554 = vmatprep.subr.bf16.mxu0 0
  %1555 = vmatpush1.bf16.msra.mxu0 0
  %1556 = vmatprep.subr.bf16.mxu0 0
  %1557 = vmatpush1.bf16.msra.mxu0 0
  %1558 = vmatprep.subr.bf16.mxu0 0
  %1559 = vmatpush1.bf16.msra.mxu0 0
  %1560 = vmatprep.subr.bf16.mxu0 0
  %1561 = vmatpush1.bf16.msra.mxu0 0
  %1562 = vmatprep.subr.bf16.mxu0 0
  %1563 = vmatpush1.bf16.msra.mxu0 0
  %1564 = vmatprep.subr.bf16.mxu0 0
  %1565 = vmatpush1.bf16.msra.mxu0 0
  %1566 = vmatprep.subr.bf16.mxu0 0
  %1567 = vmatpush1.bf16.msra.mxu0 0
  %1568 = vmatprep.mubr.bf16.mxu0 0
  %1569 = vmatmul.mubr.bf16.gmra.mrb[0].mxu0 %v1384
  %v1570 = vpop.f32.mrb[0].mxu0
  %v1571 = vadd.f32 %v1522, %v1570
  %v1572 = vpop.f32.mrb[0].mxu0
  %v1573 = vpop.f32.mrb[0].mxu0
  %v1574 = vadd.f32 %v1525, %v1573
  %v1575 = vpop.f32.mrb[0].mxu0
  %1576 = vmatprep.mubr.bf16.mxu0 0
  %1577 = vmatmul.mubr.bf16.gmra.mrb[0].mxu0 %v1387
  %v1578 = vpop.f32.mrb[0].mxu0
  %v1579 = vadd.f32 %v1530, %v1578
  %v1580 = vpop.f32.mrb[0].mxu0
  %v1581 = vpop.f32.mrb[0].mxu0
  %v1582 = vadd.f32 %v1533, %v1581
  %v1583 = vpop.f32.mrb[0].mxu0
  %1584 = vdwg.mxu0
  %v1585 = vmax.f32 %v1293, %v1571
  %v1586 = vmax.f32 %v1294, %v1574
  %v1587 = vmax.f32 %v1295, %v1579
  %v1588 = vmax.f32 %v1296, %v1582
  %v1589 = vld [vmem:[%s5] sm:$0x1]
  %v1591 = vlaneseq
  %v1592 = vshrl.u32 %v1591, 7
  %v1593 = vsub.s32 0, %v1592
  %v1594 = vrot.slane %v1589, %v1593
  %v1596 = vadd.f32 %v1585, %v1594
  %v1597 = vadd.f32 %v1586, %v1594
  %v1598 = vadd.f32 %v1587, %v1594
  %v1599 = vadd.f32 %v1588, %v1594
  %v1600 = vpack.c.bf16 %v1597, %v1596
  %v1601 = vpack.c.bf16 %v1599, %v1598
  %v1604 = vunpack.c.l.b16 %v1600
  %v1605 = vunpack.c.h.b16 %v1600
  %v1606 = vunpack.c.l.b16 %v1601
  %v1607 = vunpack.c.h.b16 %v1601
  %v1608 = vpack.c.b16 %v1604, %v1604
  %v1609 = vpack.c.b16 %v1605, %v1605
  %v1610 = vpack.c.b16 %v1606, %v1606
  %v1611 = vpack.c.b16 %v1607, %v1607
  %vm1616 = vcmask 519168
  %1617 = vst.msk [vmem:[%s6] sm:$0xf] %vm1616, %v1608
  %1618 = vst.msk [vmem:[%s6 + $0x4] sm:$0xf] %vm1616, %v1609
  %1619 = vst.msk [vmem:[%s6 + $0x8] sm:$0xf] %vm1616, %v1610
  %1620 = vst.msk [vmem:[%s6 + $0xc] sm:$0xf] %vm1616, %v1611
  // Predicated region
  $region26: #{yuzhao_forward.6} parent=0 // pred_check
    _
  $region27: #{yuzhao_forward.6} parent=0 // pred_check_branch
    %1622 = sbr.rel (0) target = $region29
  $region28: #{yuzhao_forward.6} parent=0 // pred_region
    _
  $region29: #{yuzhao_forward.6} parent=0 // pred_fallthru
    _
  // Predicated region
  $region30: #{yuzhao_forward.6} parent=0 // pred_check
    _
  $region31: #{yuzhao_forward.6} parent=0 // pred_check_branch
    %1624 = sbr.rel (0) target = $region33
  $region32: #{yuzhao_forward.6} parent=0 // pred_region
    _
  $region33: #{yuzhao_forward.6} parent=0 // pred_fallthru
    _

// kernel: yuzhao_forward.7
$region0: #{yuzhao_forward.7}
  #allocation0 [shape = 'u32[]', space=smem, size = 0x4, offset = 0x4, fixed_abs, tag = 'smem constant byte address 0x4 - core index']
  #allocation1 [shape = 'u32[144,128]{1,0:T(1,128)}', space=vmem, size = 0x12000, scoped, tag = 'internal scratch']
  %s0 = inlined_call_operand.vmem [shape: bf16[2,1024], index: 0, kind: input, shape index: {}]
  %s1 = inlined_call_operand.vmem [shape: bf16[1024,64], index: 1, kind: input, shape index: {}]
  %s2 = inlined_call_operand.vmem [shape: f32[1,64], index: 2, kind: input, shape index: {}]
  %s3 = inlined_call_operand.vmem [shape: f32[64,10], index: 3, kind: input, shape index: {}]
  %s4 = inlined_call_operand.vmem [shape: f32[1,10], index: 4, kind: input, shape index: {}]
  %s5 = inlined_call_operand.hbm [shape: f32[2,10], index: 5, kind: output, shape index: {}]
  %s6 = sld [smem:[#allocation0]]
  $region30: #{yuzhao_forward.7} parent=0
    _
  %s8 = ssub.s32 1, %s6
  %s9 = scalar_select 0, %s8, %s6
  $region1: #{yuzhao_forward.7} parent=0
    #allocation2 [shape = 'u8[1024]{0}', space=vmem, size = 0x400, scoped, tag = 'output window, operand 0, single buffered']
    #allocation3 [shape = 's32[1]{0}', space=sflag, size = 0x4, scoped, tag = 'scoped memory for yuzhao_forward.7']
    %10 = vsyncpa [#allocation3], 0
    // Predicated region
    $region2: #{yuzhao_forward.7} parent=1 // pred_check
      _
    $region3: #{yuzhao_forward.7} parent=1 // pred_check_branch
      %12 = sbr.rel (0) target = $region5
    $region4: #{yuzhao_forward.7} parent=1 // pred_region
      _
    $region5: #{yuzhao_forward.7} parent=1 // pred_fallthru
      _
    // Predicated region
    $region6: #{yuzhao_forward.7} parent=1 // pred_check
      _
    $region7: #{yuzhao_forward.7} parent=1 // pred_check_branch
      %14 = sbr.rel (0) target = $region9
    $region8: #{yuzhao_forward.7} parent=1 // pred_region
      _
    $region9: #{yuzhao_forward.7} parent=1 // pred_fallthru
      _
    // Predicated region
    $region10: #{yuzhao_forward.7} parent=1 // pred_check
      _
    $region11: #{yuzhao_forward.7} parent=1 // pred_check_branch
      %16 = sbr.rel (0) target = $region13
    $region12: #{yuzhao_forward.7} parent=1 // pred_region
      _
    $region13: #{yuzhao_forward.7} parent=1 // pred_fallthru
      _
    // Predicated region
    $region14: #{yuzhao_forward.7} parent=1 // pred_check
      _
    $region15: #{yuzhao_forward.7} parent=1 // pred_check_branch
      %18 = sbr.rel (0) target = $region17
    $region16: #{yuzhao_forward.7} parent=1 // pred_region
      _
    $region17: #{yuzhao_forward.7} parent=1 // pred_fallthru
      _
    // Predicated region
    $region18: #{yuzhao_forward.7} parent=1 // pred_check
      _
    $region19: #{yuzhao_forward.7} parent=1 // pred_check_branch
      %20 = sbr.rel (0) target = $region21
    $region20: #{yuzhao_forward.7} parent=1 // pred_region
      _
    $region21: #{yuzhao_forward.7} parent=1 // pred_fallthru
      _
    %v22 = vld [vmem:[%s0] sm:$0xff]
    %v23 = vld [vmem:[%s1] sm:$0xf]
    %v24 = vld [vmem:[%s1 + $0x4] sm:$0xf]
    %v25 = vld [vmem:[%s1 + $0x8] sm:$0xf]
    %v26 = vld [vmem:[%s1 + $0xc] sm:$0xf]
    %v27 = vld [vmem:[%s1 + $0x10] sm:$0xf]
    %v28 = vld [vmem:[%s1 + $0x14] sm:$0xf]
    %v29 = vld [vmem:[%s1 + $0x18] sm:$0xf]
    %v30 = vld [vmem:[%s1 + $0x1c] sm:$0xf]
    %v31 = vld [vmem:[%s1 + $0x20] sm:$0xf]
    %v32 = vld [vmem:[%s1 + $0x24] sm:$0xf]
    %v33 = vld [vmem:[%s1 + $0x28] sm:$0xf]
    %v34 = vld [vmem:[%s1 + $0x2c] sm:$0xf]
    %v35 = vld [vmem:[%s1 + $0x30] sm:$0xf]
    %v36 = vld [vmem:[%s1 + $0x34] sm:$0xf]
    %v37 = vld [vmem:[%s1 + $0x38] sm:$0xf]
    %v38 = vld [vmem:[%s1 + $0x3c] sm:$0xf]
    %v39 = vld [vmem:[%s1 + $0x40] sm:$0xf]
    %v40 = vld [vmem:[%s1 + $0x44] sm:$0xf]
    %v41 = vld [vmem:[%s1 + $0x48] sm:$0xf]
    %v42 = vld [vmem:[%s1 + $0x4c] sm:$0xf]
    %v43 = vld [vmem:[%s1 + $0x50] sm:$0xf]
    %v44 = vld [vmem:[%s1 + $0x54] sm:$0xf]
    %v45 = vld [vmem:[%s1 + $0x58] sm:$0xf]
    %v46 = vld [vmem:[%s1 + $0x5c] sm:$0xf]
    %v47 = vld [vmem:[%s1 + $0x60] sm:$0xf]
    %v48 = vld [vmem:[%s1 + $0x64] sm:$0xf]
    %v49 = vld [vmem:[%s1 + $0x68] sm:$0xf]
    %v50 = vld [vmem:[%s1 + $0x6c] sm:$0xf]
    %v51 = vld [vmem:[%s1 + $0x70] sm:$0xf]
    %v52 = vld [vmem:[%s1 + $0x74] sm:$0xf]
    %v53 = vld [vmem:[%s1 + $0x78] sm:$0xf]
    %v54 = vld [vmem:[%s1 + $0x7c] sm:$0xf]
    %v55 = vld [vmem:[%s1 + $0x80] sm:$0xf]
    %v56 = vld [vmem:[%s1 + $0x84] sm:$0xf]
    %v57 = vld [vmem:[%s1 + $0x88] sm:$0xf]
    %v58 = vld [vmem:[%s1 + $0x8c] sm:$0xf]
    %v59 = vld [vmem:[%s1 + $0x90] sm:$0xf]
    %v60 = vld [vmem:[%s1 + $0x94] sm:$0xf]
    %v61 = vld [vmem:[%s1 + $0x98] sm:$0xf]
    %v62 = vld [vmem:[%s1 + $0x9c] sm:$0xf]
    %v63 = vld [vmem:[%s1 + $0xa0] sm:$0xf]
    %v64 = vld [vmem:[%s1 + $0xa4] sm:$0xf]
    %v65 = vld [vmem:[%s1 + $0xa8] sm:$0xf]
    %v66 = vld [vmem:[%s1 + $0xac] sm:$0xf]
    %v67 = vld [vmem:[%s1 + $0xb0] sm:$0xf]
    %v68 = vld [vmem:[%s1 + $0xb4] sm:$0xf]
    %v69 = vld [vmem:[%s1 + $0xb8] sm:$0xf]
    %v70 = vld [vmem:[%s1 + $0xbc] sm:$0xf]
    %v71 = vld [vmem:[%s1 + $0xc0] sm:$0xf]
    %v72 = vld [vmem:[%s1 + $0xc4] sm:$0xf]
    %v73 = vld [vmem:[%s1 + $0xc8] sm:$0xf]
    %v74 = vld [vmem:[%s1 + $0xcc] sm:$0xf]
    %v75 = vld [vmem:[%s1 + $0xd0] sm:$0xf]
    %v76 = vld [vmem:[%s1 + $0xd4] sm:$0xf]
    %v77 = vld [vmem:[%s1 + $0xd8] sm:$0xf]
    %v78 = vld [vmem:[%s1 + $0xdc] sm:$0xf]
    %v79 = vld [vmem:[%s1 + $0xe0] sm:$0xf]
    %v80 = vld [vmem:[%s1 + $0xe4] sm:$0xf]
    %v81 = vld [vmem:[%s1 + $0xe8] sm:$0xf]
    %v82 = vld [vmem:[%s1 + $0xec] sm:$0xf]
    %v83 = vld [vmem:[%s1 + $0xf0] sm:$0xf]
    %v84 = vld [vmem:[%s1 + $0xf4] sm:$0xf]
    %v85 = vld [vmem:[%s1 + $0xf8] sm:$0xf]
    %v86 = vld [vmem:[%s1 + $0xfc] sm:$0xf]
    %v87 = vld [vmem:[%s1 + $0x100] sm:$0xf]
    %v88 = vld [vmem:[%s1 + $0x104] sm:$0xf]
    %v89 = vld [vmem:[%s1 + $0x108] sm:$0xf]
    %v90 = vld [vmem:[%s1 + $0x10c] sm:$0xf]
    %v91 = vld [vmem:[%s1 + $0x110] sm:$0xf]
    %v92 = vld [vmem:[%s1 + $0x114] sm:$0xf]
    %v93 = vld [vmem:[%s1 + $0x118] sm:$0xf]
    %v94 = vld [vmem:[%s1 + $0x11c] sm:$0xf]
    %v95 = vld [vmem:[%s1 + $0x120] sm:$0xf]
    %v96 = vld [vmem:[%s1 + $0x124] sm:$0xf]
    %v97 = vld [vmem:[%s1 + $0x128] sm:$0xf]
    %v98 = vld [vmem:[%s1 + $0x12c] sm:$0xf]
    %v99 = vld [vmem:[%s1 + $0x130] sm:$0xf]
    %v100 = vld [vmem:[%s1 + $0x134] sm:$0xf]
    %v101 = vld [vmem:[%s1 + $0x138] sm:$0xf]
    %v102 = vld [vmem:[%s1 + $0x13c] sm:$0xf]
    %v103 = vld [vmem:[%s1 + $0x140] sm:$0xf]
    %v104 = vld [vmem:[%s1 + $0x144] sm:$0xf]
    %v105 = vld [vmem:[%s1 + $0x148] sm:$0xf]
    %v106 = vld [vmem:[%s1 + $0x14c] sm:$0xf]
    %v107 = vld [vmem:[%s1 + $0x150] sm:$0xf]
    %v108 = vld [vmem:[%s1 + $0x154] sm:$0xf]
    %v109 = vld [vmem:[%s1 + $0x158] sm:$0xf]
    %v110 = vld [vmem:[%s1 + $0x15c] sm:$0xf]
    %v111 = vld [vmem:[%s1 + $0x160] sm:$0xf]
    %v112 = vld [vmem:[%s1 + $0x164] sm:$0xf]
    %v113 = vld [vmem:[%s1 + $0x168] sm:$0xf]
    %v114 = vld [vmem:[%s1 + $0x16c] sm:$0xf]
    %v115 = vld [vmem:[%s1 + $0x170] sm:$0xf]
    %v116 = vld [vmem:[%s1 + $0x174] sm:$0xf]
    %v117 = vld [vmem:[%s1 + $0x178] sm:$0xf]
    %v118 = vld [vmem:[%s1 + $0x17c] sm:$0xf]
    %v119 = vld [vmem:[%s1 + $0x180] sm:$0xf]
    %v120 = vld [vmem:[%s1 + $0x184] sm:$0xf]
    %v121 = vld [vmem:[%s1 + $0x188] sm:$0xf]
    %v122 = vld [vmem:[%s1 + $0x18c] sm:$0xf]
    %v123 = vld [vmem:[%s1 + $0x190] sm:$0xf]
    %v124 = vld [vmem:[%s1 + $0x194] sm:$0xf]
    %v125 = vld [vmem:[%s1 + $0x198] sm:$0xf]
    %v126 = vld [vmem:[%s1 + $0x19c] sm:$0xf]
    %v127 = vld [vmem:[%s1 + $0x1a0] sm:$0xf]
    %v128 = vld [vmem:[%s1 + $0x1a4] sm:$0xf]
    %v129 = vld [vmem:[%s1 + $0x1a8] sm:$0xf]
    %v130 = vld [vmem:[%s1 + $0x1ac] sm:$0xf]
    %v131 = vld [vmem:[%s1 + $0x1b0] sm:$0xf]
    %v132 = vld [vmem:[%s1 + $0x1b4] sm:$0xf]
    %v133 = vld [vmem:[%s1 + $0x1b8] sm:$0xf]
    %v134 = vld [vmem:[%s1 + $0x1bc] sm:$0xf]
    %v135 = vld [vmem:[%s1 + $0x1c0] sm:$0xf]
    %v136 = vld [vmem:[%s1 + $0x1c4] sm:$0xf]
    %v137 = vld [vmem:[%s1 + $0x1c8] sm:$0xf]
    %v138 = vld [vmem:[%s1 + $0x1cc] sm:$0xf]
    %v139 = vld [vmem:[%s1 + $0x1d0] sm:$0xf]
    %v140 = vld [vmem:[%s1 + $0x1d4] sm:$0xf]
    %v141 = vld [vmem:[%s1 + $0x1d8] sm:$0xf]
    %v142 = vld [vmem:[%s1 + $0x1dc] sm:$0xf]
    %v143 = vld [vmem:[%s1 + $0x1e0] sm:$0xf]
    %v144 = vld [vmem:[%s1 + $0x1e4] sm:$0xf]
    %v145 = vld [vmem:[%s1 + $0x1e8] sm:$0xf]
    %v146 = vld [vmem:[%s1 + $0x1ec] sm:$0xf]
    %v147 = vld [vmem:[%s1 + $0x1f0] sm:$0xf]
    %v148 = vld [vmem:[%s1 + $0x1f4] sm:$0xf]
    %v149 = vld [vmem:[%s1 + $0x1f8] sm:$0xf]
    %v150 = vld [vmem:[%s1 + $0x1fc] sm:$0xf]
    %v151 = vld [vmem:[%s2] sm:$0x1]
    %v153 = vlaneseq
    %v154 = vshrl.u32 %v153, 7
    %v155 = vsub.s32 0, %v154
    %v156 = vrot.slane %v151, %v155
    %v159 = vcombine.high %v22, %v22
    %v161 = vunpack.c.l.s4 1966171168
    %v162 = vunpack.c.0.s8 %v161
    %v163 = vlaneseq
    %v164 = vshrl.u32 %v163, 7
    %v165 = vsub.s32 %v162, %v164
    %v166 = vrot.slane %v22, %v165
    %v168 = vunpack.c.l.s4 1966171168
    %v169 = vunpack.c.0.s8 %v168
    %v170 = vlaneseq
    %v171 = vshrl.u32 %v170, 7
    %v172 = vsub.s32 %v169, %v171
    %v173 = vrot.slane %v159, %v172
    %v174 = vcombine.high %v166, %v166
    %v175 = vcombine.high %v173, %v173
    %v177 = vunpack.c.l.s4 1966171168
    %v178 = vunpack.c.0.s8 %v177
    %v179 = vlaneseq
    %v180 = vshrl.u32 %v179, 7
    %v181 = vsub.s32 %v178, %v180
    %v182 = vrot.slane %v166, %v181
    %v184 = vunpack.c.l.s4 1966171168
    %v185 = vunpack.c.0.s8 %v184
    %v186 = vlaneseq
    %v187 = vshrl.u32 %v186, 7
    %v188 = vsub.s32 %v185, %v187
    %v189 = vrot.slane %v173, %v188
    %v191 = vunpack.c.l.s4 1966171168
    %v192 = vunpack.c.0.s8 %v191
    %v193 = vlaneseq
    %v194 = vshrl.u32 %v193, 7
    %v195 = vsub.s32 %v192, %v194
    %v196 = vrot.slane %v174, %v195
    %v198 = vunpack.c.l.s4 1966171168
    %v199 = vunpack.c.0.s8 %v198
    %v200 = vlaneseq
    %v201 = vshrl.u32 %v200, 7
    %v202 = vsub.s32 %v199, %v201
    %v203 = vrot.slane %v175, %v202
    %v204 = vcombine.high %v182, %v182
    %v205 = vcombine.high %v189, %v189
    %v206 = vcombine.high %v196, %v196
    %v207 = vcombine.high %v203, %v203
    %v344 = vunpack.c.l.b16 %v23
    %v345 = vunpack.c.l.b16 %v24
    %v346 = vunpack.c.l.b16 %v25
    %v347 = vunpack.c.l.b16 %v26
    %v348 = vunpack.c.l.b16 %v27
    %v349 = vunpack.c.l.b16 %v28
    %v350 = vunpack.c.l.b16 %v29
    %v351 = vunpack.c.l.b16 %v30
    %v352 = vunpack.c.l.b16 %v31
    %v353 = vunpack.c.l.b16 %v32
    %v354 = vunpack.c.l.b16 %v33
    %v355 = vunpack.c.l.b16 %v34
    %v356 = vunpack.c.l.b16 %v35
    %v357 = vunpack.c.l.b16 %v36
    %v358 = vunpack.c.l.b16 %v37
    %v359 = vunpack.c.l.b16 %v38
    %v360 = vunpack.c.l.b16 %v39
    %v361 = vunpack.c.l.b16 %v40
    %v362 = vunpack.c.l.b16 %v41
    %v363 = vunpack.c.l.b16 %v42
    %v364 = vunpack.c.l.b16 %v43
    %v365 = vunpack.c.l.b16 %v44
    %v366 = vunpack.c.l.b16 %v45
    %v367 = vunpack.c.l.b16 %v46
    %v368 = vunpack.c.l.b16 %v47
    %v369 = vunpack.c.l.b16 %v48
    %v370 = vunpack.c.l.b16 %v49
    %v371 = vunpack.c.l.b16 %v50
    %v372 = vunpack.c.l.b16 %v51
    %v373 = vunpack.c.l.b16 %v52
    %v374 = vunpack.c.l.b16 %v53
    %v375 = vunpack.c.l.b16 %v54
    %v376 = vunpack.c.l.b16 %v55
    %v377 = vunpack.c.l.b16 %v56
    %v378 = vunpack.c.l.b16 %v57
    %v379 = vunpack.c.l.b16 %v58
    %v380 = vunpack.c.l.b16 %v59
    %v381 = vunpack.c.l.b16 %v60
    %v382 = vunpack.c.l.b16 %v61
    %v383 = vunpack.c.l.b16 %v62
    %v384 = vunpack.c.l.b16 %v63
    %v385 = vunpack.c.l.b16 %v64
    %v386 = vunpack.c.l.b16 %v65
    %v387 = vunpack.c.l.b16 %v66
    %v388 = vunpack.c.l.b16 %v67
    %v389 = vunpack.c.l.b16 %v68
    %v390 = vunpack.c.l.b16 %v69
    %v391 = vunpack.c.l.b16 %v70
    %v392 = vunpack.c.l.b16 %v71
    %v393 = vunpack.c.l.b16 %v72
    %v394 = vunpack.c.l.b16 %v73
    %v395 = vunpack.c.l.b16 %v74
    %v396 = vunpack.c.l.b16 %v75
    %v397 = vunpack.c.l.b16 %v76
    %v398 = vunpack.c.l.b16 %v77
    %v399 = vunpack.c.l.b16 %v78
    %v400 = vunpack.c.l.b16 %v79
    %v401 = vunpack.c.l.b16 %v80
    %v402 = vunpack.c.l.b16 %v81
    %v403 = vunpack.c.l.b16 %v82
    %v404 = vunpack.c.l.b16 %v83
    %v405 = vunpack.c.l.b16 %v84
    %v406 = vunpack.c.l.b16 %v85
    %v407 = vunpack.c.l.b16 %v86
    %v408 = vunpack.c.l.b16 %v87
    %v409 = vunpack.c.l.b16 %v88
    %v410 = vunpack.c.l.b16 %v89
    %v411 = vunpack.c.l.b16 %v90
    %v412 = vunpack.c.l.b16 %v91
    %v413 = vunpack.c.l.b16 %v92
    %v414 = vunpack.c.l.b16 %v93
    %v415 = vunpack.c.l.b16 %v94
    %v416 = vunpack.c.l.b16 %v95
    %v417 = vunpack.c.l.b16 %v96
    %v418 = vunpack.c.l.b16 %v97
    %v419 = vunpack.c.l.b16 %v98
    %v420 = vunpack.c.l.b16 %v99
    %v421 = vunpack.c.l.b16 %v100
    %v422 = vunpack.c.l.b16 %v101
    %v423 = vunpack.c.l.b16 %v102
    %v424 = vunpack.c.l.b16 %v103
    %v425 = vunpack.c.l.b16 %v104
    %v426 = vunpack.c.l.b16 %v105
    %v427 = vunpack.c.l.b16 %v106
    %v428 = vunpack.c.l.b16 %v107
    %v429 = vunpack.c.l.b16 %v108
    %v430 = vunpack.c.l.b16 %v109
    %v431 = vunpack.c.l.b16 %v110
    %v432 = vunpack.c.l.b16 %v111
    %v433 = vunpack.c.l.b16 %v112
    %v434 = vunpack.c.l.b16 %v113
    %v435 = vunpack.c.l.b16 %v114
    %v436 = vunpack.c.l.b16 %v115
    %v437 = vunpack.c.l.b16 %v116
    %v438 = vunpack.c.l.b16 %v117
    %v439 = vunpack.c.l.b16 %v118
    %v440 = vunpack.c.l.b16 %v119
    %v441 = vunpack.c.l.b16 %v120
    %v442 = vunpack.c.l.b16 %v121
    %v443 = vunpack.c.l.b16 %v122
    %v444 = vunpack.c.l.b16 %v123
    %v445 = vunpack.c.l.b16 %v124
    %v446 = vunpack.c.l.b16 %v125
    %v447 = vunpack.c.l.b16 %v126
    %v448 = vunpack.c.l.b16 %v127
    %v449 = vunpack.c.l.b16 %v128
    %v450 = vunpack.c.l.b16 %v129
    %v451 = vunpack.c.l.b16 %v130
    %v452 = vunpack.c.l.b16 %v131
    %v453 = vunpack.c.l.b16 %v132
    %v454 = vunpack.c.l.b16 %v133
    %v455 = vunpack.c.l.b16 %v134
    %v456 = vunpack.c.l.b16 %v135
    %v457 = vunpack.c.l.b16 %v136
    %v458 = vunpack.c.l.b16 %v137
    %v459 = vunpack.c.l.b16 %v138
    %v460 = vunpack.c.l.b16 %v139
    %v461 = vunpack.c.l.b16 %v140
    %v462 = vunpack.c.l.b16 %v141
    %v463 = vunpack.c.l.b16 %v142
    %v464 = vunpack.c.l.b16 %v143
    %v465 = vunpack.c.l.b16 %v144
    %v466 = vunpack.c.l.b16 %v145
    %v467 = vunpack.c.l.b16 %v146
    %v468 = vunpack.c.l.b16 %v147
    %v469 = vunpack.c.l.b16 %v148
    %v470 = vunpack.c.l.b16 %v149
    %v471 = vunpack.c.l.b16 %v150
    %v472 = vpack.c.b16 %v345, %v344
    %v473 = vpack.c.b16 %v347, %v346
    %v474 = vpack.c.b16 %v349, %v348
    %v475 = vpack.c.b16 %v351, %v350
    %v476 = vpack.c.b16 %v353, %v352
    %v477 = vpack.c.b16 %v355, %v354
    %v478 = vpack.c.b16 %v357, %v356
    %v479 = vpack.c.b16 %v359, %v358
    %v480 = vpack.c.b16 %v361, %v360
    %v481 = vpack.c.b16 %v363, %v362
    %v482 = vpack.c.b16 %v365, %v364
    %v483 = vpack.c.b16 %v367, %v366
    %v484 = vpack.c.b16 %v369, %v368
    %v485 = vpack.c.b16 %v371, %v370
    %v486 = vpack.c.b16 %v373, %v372
    %v487 = vpack.c.b16 %v375, %v374
    %v488 = vpack.c.b16 %v377, %v376
    %v489 = vpack.c.b16 %v379, %v378
    %v490 = vpack.c.b16 %v381, %v380
    %v491 = vpack.c.b16 %v383, %v382
    %v492 = vpack.c.b16 %v385, %v384
    %v493 = vpack.c.b16 %v387, %v386
    %v494 = vpack.c.b16 %v389, %v388
    %v495 = vpack.c.b16 %v391, %v390
    %v496 = vpack.c.b16 %v393, %v392
    %v497 = vpack.c.b16 %v395, %v394
    %v498 = vpack.c.b16 %v397, %v396
    %v499 = vpack.c.b16 %v399, %v398
    %v500 = vpack.c.b16 %v401, %v400
    %v501 = vpack.c.b16 %v403, %v402
    %v502 = vpack.c.b16 %v405, %v404
    %v503 = vpack.c.b16 %v407, %v406
    %v504 = vpack.c.b16 %v409, %v408
    %v505 = vpack.c.b16 %v411, %v410
    %v506 = vpack.c.b16 %v413, %v412
    %v507 = vpack.c.b16 %v415, %v414
    %v508 = vpack.c.b16 %v417, %v416
    %v509 = vpack.c.b16 %v419, %v418
    %v510 = vpack.c.b16 %v421, %v420
    %v511 = vpack.c.b16 %v423, %v422
    %v512 = vpack.c.b16 %v425, %v424
    %v513 = vpack.c.b16 %v427, %v426
    %v514 = vpack.c.b16 %v429, %v428
    %v515 = vpack.c.b16 %v431, %v430
    %v516 = vpack.c.b16 %v433, %v432
    %v517 = vpack.c.b16 %v435, %v434
    %v518 = vpack.c.b16 %v437, %v436
    %v519 = vpack.c.b16 %v439, %v438
    %v520 = vpack.c.b16 %v441, %v440
    %v521 = vpack.c.b16 %v443, %v442
    %v522 = vpack.c.b16 %v445, %v444
    %v523 = vpack.c.b16 %v447, %v446
    %v524 = vpack.c.b16 %v449, %v448
    %v525 = vpack.c.b16 %v451, %v450
    %v526 = vpack.c.b16 %v453, %v452
    %v527 = vpack.c.b16 %v455, %v454
    %v528 = vpack.c.b16 %v457, %v456
    %v529 = vpack.c.b16 %v459, %v458
    %v530 = vpack.c.b16 %v461, %v460
    %v531 = vpack.c.b16 %v463, %v462
    %v532 = vpack.c.b16 %v465, %v464
    %v533 = vpack.c.b16 %v467, %v466
    %v534 = vpack.c.b16 %v469, %v468
    %v535 = vpack.c.b16 %v471, %v470
    %600 = vmatprep.subr.bf16.mxu0 0
    %601 = vmatpush1.bf16.msra.mxu0 %v472
    %602 = vmatprep.subr.bf16.mxu0 0
    %603 = vmatpush1.bf16.msra.mxu0 %v473
    %604 = vmatprep.subr.bf16.mxu0 0
    %605 = vmatpush1.bf16.msra.mxu0 %v474
    %606 = vmatprep.subr.bf16.mxu0 0
    %607 = vmatpush1.bf16.msra.mxu0 %v475
    %608 = vmatprep.subr.bf16.mxu0 0
    %609 = vmatpush1.bf16.msra.mxu0 %v476
    %610 = vmatprep.subr.bf16.mxu0 0
    %611 = vmatpush1.bf16.msra.mxu0 %v477
    %612 = vmatprep.subr.bf16.mxu0 0
    %613 = vmatpush1.bf16.msra.mxu0 %v478
    %614 = vmatprep.subr.bf16.mxu0 0
    %615 = vmatpush1.bf16.msra.mxu0 %v479
    %616 = vmatprep.subr.bf16.mxu0 0
    %617 = vmatpush1.bf16.msra.mxu0 %v480
    %618 = vmatprep.subr.bf16.mxu0 0
    %619 = vmatpush1.bf16.msra.mxu0 %v481
    %620 = vmatprep.subr.bf16.mxu0 0
    %621 = vmatpush1.bf16.msra.mxu0 %v482
    %622 = vmatprep.subr.bf16.mxu0 0
    %623 = vmatpush1.bf16.msra.mxu0 %v483
    %624 = vmatprep.subr.bf16.mxu0 0
    %625 = vmatpush1.bf16.msra.mxu0 %v484
    %626 = vmatprep.subr.bf16.mxu0 0
    %627 = vmatpush1.bf16.msra.mxu0 %v485
    %628 = vmatprep.subr.bf16.mxu0 0
    %629 = vmatpush1.bf16.msra.mxu0 %v486
    %630 = vmatprep.subr.bf16.mxu0 0
    %631 = vmatpush1.bf16.msra.mxu0 %v487
    %632 = vmatprep.mubr.bf16.mxu0 %v196
    %633 = vmatmul.mubr.bf16.gmra.mrb[0].mxu0 %v182
    %v634 = vpop.f32.mrb[0].mxu0
    %v635 = vadd.f32 %v156, %v634
    %v636 = vpop.f32.mrb[0].mxu0
    %v637 = vpop.f32.mrb[0].mxu0
    %v638 = vpop.f32.mrb[0].mxu0
    %639 = vdwg.mxu0
    %640 = vmatprep.subr.bf16.mxu0 0
    %641 = vmatpush1.bf16.msra.mxu0 %v488
    %642 = vmatprep.subr.bf16.mxu0 0
    %643 = vmatpush1.bf16.msra.mxu0 %v489
    %644 = vmatprep.subr.bf16.mxu0 0
    %645 = vmatpush1.bf16.msra.mxu0 %v490
    %646 = vmatprep.subr.bf16.mxu0 0
    %647 = vmatpush1.bf16.msra.mxu0 %v491
    %648 = vmatprep.subr.bf16.mxu0 0
    %649 = vmatpush1.bf16.msra.mxu0 %v492
    %650 = vmatprep.subr.bf16.mxu0 0
    %651 = vmatpush1.bf16.msra.mxu0 %v493
    %652 = vmatprep.subr.bf16.mxu0 0
    %653 = vmatpush1.bf16.msra.mxu0 %v494
    %654 = vmatprep.subr.bf16.mxu0 0
    %655 = vmatpush1.bf16.msra.mxu0 %v495
    %656 = vmatprep.subr.bf16.mxu0 0
    %657 = vmatpush1.bf16.msra.mxu0 %v496
    %658 = vmatprep.subr.bf16.mxu0 0
    %659 = vmatpush1.bf16.msra.mxu0 %v497
    %660 = vmatprep.subr.bf16.mxu0 0
    %661 = vmatpush1.bf16.msra.mxu0 %v498
    %662 = vmatprep.subr.bf16.mxu0 0
    %663 = vmatpush1.bf16.msra.mxu0 %v499
    %664 = vmatprep.subr.bf16.mxu0 0
    %665 = vmatpush1.bf16.msra.mxu0 %v500
    %666 = vmatprep.subr.bf16.mxu0 0
    %667 = vmatpush1.bf16.msra.mxu0 %v501
    %668 = vmatprep.subr.bf16.mxu0 0
    %669 = vmatpush1.bf16.msra.mxu0 %v502
    %670 = vmatprep.subr.bf16.mxu0 0
    %671 = vmatpush1.bf16.msra.mxu0 %v503
    %672 = vmatprep.mubr.bf16.mxu0 %v206
    %673 = vmatmul.mubr.bf16.gmra.mrb[0].mxu0 %v204
    %v674 = vpop.f32.mrb[0].mxu0
    %v675 = vadd.f32 %v635, %v674
    %v676 = vpop.f32.mrb[0].mxu0
    %v677 = vpop.f32.mrb[0].mxu0
    %v678 = vpop.f32.mrb[0].mxu0
    %679 = vdwg.mxu0
    %680 = vmatprep.subr.bf16.mxu0 0
    %681 = vmatpush1.bf16.msra.mxu0 %v504
    %682 = vmatprep.subr.bf16.mxu0 0
    %683 = vmatpush1.bf16.msra.mxu0 %v505
    %684 = vmatprep.subr.bf16.mxu0 0
    %685 = vmatpush1.bf16.msra.mxu0 %v506
    %686 = vmatprep.subr.bf16.mxu0 0
    %687 = vmatpush1.bf16.msra.mxu0 %v507
    %688 = vmatprep.subr.bf16.mxu0 0
    %689 = vmatpush1.bf16.msra.mxu0 %v508
    %690 = vmatprep.subr.bf16.mxu0 0
    %691 = vmatpush1.bf16.msra.mxu0 %v509
    %692 = vmatprep.subr.bf16.mxu0 0
    %693 = vmatpush1.bf16.msra.mxu0 %v510
    %694 = vmatprep.subr.bf16.mxu0 0
    %695 = vmatpush1.bf16.msra.mxu0 %v511
    %696 = vmatprep.subr.bf16.mxu0 0
    %697 = vmatpush1.bf16.msra.mxu0 %v512
    %698 = vmatprep.subr.bf16.mxu0 0
    %699 = vmatpush1.bf16.msra.mxu0 %v513
    %700 = vmatprep.subr.bf16.mxu0 0
    %701 = vmatpush1.bf16.msra.mxu0 %v514
    %702 = vmatprep.subr.bf16.mxu0 0
    %703 = vmatpush1.bf16.msra.mxu0 %v515
    %704 = vmatprep.subr.bf16.mxu0 0
    %705 = vmatpush1.bf16.msra.mxu0 %v516
    %706 = vmatprep.subr.bf16.mxu0 0
    %707 = vmatpush1.bf16.msra.mxu0 %v517
    %708 = vmatprep.subr.bf16.mxu0 0
    %709 = vmatpush1.bf16.msra.mxu0 %v518
    %710 = vmatprep.subr.bf16.mxu0 0
    %711 = vmatpush1.bf16.msra.mxu0 %v519
    %712 = vmatprep.mubr.bf16.mxu0 %v203
    %713 = vmatmul.mubr.bf16.gmra.mrb[0].mxu0 %v189
    %v714 = vpop.f32.mrb[0].mxu0
    %v715 = vadd.f32 %v675, %v714
    %v716 = vpop.f32.mrb[0].mxu0
    %v717 = vpop.f32.mrb[0].mxu0
    %v718 = vpop.f32.mrb[0].mxu0
    %719 = vdwg.mxu0
    %720 = vmatprep.subr.bf16.mxu0 0
    %721 = vmatpush1.bf16.msra.mxu0 %v520
    %722 = vmatprep.subr.bf16.mxu0 0
    %723 = vmatpush1.bf16.msra.mxu0 %v521
    %724 = vmatprep.subr.bf16.mxu0 0
    %725 = vmatpush1.bf16.msra.mxu0 %v522
    %726 = vmatprep.subr.bf16.mxu0 0
    %727 = vmatpush1.bf16.msra.mxu0 %v523
    %728 = vmatprep.subr.bf16.mxu0 0
    %729 = vmatpush1.bf16.msra.mxu0 %v524
    %730 = vmatprep.subr.bf16.mxu0 0
    %731 = vmatpush1.bf16.msra.mxu0 %v525
    %732 = vmatprep.subr.bf16.mxu0 0
    %733 = vmatpush1.bf16.msra.mxu0 %v526
    %734 = vmatprep.subr.bf16.mxu0 0
    %735 = vmatpush1.bf16.msra.mxu0 %v527
    %736 = vmatprep.subr.bf16.mxu0 0
    %737 = vmatpush1.bf16.msra.mxu0 %v528
    %738 = vmatprep.subr.bf16.mxu0 0
    %739 = vmatpush1.bf16.msra.mxu0 %v529
    %740 = vmatprep.subr.bf16.mxu0 0
    %741 = vmatpush1.bf16.msra.mxu0 %v530
    %742 = vmatprep.subr.bf16.mxu0 0
    %743 = vmatpush1.bf16.msra.mxu0 %v531
    %744 = vmatprep.subr.bf16.mxu0 0
    %745 = vmatpush1.bf16.msra.mxu0 %v532
    %746 = vmatprep.subr.bf16.mxu0 0
    %747 = vmatpush1.bf16.msra.mxu0 %v533
    %748 = vmatprep.subr.bf16.mxu0 0
    %749 = vmatpush1.bf16.msra.mxu0 %v534
    %750 = vmatprep.subr.bf16.mxu0 0
    %751 = vmatpush1.bf16.msra.mxu0 %v535
    %752 = vmatprep.mubr.bf16.mxu0 %v207
    %753 = vmatmul.mubr.bf16.gmra.mrb[0].mxu0 %v205
    %v754 = vpop.f32.mrb[0].mxu0
    %v755 = vadd.f32 %v715, %v754
    %v756 = vpop.f32.mrb[0].mxu0
    %v757 = vpop.f32.mrb[0].mxu0
    %v758 = vpop.f32.mrb[0].mxu0
    %759 = vdwg.mxu0
    %v760 = vld [vmem:[%s3] sm:$0xff]
    %v761 = vld [vmem:[%s3 + $0x8] sm:$0xff]
    %v762 = vld [vmem:[%s3 + $0x10] sm:$0xff]
    %v763 = vld [vmem:[%s3 + $0x18] sm:$0xff]
    %v764 = vld [vmem:[%s3 + $0x20] sm:$0xff]
    %v765 = vld [vmem:[%s3 + $0x28] sm:$0xff]
    %v766 = vld [vmem:[%s3 + $0x30] sm:$0xff]
    %v767 = vld [vmem:[%s3 + $0x38] sm:$0xff]
    %v768 = vld [vmem:[%s4] sm:$0x1]
    %v770 = vlaneseq
    %v771 = vshrl.u32 %v770, 7
    %v772 = vsub.s32 0, %v771
    %v773 = vrot.slane %v768, %v772
    %vm775 = vcmask 523264
    %v777 = vsel %vm775, %v755, 0
    %779 = vmatprep.subr.mxu0 0.0
    %780 = vmatpush1.msra.mxu0 %v760
    %781 = vmatprep.subr.mxu0 0.0
    %782 = vmatpush1.msra.mxu0 %v761
    %783 = vmatprep.subr.mxu0 0.0
    %784 = vmatpush1.msra.mxu0 %v762
    %785 = vmatprep.subr.mxu0 0.0
    %786 = vmatpush1.msra.mxu0 %v763
    %787 = vmatprep.subr.mxu0 0.0
    %788 = vmatpush1.msra.mxu0 %v764
    %789 = vmatprep.subr.mxu0 0.0
    %790 = vmatpush1.msra.mxu0 %v765
    %791 = vmatprep.subr.mxu0 0.0
    %792 = vmatpush1.msra.mxu0 %v766
    %793 = vmatprep.subr.mxu0 0.0
    %794 = vmatpush1.msra.mxu0 %v767
    %795 = vmatprep.subr.mxu0 0.0
    %796 = vmatpush1.msra.mxu0 0.0
    %797 = vmatprep.subr.mxu0 0.0
    %798 = vmatpush1.msra.mxu0 0.0
    %799 = vmatprep.subr.mxu0 0.0
    %800 = vmatpush1.msra.mxu0 0.0
    %801 = vmatprep.subr.mxu0 0.0
    %802 = vmatpush1.msra.mxu0 0.0
    %803 = vmatprep.subr.mxu0 0.0
    %804 = vmatpush1.msra.mxu0 0.0
    %805 = vmatprep.subr.mxu0 0.0
    %806 = vmatpush1.msra.mxu0 0.0
    %807 = vmatprep.subr.mxu0 0.0
    %808 = vmatpush1.msra.mxu0 0.0
    %809 = vmatprep.subr.mxu0 0.0
    %810 = vmatpush1.msra.mxu0 0.0
    %811 = vmatprep.subr.mxu0 0.0
    %812 = vmatpush1.msra.mxu0 0.0
    %813 = vmatprep.subr.mxu0 0.0
    %814 = vmatpush1.msra.mxu0 0.0
    %815 = vmatprep.subr.mxu0 0.0
    %816 = vmatpush1.msra.mxu0 0.0
    %817 = vmatprep.subr.mxu0 0.0
    %818 = vmatpush1.msra.mxu0 0.0
    %819 = vmatprep.subr.mxu0 0.0
    %820 = vmatpush1.msra.mxu0 0.0
    %821 = vmatprep.subr.mxu0 0.0
    %822 = vmatpush1.msra.mxu0 0.0
    %823 = vmatprep.subr.mxu0 0.0
    %824 = vmatpush1.msra.mxu0 0.0
    %825 = vmatprep.subr.mxu0 0.0
    %826 = vmatpush1.msra.mxu0 0.0
    %827 = vmatprep.subr.mxu0 0.0
    %828 = vmatpush1.msra.mxu0 0.0
    %829 = vmatprep.subr.mxu0 0.0
    %830 = vmatpush1.msra.mxu0 0.0
    %831 = vmatprep.subr.mxu0 0.0
    %832 = vmatpush1.msra.mxu0 0.0
    %833 = vmatprep.subr.mxu0 0.0
    %834 = vmatpush1.msra.mxu0 0.0
    %835 = vmatprep.subr.mxu0 0.0
    %836 = vmatpush1.msra.mxu0 0.0
    %837 = vmatprep.subr.mxu0 0.0
    %838 = vmatpush1.msra.mxu0 0.0
    %839 = vmatprep.subr.mxu0 0.0
    %840 = vmatpush1.msra.mxu0 0.0
    %841 = vmatprep.subr.mxu0 0.0
    %842 = vmatpush1.msra.mxu0 0.0
    %843 = vmatprep.mubr.f32.mxu0 0.0
    %844 = vmatmul.mubr.f32.gmra.mrb[0].mxu0 %v777
    %v845 = vpop.f32.mrb[0].mxu0
    %v846 = vadd.f32 %v773, %v845
    %v847 = vpop.f32.mrb[0].mxu0
    %848 = vdwg.mxu0
    %vm849 = vcmask 74752
    %850 = vst.msk [vmem:[#allocation2] sm:$0x3] %vm849, %v846
    // Predicated region
    $region22: #{yuzhao_forward.7} parent=1 // pred_check
      _
    $region23: #{yuzhao_forward.7} parent=1 // pred_check_branch
      %852 = sbr.rel (0) target = $region25
    $region24: #{yuzhao_forward.7} parent=1 // pred_region
      %s854 = ssub.s32 32, 32
      %855 = vsyncadd [#allocation3], %s854
      %s857 = sshll.u32 [#allocation2], 4
      %s858 = int_to_ptr.vmem [resolvable:$true] %s857
      %860 = dma.vmem_to_hbm [thread:$0]  %s858, 32, %s5, [#allocation3]
    $region25: #{yuzhao_forward.7} parent=1 // pred_fallthru
      _
    // Predicated region
    $region26: #{yuzhao_forward.7} parent=1 // pred_check
      _
    $region27: #{yuzhao_forward.7} parent=1 // pred_check_branch
      %862 = sbr.rel (0) target = $region29
    $region28: #{yuzhao_forward.7} parent=1 // pred_region
      %863 = dma.done [#allocation3], 32
    $region29: #{yuzhao_forward.7} parent=1 // pred_fallthru
      _
    %864 = vsyncpa [#allocation3], 1

</llo_original>
